<compile_context>
chip_gen: v7x
topology: tpu7x:2x2x1
jax: 0.10.0
libtpu: 0.0.40
codegen_flags: <defaults>
</compile_context>

<pallas_src>
import functools
import math

import jax
import jax.numpy as jnp
from jax import lax
from jax.experimental import pallas as pl
from jax.experimental.pallas import tpu as pltpu


# ------------------------------ fused kernel --------------------------------

def _atloc_fused_kernel(patches_ref, convw_ref, convb_ref, poolT_ref,
                        fcw_ref, fcb_ref,
                        wih_rl_ref, whh_rl_ref, b_rl_ref,
                        p_du_ref, wih_du_ref, whh_du_ref, b_du_ref,
                        h0_rl_ref, c0_rl_ref, h0_du_ref, c0_du_ref,
                        u_ref, wh_ref, bh_ref, o_ref,
                        *, batch, seq_size, feat_size, hidden, droprate):
    f32 = jnp.float32
    gh = 2 * hidden          # one gate block (fw + bw halves)
    gw = 8 * hidden          # all four gates, both directions

    # ---- stand-in backbone conv: lane-dense im2col matmul + ReLU -----------
    feat = jnp.dot(convw_ref[...], patches_ref[...],
                   preferred_element_type=f32)                    # (Cout, B*HW)
    feat = jnp.maximum(feat + convb_ref[...], 0.0)

    # ---- AdaptiveAvgPool2d(1): matmul contracting the pixel (lane) axis ----
    pooled = lax.dot_general(poolT_ref[...], feat,
                             (((1,), (1,)), ((), ())),
                             preferred_element_type=f32)          # (B, Cout)

    # ---- feature_extractor.fc + the F.relu applied in AtLoc.forward --------
    x_feat = jnp.dot(pooled, fcw_ref[...], preferred_element_type=f32) + fcb_ref[...]
    x_feat = jnp.maximum(x_feat, 0.0)                             # (B, feat_dim)

    # ---- merged-direction bidirectional LSTM (fw+bw in one unrolled loop) --
    # xp_steps[t] = x_t @ Wih + b for BOTH directions; columns are ordered
    # (gate, direction, hidden).  Forward columns satisfy (col mod 2H) < H.
    col = lax.broadcasted_iota(jnp.int32, (batch, gw), 1)
    is_fw = (col % gh) < hidden

    def bilstm(xp_steps, h0, c0, whh):
        n = len(xp_steps)
        h, c = h0, c0                                             # (B, 2H) = [fw|bw]
        for t in range(n):                                        # static unroll
            # fw consumes x[t], bw consumes x[n-1-t]; select per column.
            xg = jnp.where(is_fw, xp_steps[t], xp_steps[n - 1 - t])
            gates = xg + jnp.dot(h, whh, preferred_element_type=f32)   # (B, 8H)
            sg = jax.nn.sigmoid(gates)                            # full-vreg nonlin
            th = jnp.tanh(gates)
            c = sg[:, gh:2 * gh] * c + sg[:, 0:gh] * th[:, 2 * gh:3 * gh]
            h = sg[:, 3 * gh:4 * gh] * jnp.tanh(c)
        return h                                                  # (B, 2H) = [fw|bw]

    # lstm_rightleft: seq_size steps over feat_size-wide slices of x_feat.
    # Input projections hoisted out of the recurrence (not on the carry chain).
    wih_rl = wih_rl_ref[...]
    b_rl = b_rl_ref[...]
    xp_rl = [jnp.dot(x_feat[:, s * feat_size:(s + 1) * feat_size], wih_rl,
                     preferred_element_type=f32) + b_rl
             for s in range(seq_size)]
    h_rl = bilstm(xp_rl, h0_rl_ref[...], c0_rl_ref[...], whh_rl_ref[...])

    # lstm_downup: x_rl.transpose(1, 2) realised as a lane permutation matmul.
    x_perm = jnp.dot(x_feat, p_du_ref[...], preferred_element_type=f32)  # (B, feat_dim)
    wih_du = wih_du_ref[...]
    b_du = b_du_ref[...]
    xp_du = [jnp.dot(x_perm[:, t * seq_size:(t + 1) * seq_size], wih_du,
                     preferred_element_type=f32) + b_du
             for t in range(feat_size)]
    h_du = bilstm(xp_du, h0_du_ref[...], c0_du_ref[...], whh_du_ref[...])

    # torch.cat([hlr_fw, hlr_bw, hud_fw, hud_bw], dim=1)
    x_cat = jnp.concatenate([h_rl, h_du], axis=1)                 # (B, feat_dim//2)

    # F.dropout(p=droprate) — AtLoc calls it unconditionally (training=True).
    if droprate > 0.0:
        keep = (u_ref[...] >= droprate).astype(f32)
        x_cat = x_cat * keep * (1.0 / (1.0 - droprate))

    # Fused, zero-padded [fc_xyz | fc_wpqr] head -> lane-dense (B, 128) store.
    o_ref[...] = jnp.dot(x_cat, wh_ref[...], preferred_element_type=f32) + bh_ref[...]


# --------------------------------- model ------------------------------------

class AtLocPallas:
    """AtLoc(lstm=True) forward with a single fused Pallas TPU kernel.

    Scaled-down, structure-preserving shapes:
      feat_dim=256, seq_size=8 -> feat_size=32, hidden_size=32
      (original: 2048 / 32 / 64 / 256), so 4*hidden == feat_dim // 2 as in AtLoc.
    """

    def __init__(self, key, *, in_channels=4, fe_planes=16, feat_dim=256,
                 seq_size=8, hidden_size=32, droprate=0.5):
        assert feat_dim % seq_size == 0
        feat_size = feat_dim // seq_size
        assert 4 * hidden_size == feat_dim // 2
        self.in_channels = in_channels
        self.fe_planes = fe_planes
        self.feat_dim = feat_dim
        self.seq_size = seq_size
        self.feat_size = feat_size
        self.hidden_size = hidden_size
        self.droprate = droprate

        ks = jax.random.split(key, 8)

        def kaiming(k, out_f, in_f):
            return jax.random.normal(k, (out_f, in_f), jnp.float32) * math.sqrt(2.0 / in_f)

        # Stand-in backbone conv (3x3, pad 1) as an im2col matmul weight.
        fan = in_channels * 9
        conv_w = jax.random.normal(ks[0], (fe_planes, in_channels, 3, 3),
                                   jnp.float32) * math.sqrt(2.0 / fan)
        self.conv_w_mat = conv_w.reshape(fe_planes, in_channels * 9)      # (Cout, Cin*9)
        self.conv_b = jnp.zeros((fe_planes, 1), jnp.float32)

        # feature_extractor.fc = Linear(fe_planes, feat_dim), kaiming, bias 0.
        self.fc_feat_w = kaiming(ks[1], feat_dim, fe_planes).T            # (Cout, feat_dim)
        self.fc_feat_b = jnp.zeros((1, feat_dim), jnp.float32)

        # Bidirectional LSTMs (PyTorch default init), packed for the fused kernel.
        self.wih_rl, self.whh_rl, self.b_rl = self._init_bilstm(ks[2], feat_size, hidden_size)
        self.wih_du, self.whh_du, self.b_du = self._init_bilstm(ks[3], seq_size, hidden_size)

        # fc_xyz / fc_wpqr (kaiming, bias 0), fused and zero-padded to 128 lanes.
        half = feat_dim // 2
        w_xyz = kaiming(ks[4], 3, half)
        w_wpqr = kaiming(ks[5], 3, half)
        w_head = jnp.zeros((half, half), jnp.float32)
        self.w_head = w_head.at[:, 0:3].set(w_xyz.T).at[:, 3:6].set(w_wpqr.T)
        self.b_head = jnp.zeros((1, half), jnp.float32)

        # Lane permutation realizing x_rightleft.transpose(1, 2) for lstm_downup:
        # P[s*feat_size + t, t*seq_size + s] = 1.
        s = jnp.arange(seq_size)
        t = jnp.arange(feat_size)
        rows = (s[:, None] * feat_size + t[None, :]).reshape(-1)
        cols = (t[None, :] * seq_size + s[:, None]).reshape(-1)
        self.p_du = jnp.zeros((feat_dim, feat_dim), jnp.float32).at[rows, cols].set(1.0)

    def _init_bilstm(self, key, input_size, hidden):
        # PyTorch nn.LSTM default: uniform(-1/sqrt(H), 1/sqrt(H)); gate order i,f,g,o.
        bound = 1.0 / math.sqrt(hidden)
        sub = jax.random.split(key, 8)

        def u(k, shape):
            return jax.random.uniform(k, shape, jnp.float32, -bound, bound)

        dirs = []
        for d in range(2):                                       # 0 = fw, 1 = bw
            wih = u(sub[4 * d + 0], (4 * hidden, input_size))
            whh = u(sub[4 * d + 1], (4 * hidden, hidden))
            bias = u(sub[4 * d + 2], (4 * hidden,)) + u(sub[4 * d + 3], (4 * hidden,))
            dirs.append((wih, whh, bias))
        (wih_f, whh_f, b_f), (wih_b, whh_b, b_b) = dirs

        # Pack both directions with gate-major columns: col = gate*2H + dir*H + h.
        wih_t = jnp.stack([wih_f.reshape(4, hidden, input_size),
                           wih_b.reshape(4, hidden, input_size)],
                          axis=1).reshape(8 * hidden, input_size).T       # (Fin, 8H)

        def colmaj(w):                                           # (4H, H) -> (Hin, 4, Hout)
            return jnp.transpose(w.reshape(4, hidden, hidden), (2, 0, 1))

        whh = jnp.zeros((2 * hidden, 4, 2, hidden), jnp.float32)
        whh = whh.at[:hidden, :, 0, :].set(colmaj(whh_f))        # block-diagonal
        whh = whh.at[hidden:, :, 1, :].set(colmaj(whh_b))
        whh = whh.reshape(2 * hidden, 8 * hidden)                # (2H, 8H)

        bias = jnp.stack([b_f.reshape(4, hidden), b_b.reshape(4, hidden)],
                         axis=1).reshape(1, 8 * hidden)          # bih + bhh, same order
        return wih_t, whh, bias

    def __call__(self, x, rng_key):
        B, Cin, H, W = x.shape
        HW = H * W
        k_h_rl, k_c_rl, k_h_du, k_c_du, k_drop = jax.random.split(rng_key, 5)

        # im2col for the stand-in conv, lane-dense as (Cin*9, B*H*W).
        xp = jnp.pad(x, ((0, 0), (0, 0), (1, 1), (1, 1)))
        taps = [xp[:, :, kh:kh + H, kw:kw + W] for kh in range(3) for kw in range(3)]
        pat = jnp.stack(taps, axis=2)                                     # (B, Cin, 9, H, W)
        patches_T = jnp.transpose(pat, (1, 2, 0, 3, 4)).reshape(Cin * 9, B * HW)

        # AdaptiveAvgPool2d(1) as a (B, B*HW) averaging matrix.
        pool_T = jnp.repeat(jnp.eye(B, dtype=jnp.float32), HW, axis=1) / float(HW)

        # FourDirectionalLSTM.init_hidden_: torch.randn(2, B, H), packed (B, 2H)=[fw|bw].
        h0_rl = jax.random.normal(k_h_rl, (B, 2 * self.hidden_size), jnp.float32)
        c0_rl = jax.random.normal(k_c_rl, (B, 2 * self.hidden_size), jnp.float32)
        h0_du = jax.random.normal(k_h_du, (B, 2 * self.hidden_size), jnp.float32)
        c0_du = jax.random.normal(k_c_du, (B, 2 * self.hidden_size), jnp.float32)

        # Dropout uniforms (host-side jax.random; pltpu PRNG has no interpret path).
        u = jax.random.uniform(k_drop, (B, self.feat_dim // 2), jnp.float32)

        kernel = functools.partial(
            _atloc_fused_kernel, batch=B, seq_size=self.seq_size,
            feat_size=self.feat_size, hidden=self.hidden_size, droprate=self.droprate)
        vmem = pl.BlockSpec(memory_space=pltpu.MemorySpace.VMEM)

        out = pl.pallas_call(
            kernel,
            out_shape=jax.ShapeDtypeStruct((B, self.feat_dim // 2), jnp.float32),
            in_specs=[vmem] * 20,
            out_specs=vmem,
        )(patches_T, self.conv_w_mat, self.conv_b, pool_T,
          self.fc_feat_w, self.fc_feat_b,
          self.wih_rl, self.whh_rl, self.b_rl,
          self.p_du, self.wih_du, self.whh_du, self.b_du,
          h0_rl, c0_rl, h0_du, c0_du,
          u, self.w_head, self.b_head)

        return out[:, :6]                                                  # (B, 6)


# ---------------------------------- main -------------------------------------

if __name__ == "__main__":
    key = jax.random.PRNGKey(0)
    k_param, k_input, k_fwd = jax.random.split(key, 3)

    model = AtLocPallas(k_param)
    x = jax.random.normal(k_input, (2, 4, 16, 16), jnp.float32)            # NCHW

    fwd = jax.jit(model.__call__)
    out = jax.block_until_ready(fwd(x, k_fwd))

    assert out.shape == (2, 6) and out.dtype == jnp.float32
    assert bool(jnp.all(jnp.isfinite(out)))
    print("KERNEL_OK")
</pallas_src>

<mosaic_0001>
module attributes {stable_mosaic.version = 11 : i64} {
  func.func @_atloc_fused_kernel(%arg0: memref<36x512xf32, #tpu.memory_space<vmem>>, %arg1: memref<16x36xf32, #tpu.memory_space<vmem>>, %arg2: memref<16x1xf32, #tpu.memory_space<vmem>>, %arg3: memref<2x512xf32, #tpu.memory_space<vmem>>, %arg4: memref<16x256xf32, #tpu.memory_space<vmem>>, %arg5: memref<1x256xf32, #tpu.memory_space<vmem>>, %arg6: memref<32x256xf32, #tpu.memory_space<vmem>>, %arg7: memref<64x256xf32, #tpu.memory_space<vmem>>, %arg8: memref<1x256xf32, #tpu.memory_space<vmem>>, %arg9: memref<256x256xf32, #tpu.memory_space<vmem>>, %arg10: memref<8x256xf32, #tpu.memory_space<vmem>>, %arg11: memref<64x256xf32, #tpu.memory_space<vmem>>, %arg12: memref<1x256xf32, #tpu.memory_space<vmem>>, %arg13: memref<2x64xf32, #tpu.memory_space<vmem>>, %arg14: memref<2x64xf32, #tpu.memory_space<vmem>>, %arg15: memref<2x64xf32, #tpu.memory_space<vmem>>, %arg16: memref<2x64xf32, #tpu.memory_space<vmem>>, %arg17: memref<2x128xf32, #tpu.memory_space<vmem>>, %arg18: memref<128x128xf32, #tpu.memory_space<vmem>>, %arg19: memref<1x128xf32, #tpu.memory_space<vmem>>, %arg20: memref<2x128xf32, #tpu.memory_space<vmem>>) attributes {dimension_semantics = [], scalar_prefetch = 0 : i64, scratch_operands = 0 : i64, tpu.core_type = #tpu.core_type<tc>} {
    %c0 = arith.constant 0 : index
    %c0_0 = arith.constant 0 : index
    %0 = vector.load %arg1[%c0, %c0_0] : memref<16x36xf32, #tpu.memory_space<vmem>>, vector<16x36xf32>
    %c0_1 = arith.constant 0 : index
    %c0_2 = arith.constant 0 : index
    %1 = vector.load %arg0[%c0_1, %c0_2] : memref<36x512xf32, #tpu.memory_space<vmem>>, vector<36x512xf32>
    %cst = arith.constant dense<0.000000e+00> : vector<16x512xf32>
    %2 = tpu.matmul %0, %1, %cst {dimension_numbers = #tpu.dot_dimension_numbers<[1], [0], [0], [1], [0, 0, 1, 1], [], []>} : vector<16x36xf32>, vector<36x512xf32>, vector<16x512xf32> -> vector<16x512xf32>
    %c0_3 = arith.constant 0 : index
    %c0_4 = arith.constant 0 : index
    %3 = vector.load %arg2[%c0_3, %c0_4] : memref<16x1xf32, #tpu.memory_space<vmem>>, vector<16x1xf32>
    %4 = vector.broadcast %3 : vector<16x1xf32> to vector<16x512xf32>
    %5 = arith.addf %2, %4 : vector<16x512xf32>
    %cst_5 = arith.constant 0.000000e+00 : f32
    %6 = vector.broadcast %cst_5 : f32 to vector<16x512xf32>
    %7 = arith.maximumf %5, %6 : vector<16x512xf32>
    %c0_6 = arith.constant 0 : index
    %c0_7 = arith.constant 0 : index
    %8 = vector.load %arg3[%c0_6, %c0_7] : memref<2x512xf32, #tpu.memory_space<vmem>>, vector<2x512xf32>
    %cst_8 = arith.constant dense<0.000000e+00> : vector<2x16xf32>
    %9 = tpu.matmul %8, %7, %cst_8 {dimension_numbers = #tpu.dot_dimension_numbers<[1], [1], [0], [0], [0, 0, 1, 0], [], []>} : vector<2x512xf32>, vector<16x512xf32>, vector<2x16xf32> -> vector<2x16xf32>
    %c0_9 = arith.constant 0 : index
    %c0_10 = arith.constant 0 : index
    %10 = vector.load %arg4[%c0_9, %c0_10] : memref<16x256xf32, #tpu.memory_space<vmem>>, vector<16x256xf32>
    %cst_11 = arith.constant dense<0.000000e+00> : vector<2x256xf32>
    %11 = tpu.matmul %9, %10, %cst_11 {dimension_numbers = #tpu.dot_dimension_numbers<[1], [0], [0], [1], [0, 0, 1, 1], [], []>} : vector<2x16xf32>, vector<16x256xf32>, vector<2x256xf32> -> vector<2x256xf32>
    %c0_12 = arith.constant 0 : index
    %c0_13 = arith.constant 0 : index
    %12 = vector.load %arg5[%c0_12, %c0_13] : memref<1x256xf32, #tpu.memory_space<vmem>>, vector<1x256xf32>
    %13 = vector.broadcast %12 : vector<1x256xf32> to vector<2x256xf32>
    %14 = arith.addf %11, %13 : vector<2x256xf32>
    %cst_14 = arith.constant 0.000000e+00 : f32
    %15 = vector.broadcast %cst_14 : f32 to vector<2x256xf32>
    %16 = arith.maximumf %14, %15 : vector<2x256xf32>
    %17 = tpu.iota {dimensions = array<i32: 1>} : vector<2x256xi32>
    %c64_i32 = arith.constant 64 : i32
    %c0_i32 = arith.constant 0 : i32
    %18 = arith.cmpi eq, %c64_i32, %c0_i32 : i32
    %c1_i32 = arith.constant 1 : i32
    %19 = arith.select %18, %c1_i32, %c64_i32 : i32
    %20 = vector.broadcast %19 : i32 to vector<2x256xi32>
    %21 = arith.remsi %17, %20 : vector<2x256xi32>
    %c0_i32_15 = arith.constant 0 : i32
    %22 = vector.broadcast %c0_i32_15 : i32 to vector<2x256xi32>
    %23 = arith.cmpi ne, %21, %22 : vector<2x256xi32>
    %c0_i32_16 = arith.constant 0 : i32
    %24 = vector.broadcast %c0_i32_16 : i32 to vector<2x256xi32>
    %25 = arith.cmpi slt, %21, %24 : vector<2x256xi32>
    %c0_i32_17 = arith.constant 0 : i32
    %26 = arith.cmpi slt, %19, %c0_i32_17 : i32
    %27 = vector.broadcast %26 : i1 to vector<2x256xi1>
    %28 = vector.broadcast %27 : vector<2x256xi1> to vector<2x256xi1>
    %29 = arith.xori %25, %28 : vector<2x256xi1>
    %30 = arith.andi %29, %23 : vector<2x256xi1>
    %31 = vector.broadcast %19 : i32 to vector<2x256xi32>
    %32 = arith.addi %21, %31 : vector<2x256xi32>
    %33 = arith.select %30, %32, %21 : vector<2x256xi1>, vector<2x256xi32>
    %c32_i32 = arith.constant 32 : i32
    %34 = vector.broadcast %c32_i32 : i32 to vector<2x256xi32>
    %35 = arith.cmpi slt, %33, %34 : vector<2x256xi32>
    %c0_18 = arith.constant 0 : index
    %c0_19 = arith.constant 0 : index
    %36 = vector.load %arg6[%c0_18, %c0_19] : memref<32x256xf32, #tpu.memory_space<vmem>>, vector<32x256xf32>
    %c0_20 = arith.constant 0 : index
    %c0_21 = arith.constant 0 : index
    %37 = vector.load %arg8[%c0_20, %c0_21] : memref<1x256xf32, #tpu.memory_space<vmem>>, vector<1x256xf32>
    %38 = vector.extract_strided_slice %16 {offsets = [0, 0], sizes = [2, 32], strides = [1, 1]} : vector<2x256xf32> to vector<2x32xf32>
    %cst_22 = arith.constant dense<0.000000e+00> : vector<2x256xf32>
    %39 = tpu.matmul %38, %36, %cst_22 {dimension_numbers = #tpu.dot_dimension_numbers<[1], [0], [0], [1], [0, 0, 1, 1], [], []>} : vector<2x32xf32>, vector<32x256xf32>, vector<2x256xf32> -> vector<2x256xf32>
    %40 = vector.broadcast %37 : vector<1x256xf32> to vector<2x256xf32>
    %41 = arith.addf %39, %40 : vector<2x256xf32>
    %42 = vector.extract_strided_slice %16 {offsets = [0, 32], sizes = [2, 32], strides = [1, 1]} : vector<2x256xf32> to vector<2x32xf32>
    %cst_23 = arith.constant dense<0.000000e+00> : vector<2x256xf32>
    %43 = tpu.matmul %42, %36, %cst_23 {dimension_numbers = #tpu.dot_dimension_numbers<[1], [0], [0], [1], [0, 0, 1, 1], [], []>} : vector<2x32xf32>, vector<32x256xf32>, vector<2x256xf32> -> vector<2x256xf32>
    %44 = vector.broadcast %37 : vector<1x256xf32> to vector<2x256xf32>
    %45 = arith.addf %43, %44 : vector<2x256xf32>
    %46 = vector.extract_strided_slice %16 {offsets = [0, 64], sizes = [2, 32], strides = [1, 1]} : vector<2x256xf32> to vector<2x32xf32>
    %cst_24 = arith.constant dense<0.000000e+00> : vector<2x256xf32>
    %47 = tpu.matmul %46, %36, %cst_24 {dimension_numbers = #tpu.dot_dimension_numbers<[1], [0], [0], [1], [0, 0, 1, 1], [], []>} : vector<2x32xf32>, vector<32x256xf32>, vector<2x256xf32> -> vector<2x256xf32>
    %48 = vector.broadcast %37 : vector<1x256xf32> to vector<2x256xf32>
    %49 = arith.addf %47, %48 : vector<2x256xf32>
    %50 = vector.extract_strided_slice %16 {offsets = [0, 96], sizes = [2, 32], strides = [1, 1]} : vector<2x256xf32> to vector<2x32xf32>
    %cst_25 = arith.constant dense<0.000000e+00> : vector<2x256xf32>
    %51 = tpu.matmul %50, %36, %cst_25 {dimension_numbers = #tpu.dot_dimension_numbers<[1], [0], [0], [1], [0, 0, 1, 1], [], []>} : vector<2x32xf32>, vector<32x256xf32>, vector<2x256xf32> -> vector<2x256xf32>
    %52 = vector.broadcast %37 : vector<1x256xf32> to vector<2x256xf32>
    %53 = arith.addf %51, %52 : vector<2x256xf32>
    %54 = vector.extract_strided_slice %16 {offsets = [0, 128], sizes = [2, 32], strides = [1, 1]} : vector<2x256xf32> to vector<2x32xf32>
    %cst_26 = arith.constant dense<0.000000e+00> : vector<2x256xf32>
    %55 = tpu.matmul %54, %36, %cst_26 {dimension_numbers = #tpu.dot_dimension_numbers<[1], [0], [0], [1], [0, 0, 1, 1], [], []>} : vector<2x32xf32>, vector<32x256xf32>, vector<2x256xf32> -> vector<2x256xf32>
    %56 = vector.broadcast %37 : vector<1x256xf32> to vector<2x256xf32>
    %57 = arith.addf %55, %56 : vector<2x256xf32>
    %58 = vector.extract_strided_slice %16 {offsets = [0, 160], sizes = [2, 32], strides = [1, 1]} : vector<2x256xf32> to vector<2x32xf32>
    %cst_27 = arith.constant dense<0.000000e+00> : vector<2x256xf32>
    %59 = tpu.matmul %58, %36, %cst_27 {dimension_numbers = #tpu.dot_dimension_numbers<[1], [0], [0], [1], [0, 0, 1, 1], [], []>} : vector<2x32xf32>, vector<32x256xf32>, vector<2x256xf32> -> vector<2x256xf32>
    %60 = vector.broadcast %37 : vector<1x256xf32> to vector<2x256xf32>
    %61 = arith.addf %59, %60 : vector<2x256xf32>
    %62 = vector.extract_strided_slice %16 {offsets = [0, 192], sizes = [2, 32], strides = [1, 1]} : vector<2x256xf32> to vector<2x32xf32>
    %cst_28 = arith.constant dense<0.000000e+00> : vector<2x256xf32>
    %63 = tpu.matmul %62, %36, %cst_28 {dimension_numbers = #tpu.dot_dimension_numbers<[1], [0], [0], [1], [0, 0, 1, 1], [], []>} : vector<2x32xf32>, vector<32x256xf32>, vector<2x256xf32> -> vector<2x256xf32>
    %64 = vector.broadcast %37 : vector<1x256xf32> to vector<2x256xf32>
    %65 = arith.addf %63, %64 : vector<2x256xf32>
    %66 = vector.extract_strided_slice %16 {offsets = [0, 224], sizes = [2, 32], strides = [1, 1]} : vector<2x256xf32> to vector<2x32xf32>
    %cst_29 = arith.constant dense<0.000000e+00> : vector<2x256xf32>
    %67 = tpu.matmul %66, %36, %cst_29 {dimension_numbers = #tpu.dot_dimension_numbers<[1], [0], [0], [1], [0, 0, 1, 1], [], []>} : vector<2x32xf32>, vector<32x256xf32>, vector<2x256xf32> -> vector<2x256xf32>
    %68 = vector.broadcast %37 : vector<1x256xf32> to vector<2x256xf32>
    %69 = arith.addf %67, %68 : vector<2x256xf32>
    %c0_30 = arith.constant 0 : index
    %c0_31 = arith.constant 0 : index
    %70 = vector.load %arg13[%c0_30, %c0_31] : memref<2x64xf32, #tpu.memory_space<vmem>>, vector<2x64xf32>
    %c0_32 = arith.constant 0 : index
    %c0_33 = arith.constant 0 : index
    %71 = vector.load %arg14[%c0_32, %c0_33] : memref<2x64xf32, #tpu.memory_space<vmem>>, vector<2x64xf32>
    %c0_34 = arith.constant 0 : index
    %c0_35 = arith.constant 0 : index
    %72 = vector.load %arg7[%c0_34, %c0_35] : memref<64x256xf32, #tpu.memory_space<vmem>>, vector<64x256xf32>
    %73 = arith.select %35, %41, %69 : vector<2x256xi1>, vector<2x256xf32>
    %cst_36 = arith.constant dense<0.000000e+00> : vector<2x256xf32>
    %74 = tpu.matmul %70, %72, %cst_36 {dimension_numbers = #tpu.dot_dimension_numbers<[1], [0], [0], [1], [0, 0, 1, 1], [], []>} : vector<2x64xf32>, vector<64x256xf32>, vector<2x256xf32> -> vector<2x256xf32>
    %75 = arith.addf %73, %74 : vector<2x256xf32>
    %76 = arith.negf %75 : vector<2x256xf32>
    %77 = math.exp %76 : vector<2x256xf32>
    %cst_37 = arith.constant 1.000000e+00 : f32
    %78 = vector.broadcast %cst_37 : f32 to vector<2x256xf32>
    %79 = arith.addf %78, %77 : vector<2x256xf32>
    %80 = arith.divf %78, %79 : vector<2x256xf32>
    %81 = math.tanh %75 : vector<2x256xf32>
    %82 = vector.extract_strided_slice %80 {offsets = [0, 64], sizes = [2, 64], strides = [1, 1]} : vector<2x256xf32> to vector<2x64xf32>
    %83 = arith.mulf %82, %71 : vector<2x64xf32>
    %84 = vector.extract_strided_slice %80 {offsets = [0, 0], sizes = [2, 64], strides = [1, 1]} : vector<2x256xf32> to vector<2x64xf32>
    %85 = vector.extract_strided_slice %81 {offsets = [0, 128], sizes = [2, 64], strides = [1, 1]} : vector<2x256xf32> to vector<2x64xf32>
    %86 = arith.mulf %84, %85 : vector<2x64xf32>
    %87 = arith.addf %83, %86 : vector<2x64xf32>
    %88 = vector.extract_strided_slice %80 {offsets = [0, 192], sizes = [2, 64], strides = [1, 1]} : vector<2x256xf32> to vector<2x64xf32>
    %89 = math.tanh %87 : vector<2x64xf32>
    %90 = arith.mulf %88, %89 : vector<2x64xf32>
    %91 = arith.select %35, %45, %65 : vector<2x256xi1>, vector<2x256xf32>
    %cst_38 = arith.constant dense<0.000000e+00> : vector<2x256xf32>
    %92 = tpu.matmul %90, %72, %cst_38 {dimension_numbers = #tpu.dot_dimension_numbers<[1], [0], [0], [1], [0, 0, 1, 1], [], []>} : vector<2x64xf32>, vector<64x256xf32>, vector<2x256xf32> -> vector<2x256xf32>
    %93 = arith.addf %91, %92 : vector<2x256xf32>
    %94 = arith.negf %93 : vector<2x256xf32>
    %95 = math.exp %94 : vector<2x256xf32>
    %cst_39 = arith.constant 1.000000e+00 : f32
    %96 = vector.broadcast %cst_39 : f32 to vector<2x256xf32>
    %97 = arith.addf %96, %95 : vector<2x256xf32>
    %98 = arith.divf %96, %97 : vector<2x256xf32>
    %99 = math.tanh %93 : vector<2x256xf32>
    %100 = vector.extract_strided_slice %98 {offsets = [0, 64], sizes = [2, 64], strides = [1, 1]} : vector<2x256xf32> to vector<2x64xf32>
    %101 = arith.mulf %100, %87 : vector<2x64xf32>
    %102 = vector.extract_strided_slice %98 {offsets = [0, 0], sizes = [2, 64], strides = [1, 1]} : vector<2x256xf32> to vector<2x64xf32>
    %103 = vector.extract_strided_slice %99 {offsets = [0, 128], sizes = [2, 64], strides = [1, 1]} : vector<2x256xf32> to vector<2x64xf32>
    %104 = arith.mulf %102, %103 : vector<2x64xf32>
    %105 = arith.addf %101, %104 : vector<2x64xf32>
    %106 = vector.extract_strided_slice %98 {offsets = [0, 192], sizes = [2, 64], strides = [1, 1]} : vector<2x256xf32> to vector<2x64xf32>
    %107 = math.tanh %105 : vector<2x64xf32>
    %108 = arith.mulf %106, %107 : vector<2x64xf32>
    %109 = arith.select %35, %49, %61 : vector<2x256xi1>, vector<2x256xf32>
    %cst_40 = arith.constant dense<0.000000e+00> : vector<2x256xf32>
    %110 = tpu.matmul %108, %72, %cst_40 {dimension_numbers = #tpu.dot_dimension_numbers<[1], [0], [0], [1], [0, 0, 1, 1], [], []>} : vector<2x64xf32>, vector<64x256xf32>, vector<2x256xf32> -> vector<2x256xf32>
    %111 = arith.addf %109, %110 : vector<2x256xf32>
    %112 = arith.negf %111 : vector<2x256xf32>
    %113 = math.exp %112 : vector<2x256xf32>
    %cst_41 = arith.constant 1.000000e+00 : f32
    %114 = vector.broadcast %cst_41 : f32 to vector<2x256xf32>
    %115 = arith.addf %114, %113 : vector<2x256xf32>
    %116 = arith.divf %114, %115 : vector<2x256xf32>
    %117 = math.tanh %111 : vector<2x256xf32>
    %118 = vector.extract_strided_slice %116 {offsets = [0, 64], sizes = [2, 64], strides = [1, 1]} : vector<2x256xf32> to vector<2x64xf32>
    %119 = arith.mulf %118, %105 : vector<2x64xf32>
    %120 = vector.extract_strided_slice %116 {offsets = [0, 0], sizes = [2, 64], strides = [1, 1]} : vector<2x256xf32> to vector<2x64xf32>
    %121 = vector.extract_strided_slice %117 {offsets = [0, 128], sizes = [2, 64], strides = [1, 1]} : vector<2x256xf32> to vector<2x64xf32>
    %122 = arith.mulf %120, %121 : vector<2x64xf32>
    %123 = arith.addf %119, %122 : vector<2x64xf32>
    %124 = vector.extract_strided_slice %116 {offsets = [0, 192], sizes = [2, 64], strides = [1, 1]} : vector<2x256xf32> to vector<2x64xf32>
    %125 = math.tanh %123 : vector<2x64xf32>
    %126 = arith.mulf %124, %125 : vector<2x64xf32>
    %127 = arith.select %35, %53, %57 : vector<2x256xi1>, vector<2x256xf32>
    %cst_42 = arith.constant dense<0.000000e+00> : vector<2x256xf32>
    %128 = tpu.matmul %126, %72, %cst_42 {dimension_numbers = #tpu.dot_dimension_numbers<[1], [0], [0], [1], [0, 0, 1, 1], [], []>} : vector<2x64xf32>, vector<64x256xf32>, vector<2x256xf32> -> vector<2x256xf32>
    %129 = arith.addf %127, %128 : vector<2x256xf32>
    %130 = arith.negf %129 : vector<2x256xf32>
    %131 = math.exp %130 : vector<2x256xf32>
    %cst_43 = arith.constant 1.000000e+00 : f32
    %132 = vector.broadcast %cst_43 : f32 to vector<2x256xf32>
    %133 = arith.addf %132, %131 : vector<2x256xf32>
    %134 = arith.divf %132, %133 : vector<2x256xf32>
    %135 = math.tanh %129 : vector<2x256xf32>
    %136 = vector.extract_strided_slice %134 {offsets = [0, 64], sizes = [2, 64], strides = [1, 1]} : vector<2x256xf32> to vector<2x64xf32>
    %137 = arith.mulf %136, %123 : vector<2x64xf32>
    %138 = vector.extract_strided_slice %134 {offsets = [0, 0], sizes = [2, 64], strides = [1, 1]} : vector<2x256xf32> to vector<2x64xf32>
    %139 = vector.extract_strided_slice %135 {offsets = [0, 128], sizes = [2, 64], strides = [1, 1]} : vector<2x256xf32> to vector<2x64xf32>
    %140 = arith.mulf %138, %139 : vector<2x64xf32>
    %141 = arith.addf %137, %140 : vector<2x64xf32>
    %142 = vector.extract_strided_slice %134 {offsets = [0, 192], sizes = [2, 64], strides = [1, 1]} : vector<2x256xf32> to vector<2x64xf32>
    %143 = math.tanh %141 : vector<2x64xf32>
    %144 = arith.mulf %142, %143 : vector<2x64xf32>
    %145 = arith.select %35, %57, %53 : vector<2x256xi1>, vector<2x256xf32>
    %cst_44 = arith.constant dense<0.000000e+00> : vector<2x256xf32>
    %146 = tpu.matmul %144, %72, %cst_44 {dimension_numbers = #tpu.dot_dimension_numbers<[1], [0], [0], [1], [0, 0, 1, 1], [], []>} : vector<2x64xf32>, vector<64x256xf32>, vector<2x256xf32> -> vector<2x256xf32>
    %147 = arith.addf %145, %146 : vector<2x256xf32>
    %148 = arith.negf %147 : vector<2x256xf32>
    %149 = math.exp %148 : vector<2x256xf32>
    %cst_45 = arith.constant 1.000000e+00 : f32
    %150 = vector.broadcast %cst_45 : f32 to vector<2x256xf32>
    %151 = arith.addf %150, %149 : vector<2x256xf32>
    %152 = arith.divf %150, %151 : vector<2x256xf32>
    %153 = math.tanh %147 : vector<2x256xf32>
    %154 = vector.extract_strided_slice %152 {offsets = [0, 64], sizes = [2, 64], strides = [1, 1]} : vector<2x256xf32> to vector<2x64xf32>
    %155 = arith.mulf %154, %141 : vector<2x64xf32>
    %156 = vector.extract_strided_slice %152 {offsets = [0, 0], sizes = [2, 64], strides = [1, 1]} : vector<2x256xf32> to vector<2x64xf32>
    %157 = vector.extract_strided_slice %153 {offsets = [0, 128], sizes = [2, 64], strides = [1, 1]} : vector<2x256xf32> to vector<2x64xf32>
    %158 = arith.mulf %156, %157 : vector<2x64xf32>
    %159 = arith.addf %155, %158 : vector<2x64xf32>
    %160 = vector.extract_strided_slice %152 {offsets = [0, 192], sizes = [2, 64], strides = [1, 1]} : vector<2x256xf32> to vector<2x64xf32>
    %161 = math.tanh %159 : vector<2x64xf32>
    %162 = arith.mulf %160, %161 : vector<2x64xf32>
    %163 = arith.select %35, %61, %49 : vector<2x256xi1>, vector<2x256xf32>
    %cst_46 = arith.constant dense<0.000000e+00> : vector<2x256xf32>
    %164 = tpu.matmul %162, %72, %cst_46 {dimension_numbers = #tpu.dot_dimension_numbers<[1], [0], [0], [1], [0, 0, 1, 1], [], []>} : vector<2x64xf32>, vector<64x256xf32>, vector<2x256xf32> -> vector<2x256xf32>
    %165 = arith.addf %163, %164 : vector<2x256xf32>
    %166 = arith.negf %165 : vector<2x256xf32>
    %167 = math.exp %166 : vector<2x256xf32>
    %cst_47 = arith.constant 1.000000e+00 : f32
    %168 = vector.broadcast %cst_47 : f32 to vector<2x256xf32>
    %169 = arith.addf %168, %167 : vector<2x256xf32>
    %170 = arith.divf %168, %169 : vector<2x256xf32>
    %171 = math.tanh %165 : vector<2x256xf32>
    %172 = vector.extract_strided_slice %170 {offsets = [0, 64], sizes = [2, 64], strides = [1, 1]} : vector<2x256xf32> to vector<2x64xf32>
    %173 = arith.mulf %172, %159 : vector<2x64xf32>
    %174 = vector.extract_strided_slice %170 {offsets = [0, 0], sizes = [2, 64], strides = [1, 1]} : vector<2x256xf32> to vector<2x64xf32>
    %175 = vector.extract_strided_slice %171 {offsets = [0, 128], sizes = [2, 64], strides = [1, 1]} : vector<2x256xf32> to vector<2x64xf32>
    %176 = arith.mulf %174, %175 : vector<2x64xf32>
    %177 = arith.addf %173, %176 : vector<2x64xf32>
    %178 = vector.extract_strided_slice %170 {offsets = [0, 192], sizes = [2, 64], strides = [1, 1]} : vector<2x256xf32> to vector<2x64xf32>
    %179 = math.tanh %177 : vector<2x64xf32>
    %180 = arith.mulf %178, %179 : vector<2x64xf32>
    %181 = arith.select %35, %65, %45 : vector<2x256xi1>, vector<2x256xf32>
    %cst_48 = arith.constant dense<0.000000e+00> : vector<2x256xf32>
    %182 = tpu.matmul %180, %72, %cst_48 {dimension_numbers = #tpu.dot_dimension_numbers<[1], [0], [0], [1], [0, 0, 1, 1], [], []>} : vector<2x64xf32>, vector<64x256xf32>, vector<2x256xf32> -> vector<2x256xf32>
    %183 = arith.addf %181, %182 : vector<2x256xf32>
    %184 = arith.negf %183 : vector<2x256xf32>
    %185 = math.exp %184 : vector<2x256xf32>
    %cst_49 = arith.constant 1.000000e+00 : f32
    %186 = vector.broadcast %cst_49 : f32 to vector<2x256xf32>
    %187 = arith.addf %186, %185 : vector<2x256xf32>
    %188 = arith.divf %186, %187 : vector<2x256xf32>
    %189 = math.tanh %183 : vector<2x256xf32>
    %190 = vector.extract_strided_slice %188 {offsets = [0, 64], sizes = [2, 64], strides = [1, 1]} : vector<2x256xf32> to vector<2x64xf32>
    %191 = arith.mulf %190, %177 : vector<2x64xf32>
    %192 = vector.extract_strided_slice %188 {offsets = [0, 0], sizes = [2, 64], strides = [1, 1]} : vector<2x256xf32> to vector<2x64xf32>
    %193 = vector.extract_strided_slice %189 {offsets = [0, 128], sizes = [2, 64], strides = [1, 1]} : vector<2x256xf32> to vector<2x64xf32>
    %194 = arith.mulf %192, %193 : vector<2x64xf32>
    %195 = arith.addf %191, %194 : vector<2x64xf32>
    %196 = vector.extract_strided_slice %188 {offsets = [0, 192], sizes = [2, 64], strides = [1, 1]} : vector<2x256xf32> to vector<2x64xf32>
    %197 = math.tanh %195 : vector<2x64xf32>
    %198 = arith.mulf %196, %197 : vector<2x64xf32>
    %199 = arith.select %35, %69, %41 : vector<2x256xi1>, vector<2x256xf32>
    %cst_50 = arith.constant dense<0.000000e+00> : vector<2x256xf32>
    %200 = tpu.matmul %198, %72, %cst_50 {dimension_numbers = #tpu.dot_dimension_numbers<[1], [0], [0], [1], [0, 0, 1, 1], [], []>} : vector<2x64xf32>, vector<64x256xf32>, vector<2x256xf32> -> vector<2x256xf32>
    %201 = arith.addf %199, %200 : vector<2x256xf32>
    %202 = arith.negf %201 : vector<2x256xf32>
    %203 = math.exp %202 : vector<2x256xf32>
    %cst_51 = arith.constant 1.000000e+00 : f32
    %204 = vector.broadcast %cst_51 : f32 to vector<2x256xf32>
    %205 = arith.addf %204, %203 : vector<2x256xf32>
    %206 = arith.divf %204, %205 : vector<2x256xf32>
    %207 = math.tanh %201 : vector<2x256xf32>
    %208 = vector.extract_strided_slice %206 {offsets = [0, 64], sizes = [2, 64], strides = [1, 1]} : vector<2x256xf32> to vector<2x64xf32>
    %209 = arith.mulf %208, %195 : vector<2x64xf32>
    %210 = vector.extract_strided_slice %206 {offsets = [0, 0], sizes = [2, 64], strides = [1, 1]} : vector<2x256xf32> to vector<2x64xf32>
    %211 = vector.extract_strided_slice %207 {offsets = [0, 128], sizes = [2, 64], strides = [1, 1]} : vector<2x256xf32> to vector<2x64xf32>
    %212 = arith.mulf %210, %211 : vector<2x64xf32>
    %213 = arith.addf %209, %212 : vector<2x64xf32>
    %214 = vector.extract_strided_slice %206 {offsets = [0, 192], sizes = [2, 64], strides = [1, 1]} : vector<2x256xf32> to vector<2x64xf32>
    %215 = math.tanh %213 : vector<2x64xf32>
    %216 = arith.mulf %214, %215 : vector<2x64xf32>
    %c0_52 = arith.constant 0 : index
    %c0_53 = arith.constant 0 : index
    %217 = vector.load %arg9[%c0_52, %c0_53] : memref<256x256xf32, #tpu.memory_space<vmem>>, vector<256x256xf32>
    %cst_54 = arith.constant dense<0.000000e+00> : vector<2x256xf32>
    %218 = tpu.matmul %16, %217, %cst_54 {dimension_numbers = #tpu.dot_dimension_numbers<[1], [0], [0], [1], [0, 0, 1, 1], [], []>} : vector<2x256xf32>, vector<256x256xf32>, vector<2x256xf32> -> vector<2x256xf32>
    %c0_55 = arith.constant 0 : index
    %c0_56 = arith.constant 0 : index
    %219 = vector.load %arg10[%c0_55, %c0_56] : memref<8x256xf32, #tpu.memory_space<vmem>>, vector<8x256xf32>
    %c0_57 = arith.constant 0 : index
    %c0_58 = arith.constant 0 : index
    %220 = vector.load %arg12[%c0_57, %c0_58] : memref<1x256xf32, #tpu.memory_space<vmem>>, vector<1x256xf32>
    %221 = vector.extract_strided_slice %218 {offsets = [0, 0], sizes = [2, 8], strides = [1, 1]} : vector<2x256xf32> to vector<2x8xf32>
    %cst_59 = arith.constant dense<0.000000e+00> : vector<2x256xf32>
    %222 = tpu.matmul %221, %219, %cst_59 {dimension_numbers = #tpu.dot_dimension_numbers<[1], [0], [0], [1], [0, 0, 1, 1], [], []>} : vector<2x8xf32>, vector<8x256xf32>, vector<2x256xf32> -> vector<2x256xf32>
    %223 = vector.broadcast %220 : vector<1x256xf32> to vector<2x256xf32>
    %224 = arith.addf %222, %223 : vector<2x256xf32>
    %225 = vector.extract_strided_slice %218 {offsets = [0, 8], sizes = [2, 8], strides = [1, 1]} : vector<2x256xf32> to vector<2x8xf32>
    %cst_60 = arith.constant dense<0.000000e+00> : vector<2x256xf32>
    %226 = tpu.matmul %225, %219, %cst_60 {dimension_numbers = #tpu.dot_dimension_numbers<[1], [0], [0], [1], [0, 0, 1, 1], [], []>} : vector<2x8xf32>, vector<8x256xf32>, vector<2x256xf32> -> vector<2x256xf32>
    %227 = vector.broadcast %220 : vector<1x256xf32> to vector<2x256xf32>
    %228 = arith.addf %226, %227 : vector<2x256xf32>
    %229 = vector.extract_strided_slice %218 {offsets = [0, 16], sizes = [2, 8], strides = [1, 1]} : vector<2x256xf32> to vector<2x8xf32>
    %cst_61 = arith.constant dense<0.000000e+00> : vector<2x256xf32>
    %230 = tpu.matmul %229, %219, %cst_61 {dimension_numbers = #tpu.dot_dimension_numbers<[1], [0], [0], [1], [0, 0, 1, 1], [], []>} : vector<2x8xf32>, vector<8x256xf32>, vector<2x256xf32> -> vector<2x256xf32>
    %231 = vector.broadcast %220 : vector<1x256xf32> to vector<2x256xf32>
    %232 = arith.addf %230, %231 : vector<2x256xf32>
    %233 = vector.extract_strided_slice %218 {offsets = [0, 24], sizes = [2, 8], strides = [1, 1]} : vector<2x256xf32> to vector<2x8xf32>
    %cst_62 = arith.constant dense<0.000000e+00> : vector<2x256xf32>
    %234 = tpu.matmul %233, %219, %cst_62 {dimension_numbers = #tpu.dot_dimension_numbers<[1], [0], [0], [1], [0, 0, 1, 1], [], []>} : vector<2x8xf32>, vector<8x256xf32>, vector<2x256xf32> -> vector<2x256xf32>
    %235 = vector.broadcast %220 : vector<1x256xf32> to vector<2x256xf32>
    %236 = arith.addf %234, %235 : vector<2x256xf32>
    %237 = vector.extract_strided_slice %218 {offsets = [0, 32], sizes = [2, 8], strides = [1, 1]} : vector<2x256xf32> to vector<2x8xf32>
    %cst_63 = arith.constant dense<0.000000e+00> : vector<2x256xf32>
    %238 = tpu.matmul %237, %219, %cst_63 {dimension_numbers = #tpu.dot_dimension_numbers<[1], [0], [0], [1], [0, 0, 1, 1], [], []>} : vector<2x8xf32>, vector<8x256xf32>, vector<2x256xf32> -> vector<2x256xf32>
    %239 = vector.broadcast %220 : vector<1x256xf32> to vector<2x256xf32>
    %240 = arith.addf %238, %239 : vector<2x256xf32>
    %241 = vector.extract_strided_slice %218 {offsets = [0, 40], sizes = [2, 8], strides = [1, 1]} : vector<2x256xf32> to vector<2x8xf32>
    %cst_64 = arith.constant dense<0.000000e+00> : vector<2x256xf32>
    %242 = tpu.matmul %241, %219, %cst_64 {dimension_numbers = #tpu.dot_dimension_numbers<[1], [0], [0], [1], [0, 0, 1, 1], [], []>} : vector<2x8xf32>, vector<8x256xf32>, vector<2x256xf32> -> vector<2x256xf32>
    %243 = vector.broadcast %220 : vector<1x256xf32> to vector<2x256xf32>
    %244 = arith.addf %242, %243 : vector<2x256xf32>
    %245 = vector.extract_strided_slice %218 {offsets = [0, 48], sizes = [2, 8], strides = [1, 1]} : vector<2x256xf32> to vector<2x8xf32>
    %cst_65 = arith.constant dense<0.000000e+00> : vector<2x256xf32>
    %246 = tpu.matmul %245, %219, %cst_65 {dimension_numbers = #tpu.dot_dimension_numbers<[1], [0], [0], [1], [0, 0, 1, 1], [], []>} : vector<2x8xf32>, vector<8x256xf32>, vector<2x256xf32> -> vector<2x256xf32>
    %247 = vector.broadcast %220 : vector<1x256xf32> to vector<2x256xf32>
    %248 = arith.addf %246, %247 : vector<2x256xf32>
    %249 = vector.extract_strided_slice %218 {offsets = [0, 56], sizes = [2, 8], strides = [1, 1]} : vector<2x256xf32> to vector<2x8xf32>
    %cst_66 = arith.constant dense<0.000000e+00> : vector<2x256xf32>
    %250 = tpu.matmul %249, %219, %cst_66 {dimension_numbers = #tpu.dot_dimension_numbers<[1], [0], [0], [1], [0, 0, 1, 1], [], []>} : vector<2x8xf32>, vector<8x256xf32>, vector<2x256xf32> -> vector<2x256xf32>
    %251 = vector.broadcast %220 : vector<1x256xf32> to vector<2x256xf32>
    %252 = arith.addf %250, %251 : vector<2x256xf32>
    %253 = vector.extract_strided_slice %218 {offsets = [0, 64], sizes = [2, 8], strides = [1, 1]} : vector<2x256xf32> to vector<2x8xf32>
    %cst_67 = arith.constant dense<0.000000e+00> : vector<2x256xf32>
    %254 = tpu.matmul %253, %219, %cst_67 {dimension_numbers = #tpu.dot_dimension_numbers<[1], [0], [0], [1], [0, 0, 1, 1], [], []>} : vector<2x8xf32>, vector<8x256xf32>, vector<2x256xf32> -> vector<2x256xf32>
    %255 = vector.broadcast %220 : vector<1x256xf32> to vector<2x256xf32>
    %256 = arith.addf %254, %255 : vector<2x256xf32>
    %257 = vector.extract_strided_slice %218 {offsets = [0, 72], sizes = [2, 8], strides = [1, 1]} : vector<2x256xf32> to vector<2x8xf32>
    %cst_68 = arith.constant dense<0.000000e+00> : vector<2x256xf32>
    %258 = tpu.matmul %257, %219, %cst_68 {dimension_numbers = #tpu.dot_dimension_numbers<[1], [0], [0], [1], [0, 0, 1, 1], [], []>} : vector<2x8xf32>, vector<8x256xf32>, vector<2x256xf32> -> vector<2x256xf32>
    %259 = vector.broadcast %220 : vector<1x256xf32> to vector<2x256xf32>
    %260 = arith.addf %258, %259 : vector<2x256xf32>
    %261 = vector.extract_strided_slice %218 {offsets = [0, 80], sizes = [2, 8], strides = [1, 1]} : vector<2x256xf32> to vector<2x8xf32>
    %cst_69 = arith.constant dense<0.000000e+00> : vector<2x256xf32>
    %262 = tpu.matmul %261, %219, %cst_69 {dimension_numbers = #tpu.dot_dimension_numbers<[1], [0], [0], [1], [0, 0, 1, 1], [], []>} : vector<2x8xf32>, vector<8x256xf32>, vector<2x256xf32> -> vector<2x256xf32>
    %263 = vector.broadcast %220 : vector<1x256xf32> to vector<2x256xf32>
    %264 = arith.addf %262, %263 : vector<2x256xf32>
    %265 = vector.extract_strided_slice %218 {offsets = [0, 88], sizes = [2, 8], strides = [1, 1]} : vector<2x256xf32> to vector<2x8xf32>
    %cst_70 = arith.constant dense<0.000000e+00> : vector<2x256xf32>
    %266 = tpu.matmul %265, %219, %cst_70 {dimension_numbers = #tpu.dot_dimension_numbers<[1], [0], [0], [1], [0, 0, 1, 1], [], []>} : vector<2x8xf32>, vector<8x256xf32>, vector<2x256xf32> -> vector<2x256xf32>
    %267 = vector.broadcast %220 : vector<1x256xf32> to vector<2x256xf32>
    %268 = arith.addf %266, %267 : vector<2x256xf32>
    %269 = vector.extract_strided_slice %218 {offsets = [0, 96], sizes = [2, 8], strides = [1, 1]} : vector<2x256xf32> to vector<2x8xf32>
    %cst_71 = arith.constant dense<0.000000e+00> : vector<2x256xf32>
    %270 = tpu.matmul %269, %219, %cst_71 {dimension_numbers = #tpu.dot_dimension_numbers<[1], [0], [0], [1], [0, 0, 1, 1], [], []>} : vector<2x8xf32>, vector<8x256xf32>, vector<2x256xf32> -> vector<2x256xf32>
    %271 = vector.broadcast %220 : vector<1x256xf32> to vector<2x256xf32>
    %272 = arith.addf %270, %271 : vector<2x256xf32>
    %273 = vector.extract_strided_slice %218 {offsets = [0, 104], sizes = [2, 8], strides = [1, 1]} : vector<2x256xf32> to vector<2x8xf32>
    %cst_72 = arith.constant dense<0.000000e+00> : vector<2x256xf32>
    %274 = tpu.matmul %273, %219, %cst_72 {dimension_numbers = #tpu.dot_dimension_numbers<[1], [0], [0], [1], [0, 0, 1, 1], [], []>} : vector<2x8xf32>, vector<8x256xf32>, vector<2x256xf32> -> vector<2x256xf32>
    %275 = vector.broadcast %220 : vector<1x256xf32> to vector<2x256xf32>
    %276 = arith.addf %274, %275 : vector<2x256xf32>
    %277 = vector.extract_strided_slice %218 {offsets = [0, 112], sizes = [2, 8], strides = [1, 1]} : vector<2x256xf32> to vector<2x8xf32>
    %cst_73 = arith.constant dense<0.000000e+00> : vector<2x256xf32>
    %278 = tpu.matmul %277, %219, %cst_73 {dimension_numbers = #tpu.dot_dimension_numbers<[1], [0], [0], [1], [0, 0, 1, 1], [], []>} : vector<2x8xf32>, vector<8x256xf32>, vector<2x256xf32> -> vector<2x256xf32>
    %279 = vector.broadcast %220 : vector<1x256xf32> to vector<2x256xf32>
    %280 = arith.addf %278, %279 : vector<2x256xf32>
    %281 = vector.extract_strided_slice %218 {offsets = [0, 120], sizes = [2, 8], strides = [1, 1]} : vector<2x256xf32> to vector<2x8xf32>
    %cst_74 = arith.constant dense<0.000000e+00> : vector<2x256xf32>
    %282 = tpu.matmul %281, %219, %cst_74 {dimension_numbers = #tpu.dot_dimension_numbers<[1], [0], [0], [1], [0, 0, 1, 1], [], []>} : vector<2x8xf32>, vector<8x256xf32>, vector<2x256xf32> -> vector<2x256xf32>
    %283 = vector.broadcast %220 : vector<1x256xf32> to vector<2x256xf32>
    %284 = arith.addf %282, %283 : vector<2x256xf32>
    %285 = vector.extract_strided_slice %218 {offsets = [0, 128], sizes = [2, 8], strides = [1, 1]} : vector<2x256xf32> to vector<2x8xf32>
    %cst_75 = arith.constant dense<0.000000e+00> : vector<2x256xf32>
    %286 = tpu.matmul %285, %219, %cst_75 {dimension_numbers = #tpu.dot_dimension_numbers<[1], [0], [0], [1], [0, 0, 1, 1], [], []>} : vector<2x8xf32>, vector<8x256xf32>, vector<2x256xf32> -> vector<2x256xf32>
    %287 = vector.broadcast %220 : vector<1x256xf32> to vector<2x256xf32>
    %288 = arith.addf %286, %287 : vector<2x256xf32>
    %289 = vector.extract_strided_slice %218 {offsets = [0, 136], sizes = [2, 8], strides = [1, 1]} : vector<2x256xf32> to vector<2x8xf32>
    %cst_76 = arith.constant dense<0.000000e+00> : vector<2x256xf32>
    %290 = tpu.matmul %289, %219, %cst_76 {dimension_numbers = #tpu.dot_dimension_numbers<[1], [0], [0], [1], [0, 0, 1, 1], [], []>} : vector<2x8xf32>, vector<8x256xf32>, vector<2x256xf32> -> vector<2x256xf32>
    %291 = vector.broadcast %220 : vector<1x256xf32> to vector<2x256xf32>
    %292 = arith.addf %290, %291 : vector<2x256xf32>
    %293 = vector.extract_strided_slice %218 {offsets = [0, 144], sizes = [2, 8], strides = [1, 1]} : vector<2x256xf32> to vector<2x8xf32>
    %cst_77 = arith.constant dense<0.000000e+00> : vector<2x256xf32>
    %294 = tpu.matmul %293, %219, %cst_77 {dimension_numbers = #tpu.dot_dimension_numbers<[1], [0], [0], [1], [0, 0, 1, 1], [], []>} : vector<2x8xf32>, vector<8x256xf32>, vector<2x256xf32> -> vector<2x256xf32>
    %295 = vector.broadcast %220 : vector<1x256xf32> to vector<2x256xf32>
    %296 = arith.addf %294, %295 : vector<2x256xf32>
    %297 = vector.extract_strided_slice %218 {offsets = [0, 152], sizes = [2, 8], strides = [1, 1]} : vector<2x256xf32> to vector<2x8xf32>
    %cst_78 = arith.constant dense<0.000000e+00> : vector<2x256xf32>
    %298 = tpu.matmul %297, %219, %cst_78 {dimension_numbers = #tpu.dot_dimension_numbers<[1], [0], [0], [1], [0, 0, 1, 1], [], []>} : vector<2x8xf32>, vector<8x256xf32>, vector<2x256xf32> -> vector<2x256xf32>
    %299 = vector.broadcast %220 : vector<1x256xf32> to vector<2x256xf32>
    %300 = arith.addf %298, %299 : vector<2x256xf32>
    %301 = vector.extract_strided_slice %218 {offsets = [0, 160], sizes = [2, 8], strides = [1, 1]} : vector<2x256xf32> to vector<2x8xf32>
    %cst_79 = arith.constant dense<0.000000e+00> : vector<2x256xf32>
    %302 = tpu.matmul %301, %219, %cst_79 {dimension_numbers = #tpu.dot_dimension_numbers<[1], [0], [0], [1], [0, 0, 1, 1], [], []>} : vector<2x8xf32>, vector<8x256xf32>, vector<2x256xf32> -> vector<2x256xf32>
    %303 = vector.broadcast %220 : vector<1x256xf32> to vector<2x256xf32>
    %304 = arith.addf %302, %303 : vector<2x256xf32>
    %305 = vector.extract_strided_slice %218 {offsets = [0, 168], sizes = [2, 8], strides = [1, 1]} : vector<2x256xf32> to vector<2x8xf32>
    %cst_80 = arith.constant dense<0.000000e+00> : vector<2x256xf32>
    %306 = tpu.matmul %305, %219, %cst_80 {dimension_numbers = #tpu.dot_dimension_numbers<[1], [0], [0], [1], [0, 0, 1, 1], [], []>} : vector<2x8xf32>, vector<8x256xf32>, vector<2x256xf32> -> vector<2x256xf32>
    %307 = vector.broadcast %220 : vector<1x256xf32> to vector<2x256xf32>
    %308 = arith.addf %306, %307 : vector<2x256xf32>
    %309 = vector.extract_strided_slice %218 {offsets = [0, 176], sizes = [2, 8], strides = [1, 1]} : vector<2x256xf32> to vector<2x8xf32>
    %cst_81 = arith.constant dense<0.000000e+00> : vector<2x256xf32>
    %310 = tpu.matmul %309, %219, %cst_81 {dimension_numbers = #tpu.dot_dimension_numbers<[1], [0], [0], [1], [0, 0, 1, 1], [], []>} : vector<2x8xf32>, vector<8x256xf32>, vector<2x256xf32> -> vector<2x256xf32>
    %311 = vector.broadcast %220 : vector<1x256xf32> to vector<2x256xf32>
    %312 = arith.addf %310, %311 : vector<2x256xf32>
    %313 = vector.extract_strided_slice %218 {offsets = [0, 184], sizes = [2, 8], strides = [1, 1]} : vector<2x256xf32> to vector<2x8xf32>
    %cst_82 = arith.constant dense<0.000000e+00> : vector<2x256xf32>
    %314 = tpu.matmul %313, %219, %cst_82 {dimension_numbers = #tpu.dot_dimension_numbers<[1], [0], [0], [1], [0, 0, 1, 1], [], []>} : vector<2x8xf32>, vector<8x256xf32>, vector<2x256xf32> -> vector<2x256xf32>
    %315 = vector.broadcast %220 : vector<1x256xf32> to vector<2x256xf32>
    %316 = arith.addf %314, %315 : vector<2x256xf32>
    %317 = vector.extract_strided_slice %218 {offsets = [0, 192], sizes = [2, 8], strides = [1, 1]} : vector<2x256xf32> to vector<2x8xf32>
    %cst_83 = arith.constant dense<0.000000e+00> : vector<2x256xf32>
    %318 = tpu.matmul %317, %219, %cst_83 {dimension_numbers = #tpu.dot_dimension_numbers<[1], [0], [0], [1], [0, 0, 1, 1], [], []>} : vector<2x8xf32>, vector<8x256xf32>, vector<2x256xf32> -> vector<2x256xf32>
    %319 = vector.broadcast %220 : vector<1x256xf32> to vector<2x256xf32>
    %320 = arith.addf %318, %319 : vector<2x256xf32>
    %321 = vector.extract_strided_slice %218 {offsets = [0, 200], sizes = [2, 8], strides = [1, 1]} : vector<2x256xf32> to vector<2x8xf32>
    %cst_84 = arith.constant dense<0.000000e+00> : vector<2x256xf32>
    %322 = tpu.matmul %321, %219, %cst_84 {dimension_numbers = #tpu.dot_dimension_numbers<[1], [0], [0], [1], [0, 0, 1, 1], [], []>} : vector<2x8xf32>, vector<8x256xf32>, vector<2x256xf32> -> vector<2x256xf32>
    %323 = vector.broadcast %220 : vector<1x256xf32> to vector<2x256xf32>
    %324 = arith.addf %322, %323 : vector<2x256xf32>
    %325 = vector.extract_strided_slice %218 {offsets = [0, 208], sizes = [2, 8], strides = [1, 1]} : vector<2x256xf32> to vector<2x8xf32>
    %cst_85 = arith.constant dense<0.000000e+00> : vector<2x256xf32>
    %326 = tpu.matmul %325, %219, %cst_85 {dimension_numbers = #tpu.dot_dimension_numbers<[1], [0], [0], [1], [0, 0, 1, 1], [], []>} : vector<2x8xf32>, vector<8x256xf32>, vector<2x256xf32> -> vector<2x256xf32>
    %327 = vector.broadcast %220 : vector<1x256xf32> to vector<2x256xf32>
    %328 = arith.addf %326, %327 : vector<2x256xf32>
    %329 = vector.extract_strided_slice %218 {offsets = [0, 216], sizes = [2, 8], strides = [1, 1]} : vector<2x256xf32> to vector<2x8xf32>
    %cst_86 = arith.constant dense<0.000000e+00> : vector<2x256xf32>
    %330 = tpu.matmul %329, %219, %cst_86 {dimension_numbers = #tpu.dot_dimension_numbers<[1], [0], [0], [1], [0, 0, 1, 1], [], []>} : vector<2x8xf32>, vector<8x256xf32>, vector<2x256xf32> -> vector<2x256xf32>
    %331 = vector.broadcast %220 : vector<1x256xf32> to vector<2x256xf32>
    %332 = arith.addf %330, %331 : vector<2x256xf32>
    %333 = vector.extract_strided_slice %218 {offsets = [0, 224], sizes = [2, 8], strides = [1, 1]} : vector<2x256xf32> to vector<2x8xf32>
    %cst_87 = arith.constant dense<0.000000e+00> : vector<2x256xf32>
    %334 = tpu.matmul %333, %219, %cst_87 {dimension_numbers = #tpu.dot_dimension_numbers<[1], [0], [0], [1], [0, 0, 1, 1], [], []>} : vector<2x8xf32>, vector<8x256xf32>, vector<2x256xf32> -> vector<2x256xf32>
    %335 = vector.broadcast %220 : vector<1x256xf32> to vector<2x256xf32>
    %336 = arith.addf %334, %335 : vector<2x256xf32>
    %337 = vector.extract_strided_slice %218 {offsets = [0, 232], sizes = [2, 8], strides = [1, 1]} : vector<2x256xf32> to vector<2x8xf32>
    %cst_88 = arith.constant dense<0.000000e+00> : vector<2x256xf32>
    %338 = tpu.matmul %337, %219, %cst_88 {dimension_numbers = #tpu.dot_dimension_numbers<[1], [0], [0], [1], [0, 0, 1, 1], [], []>} : vector<2x8xf32>, vector<8x256xf32>, vector<2x256xf32> -> vector<2x256xf32>
    %339 = vector.broadcast %220 : vector<1x256xf32> to vector<2x256xf32>
    %340 = arith.addf %338, %339 : vector<2x256xf32>
    %341 = vector.extract_strided_slice %218 {offsets = [0, 240], sizes = [2, 8], strides = [1, 1]} : vector<2x256xf32> to vector<2x8xf32>
    %cst_89 = arith.constant dense<0.000000e+00> : vector<2x256xf32>
    %342 = tpu.matmul %341, %219, %cst_89 {dimension_numbers = #tpu.dot_dimension_numbers<[1], [0], [0], [1], [0, 0, 1, 1], [], []>} : vector<2x8xf32>, vector<8x256xf32>, vector<2x256xf32> -> vector<2x256xf32>
    %343 = vector.broadcast %220 : vector<1x256xf32> to vector<2x256xf32>
    %344 = arith.addf %342, %343 : vector<2x256xf32>
    %345 = vector.extract_strided_slice %218 {offsets = [0, 248], sizes = [2, 8], strides = [1, 1]} : vector<2x256xf32> to vector<2x8xf32>
    %cst_90 = arith.constant dense<0.000000e+00> : vector<2x256xf32>
    %346 = tpu.matmul %345, %219, %cst_90 {dimension_numbers = #tpu.dot_dimension_numbers<[1], [0], [0], [1], [0, 0, 1, 1], [], []>} : vector<2x8xf32>, vector<8x256xf32>, vector<2x256xf32> -> vector<2x256xf32>
    %347 = vector.broadcast %220 : vector<1x256xf32> to vector<2x256xf32>
    %348 = arith.addf %346, %347 : vector<2x256xf32>
    %c0_91 = arith.constant 0 : index
    %c0_92 = arith.constant 0 : index
    %349 = vector.load %arg15[%c0_91, %c0_92] : memref<2x64xf32, #tpu.memory_space<vmem>>, vector<2x64xf32>
    %c0_93 = arith.constant 0 : index
    %c0_94 = arith.constant 0 : index
    %350 = vector.load %arg16[%c0_93, %c0_94] : memref<2x64xf32, #tpu.memory_space<vmem>>, vector<2x64xf32>
    %c0_95 = arith.constant 0 : index
    %c0_96 = arith.constant 0 : index
    %351 = vector.load %arg11[%c0_95, %c0_96] : memref<64x256xf32, #tpu.memory_space<vmem>>, vector<64x256xf32>
    %352 = arith.select %35, %224, %348 : vector<2x256xi1>, vector<2x256xf32>
    %cst_97 = arith.constant dense<0.000000e+00> : vector<2x256xf32>
    %353 = tpu.matmul %349, %351, %cst_97 {dimension_numbers = #tpu.dot_dimension_numbers<[1], [0], [0], [1], [0, 0, 1, 1], [], []>} : vector<2x64xf32>, vector<64x256xf32>, vector<2x256xf32> -> vector<2x256xf32>
    %354 = arith.addf %352, %353 : vector<2x256xf32>
    %355 = arith.negf %354 : vector<2x256xf32>
    %356 = math.exp %355 : vector<2x256xf32>
    %cst_98 = arith.constant 1.000000e+00 : f32
    %357 = vector.broadcast %cst_98 : f32 to vector<2x256xf32>
    %358 = arith.addf %357, %356 : vector<2x256xf32>
    %359 = arith.divf %357, %358 : vector<2x256xf32>
    %360 = math.tanh %354 : vector<2x256xf32>
    %361 = vector.extract_strided_slice %359 {offsets = [0, 64], sizes = [2, 64], strides = [1, 1]} : vector<2x256xf32> to vector<2x64xf32>
    %362 = arith.mulf %361, %350 : vector<2x64xf32>
    %363 = vector.extract_strided_slice %359 {offsets = [0, 0], sizes = [2, 64], strides = [1, 1]} : vector<2x256xf32> to vector<2x64xf32>
    %364 = vector.extract_strided_slice %360 {offsets = [0, 128], sizes = [2, 64], strides = [1, 1]} : vector<2x256xf32> to vector<2x64xf32>
    %365 = arith.mulf %363, %364 : vector<2x64xf32>
    %366 = arith.addf %362, %365 : vector<2x64xf32>
    %367 = vector.extract_strided_slice %359 {offsets = [0, 192], sizes = [2, 64], strides = [1, 1]} : vector<2x256xf32> to vector<2x64xf32>
    %368 = math.tanh %366 : vector<2x64xf32>
    %369 = arith.mulf %367, %368 : vector<2x64xf32>
    %370 = arith.select %35, %228, %344 : vector<2x256xi1>, vector<2x256xf32>
    %cst_99 = arith.constant dense<0.000000e+00> : vector<2x256xf32>
    %371 = tpu.matmul %369, %351, %cst_99 {dimension_numbers = #tpu.dot_dimension_numbers<[1], [0], [0], [1], [0, 0, 1, 1], [], []>} : vector<2x64xf32>, vector<64x256xf32>, vector<2x256xf32> -> vector<2x256xf32>
    %372 = arith.addf %370, %371 : vector<2x256xf32>
    %373 = arith.negf %372 : vector<2x256xf32>
    %374 = math.exp %373 : vector<2x256xf32>
    %cst_100 = arith.constant 1.000000e+00 : f32
    %375 = vector.broadcast %cst_100 : f32 to vector<2x256xf32>
    %376 = arith.addf %375, %374 : vector<2x256xf32>
    %377 = arith.divf %375, %376 : vector<2x256xf32>
    %378 = math.tanh %372 : vector<2x256xf32>
    %379 = vector.extract_strided_slice %377 {offsets = [0, 64], sizes = [2, 64], strides = [1, 1]} : vector<2x256xf32> to vector<2x64xf32>
    %380 = arith.mulf %379, %366 : vector<2x64xf32>
    %381 = vector.extract_strided_slice %377 {offsets = [0, 0], sizes = [2, 64], strides = [1, 1]} : vector<2x256xf32> to vector<2x64xf32>
    %382 = vector.extract_strided_slice %378 {offsets = [0, 128], sizes = [2, 64], strides = [1, 1]} : vector<2x256xf32> to vector<2x64xf32>
    %383 = arith.mulf %381, %382 : vector<2x64xf32>
    %384 = arith.addf %380, %383 : vector<2x64xf32>
    %385 = vector.extract_strided_slice %377 {offsets = [0, 192], sizes = [2, 64], strides = [1, 1]} : vector<2x256xf32> to vector<2x64xf32>
    %386 = math.tanh %384 : vector<2x64xf32>
    %387 = arith.mulf %385, %386 : vector<2x64xf32>
    %388 = arith.select %35, %232, %340 : vector<2x256xi1>, vector<2x256xf32>
    %cst_101 = arith.constant dense<0.000000e+00> : vector<2x256xf32>
    %389 = tpu.matmul %387, %351, %cst_101 {dimension_numbers = #tpu.dot_dimension_numbers<[1], [0], [0], [1], [0, 0, 1, 1], [], []>} : vector<2x64xf32>, vector<64x256xf32>, vector<2x256xf32> -> vector<2x256xf32>
    %390 = arith.addf %388, %389 : vector<2x256xf32>
    %391 = arith.negf %390 : vector<2x256xf32>
    %392 = math.exp %391 : vector<2x256xf32>
    %cst_102 = arith.constant 1.000000e+00 : f32
    %393 = vector.broadcast %cst_102 : f32 to vector<2x256xf32>
    %394 = arith.addf %393, %392 : vector<2x256xf32>
    %395 = arith.divf %393, %394 : vector<2x256xf32>
    %396 = math.tanh %390 : vector<2x256xf32>
    %397 = vector.extract_strided_slice %395 {offsets = [0, 64], sizes = [2, 64], strides = [1, 1]} : vector<2x256xf32> to vector<2x64xf32>
    %398 = arith.mulf %397, %384 : vector<2x64xf32>
    %399 = vector.extract_strided_slice %395 {offsets = [0, 0], sizes = [2, 64], strides = [1, 1]} : vector<2x256xf32> to vector<2x64xf32>
    %400 = vector.extract_strided_slice %396 {offsets = [0, 128], sizes = [2, 64], strides = [1, 1]} : vector<2x256xf32> to vector<2x64xf32>
    %401 = arith.mulf %399, %400 : vector<2x64xf32>
    %402 = arith.addf %398, %401 : vector<2x64xf32>
    %403 = vector.extract_strided_slice %395 {offsets = [0, 192], sizes = [2, 64], strides = [1, 1]} : vector<2x256xf32> to vector<2x64xf32>
    %404 = math.tanh %402 : vector<2x64xf32>
    %405 = arith.mulf %403, %404 : vector<2x64xf32>
    %406 = arith.select %35, %236, %336 : vector<2x256xi1>, vector<2x256xf32>
    %cst_103 = arith.constant dense<0.000000e+00> : vector<2x256xf32>
    %407 = tpu.matmul %405, %351, %cst_103 {dimension_numbers = #tpu.dot_dimension_numbers<[1], [0], [0], [1], [0, 0, 1, 1], [], []>} : vector<2x64xf32>, vector<64x256xf32>, vector<2x256xf32> -> vector<2x256xf32>
    %408 = arith.addf %406, %407 : vector<2x256xf32>
    %409 = arith.negf %408 : vector<2x256xf32>
    %410 = math.exp %409 : vector<2x256xf32>
    %cst_104 = arith.constant 1.000000e+00 : f32
    %411 = vector.broadcast %cst_104 : f32 to vector<2x256xf32>
    %412 = arith.addf %411, %410 : vector<2x256xf32>
    %413 = arith.divf %411, %412 : vector<2x256xf32>
    %414 = math.tanh %408 : vector<2x256xf32>
    %415 = vector.extract_strided_slice %413 {offsets = [0, 64], sizes = [2, 64], strides = [1, 1]} : vector<2x256xf32> to vector<2x64xf32>
    %416 = arith.mulf %415, %402 : vector<2x64xf32>
    %417 = vector.extract_strided_slice %413 {offsets = [0, 0], sizes = [2, 64], strides = [1, 1]} : vector<2x256xf32> to vector<2x64xf32>
    %418 = vector.extract_strided_slice %414 {offsets = [0, 128], sizes = [2, 64], strides = [1, 1]} : vector<2x256xf32> to vector<2x64xf32>
    %419 = arith.mulf %417, %418 : vector<2x64xf32>
    %420 = arith.addf %416, %419 : vector<2x64xf32>
    %421 = vector.extract_strided_slice %413 {offsets = [0, 192], sizes = [2, 64], strides = [1, 1]} : vector<2x256xf32> to vector<2x64xf32>
    %422 = math.tanh %420 : vector<2x64xf32>
    %423 = arith.mulf %421, %422 : vector<2x64xf32>
    %424 = arith.select %35, %240, %332 : vector<2x256xi1>, vector<2x256xf32>
    %cst_105 = arith.constant dense<0.000000e+00> : vector<2x256xf32>
    %425 = tpu.matmul %423, %351, %cst_105 {dimension_numbers = #tpu.dot_dimension_numbers<[1], [0], [0], [1], [0, 0, 1, 1], [], []>} : vector<2x64xf32>, vector<64x256xf32>, vector<2x256xf32> -> vector<2x256xf32>
    %426 = arith.addf %424, %425 : vector<2x256xf32>
    %427 = arith.negf %426 : vector<2x256xf32>
    %428 = math.exp %427 : vector<2x256xf32>
    %cst_106 = arith.constant 1.000000e+00 : f32
    %429 = vector.broadcast %cst_106 : f32 to vector<2x256xf32>
    %430 = arith.addf %429, %428 : vector<2x256xf32>
    %431 = arith.divf %429, %430 : vector<2x256xf32>
    %432 = math.tanh %426 : vector<2x256xf32>
    %433 = vector.extract_strided_slice %431 {offsets = [0, 64], sizes = [2, 64], strides = [1, 1]} : vector<2x256xf32> to vector<2x64xf32>
    %434 = arith.mulf %433, %420 : vector<2x64xf32>
    %435 = vector.extract_strided_slice %431 {offsets = [0, 0], sizes = [2, 64], strides = [1, 1]} : vector<2x256xf32> to vector<2x64xf32>
    %436 = vector.extract_strided_slice %432 {offsets = [0, 128], sizes = [2, 64], strides = [1, 1]} : vector<2x256xf32> to vector<2x64xf32>
    %437 = arith.mulf %435, %436 : vector<2x64xf32>
    %438 = arith.addf %434, %437 : vector<2x64xf32>
    %439 = vector.extract_strided_slice %431 {offsets = [0, 192], sizes = [2, 64], strides = [1, 1]} : vector<2x256xf32> to vector<2x64xf32>
    %440 = math.tanh %438 : vector<2x64xf32>
    %441 = arith.mulf %439, %440 : vector<2x64xf32>
    %442 = arith.select %35, %244, %328 : vector<2x256xi1>, vector<2x256xf32>
    %cst_107 = arith.constant dense<0.000000e+00> : vector<2x256xf32>
    %443 = tpu.matmul %441, %351, %cst_107 {dimension_numbers = #tpu.dot_dimension_numbers<[1], [0], [0], [1], [0, 0, 1, 1], [], []>} : vector<2x64xf32>, vector<64x256xf32>, vector<2x256xf32> -> vector<2x256xf32>
    %444 = arith.addf %442, %443 : vector<2x256xf32>
    %445 = arith.negf %444 : vector<2x256xf32>
    %446 = math.exp %445 : vector<2x256xf32>
    %cst_108 = arith.constant 1.000000e+00 : f32
    %447 = vector.broadcast %cst_108 : f32 to vector<2x256xf32>
    %448 = arith.addf %447, %446 : vector<2x256xf32>
    %449 = arith.divf %447, %448 : vector<2x256xf32>
    %450 = math.tanh %444 : vector<2x256xf32>
    %451 = vector.extract_strided_slice %449 {offsets = [0, 64], sizes = [2, 64], strides = [1, 1]} : vector<2x256xf32> to vector<2x64xf32>
    %452 = arith.mulf %451, %438 : vector<2x64xf32>
    %453 = vector.extract_strided_slice %449 {offsets = [0, 0], sizes = [2, 64], strides = [1, 1]} : vector<2x256xf32> to vector<2x64xf32>
    %454 = vector.extract_strided_slice %450 {offsets = [0, 128], sizes = [2, 64], strides = [1, 1]} : vector<2x256xf32> to vector<2x64xf32>
    %455 = arith.mulf %453, %454 : vector<2x64xf32>
    %456 = arith.addf %452, %455 : vector<2x64xf32>
    %457 = vector.extract_strided_slice %449 {offsets = [0, 192], sizes = [2, 64], strides = [1, 1]} : vector<2x256xf32> to vector<2x64xf32>
    %458 = math.tanh %456 : vector<2x64xf32>
    %459 = arith.mulf %457, %458 : vector<2x64xf32>
    %460 = arith.select %35, %248, %324 : vector<2x256xi1>, vector<2x256xf32>
    %cst_109 = arith.constant dense<0.000000e+00> : vector<2x256xf32>
    %461 = tpu.matmul %459, %351, %cst_109 {dimension_numbers = #tpu.dot_dimension_numbers<[1], [0], [0], [1], [0, 0, 1, 1], [], []>} : vector<2x64xf32>, vector<64x256xf32>, vector<2x256xf32> -> vector<2x256xf32>
    %462 = arith.addf %460, %461 : vector<2x256xf32>
    %463 = arith.negf %462 : vector<2x256xf32>
    %464 = math.exp %463 : vector<2x256xf32>
    %cst_110 = arith.constant 1.000000e+00 : f32
    %465 = vector.broadcast %cst_110 : f32 to vector<2x256xf32>
    %466 = arith.addf %465, %464 : vector<2x256xf32>
    %467 = arith.divf %465, %466 : vector<2x256xf32>
    %468 = math.tanh %462 : vector<2x256xf32>
    %469 = vector.extract_strided_slice %467 {offsets = [0, 64], sizes = [2, 64], strides = [1, 1]} : vector<2x256xf32> to vector<2x64xf32>
    %470 = arith.mulf %469, %456 : vector<2x64xf32>
    %471 = vector.extract_strided_slice %467 {offsets = [0, 0], sizes = [2, 64], strides = [1, 1]} : vector<2x256xf32> to vector<2x64xf32>
    %472 = vector.extract_strided_slice %468 {offsets = [0, 128], sizes = [2, 64], strides = [1, 1]} : vector<2x256xf32> to vector<2x64xf32>
    %473 = arith.mulf %471, %472 : vector<2x64xf32>
    %474 = arith.addf %470, %473 : vector<2x64xf32>
    %475 = vector.extract_strided_slice %467 {offsets = [0, 192], sizes = [2, 64], strides = [1, 1]} : vector<2x256xf32> to vector<2x64xf32>
    %476 = math.tanh %474 : vector<2x64xf32>
    %477 = arith.mulf %475, %476 : vector<2x64xf32>
    %478 = arith.select %35, %252, %320 : vector<2x256xi1>, vector<2x256xf32>
    %cst_111 = arith.constant dense<0.000000e+00> : vector<2x256xf32>
    %479 = tpu.matmul %477, %351, %cst_111 {dimension_numbers = #tpu.dot_dimension_numbers<[1], [0], [0], [1], [0, 0, 1, 1], [], []>} : vector<2x64xf32>, vector<64x256xf32>, vector<2x256xf32> -> vector<2x256xf32>
    %480 = arith.addf %478, %479 : vector<2x256xf32>
    %481 = arith.negf %480 : vector<2x256xf32>
    %482 = math.exp %481 : vector<2x256xf32>
    %cst_112 = arith.constant 1.000000e+00 : f32
    %483 = vector.broadcast %cst_112 : f32 to vector<2x256xf32>
    %484 = arith.addf %483, %482 : vector<2x256xf32>
    %485 = arith.divf %483, %484 : vector<2x256xf32>
    %486 = math.tanh %480 : vector<2x256xf32>
    %487 = vector.extract_strided_slice %485 {offsets = [0, 64], sizes = [2, 64], strides = [1, 1]} : vector<2x256xf32> to vector<2x64xf32>
    %488 = arith.mulf %487, %474 : vector<2x64xf32>
    %489 = vector.extract_strided_slice %485 {offsets = [0, 0], sizes = [2, 64], strides = [1, 1]} : vector<2x256xf32> to vector<2x64xf32>
    %490 = vector.extract_strided_slice %486 {offsets = [0, 128], sizes = [2, 64], strides = [1, 1]} : vector<2x256xf32> to vector<2x64xf32>
    %491 = arith.mulf %489, %490 : vector<2x64xf32>
    %492 = arith.addf %488, %491 : vector<2x64xf32>
    %493 = vector.extract_strided_slice %485 {offsets = [0, 192], sizes = [2, 64], strides = [1, 1]} : vector<2x256xf32> to vector<2x64xf32>
    %494 = math.tanh %492 : vector<2x64xf32>
    %495 = arith.mulf %493, %494 : vector<2x64xf32>
    %496 = arith.select %35, %256, %316 : vector<2x256xi1>, vector<2x256xf32>
    %cst_113 = arith.constant dense<0.000000e+00> : vector<2x256xf32>
    %497 = tpu.matmul %495, %351, %cst_113 {dimension_numbers = #tpu.dot_dimension_numbers<[1], [0], [0], [1], [0, 0, 1, 1], [], []>} : vector<2x64xf32>, vector<64x256xf32>, vector<2x256xf32> -> vector<2x256xf32>
    %498 = arith.addf %496, %497 : vector<2x256xf32>
    %499 = arith.negf %498 : vector<2x256xf32>
    %500 = math.exp %499 : vector<2x256xf32>
    %cst_114 = arith.constant 1.000000e+00 : f32
    %501 = vector.broadcast %cst_114 : f32 to vector<2x256xf32>
    %502 = arith.addf %501, %500 : vector<2x256xf32>
    %503 = arith.divf %501, %502 : vector<2x256xf32>
    %504 = math.tanh %498 : vector<2x256xf32>
    %505 = vector.extract_strided_slice %503 {offsets = [0, 64], sizes = [2, 64], strides = [1, 1]} : vector<2x256xf32> to vector<2x64xf32>
    %506 = arith.mulf %505, %492 : vector<2x64xf32>
    %507 = vector.extract_strided_slice %503 {offsets = [0, 0], sizes = [2, 64], strides = [1, 1]} : vector<2x256xf32> to vector<2x64xf32>
    %508 = vector.extract_strided_slice %504 {offsets = [0, 128], sizes = [2, 64], strides = [1, 1]} : vector<2x256xf32> to vector<2x64xf32>
    %509 = arith.mulf %507, %508 : vector<2x64xf32>
    %510 = arith.addf %506, %509 : vector<2x64xf32>
    %511 = vector.extract_strided_slice %503 {offsets = [0, 192], sizes = [2, 64], strides = [1, 1]} : vector<2x256xf32> to vector<2x64xf32>
    %512 = math.tanh %510 : vector<2x64xf32>
    %513 = arith.mulf %511, %512 : vector<2x64xf32>
    %514 = arith.select %35, %260, %312 : vector<2x256xi1>, vector<2x256xf32>
    %cst_115 = arith.constant dense<0.000000e+00> : vector<2x256xf32>
    %515 = tpu.matmul %513, %351, %cst_115 {dimension_numbers = #tpu.dot_dimension_numbers<[1], [0], [0], [1], [0, 0, 1, 1], [], []>} : vector<2x64xf32>, vector<64x256xf32>, vector<2x256xf32> -> vector<2x256xf32>
    %516 = arith.addf %514, %515 : vector<2x256xf32>
    %517 = arith.negf %516 : vector<2x256xf32>
    %518 = math.exp %517 : vector<2x256xf32>
    %cst_116 = arith.constant 1.000000e+00 : f32
    %519 = vector.broadcast %cst_116 : f32 to vector<2x256xf32>
    %520 = arith.addf %519, %518 : vector<2x256xf32>
    %521 = arith.divf %519, %520 : vector<2x256xf32>
    %522 = math.tanh %516 : vector<2x256xf32>
    %523 = vector.extract_strided_slice %521 {offsets = [0, 64], sizes = [2, 64], strides = [1, 1]} : vector<2x256xf32> to vector<2x64xf32>
    %524 = arith.mulf %523, %510 : vector<2x64xf32>
    %525 = vector.extract_strided_slice %521 {offsets = [0, 0], sizes = [2, 64], strides = [1, 1]} : vector<2x256xf32> to vector<2x64xf32>
    %526 = vector.extract_strided_slice %522 {offsets = [0, 128], sizes = [2, 64], strides = [1, 1]} : vector<2x256xf32> to vector<2x64xf32>
    %527 = arith.mulf %525, %526 : vector<2x64xf32>
    %528 = arith.addf %524, %527 : vector<2x64xf32>
    %529 = vector.extract_strided_slice %521 {offsets = [0, 192], sizes = [2, 64], strides = [1, 1]} : vector<2x256xf32> to vector<2x64xf32>
    %530 = math.tanh %528 : vector<2x64xf32>
    %531 = arith.mulf %529, %530 : vector<2x64xf32>
    %532 = arith.select %35, %264, %308 : vector<2x256xi1>, vector<2x256xf32>
    %cst_117 = arith.constant dense<0.000000e+00> : vector<2x256xf32>
    %533 = tpu.matmul %531, %351, %cst_117 {dimension_numbers = #tpu.dot_dimension_numbers<[1], [0], [0], [1], [0, 0, 1, 1], [], []>} : vector<2x64xf32>, vector<64x256xf32>, vector<2x256xf32> -> vector<2x256xf32>
    %534 = arith.addf %532, %533 : vector<2x256xf32>
    %535 = arith.negf %534 : vector<2x256xf32>
    %536 = math.exp %535 : vector<2x256xf32>
    %cst_118 = arith.constant 1.000000e+00 : f32
    %537 = vector.broadcast %cst_118 : f32 to vector<2x256xf32>
    %538 = arith.addf %537, %536 : vector<2x256xf32>
    %539 = arith.divf %537, %538 : vector<2x256xf32>
    %540 = math.tanh %534 : vector<2x256xf32>
    %541 = vector.extract_strided_slice %539 {offsets = [0, 64], sizes = [2, 64], strides = [1, 1]} : vector<2x256xf32> to vector<2x64xf32>
    %542 = arith.mulf %541, %528 : vector<2x64xf32>
    %543 = vector.extract_strided_slice %539 {offsets = [0, 0], sizes = [2, 64], strides = [1, 1]} : vector<2x256xf32> to vector<2x64xf32>
    %544 = vector.extract_strided_slice %540 {offsets = [0, 128], sizes = [2, 64], strides = [1, 1]} : vector<2x256xf32> to vector<2x64xf32>
    %545 = arith.mulf %543, %544 : vector<2x64xf32>
    %546 = arith.addf %542, %545 : vector<2x64xf32>
    %547 = vector.extract_strided_slice %539 {offsets = [0, 192], sizes = [2, 64], strides = [1, 1]} : vector<2x256xf32> to vector<2x64xf32>
    %548 = math.tanh %546 : vector<2x64xf32>
    %549 = arith.mulf %547, %548 : vector<2x64xf32>
    %550 = arith.select %35, %268, %304 : vector<2x256xi1>, vector<2x256xf32>
    %cst_119 = arith.constant dense<0.000000e+00> : vector<2x256xf32>
    %551 = tpu.matmul %549, %351, %cst_119 {dimension_numbers = #tpu.dot_dimension_numbers<[1], [0], [0], [1], [0, 0, 1, 1], [], []>} : vector<2x64xf32>, vector<64x256xf32>, vector<2x256xf32> -> vector<2x256xf32>
    %552 = arith.addf %550, %551 : vector<2x256xf32>
    %553 = arith.negf %552 : vector<2x256xf32>
    %554 = math.exp %553 : vector<2x256xf32>
    %cst_120 = arith.constant 1.000000e+00 : f32
    %555 = vector.broadcast %cst_120 : f32 to vector<2x256xf32>
    %556 = arith.addf %555, %554 : vector<2x256xf32>
    %557 = arith.divf %555, %556 : vector<2x256xf32>
    %558 = math.tanh %552 : vector<2x256xf32>
    %559 = vector.extract_strided_slice %557 {offsets = [0, 64], sizes = [2, 64], strides = [1, 1]} : vector<2x256xf32> to vector<2x64xf32>
    %560 = arith.mulf %559, %546 : vector<2x64xf32>
    %561 = vector.extract_strided_slice %557 {offsets = [0, 0], sizes = [2, 64], strides = [1, 1]} : vector<2x256xf32> to vector<2x64xf32>
    %562 = vector.extract_strided_slice %558 {offsets = [0, 128], sizes = [2, 64], strides = [1, 1]} : vector<2x256xf32> to vector<2x64xf32>
    %563 = arith.mulf %561, %562 : vector<2x64xf32>
    %564 = arith.addf %560, %563 : vector<2x64xf32>
    %565 = vector.extract_strided_slice %557 {offsets = [0, 192], sizes = [2, 64], strides = [1, 1]} : vector<2x256xf32> to vector<2x64xf32>
    %566 = math.tanh %564 : vector<2x64xf32>
    %567 = arith.mulf %565, %566 : vector<2x64xf32>
    %568 = arith.select %35, %272, %300 : vector<2x256xi1>, vector<2x256xf32>
    %cst_121 = arith.constant dense<0.000000e+00> : vector<2x256xf32>
    %569 = tpu.matmul %567, %351, %cst_121 {dimension_numbers = #tpu.dot_dimension_numbers<[1], [0], [0], [1], [0, 0, 1, 1], [], []>} : vector<2x64xf32>, vector<64x256xf32>, vector<2x256xf32> -> vector<2x256xf32>
    %570 = arith.addf %568, %569 : vector<2x256xf32>
    %571 = arith.negf %570 : vector<2x256xf32>
    %572 = math.exp %571 : vector<2x256xf32>
    %cst_122 = arith.constant 1.000000e+00 : f32
    %573 = vector.broadcast %cst_122 : f32 to vector<2x256xf32>
    %574 = arith.addf %573, %572 : vector<2x256xf32>
    %575 = arith.divf %573, %574 : vector<2x256xf32>
    %576 = math.tanh %570 : vector<2x256xf32>
    %577 = vector.extract_strided_slice %575 {offsets = [0, 64], sizes = [2, 64], strides = [1, 1]} : vector<2x256xf32> to vector<2x64xf32>
    %578 = arith.mulf %577, %564 : vector<2x64xf32>
    %579 = vector.extract_strided_slice %575 {offsets = [0, 0], sizes = [2, 64], strides = [1, 1]} : vector<2x256xf32> to vector<2x64xf32>
    %580 = vector.extract_strided_slice %576 {offsets = [0, 128], sizes = [2, 64], strides = [1, 1]} : vector<2x256xf32> to vector<2x64xf32>
    %581 = arith.mulf %579, %580 : vector<2x64xf32>
    %582 = arith.addf %578, %581 : vector<2x64xf32>
    %583 = vector.extract_strided_slice %575 {offsets = [0, 192], sizes = [2, 64], strides = [1, 1]} : vector<2x256xf32> to vector<2x64xf32>
    %584 = math.tanh %582 : vector<2x64xf32>
    %585 = arith.mulf %583, %584 : vector<2x64xf32>
    %586 = arith.select %35, %276, %296 : vector<2x256xi1>, vector<2x256xf32>
    %cst_123 = arith.constant dense<0.000000e+00> : vector<2x256xf32>
    %587 = tpu.matmul %585, %351, %cst_123 {dimension_numbers = #tpu.dot_dimension_numbers<[1], [0], [0], [1], [0, 0, 1, 1], [], []>} : vector<2x64xf32>, vector<64x256xf32>, vector<2x256xf32> -> vector<2x256xf32>
    %588 = arith.addf %586, %587 : vector<2x256xf32>
    %589 = arith.negf %588 : vector<2x256xf32>
    %590 = math.exp %589 : vector<2x256xf32>
    %cst_124 = arith.constant 1.000000e+00 : f32
    %591 = vector.broadcast %cst_124 : f32 to vector<2x256xf32>
    %592 = arith.addf %591, %590 : vector<2x256xf32>
    %593 = arith.divf %591, %592 : vector<2x256xf32>
    %594 = math.tanh %588 : vector<2x256xf32>
    %595 = vector.extract_strided_slice %593 {offsets = [0, 64], sizes = [2, 64], strides = [1, 1]} : vector<2x256xf32> to vector<2x64xf32>
    %596 = arith.mulf %595, %582 : vector<2x64xf32>
    %597 = vector.extract_strided_slice %593 {offsets = [0, 0], sizes = [2, 64], strides = [1, 1]} : vector<2x256xf32> to vector<2x64xf32>
    %598 = vector.extract_strided_slice %594 {offsets = [0, 128], sizes = [2, 64], strides = [1, 1]} : vector<2x256xf32> to vector<2x64xf32>
    %599 = arith.mulf %597, %598 : vector<2x64xf32>
    %600 = arith.addf %596, %599 : vector<2x64xf32>
    %601 = vector.extract_strided_slice %593 {offsets = [0, 192], sizes = [2, 64], strides = [1, 1]} : vector<2x256xf32> to vector<2x64xf32>
    %602 = math.tanh %600 : vector<2x64xf32>
    %603 = arith.mulf %601, %602 : vector<2x64xf32>
    %604 = arith.select %35, %280, %292 : vector<2x256xi1>, vector<2x256xf32>
    %cst_125 = arith.constant dense<0.000000e+00> : vector<2x256xf32>
    %605 = tpu.matmul %603, %351, %cst_125 {dimension_numbers = #tpu.dot_dimension_numbers<[1], [0], [0], [1], [0, 0, 1, 1], [], []>} : vector<2x64xf32>, vector<64x256xf32>, vector<2x256xf32> -> vector<2x256xf32>
    %606 = arith.addf %604, %605 : vector<2x256xf32>
    %607 = arith.negf %606 : vector<2x256xf32>
    %608 = math.exp %607 : vector<2x256xf32>
    %cst_126 = arith.constant 1.000000e+00 : f32
    %609 = vector.broadcast %cst_126 : f32 to vector<2x256xf32>
    %610 = arith.addf %609, %608 : vector<2x256xf32>
    %611 = arith.divf %609, %610 : vector<2x256xf32>
    %612 = math.tanh %606 : vector<2x256xf32>
    %613 = vector.extract_strided_slice %611 {offsets = [0, 64], sizes = [2, 64], strides = [1, 1]} : vector<2x256xf32> to vector<2x64xf32>
    %614 = arith.mulf %613, %600 : vector<2x64xf32>
    %615 = vector.extract_strided_slice %611 {offsets = [0, 0], sizes = [2, 64], strides = [1, 1]} : vector<2x256xf32> to vector<2x64xf32>
    %616 = vector.extract_strided_slice %612 {offsets = [0, 128], sizes = [2, 64], strides = [1, 1]} : vector<2x256xf32> to vector<2x64xf32>
    %617 = arith.mulf %615, %616 : vector<2x64xf32>
    %618 = arith.addf %614, %617 : vector<2x64xf32>
    %619 = vector.extract_strided_slice %611 {offsets = [0, 192], sizes = [2, 64], strides = [1, 1]} : vector<2x256xf32> to vector<2x64xf32>
    %620 = math.tanh %618 : vector<2x64xf32>
    %621 = arith.mulf %619, %620 : vector<2x64xf32>
    %622 = arith.select %35, %284, %288 : vector<2x256xi1>, vector<2x256xf32>
    %cst_127 = arith.constant dense<0.000000e+00> : vector<2x256xf32>
    %623 = tpu.matmul %621, %351, %cst_127 {dimension_numbers = #tpu.dot_dimension_numbers<[1], [0], [0], [1], [0, 0, 1, 1], [], []>} : vector<2x64xf32>, vector<64x256xf32>, vector<2x256xf32> -> vector<2x256xf32>
    %624 = arith.addf %622, %623 : vector<2x256xf32>
    %625 = arith.negf %624 : vector<2x256xf32>
    %626 = math.exp %625 : vector<2x256xf32>
    %cst_128 = arith.constant 1.000000e+00 : f32
    %627 = vector.broadcast %cst_128 : f32 to vector<2x256xf32>
    %628 = arith.addf %627, %626 : vector<2x256xf32>
    %629 = arith.divf %627, %628 : vector<2x256xf32>
    %630 = math.tanh %624 : vector<2x256xf32>
    %631 = vector.extract_strided_slice %629 {offsets = [0, 64], sizes = [2, 64], strides = [1, 1]} : vector<2x256xf32> to vector<2x64xf32>
    %632 = arith.mulf %631, %618 : vector<2x64xf32>
    %633 = vector.extract_strided_slice %629 {offsets = [0, 0], sizes = [2, 64], strides = [1, 1]} : vector<2x256xf32> to vector<2x64xf32>
    %634 = vector.extract_strided_slice %630 {offsets = [0, 128], sizes = [2, 64], strides = [1, 1]} : vector<2x256xf32> to vector<2x64xf32>
    %635 = arith.mulf %633, %634 : vector<2x64xf32>
    %636 = arith.addf %632, %635 : vector<2x64xf32>
    %637 = vector.extract_strided_slice %629 {offsets = [0, 192], sizes = [2, 64], strides = [1, 1]} : vector<2x256xf32> to vector<2x64xf32>
    %638 = math.tanh %636 : vector<2x64xf32>
    %639 = arith.mulf %637, %638 : vector<2x64xf32>
    %640 = arith.select %35, %288, %284 : vector<2x256xi1>, vector<2x256xf32>
    %cst_129 = arith.constant dense<0.000000e+00> : vector<2x256xf32>
    %641 = tpu.matmul %639, %351, %cst_129 {dimension_numbers = #tpu.dot_dimension_numbers<[1], [0], [0], [1], [0, 0, 1, 1], [], []>} : vector<2x64xf32>, vector<64x256xf32>, vector<2x256xf32> -> vector<2x256xf32>
    %642 = arith.addf %640, %641 : vector<2x256xf32>
    %643 = arith.negf %642 : vector<2x256xf32>
    %644 = math.exp %643 : vector<2x256xf32>
    %cst_130 = arith.constant 1.000000e+00 : f32
    %645 = vector.broadcast %cst_130 : f32 to vector<2x256xf32>
    %646 = arith.addf %645, %644 : vector<2x256xf32>
    %647 = arith.divf %645, %646 : vector<2x256xf32>
    %648 = math.tanh %642 : vector<2x256xf32>
    %649 = vector.extract_strided_slice %647 {offsets = [0, 64], sizes = [2, 64], strides = [1, 1]} : vector<2x256xf32> to vector<2x64xf32>
    %650 = arith.mulf %649, %636 : vector<2x64xf32>
    %651 = vector.extract_strided_slice %647 {offsets = [0, 0], sizes = [2, 64], strides = [1, 1]} : vector<2x256xf32> to vector<2x64xf32>
    %652 = vector.extract_strided_slice %648 {offsets = [0, 128], sizes = [2, 64], strides = [1, 1]} : vector<2x256xf32> to vector<2x64xf32>
    %653 = arith.mulf %651, %652 : vector<2x64xf32>
    %654 = arith.addf %650, %653 : vector<2x64xf32>
    %655 = vector.extract_strided_slice %647 {offsets = [0, 192], sizes = [2, 64], strides = [1, 1]} : vector<2x256xf32> to vector<2x64xf32>
    %656 = math.tanh %654 : vector<2x64xf32>
    %657 = arith.mulf %655, %656 : vector<2x64xf32>
    %658 = arith.select %35, %292, %280 : vector<2x256xi1>, vector<2x256xf32>
    %cst_131 = arith.constant dense<0.000000e+00> : vector<2x256xf32>
    %659 = tpu.matmul %657, %351, %cst_131 {dimension_numbers = #tpu.dot_dimension_numbers<[1], [0], [0], [1], [0, 0, 1, 1], [], []>} : vector<2x64xf32>, vector<64x256xf32>, vector<2x256xf32> -> vector<2x256xf32>
    %660 = arith.addf %658, %659 : vector<2x256xf32>
    %661 = arith.negf %660 : vector<2x256xf32>
    %662 = math.exp %661 : vector<2x256xf32>
    %cst_132 = arith.constant 1.000000e+00 : f32
    %663 = vector.broadcast %cst_132 : f32 to vector<2x256xf32>
    %664 = arith.addf %663, %662 : vector<2x256xf32>
    %665 = arith.divf %663, %664 : vector<2x256xf32>
    %666 = math.tanh %660 : vector<2x256xf32>
    %667 = vector.extract_strided_slice %665 {offsets = [0, 64], sizes = [2, 64], strides = [1, 1]} : vector<2x256xf32> to vector<2x64xf32>
    %668 = arith.mulf %667, %654 : vector<2x64xf32>
    %669 = vector.extract_strided_slice %665 {offsets = [0, 0], sizes = [2, 64], strides = [1, 1]} : vector<2x256xf32> to vector<2x64xf32>
    %670 = vector.extract_strided_slice %666 {offsets = [0, 128], sizes = [2, 64], strides = [1, 1]} : vector<2x256xf32> to vector<2x64xf32>
    %671 = arith.mulf %669, %670 : vector<2x64xf32>
    %672 = arith.addf %668, %671 : vector<2x64xf32>
    %673 = vector.extract_strided_slice %665 {offsets = [0, 192], sizes = [2, 64], strides = [1, 1]} : vector<2x256xf32> to vector<2x64xf32>
    %674 = math.tanh %672 : vector<2x64xf32>
    %675 = arith.mulf %673, %674 : vector<2x64xf32>
    %676 = arith.select %35, %296, %276 : vector<2x256xi1>, vector<2x256xf32>
    %cst_133 = arith.constant dense<0.000000e+00> : vector<2x256xf32>
    %677 = tpu.matmul %675, %351, %cst_133 {dimension_numbers = #tpu.dot_dimension_numbers<[1], [0], [0], [1], [0, 0, 1, 1], [], []>} : vector<2x64xf32>, vector<64x256xf32>, vector<2x256xf32> -> vector<2x256xf32>
    %678 = arith.addf %676, %677 : vector<2x256xf32>
    %679 = arith.negf %678 : vector<2x256xf32>
    %680 = math.exp %679 : vector<2x256xf32>
    %cst_134 = arith.constant 1.000000e+00 : f32
    %681 = vector.broadcast %cst_134 : f32 to vector<2x256xf32>
    %682 = arith.addf %681, %680 : vector<2x256xf32>
    %683 = arith.divf %681, %682 : vector<2x256xf32>
    %684 = math.tanh %678 : vector<2x256xf32>
    %685 = vector.extract_strided_slice %683 {offsets = [0, 64], sizes = [2, 64], strides = [1, 1]} : vector<2x256xf32> to vector<2x64xf32>
    %686 = arith.mulf %685, %672 : vector<2x64xf32>
    %687 = vector.extract_strided_slice %683 {offsets = [0, 0], sizes = [2, 64], strides = [1, 1]} : vector<2x256xf32> to vector<2x64xf32>
    %688 = vector.extract_strided_slice %684 {offsets = [0, 128], sizes = [2, 64], strides = [1, 1]} : vector<2x256xf32> to vector<2x64xf32>
    %689 = arith.mulf %687, %688 : vector<2x64xf32>
    %690 = arith.addf %686, %689 : vector<2x64xf32>
    %691 = vector.extract_strided_slice %683 {offsets = [0, 192], sizes = [2, 64], strides = [1, 1]} : vector<2x256xf32> to vector<2x64xf32>
    %692 = math.tanh %690 : vector<2x64xf32>
    %693 = arith.mulf %691, %692 : vector<2x64xf32>
    %694 = arith.select %35, %300, %272 : vector<2x256xi1>, vector<2x256xf32>
    %cst_135 = arith.constant dense<0.000000e+00> : vector<2x256xf32>
    %695 = tpu.matmul %693, %351, %cst_135 {dimension_numbers = #tpu.dot_dimension_numbers<[1], [0], [0], [1], [0, 0, 1, 1], [], []>} : vector<2x64xf32>, vector<64x256xf32>, vector<2x256xf32> -> vector<2x256xf32>
    %696 = arith.addf %694, %695 : vector<2x256xf32>
    %697 = arith.negf %696 : vector<2x256xf32>
    %698 = math.exp %697 : vector<2x256xf32>
    %cst_136 = arith.constant 1.000000e+00 : f32
    %699 = vector.broadcast %cst_136 : f32 to vector<2x256xf32>
    %700 = arith.addf %699, %698 : vector<2x256xf32>
    %701 = arith.divf %699, %700 : vector<2x256xf32>
    %702 = math.tanh %696 : vector<2x256xf32>
    %703 = vector.extract_strided_slice %701 {offsets = [0, 64], sizes = [2, 64], strides = [1, 1]} : vector<2x256xf32> to vector<2x64xf32>
    %704 = arith.mulf %703, %690 : vector<2x64xf32>
    %705 = vector.extract_strided_slice %701 {offsets = [0, 0], sizes = [2, 64], strides = [1, 1]} : vector<2x256xf32> to vector<2x64xf32>
    %706 = vector.extract_strided_slice %702 {offsets = [0, 128], sizes = [2, 64], strides = [1, 1]} : vector<2x256xf32> to vector<2x64xf32>
    %707 = arith.mulf %705, %706 : vector<2x64xf32>
    %708 = arith.addf %704, %707 : vector<2x64xf32>
    %709 = vector.extract_strided_slice %701 {offsets = [0, 192], sizes = [2, 64], strides = [1, 1]} : vector<2x256xf32> to vector<2x64xf32>
    %710 = math.tanh %708 : vector<2x64xf32>
    %711 = arith.mulf %709, %710 : vector<2x64xf32>
    %712 = arith.select %35, %304, %268 : vector<2x256xi1>, vector<2x256xf32>
    %cst_137 = arith.constant dense<0.000000e+00> : vector<2x256xf32>
    %713 = tpu.matmul %711, %351, %cst_137 {dimension_numbers = #tpu.dot_dimension_numbers<[1], [0], [0], [1], [0, 0, 1, 1], [], []>} : vector<2x64xf32>, vector<64x256xf32>, vector<2x256xf32> -> vector<2x256xf32>
    %714 = arith.addf %712, %713 : vector<2x256xf32>
    %715 = arith.negf %714 : vector<2x256xf32>
    %716 = math.exp %715 : vector<2x256xf32>
    %cst_138 = arith.constant 1.000000e+00 : f32
    %717 = vector.broadcast %cst_138 : f32 to vector<2x256xf32>
    %718 = arith.addf %717, %716 : vector<2x256xf32>
    %719 = arith.divf %717, %718 : vector<2x256xf32>
    %720 = math.tanh %714 : vector<2x256xf32>
    %721 = vector.extract_strided_slice %719 {offsets = [0, 64], sizes = [2, 64], strides = [1, 1]} : vector<2x256xf32> to vector<2x64xf32>
    %722 = arith.mulf %721, %708 : vector<2x64xf32>
    %723 = vector.extract_strided_slice %719 {offsets = [0, 0], sizes = [2, 64], strides = [1, 1]} : vector<2x256xf32> to vector<2x64xf32>
    %724 = vector.extract_strided_slice %720 {offsets = [0, 128], sizes = [2, 64], strides = [1, 1]} : vector<2x256xf32> to vector<2x64xf32>
    %725 = arith.mulf %723, %724 : vector<2x64xf32>
    %726 = arith.addf %722, %725 : vector<2x64xf32>
    %727 = vector.extract_strided_slice %719 {offsets = [0, 192], sizes = [2, 64], strides = [1, 1]} : vector<2x256xf32> to vector<2x64xf32>
    %728 = math.tanh %726 : vector<2x64xf32>
    %729 = arith.mulf %727, %728 : vector<2x64xf32>
    %730 = arith.select %35, %308, %264 : vector<2x256xi1>, vector<2x256xf32>
    %cst_139 = arith.constant dense<0.000000e+00> : vector<2x256xf32>
    %731 = tpu.matmul %729, %351, %cst_139 {dimension_numbers = #tpu.dot_dimension_numbers<[1], [0], [0], [1], [0, 0, 1, 1], [], []>} : vector<2x64xf32>, vector<64x256xf32>, vector<2x256xf32> -> vector<2x256xf32>
    %732 = arith.addf %730, %731 : vector<2x256xf32>
    %733 = arith.negf %732 : vector<2x256xf32>
    %734 = math.exp %733 : vector<2x256xf32>
    %cst_140 = arith.constant 1.000000e+00 : f32
    %735 = vector.broadcast %cst_140 : f32 to vector<2x256xf32>
    %736 = arith.addf %735, %734 : vector<2x256xf32>
    %737 = arith.divf %735, %736 : vector<2x256xf32>
    %738 = math.tanh %732 : vector<2x256xf32>
    %739 = vector.extract_strided_slice %737 {offsets = [0, 64], sizes = [2, 64], strides = [1, 1]} : vector<2x256xf32> to vector<2x64xf32>
    %740 = arith.mulf %739, %726 : vector<2x64xf32>
    %741 = vector.extract_strided_slice %737 {offsets = [0, 0], sizes = [2, 64], strides = [1, 1]} : vector<2x256xf32> to vector<2x64xf32>
    %742 = vector.extract_strided_slice %738 {offsets = [0, 128], sizes = [2, 64], strides = [1, 1]} : vector<2x256xf32> to vector<2x64xf32>
    %743 = arith.mulf %741, %742 : vector<2x64xf32>
    %744 = arith.addf %740, %743 : vector<2x64xf32>
    %745 = vector.extract_strided_slice %737 {offsets = [0, 192], sizes = [2, 64], strides = [1, 1]} : vector<2x256xf32> to vector<2x64xf32>
    %746 = math.tanh %744 : vector<2x64xf32>
    %747 = arith.mulf %745, %746 : vector<2x64xf32>
    %748 = arith.select %35, %312, %260 : vector<2x256xi1>, vector<2x256xf32>
    %cst_141 = arith.constant dense<0.000000e+00> : vector<2x256xf32>
    %749 = tpu.matmul %747, %351, %cst_141 {dimension_numbers = #tpu.dot_dimension_numbers<[1], [0], [0], [1], [0, 0, 1, 1], [], []>} : vector<2x64xf32>, vector<64x256xf32>, vector<2x256xf32> -> vector<2x256xf32>
    %750 = arith.addf %748, %749 : vector<2x256xf32>
    %751 = arith.negf %750 : vector<2x256xf32>
    %752 = math.exp %751 : vector<2x256xf32>
    %cst_142 = arith.constant 1.000000e+00 : f32
    %753 = vector.broadcast %cst_142 : f32 to vector<2x256xf32>
    %754 = arith.addf %753, %752 : vector<2x256xf32>
    %755 = arith.divf %753, %754 : vector<2x256xf32>
    %756 = math.tanh %750 : vector<2x256xf32>
    %757 = vector.extract_strided_slice %755 {offsets = [0, 64], sizes = [2, 64], strides = [1, 1]} : vector<2x256xf32> to vector<2x64xf32>
    %758 = arith.mulf %757, %744 : vector<2x64xf32>
    %759 = vector.extract_strided_slice %755 {offsets = [0, 0], sizes = [2, 64], strides = [1, 1]} : vector<2x256xf32> to vector<2x64xf32>
    %760 = vector.extract_strided_slice %756 {offsets = [0, 128], sizes = [2, 64], strides = [1, 1]} : vector<2x256xf32> to vector<2x64xf32>
    %761 = arith.mulf %759, %760 : vector<2x64xf32>
    %762 = arith.addf %758, %761 : vector<2x64xf32>
    %763 = vector.extract_strided_slice %755 {offsets = [0, 192], sizes = [2, 64], strides = [1, 1]} : vector<2x256xf32> to vector<2x64xf32>
    %764 = math.tanh %762 : vector<2x64xf32>
    %765 = arith.mulf %763, %764 : vector<2x64xf32>
    %766 = arith.select %35, %316, %256 : vector<2x256xi1>, vector<2x256xf32>
    %cst_143 = arith.constant dense<0.000000e+00> : vector<2x256xf32>
    %767 = tpu.matmul %765, %351, %cst_143 {dimension_numbers = #tpu.dot_dimension_numbers<[1], [0], [0], [1], [0, 0, 1, 1], [], []>} : vector<2x64xf32>, vector<64x256xf32>, vector<2x256xf32> -> vector<2x256xf32>
    %768 = arith.addf %766, %767 : vector<2x256xf32>
    %769 = arith.negf %768 : vector<2x256xf32>
    %770 = math.exp %769 : vector<2x256xf32>
    %cst_144 = arith.constant 1.000000e+00 : f32
    %771 = vector.broadcast %cst_144 : f32 to vector<2x256xf32>
    %772 = arith.addf %771, %770 : vector<2x256xf32>
    %773 = arith.divf %771, %772 : vector<2x256xf32>
    %774 = math.tanh %768 : vector<2x256xf32>
    %775 = vector.extract_strided_slice %773 {offsets = [0, 64], sizes = [2, 64], strides = [1, 1]} : vector<2x256xf32> to vector<2x64xf32>
    %776 = arith.mulf %775, %762 : vector<2x64xf32>
    %777 = vector.extract_strided_slice %773 {offsets = [0, 0], sizes = [2, 64], strides = [1, 1]} : vector<2x256xf32> to vector<2x64xf32>
    %778 = vector.extract_strided_slice %774 {offsets = [0, 128], sizes = [2, 64], strides = [1, 1]} : vector<2x256xf32> to vector<2x64xf32>
    %779 = arith.mulf %777, %778 : vector<2x64xf32>
    %780 = arith.addf %776, %779 : vector<2x64xf32>
    %781 = vector.extract_strided_slice %773 {offsets = [0, 192], sizes = [2, 64], strides = [1, 1]} : vector<2x256xf32> to vector<2x64xf32>
    %782 = math.tanh %780 : vector<2x64xf32>
    %783 = arith.mulf %781, %782 : vector<2x64xf32>
    %784 = arith.select %35, %320, %252 : vector<2x256xi1>, vector<2x256xf32>
    %cst_145 = arith.constant dense<0.000000e+00> : vector<2x256xf32>
    %785 = tpu.matmul %783, %351, %cst_145 {dimension_numbers = #tpu.dot_dimension_numbers<[1], [0], [0], [1], [0, 0, 1, 1], [], []>} : vector<2x64xf32>, vector<64x256xf32>, vector<2x256xf32> -> vector<2x256xf32>
    %786 = arith.addf %784, %785 : vector<2x256xf32>
    %787 = arith.negf %786 : vector<2x256xf32>
    %788 = math.exp %787 : vector<2x256xf32>
    %cst_146 = arith.constant 1.000000e+00 : f32
    %789 = vector.broadcast %cst_146 : f32 to vector<2x256xf32>
    %790 = arith.addf %789, %788 : vector<2x256xf32>
    %791 = arith.divf %789, %790 : vector<2x256xf32>
    %792 = math.tanh %786 : vector<2x256xf32>
    %793 = vector.extract_strided_slice %791 {offsets = [0, 64], sizes = [2, 64], strides = [1, 1]} : vector<2x256xf32> to vector<2x64xf32>
    %794 = arith.mulf %793, %780 : vector<2x64xf32>
    %795 = vector.extract_strided_slice %791 {offsets = [0, 0], sizes = [2, 64], strides = [1, 1]} : vector<2x256xf32> to vector<2x64xf32>
    %796 = vector.extract_strided_slice %792 {offsets = [0, 128], sizes = [2, 64], strides = [1, 1]} : vector<2x256xf32> to vector<2x64xf32>
    %797 = arith.mulf %795, %796 : vector<2x64xf32>
    %798 = arith.addf %794, %797 : vector<2x64xf32>
    %799 = vector.extract_strided_slice %791 {offsets = [0, 192], sizes = [2, 64], strides = [1, 1]} : vector<2x256xf32> to vector<2x64xf32>
    %800 = math.tanh %798 : vector<2x64xf32>
    %801 = arith.mulf %799, %800 : vector<2x64xf32>
    %802 = arith.select %35, %324, %248 : vector<2x256xi1>, vector<2x256xf32>
    %cst_147 = arith.constant dense<0.000000e+00> : vector<2x256xf32>
    %803 = tpu.matmul %801, %351, %cst_147 {dimension_numbers = #tpu.dot_dimension_numbers<[1], [0], [0], [1], [0, 0, 1, 1], [], []>} : vector<2x64xf32>, vector<64x256xf32>, vector<2x256xf32> -> vector<2x256xf32>
    %804 = arith.addf %802, %803 : vector<2x256xf32>
    %805 = arith.negf %804 : vector<2x256xf32>
    %806 = math.exp %805 : vector<2x256xf32>
    %cst_148 = arith.constant 1.000000e+00 : f32
    %807 = vector.broadcast %cst_148 : f32 to vector<2x256xf32>
    %808 = arith.addf %807, %806 : vector<2x256xf32>
    %809 = arith.divf %807, %808 : vector<2x256xf32>
    %810 = math.tanh %804 : vector<2x256xf32>
    %811 = vector.extract_strided_slice %809 {offsets = [0, 64], sizes = [2, 64], strides = [1, 1]} : vector<2x256xf32> to vector<2x64xf32>
    %812 = arith.mulf %811, %798 : vector<2x64xf32>
    %813 = vector.extract_strided_slice %809 {offsets = [0, 0], sizes = [2, 64], strides = [1, 1]} : vector<2x256xf32> to vector<2x64xf32>
    %814 = vector.extract_strided_slice %810 {offsets = [0, 128], sizes = [2, 64], strides = [1, 1]} : vector<2x256xf32> to vector<2x64xf32>
    %815 = arith.mulf %813, %814 : vector<2x64xf32>
    %816 = arith.addf %812, %815 : vector<2x64xf32>
    %817 = vector.extract_strided_slice %809 {offsets = [0, 192], sizes = [2, 64], strides = [1, 1]} : vector<2x256xf32> to vector<2x64xf32>
    %818 = math.tanh %816 : vector<2x64xf32>
    %819 = arith.mulf %817, %818 : vector<2x64xf32>
    %820 = arith.select %35, %328, %244 : vector<2x256xi1>, vector<2x256xf32>
    %cst_149 = arith.constant dense<0.000000e+00> : vector<2x256xf32>
    %821 = tpu.matmul %819, %351, %cst_149 {dimension_numbers = #tpu.dot_dimension_numbers<[1], [0], [0], [1], [0, 0, 1, 1], [], []>} : vector<2x64xf32>, vector<64x256xf32>, vector<2x256xf32> -> vector<2x256xf32>
    %822 = arith.addf %820, %821 : vector<2x256xf32>
    %823 = arith.negf %822 : vector<2x256xf32>
    %824 = math.exp %823 : vector<2x256xf32>
    %cst_150 = arith.constant 1.000000e+00 : f32
    %825 = vector.broadcast %cst_150 : f32 to vector<2x256xf32>
    %826 = arith.addf %825, %824 : vector<2x256xf32>
    %827 = arith.divf %825, %826 : vector<2x256xf32>
    %828 = math.tanh %822 : vector<2x256xf32>
    %829 = vector.extract_strided_slice %827 {offsets = [0, 64], sizes = [2, 64], strides = [1, 1]} : vector<2x256xf32> to vector<2x64xf32>
    %830 = arith.mulf %829, %816 : vector<2x64xf32>
    %831 = vector.extract_strided_slice %827 {offsets = [0, 0], sizes = [2, 64], strides = [1, 1]} : vector<2x256xf32> to vector<2x64xf32>
    %832 = vector.extract_strided_slice %828 {offsets = [0, 128], sizes = [2, 64], strides = [1, 1]} : vector<2x256xf32> to vector<2x64xf32>
    %833 = arith.mulf %831, %832 : vector<2x64xf32>
    %834 = arith.addf %830, %833 : vector<2x64xf32>
    %835 = vector.extract_strided_slice %827 {offsets = [0, 192], sizes = [2, 64], strides = [1, 1]} : vector<2x256xf32> to vector<2x64xf32>
    %836 = math.tanh %834 : vector<2x64xf32>
    %837 = arith.mulf %835, %836 : vector<2x64xf32>
    %838 = arith.select %35, %332, %240 : vector<2x256xi1>, vector<2x256xf32>
    %cst_151 = arith.constant dense<0.000000e+00> : vector<2x256xf32>
    %839 = tpu.matmul %837, %351, %cst_151 {dimension_numbers = #tpu.dot_dimension_numbers<[1], [0], [0], [1], [0, 0, 1, 1], [], []>} : vector<2x64xf32>, vector<64x256xf32>, vector<2x256xf32> -> vector<2x256xf32>
    %840 = arith.addf %838, %839 : vector<2x256xf32>
    %841 = arith.negf %840 : vector<2x256xf32>
    %842 = math.exp %841 : vector<2x256xf32>
    %cst_152 = arith.constant 1.000000e+00 : f32
    %843 = vector.broadcast %cst_152 : f32 to vector<2x256xf32>
    %844 = arith.addf %843, %842 : vector<2x256xf32>
    %845 = arith.divf %843, %844 : vector<2x256xf32>
    %846 = math.tanh %840 : vector<2x256xf32>
    %847 = vector.extract_strided_slice %845 {offsets = [0, 64], sizes = [2, 64], strides = [1, 1]} : vector<2x256xf32> to vector<2x64xf32>
    %848 = arith.mulf %847, %834 : vector<2x64xf32>
    %849 = vector.extract_strided_slice %845 {offsets = [0, 0], sizes = [2, 64], strides = [1, 1]} : vector<2x256xf32> to vector<2x64xf32>
    %850 = vector.extract_strided_slice %846 {offsets = [0, 128], sizes = [2, 64], strides = [1, 1]} : vector<2x256xf32> to vector<2x64xf32>
    %851 = arith.mulf %849, %850 : vector<2x64xf32>
    %852 = arith.addf %848, %851 : vector<2x64xf32>
    %853 = vector.extract_strided_slice %845 {offsets = [0, 192], sizes = [2, 64], strides = [1, 1]} : vector<2x256xf32> to vector<2x64xf32>
    %854 = math.tanh %852 : vector<2x64xf32>
    %855 = arith.mulf %853, %854 : vector<2x64xf32>
    %856 = arith.select %35, %336, %236 : vector<2x256xi1>, vector<2x256xf32>
    %cst_153 = arith.constant dense<0.000000e+00> : vector<2x256xf32>
    %857 = tpu.matmul %855, %351, %cst_153 {dimension_numbers = #tpu.dot_dimension_numbers<[1], [0], [0], [1], [0, 0, 1, 1], [], []>} : vector<2x64xf32>, vector<64x256xf32>, vector<2x256xf32> -> vector<2x256xf32>
    %858 = arith.addf %856, %857 : vector<2x256xf32>
    %859 = arith.negf %858 : vector<2x256xf32>
    %860 = math.exp %859 : vector<2x256xf32>
    %cst_154 = arith.constant 1.000000e+00 : f32
    %861 = vector.broadcast %cst_154 : f32 to vector<2x256xf32>
    %862 = arith.addf %861, %860 : vector<2x256xf32>
    %863 = arith.divf %861, %862 : vector<2x256xf32>
    %864 = math.tanh %858 : vector<2x256xf32>
    %865 = vector.extract_strided_slice %863 {offsets = [0, 64], sizes = [2, 64], strides = [1, 1]} : vector<2x256xf32> to vector<2x64xf32>
    %866 = arith.mulf %865, %852 : vector<2x64xf32>
    %867 = vector.extract_strided_slice %863 {offsets = [0, 0], sizes = [2, 64], strides = [1, 1]} : vector<2x256xf32> to vector<2x64xf32>
    %868 = vector.extract_strided_slice %864 {offsets = [0, 128], sizes = [2, 64], strides = [1, 1]} : vector<2x256xf32> to vector<2x64xf32>
    %869 = arith.mulf %867, %868 : vector<2x64xf32>
    %870 = arith.addf %866, %869 : vector<2x64xf32>
    %871 = vector.extract_strided_slice %863 {offsets = [0, 192], sizes = [2, 64], strides = [1, 1]} : vector<2x256xf32> to vector<2x64xf32>
    %872 = math.tanh %870 : vector<2x64xf32>
    %873 = arith.mulf %871, %872 : vector<2x64xf32>
    %874 = arith.select %35, %340, %232 : vector<2x256xi1>, vector<2x256xf32>
    %cst_155 = arith.constant dense<0.000000e+00> : vector<2x256xf32>
    %875 = tpu.matmul %873, %351, %cst_155 {dimension_numbers = #tpu.dot_dimension_numbers<[1], [0], [0], [1], [0, 0, 1, 1], [], []>} : vector<2x64xf32>, vector<64x256xf32>, vector<2x256xf32> -> vector<2x256xf32>
    %876 = arith.addf %874, %875 : vector<2x256xf32>
    %877 = arith.negf %876 : vector<2x256xf32>
    %878 = math.exp %877 : vector<2x256xf32>
    %cst_156 = arith.constant 1.000000e+00 : f32
    %879 = vector.broadcast %cst_156 : f32 to vector<2x256xf32>
    %880 = arith.addf %879, %878 : vector<2x256xf32>
    %881 = arith.divf %879, %880 : vector<2x256xf32>
    %882 = math.tanh %876 : vector<2x256xf32>
    %883 = vector.extract_strided_slice %881 {offsets = [0, 64], sizes = [2, 64], strides = [1, 1]} : vector<2x256xf32> to vector<2x64xf32>
    %884 = arith.mulf %883, %870 : vector<2x64xf32>
    %885 = vector.extract_strided_slice %881 {offsets = [0, 0], sizes = [2, 64], strides = [1, 1]} : vector<2x256xf32> to vector<2x64xf32>
    %886 = vector.extract_strided_slice %882 {offsets = [0, 128], sizes = [2, 64], strides = [1, 1]} : vector<2x256xf32> to vector<2x64xf32>
    %887 = arith.mulf %885, %886 : vector<2x64xf32>
    %888 = arith.addf %884, %887 : vector<2x64xf32>
    %889 = vector.extract_strided_slice %881 {offsets = [0, 192], sizes = [2, 64], strides = [1, 1]} : vector<2x256xf32> to vector<2x64xf32>
    %890 = math.tanh %888 : vector<2x64xf32>
    %891 = arith.mulf %889, %890 : vector<2x64xf32>
    %892 = arith.select %35, %344, %228 : vector<2x256xi1>, vector<2x256xf32>
    %cst_157 = arith.constant dense<0.000000e+00> : vector<2x256xf32>
    %893 = tpu.matmul %891, %351, %cst_157 {dimension_numbers = #tpu.dot_dimension_numbers<[1], [0], [0], [1], [0, 0, 1, 1], [], []>} : vector<2x64xf32>, vector<64x256xf32>, vector<2x256xf32> -> vector<2x256xf32>
    %894 = arith.addf %892, %893 : vector<2x256xf32>
    %895 = arith.negf %894 : vector<2x256xf32>
    %896 = math.exp %895 : vector<2x256xf32>
    %cst_158 = arith.constant 1.000000e+00 : f32
    %897 = vector.broadcast %cst_158 : f32 to vector<2x256xf32>
    %898 = arith.addf %897, %896 : vector<2x256xf32>
    %899 = arith.divf %897, %898 : vector<2x256xf32>
    %900 = math.tanh %894 : vector<2x256xf32>
    %901 = vector.extract_strided_slice %899 {offsets = [0, 64], sizes = [2, 64], strides = [1, 1]} : vector<2x256xf32> to vector<2x64xf32>
    %902 = arith.mulf %901, %888 : vector<2x64xf32>
    %903 = vector.extract_strided_slice %899 {offsets = [0, 0], sizes = [2, 64], strides = [1, 1]} : vector<2x256xf32> to vector<2x64xf32>
    %904 = vector.extract_strided_slice %900 {offsets = [0, 128], sizes = [2, 64], strides = [1, 1]} : vector<2x256xf32> to vector<2x64xf32>
    %905 = arith.mulf %903, %904 : vector<2x64xf32>
    %906 = arith.addf %902, %905 : vector<2x64xf32>
    %907 = vector.extract_strided_slice %899 {offsets = [0, 192], sizes = [2, 64], strides = [1, 1]} : vector<2x256xf32> to vector<2x64xf32>
    %908 = math.tanh %906 : vector<2x64xf32>
    %909 = arith.mulf %907, %908 : vector<2x64xf32>
    %910 = arith.select %35, %348, %224 : vector<2x256xi1>, vector<2x256xf32>
    %cst_159 = arith.constant dense<0.000000e+00> : vector<2x256xf32>
    %911 = tpu.matmul %909, %351, %cst_159 {dimension_numbers = #tpu.dot_dimension_numbers<[1], [0], [0], [1], [0, 0, 1, 1], [], []>} : vector<2x64xf32>, vector<64x256xf32>, vector<2x256xf32> -> vector<2x256xf32>
    %912 = arith.addf %910, %911 : vector<2x256xf32>
    %913 = arith.negf %912 : vector<2x256xf32>
    %914 = math.exp %913 : vector<2x256xf32>
    %cst_160 = arith.constant 1.000000e+00 : f32
    %915 = vector.broadcast %cst_160 : f32 to vector<2x256xf32>
    %916 = arith.addf %915, %914 : vector<2x256xf32>
    %917 = arith.divf %915, %916 : vector<2x256xf32>
    %918 = math.tanh %912 : vector<2x256xf32>
    %919 = vector.extract_strided_slice %917 {offsets = [0, 64], sizes = [2, 64], strides = [1, 1]} : vector<2x256xf32> to vector<2x64xf32>
    %920 = arith.mulf %919, %906 : vector<2x64xf32>
    %921 = vector.extract_strided_slice %917 {offsets = [0, 0], sizes = [2, 64], strides = [1, 1]} : vector<2x256xf32> to vector<2x64xf32>
    %922 = vector.extract_strided_slice %918 {offsets = [0, 128], sizes = [2, 64], strides = [1, 1]} : vector<2x256xf32> to vector<2x64xf32>
    %923 = arith.mulf %921, %922 : vector<2x64xf32>
    %924 = arith.addf %920, %923 : vector<2x64xf32>
    %925 = vector.extract_strided_slice %917 {offsets = [0, 192], sizes = [2, 64], strides = [1, 1]} : vector<2x256xf32> to vector<2x64xf32>
    %926 = math.tanh %924 : vector<2x64xf32>
    %927 = arith.mulf %925, %926 : vector<2x64xf32>
    %928 = tpu.concatenate %216, %927 in 1 : vector<2x64xf32>, vector<2x64xf32> -> vector<2x128xf32>
    %c0_161 = arith.constant 0 : index
    %c0_162 = arith.constant 0 : index
    %929 = vector.load %arg17[%c0_161, %c0_162] : memref<2x128xf32, #tpu.memory_space<vmem>>, vector<2x128xf32>
    %cst_163 = arith.constant 5.000000e-01 : f32
    %930 = vector.broadcast %cst_163 : f32 to vector<2x128xf32>
    %931 = arith.cmpf oge, %929, %930 : vector<2x128xf32>
    %932 = arith.extui %931 : vector<2x128xi1> to vector<2x128xi32>
    %933 = arith.sitofp %932 : vector<2x128xi32> to vector<2x128xf32>
    %934 = arith.mulf %928, %933 : vector<2x128xf32>
    %cst_164 = arith.constant 2.000000e+00 : f32
    %935 = vector.broadcast %cst_164 : f32 to vector<2x128xf32>
    %936 = arith.mulf %934, %935 : vector<2x128xf32>
    %c0_165 = arith.constant 0 : index
    %c0_166 = arith.constant 0 : index
    %937 = vector.load %arg18[%c0_165, %c0_166] : memref<128x128xf32, #tpu.memory_space<vmem>>, vector<128x128xf32>
    %cst_167 = arith.constant dense<0.000000e+00> : vector<2x128xf32>
    %938 = tpu.matmul %936, %937, %cst_167 {dimension_numbers = #tpu.dot_dimension_numbers<[1], [0], [0], [1], [0, 0, 1, 1], [], []>} : vector<2x128xf32>, vector<128x128xf32>, vector<2x128xf32> -> vector<2x128xf32>
    %c0_168 = arith.constant 0 : index
    %c0_169 = arith.constant 0 : index
    %939 = vector.load %arg19[%c0_168, %c0_169] : memref<1x128xf32, #tpu.memory_space<vmem>>, vector<1x128xf32>
    %940 = vector.broadcast %939 : vector<1x128xf32> to vector<2x128xf32>
    %941 = arith.addf %938, %940 : vector<2x128xf32>
    %c0_170 = arith.constant 0 : index
    %c0_171 = arith.constant 0 : index
    %942 = vector.load %arg20[%c0_170, %c0_171] : memref<2x128xf32, #tpu.memory_space<vmem>>, vector<2x128xf32>
    tpu.vector_store %arg20[%c0_170, %c0_171], %941 {strides = array<i32>} : memref<2x128xf32, #tpu.memory_space<vmem>>, vector<2x128xf32>,
    return
  }
}

</mosaic_0001>

<llo_original>
// kernel: a_call__.1
$region0: #{a_call__.1}
  #allocation0 [shape = 'u32[]', space=smem, size = 0x4, offset = 0x4, fixed_abs, tag = 'smem constant byte address 0x4 - core index']
  #allocation1 [shape = 'u32[144,128]{1,0:T(1,128)}', space=vmem, size = 0x12000, scoped, tag = 'internal scratch']
  %s0 = inlined_call_operand.vmem [shape: f32[36,512], index: 0, kind: input, shape index: {}]
  %s1 = inlined_call_operand.vmem [shape: f32[16,36], index: 1, kind: input, shape index: {}]
  %s2 = inlined_call_operand.vmem [shape: f32[16,1], index: 2, kind: input, shape index: {}]
  %s3 = inlined_call_operand.vmem [shape: f32[2,512], index: 3, kind: input, shape index: {}]
  %s4 = inlined_call_operand.vmem [shape: f32[16,256], index: 4, kind: input, shape index: {}]
  %s5 = inlined_call_operand.vmem [shape: f32[1,256], index: 5, kind: input, shape index: {}]
  %s6 = inlined_call_operand.vmem [shape: f32[32,256], index: 6, kind: input, shape index: {}]
  %s7 = inlined_call_operand.vmem [shape: f32[64,256], index: 7, kind: input, shape index: {}]
  %s8 = inlined_call_operand.vmem [shape: f32[1,256], index: 8, kind: input, shape index: {}]
  %s9 = inlined_call_operand.vmem [shape: f32[256,256], index: 9, kind: input, shape index: {}]
  %s10 = inlined_call_operand.vmem [shape: f32[8,256], index: 10, kind: input, shape index: {}]
  %s11 = inlined_call_operand.vmem [shape: f32[64,256], index: 11, kind: input, shape index: {}]
  %s12 = inlined_call_operand.vmem [shape: f32[1,256], index: 12, kind: input, shape index: {}]
  %s13 = inlined_call_operand.vmem [shape: f32[2,64], index: 13, kind: input, shape index: {}]
  %s14 = inlined_call_operand.vmem [shape: f32[2,64], index: 14, kind: input, shape index: {}]
  %s15 = inlined_call_operand.vmem [shape: f32[2,64], index: 15, kind: input, shape index: {}]
  %s16 = inlined_call_operand.vmem [shape: f32[2,64], index: 16, kind: input, shape index: {}]
  %s17 = inlined_call_operand.vmem [shape: f32[2,128], index: 17, kind: input, shape index: {}]
  %s18 = inlined_call_operand.vmem [shape: f32[128,128], index: 18, kind: input, shape index: {}]
  %s19 = inlined_call_operand.vmem [shape: f32[1,128], index: 19, kind: input, shape index: {}]
  %s20 = inlined_call_operand.hbm [shape: f32[2,128], index: 20, kind: output, shape index: {}]
  %s21 = sld [smem:[#allocation0]]
  $region90: #{a_call__.1} parent=0
    _
  %s23 = ssub.s32 1, %s21
  %s24 = scalar_select 0, %s23, %s21
  $region1: #{a_call__.1} parent=0
    #allocation2 [shape = 'u8[1024]{0}', space=vmem, size = 0x400, scoped, tag = 'output window, operand 0, single buffered']
    #allocation3 [shape = 's32[1]{0}', space=sflag, size = 0x4, scoped, tag = 'scoped memory for a_call__.1']
    %25 = vsyncpa [#allocation3], 0
    // Predicated region
    $region2: #{a_call__.1} parent=1 // pred_check
      _
    $region3: #{a_call__.1} parent=1 // pred_check_branch
      %27 = sbr.rel (0) target = $region5
    $region4: #{a_call__.1} parent=1 // pred_region
      _
    $region5: #{a_call__.1} parent=1 // pred_fallthru
      _
    // Predicated region
    $region6: #{a_call__.1} parent=1 // pred_check
      _
    $region7: #{a_call__.1} parent=1 // pred_check_branch
      %29 = sbr.rel (0) target = $region9
    $region8: #{a_call__.1} parent=1 // pred_region
      _
    $region9: #{a_call__.1} parent=1 // pred_fallthru
      _
    // Predicated region
    $region10: #{a_call__.1} parent=1 // pred_check
      _
    $region11: #{a_call__.1} parent=1 // pred_check_branch
      %31 = sbr.rel (0) target = $region13
    $region12: #{a_call__.1} parent=1 // pred_region
      _
    $region13: #{a_call__.1} parent=1 // pred_fallthru
      _
    // Predicated region
    $region14: #{a_call__.1} parent=1 // pred_check
      _
    $region15: #{a_call__.1} parent=1 // pred_check_branch
      %33 = sbr.rel (0) target = $region17
    $region16: #{a_call__.1} parent=1 // pred_region
      _
    $region17: #{a_call__.1} parent=1 // pred_fallthru
      _
    // Predicated region
    $region18: #{a_call__.1} parent=1 // pred_check
      _
    $region19: #{a_call__.1} parent=1 // pred_check_branch
      %35 = sbr.rel (0) target = $region21
    $region20: #{a_call__.1} parent=1 // pred_region
      _
    $region21: #{a_call__.1} parent=1 // pred_fallthru
      _
    // Predicated region
    $region22: #{a_call__.1} parent=1 // pred_check
      _
    $region23: #{a_call__.1} parent=1 // pred_check_branch
      %37 = sbr.rel (0) target = $region25
    $region24: #{a_call__.1} parent=1 // pred_region
      _
    $region25: #{a_call__.1} parent=1 // pred_fallthru
      _
    // Predicated region
    $region26: #{a_call__.1} parent=1 // pred_check
      _
    $region27: #{a_call__.1} parent=1 // pred_check_branch
      %39 = sbr.rel (0) target = $region29
    $region28: #{a_call__.1} parent=1 // pred_region
      _
    $region29: #{a_call__.1} parent=1 // pred_fallthru
      _
    // Predicated region
    $region30: #{a_call__.1} parent=1 // pred_check
      _
    $region31: #{a_call__.1} parent=1 // pred_check_branch
      %41 = sbr.rel (0) target = $region33
    $region32: #{a_call__.1} parent=1 // pred_region
      _
    $region33: #{a_call__.1} parent=1 // pred_fallthru
      _
    // Predicated region
    $region34: #{a_call__.1} parent=1 // pred_check
      _
    $region35: #{a_call__.1} parent=1 // pred_check_branch
      %43 = sbr.rel (0) target = $region37
    $region36: #{a_call__.1} parent=1 // pred_region
      _
    $region37: #{a_call__.1} parent=1 // pred_fallthru
      _
    // Predicated region
    $region38: #{a_call__.1} parent=1 // pred_check
      _
    $region39: #{a_call__.1} parent=1 // pred_check_branch
      %45 = sbr.rel (0) target = $region41
    $region40: #{a_call__.1} parent=1 // pred_region
      _
    $region41: #{a_call__.1} parent=1 // pred_fallthru
      _
    // Predicated region
    $region42: #{a_call__.1} parent=1 // pred_check
      _
    $region43: #{a_call__.1} parent=1 // pred_check_branch
      %47 = sbr.rel (0) target = $region45
    $region44: #{a_call__.1} parent=1 // pred_region
      _
    $region45: #{a_call__.1} parent=1 // pred_fallthru
      _
    // Predicated region
    $region46: #{a_call__.1} parent=1 // pred_check
      _
    $region47: #{a_call__.1} parent=1 // pred_check_branch
      %49 = sbr.rel (0) target = $region49
    $region48: #{a_call__.1} parent=1 // pred_region
      _
    $region49: #{a_call__.1} parent=1 // pred_fallthru
      _
    // Predicated region
    $region50: #{a_call__.1} parent=1 // pred_check
      _
    $region51: #{a_call__.1} parent=1 // pred_check_branch
      %51 = sbr.rel (0) target = $region53
    $region52: #{a_call__.1} parent=1 // pred_region
      _
    $region53: #{a_call__.1} parent=1 // pred_fallthru
      _
    // Predicated region
    $region54: #{a_call__.1} parent=1 // pred_check
      _
    $region55: #{a_call__.1} parent=1 // pred_check_branch
      %53 = sbr.rel (0) target = $region57
    $region56: #{a_call__.1} parent=1 // pred_region
      _
    $region57: #{a_call__.1} parent=1 // pred_fallthru
      _
    // Predicated region
    $region58: #{a_call__.1} parent=1 // pred_check
      _
    $region59: #{a_call__.1} parent=1 // pred_check_branch
      %55 = sbr.rel (0) target = $region61
    $region60: #{a_call__.1} parent=1 // pred_region
      _
    $region61: #{a_call__.1} parent=1 // pred_fallthru
      _
    // Predicated region
    $region62: #{a_call__.1} parent=1 // pred_check
      _
    $region63: #{a_call__.1} parent=1 // pred_check_branch
      %57 = sbr.rel (0) target = $region65
    $region64: #{a_call__.1} parent=1 // pred_region
      _
    $region65: #{a_call__.1} parent=1 // pred_fallthru
      _
    // Predicated region
    $region66: #{a_call__.1} parent=1 // pred_check
      _
    $region67: #{a_call__.1} parent=1 // pred_check_branch
      %59 = sbr.rel (0) target = $region69
    $region68: #{a_call__.1} parent=1 // pred_region
      _
    $region69: #{a_call__.1} parent=1 // pred_fallthru
      _
    // Predicated region
    $region70: #{a_call__.1} parent=1 // pred_check
      _
    $region71: #{a_call__.1} parent=1 // pred_check_branch
      %61 = sbr.rel (0) target = $region73
    $region72: #{a_call__.1} parent=1 // pred_region
      _
    $region73: #{a_call__.1} parent=1 // pred_fallthru
      _
    // Predicated region
    $region74: #{a_call__.1} parent=1 // pred_check
      _
    $region75: #{a_call__.1} parent=1 // pred_check_branch
      %63 = sbr.rel (0) target = $region77
    $region76: #{a_call__.1} parent=1 // pred_region
      _
    $region77: #{a_call__.1} parent=1 // pred_fallthru
      _
    // Predicated region
    $region78: #{a_call__.1} parent=1 // pred_check
      _
    $region79: #{a_call__.1} parent=1 // pred_check_branch
      %65 = sbr.rel (0) target = $region81
    $region80: #{a_call__.1} parent=1 // pred_region
      _
    $region81: #{a_call__.1} parent=1 // pred_fallthru
      _
    %v66 = vld [vmem:[%s1] sm:$0xff]
    %v67 = vld [vmem:[%s1 + $0x8] sm:$0xff]
    %v68 = vld [vmem:[%s0] sm:$0xff]
    %v69 = vld [vmem:[%s0 + $0x8] sm:$0xff]
    %v70 = vld [vmem:[%s0 + $0x10] sm:$0xff]
    %v71 = vld [vmem:[%s0 + $0x18] sm:$0xff]
    %v72 = vld [vmem:[%s0 + $0x20] sm:$0xff]
    %v73 = vld [vmem:[%s0 + $0x28] sm:$0xff]
    %v74 = vld [vmem:[%s0 + $0x30] sm:$0xff]
    %v75 = vld [vmem:[%s0 + $0x38] sm:$0xff]
    %v76 = vld [vmem:[%s0 + $0x40] sm:$0xff]
    %v77 = vld [vmem:[%s0 + $0x48] sm:$0xff]
    %v78 = vld [vmem:[%s0 + $0x50] sm:$0xff]
    %v79 = vld [vmem:[%s0 + $0x58] sm:$0xff]
    %v80 = vld [vmem:[%s0 + $0x60] sm:$0xff]
    %v81 = vld [vmem:[%s0 + $0x68] sm:$0xff]
    %v82 = vld [vmem:[%s0 + $0x70] sm:$0xff]
    %v83 = vld [vmem:[%s0 + $0x78] sm:$0xff]
    %v84 = vld [vmem:[%s0 + $0x80] sm:$0xf]
    %v85 = vld [vmem:[%s0 + $0x88] sm:$0xf]
    %v86 = vld [vmem:[%s0 + $0x90] sm:$0xf]
    %v87 = vld [vmem:[%s0 + $0x98] sm:$0xf]
    %v88 = vld [vmem:[%s2] sm:$0xff]
    %v89 = vld [vmem:[%s2 + $0x8] sm:$0xff]
    %91 = vset.pattern.permute.xlu0 0
    %92 = vperm.xlu0 %91, %v88
    %v93 = vpop.permute.xlu0 %92
    %96 = vset.pattern.permute.xlu0 0
    %97 = vperm.xlu0 %96, %v89
    %v98 = vpop.permute.xlu0 %97
    %vm100 = vcmask 293888
    %v102 = vsel %vm100, %v66, 0
    %v105 = vsel %vm100, %v67, 0
    %vm107 = vcmask 1043456
    %v109 = vsel %vm107, %v84, 0
    %v112 = vsel %vm107, %v85, 0
    %v115 = vsel %vm107, %v86, 0
    %v118 = vsel %vm107, %v87, 0
    %120 = vmatprep.subr.mxu0 %v69
    %121 = vmatpush1.msra.mxu0 %v68
    %122 = vmatprep.subr.mxu0 %v73
    %123 = vmatpush1.msra.mxu0 %v72
    %124 = vmatprep.subr.mxu0 %v77
    %125 = vmatpush1.msra.mxu0 %v76
    %126 = vmatprep.subr.mxu0 %v81
    %127 = vmatpush1.msra.mxu0 %v80
    %128 = vmatprep.subr.mxu0 %v112
    %129 = vmatpush1.msra.mxu0 %v109
    %130 = vmatprep.subr.mxu0 0.0
    %131 = vmatpush1.msra.mxu0 0.0
    %132 = vmatprep.subr.mxu0 0.0
    %133 = vmatpush1.msra.mxu0 0.0
    %134 = vmatprep.subr.mxu0 0.0
    %135 = vmatpush1.msra.mxu0 0.0
    %136 = vmatprep.subr.mxu0 0.0
    %137 = vmatpush1.msra.mxu0 0.0
    %138 = vmatprep.subr.mxu0 0.0
    %139 = vmatpush1.msra.mxu0 0.0
    %140 = vmatprep.subr.mxu0 0.0
    %141 = vmatpush1.msra.mxu0 0.0
    %142 = vmatprep.subr.mxu0 0.0
    %143 = vmatpush1.msra.mxu0 0.0
    %144 = vmatprep.subr.mxu0 0.0
    %145 = vmatpush1.msra.mxu0 0.0
    %146 = vmatprep.subr.mxu0 0.0
    %147 = vmatpush1.msra.mxu0 0.0
    %148 = vmatprep.subr.mxu0 0.0
    %149 = vmatpush1.msra.mxu0 0.0
    %150 = vmatprep.subr.mxu0 0.0
    %151 = vmatpush1.msra.mxu0 0.0
    %152 = vmatprep.subr.mxu0 0.0
    %153 = vmatpush1.msra.mxu0 0.0
    %154 = vmatprep.subr.mxu0 0.0
    %155 = vmatpush1.msra.mxu0 0.0
    %156 = vmatprep.subr.mxu0 0.0
    %157 = vmatpush1.msra.mxu0 0.0
    %158 = vmatprep.subr.mxu0 0.0
    %159 = vmatpush1.msra.mxu0 0.0
    %160 = vmatprep.subr.mxu0 0.0
    %161 = vmatpush1.msra.mxu0 0.0
    %162 = vmatprep.subr.mxu0 0.0
    %163 = vmatpush1.msra.mxu0 0.0
    %164 = vmatprep.subr.mxu0 0.0
    %165 = vmatpush1.msra.mxu0 0.0
    %166 = vmatprep.subr.mxu0 0.0
    %167 = vmatpush1.msra.mxu0 0.0
    %168 = vmatprep.subr.mxu0 0.0
    %169 = vmatpush1.msra.mxu0 0.0
    %170 = vmatprep.subr.mxu0 0.0
    %171 = vmatpush1.msra.mxu0 0.0
    %172 = vmatprep.subr.mxu0 0.0
    %173 = vmatpush1.msra.mxu0 0.0
    %174 = vmatprep.subr.mxu0 0.0
    %175 = vmatpush1.msra.mxu0 0.0
    %176 = vmatprep.subr.mxu0 0.0
    %177 = vmatpush1.msra.mxu0 0.0
    %178 = vmatprep.subr.mxu0 0.0
    %179 = vmatpush1.msra.mxu0 0.0
    %180 = vmatprep.subr.mxu0 0.0
    %181 = vmatpush1.msra.mxu0 0.0
    %182 = vmatprep.subr.mxu0 0.0
    %183 = vmatpush1.msra.mxu0 0.0
    %184 = vmatprep.mubr.f32.mxu0 0.0
    %185 = vmatmul.mubr.f32.gmra.mrb[0].mxu0 %v102
    %v186 = vpop.f32.mrb[0].mxu0
    %v187 = vadd.f32 %v93, %v186
    %v188 = vpop.f32.mrb[0].mxu0
    %v189 = vadd.f32 %v93, %v188
    %190 = vmatprep.mubr.f32.mxu0 0.0
    %191 = vmatmul.mubr.f32.gmra.mrb[0].mxu0 %v105
    %v192 = vpop.f32.mrb[0].mxu0
    %v193 = vadd.f32 %v98, %v192
    %v194 = vpop.f32.mrb[0].mxu0
    %v195 = vadd.f32 %v98, %v194
    %196 = vdwg.mxu0
    %197 = vmatprep.subr.mxu0 %v71
    %198 = vmatpush1.msra.mxu0 %v70
    %199 = vmatprep.subr.mxu0 %v75
    %200 = vmatpush1.msra.mxu0 %v74
    %201 = vmatprep.subr.mxu0 %v79
    %202 = vmatpush1.msra.mxu0 %v78
    %203 = vmatprep.subr.mxu0 %v83
    %204 = vmatpush1.msra.mxu0 %v82
    %205 = vmatprep.subr.mxu0 %v118
    %206 = vmatpush1.msra.mxu0 %v115
    %207 = vmatprep.subr.mxu0 0.0
    %208 = vmatpush1.msra.mxu0 0.0
    %209 = vmatprep.subr.mxu0 0.0
    %210 = vmatpush1.msra.mxu0 0.0
    %211 = vmatprep.subr.mxu0 0.0
    %212 = vmatpush1.msra.mxu0 0.0
    %213 = vmatprep.subr.mxu0 0.0
    %214 = vmatpush1.msra.mxu0 0.0
    %215 = vmatprep.subr.mxu0 0.0
    %216 = vmatpush1.msra.mxu0 0.0
    %217 = vmatprep.subr.mxu0 0.0
    %218 = vmatpush1.msra.mxu0 0.0
    %219 = vmatprep.subr.mxu0 0.0
    %220 = vmatpush1.msra.mxu0 0.0
    %221 = vmatprep.subr.mxu0 0.0
    %222 = vmatpush1.msra.mxu0 0.0
    %223 = vmatprep.subr.mxu0 0.0
    %224 = vmatpush1.msra.mxu0 0.0
    %225 = vmatprep.subr.mxu0 0.0
    %226 = vmatpush1.msra.mxu0 0.0
    %227 = vmatprep.subr.mxu0 0.0
    %228 = vmatpush1.msra.mxu0 0.0
    %229 = vmatprep.subr.mxu0 0.0
    %230 = vmatpush1.msra.mxu0 0.0
    %231 = vmatprep.subr.mxu0 0.0
    %232 = vmatpush1.msra.mxu0 0.0
    %233 = vmatprep.subr.mxu0 0.0
    %234 = vmatpush1.msra.mxu0 0.0
    %235 = vmatprep.subr.mxu0 0.0
    %236 = vmatpush1.msra.mxu0 0.0
    %237 = vmatprep.subr.mxu0 0.0
    %238 = vmatpush1.msra.mxu0 0.0
    %239 = vmatprep.subr.mxu0 0.0
    %240 = vmatpush1.msra.mxu0 0.0
    %241 = vmatprep.subr.mxu0 0.0
    %242 = vmatpush1.msra.mxu0 0.0
    %243 = vmatprep.subr.mxu0 0.0
    %244 = vmatpush1.msra.mxu0 0.0
    %245 = vmatprep.subr.mxu0 0.0
    %246 = vmatpush1.msra.mxu0 0.0
    %247 = vmatprep.subr.mxu0 0.0
    %248 = vmatpush1.msra.mxu0 0.0
    %249 = vmatprep.subr.mxu0 0.0
    %250 = vmatpush1.msra.mxu0 0.0
    %251 = vmatprep.subr.mxu0 0.0
    %252 = vmatpush1.msra.mxu0 0.0
    %253 = vmatprep.subr.mxu0 0.0
    %254 = vmatpush1.msra.mxu0 0.0
    %255 = vmatprep.subr.mxu0 0.0
    %256 = vmatpush1.msra.mxu0 0.0
    %257 = vmatprep.subr.mxu0 0.0
    %258 = vmatpush1.msra.mxu0 0.0
    %259 = vmatprep.subr.mxu0 0.0
    %260 = vmatpush1.msra.mxu0 0.0
    %261 = vmatprep.mubr.f32.mxu0 0.0
    %262 = vmatmul.mubr.f32.gmra.mrb[0].mxu0 %v102
    %v263 = vpop.f32.mrb[0].mxu0
    %v264 = vadd.f32 %v93, %v263
    %v265 = vpop.f32.mrb[0].mxu0
    %v266 = vadd.f32 %v93, %v265
    %267 = vmatprep.mubr.f32.mxu0 0.0
    %268 = vmatmul.mubr.f32.gmra.mrb[0].mxu0 %v105
    %v269 = vpop.f32.mrb[0].mxu0
    %v270 = vadd.f32 %v98, %v269
    %v271 = vpop.f32.mrb[0].mxu0
    %v272 = vadd.f32 %v98, %v271
    %273 = vdwg.mxu0
    %v274 = vmax.f32 %v187, 0.0
    %v275 = vmax.f32 %v189, 0.0
    %v276 = vmax.f32 %v264, 0.0
    %v277 = vmax.f32 %v266, 0.0
    %v278 = vmax.f32 %v193, 0.0
    %v279 = vmax.f32 %v195, 0.0
    %v280 = vmax.f32 %v270, 0.0
    %v281 = vmax.f32 %v272, 0.0
    %v282 = vld [vmem:[%s3] sm:$0xff]
    %v284 = vcombine.high %v282, %v282
    %v286 = vunpack.c.l.s4 1983009808
    %v287 = vunpack.c.0.s8 %v286
    %v288 = vlaneseq
    %v289 = vshrl.u32 %v288, 7
    %v290 = vsub.s32 %v287, %v289
    %v291 = vrot.slane %v282, %v290
    %v293 = vunpack.c.l.s4 1983009808
    %v294 = vunpack.c.0.s8 %v293
    %v295 = vlaneseq
    %v296 = vshrl.u32 %v295, 7
    %v297 = vsub.s32 %v294, %v296
    %v298 = vrot.slane %v284, %v297
    %v299 = vcombine.high %v291, %v291
    %v300 = vcombine.high %v298, %v298
    %305 = vmatprep.subr.mxu0 %v275
    %306 = vmatpush1.xpose.msra.mxu0 %v274
    %307 = vmatprep.subr.mxu0 %v279
    %308 = vmatpush1.xpose.msra.mxu0 %v278
    %309 = vmatprep.subr.mxu0 0.0
    %310 = vmatpush1.xpose.msra.mxu0 0.0
    %311 = vmatprep.subr.mxu0 0.0
    %312 = vmatpush1.xpose.msra.mxu0 0.0
    %313 = vmatprep.subr.mxu0 0.0
    %314 = vmatpush1.xpose.msra.mxu0 0.0
    %315 = vmatprep.subr.mxu0 0.0
    %316 = vmatpush1.xpose.msra.mxu0 0.0
    %317 = vmatprep.subr.mxu0 0.0
    %318 = vmatpush1.xpose.msra.mxu0 0.0
    %319 = vmatprep.subr.mxu0 0.0
    %320 = vmatpush1.xpose.msra.mxu0 0.0
    %321 = vmatprep.subr.mxu0 0.0
    %322 = vmatpush1.xpose.msra.mxu0 0.0
    %323 = vmatprep.subr.mxu0 0.0
    %324 = vmatpush1.xpose.msra.mxu0 0.0
    %325 = vmatprep.subr.mxu0 0.0
    %326 = vmatpush1.xpose.msra.mxu0 0.0
    %327 = vmatprep.subr.mxu0 0.0
    %328 = vmatpush1.xpose.msra.mxu0 0.0
    %329 = vmatprep.subr.mxu0 0.0
    %330 = vmatpush1.xpose.msra.mxu0 0.0
    %331 = vmatprep.subr.mxu0 0.0
    %332 = vmatpush1.xpose.msra.mxu0 0.0
    %333 = vmatprep.subr.mxu0 0.0
    %334 = vmatpush1.xpose.msra.mxu0 0.0
    %335 = vmatprep.subr.mxu0 0.0
    %336 = vmatpush1.xpose.msra.mxu0 0.0
    %337 = vmatprep.subr.mxu0 0.0
    %338 = vmatpush1.xpose.msra.mxu0 0.0
    %339 = vmatprep.subr.mxu0 0.0
    %340 = vmatpush1.xpose.msra.mxu0 0.0
    %341 = vmatprep.subr.mxu0 0.0
    %342 = vmatpush1.xpose.msra.mxu0 0.0
    %343 = vmatprep.subr.mxu0 0.0
    %344 = vmatpush1.xpose.msra.mxu0 0.0
    %345 = vmatprep.subr.mxu0 0.0
    %346 = vmatpush1.xpose.msra.mxu0 0.0
    %347 = vmatprep.subr.mxu0 0.0
    %348 = vmatpush1.xpose.msra.mxu0 0.0
    %349 = vmatprep.subr.mxu0 0.0
    %350 = vmatpush1.xpose.msra.mxu0 0.0
    %351 = vmatprep.subr.mxu0 0.0
    %352 = vmatpush1.xpose.msra.mxu0 0.0
    %353 = vmatprep.subr.mxu0 0.0
    %354 = vmatpush1.xpose.msra.mxu0 0.0
    %355 = vmatprep.subr.mxu0 0.0
    %356 = vmatpush1.xpose.msra.mxu0 0.0
    %357 = vmatprep.subr.mxu0 0.0
    %358 = vmatpush1.xpose.msra.mxu0 0.0
    %359 = vmatprep.subr.mxu0 0.0
    %360 = vmatpush1.xpose.msra.mxu0 0.0
    %361 = vmatprep.subr.mxu0 0.0
    %362 = vmatpush1.xpose.msra.mxu0 0.0
    %363 = vmatprep.subr.mxu0 0.0
    %364 = vmatpush1.xpose.msra.mxu0 0.0
    %365 = vmatprep.subr.mxu0 0.0
    %366 = vmatpush1.xpose.msra.mxu0 0.0
    %367 = vmatprep.subr.mxu0 0.0
    %368 = vmatpush1.xpose.msra.mxu0 0.0
    %369 = vmatprep.mubr.f32.mxu0 %v299
    %370 = vmatmul.mubr.f32.gmra.mrb[0].mxu0 %v291
    %v371 = vpop.f32.mrb[0].mxu0
    %v372 = vadd.f32 0.0, %v371
    %v373 = vpop.f32.mrb[0].mxu0
    %374 = vdwg.mxu0
    %375 = vmatprep.subr.mxu0 %v277
    %376 = vmatpush1.xpose.msra.mxu0 %v276
    %377 = vmatprep.subr.mxu0 %v281
    %378 = vmatpush1.xpose.msra.mxu0 %v280
    %379 = vmatprep.subr.mxu0 0.0
    %380 = vmatpush1.xpose.msra.mxu0 0.0
    %381 = vmatprep.subr.mxu0 0.0
    %382 = vmatpush1.xpose.msra.mxu0 0.0
    %383 = vmatprep.subr.mxu0 0.0
    %384 = vmatpush1.xpose.msra.mxu0 0.0
    %385 = vmatprep.subr.mxu0 0.0
    %386 = vmatpush1.xpose.msra.mxu0 0.0
    %387 = vmatprep.subr.mxu0 0.0
    %388 = vmatpush1.xpose.msra.mxu0 0.0
    %389 = vmatprep.subr.mxu0 0.0
    %390 = vmatpush1.xpose.msra.mxu0 0.0
    %391 = vmatprep.subr.mxu0 0.0
    %392 = vmatpush1.xpose.msra.mxu0 0.0
    %393 = vmatprep.subr.mxu0 0.0
    %394 = vmatpush1.xpose.msra.mxu0 0.0
    %395 = vmatprep.subr.mxu0 0.0
    %396 = vmatpush1.xpose.msra.mxu0 0.0
    %397 = vmatprep.subr.mxu0 0.0
    %398 = vmatpush1.xpose.msra.mxu0 0.0
    %399 = vmatprep.subr.mxu0 0.0
    %400 = vmatpush1.xpose.msra.mxu0 0.0
    %401 = vmatprep.subr.mxu0 0.0
    %402 = vmatpush1.xpose.msra.mxu0 0.0
    %403 = vmatprep.subr.mxu0 0.0
    %404 = vmatpush1.xpose.msra.mxu0 0.0
    %405 = vmatprep.subr.mxu0 0.0
    %406 = vmatpush1.xpose.msra.mxu0 0.0
    %407 = vmatprep.subr.mxu0 0.0
    %408 = vmatpush1.xpose.msra.mxu0 0.0
    %409 = vmatprep.subr.mxu0 0.0
    %410 = vmatpush1.xpose.msra.mxu0 0.0
    %411 = vmatprep.subr.mxu0 0.0
    %412 = vmatpush1.xpose.msra.mxu0 0.0
    %413 = vmatprep.subr.mxu0 0.0
    %414 = vmatpush1.xpose.msra.mxu0 0.0
    %415 = vmatprep.subr.mxu0 0.0
    %416 = vmatpush1.xpose.msra.mxu0 0.0
    %417 = vmatprep.subr.mxu0 0.0
    %418 = vmatpush1.xpose.msra.mxu0 0.0
    %419 = vmatprep.subr.mxu0 0.0
    %420 = vmatpush1.xpose.msra.mxu0 0.0
    %421 = vmatprep.subr.mxu0 0.0
    %422 = vmatpush1.xpose.msra.mxu0 0.0
    %423 = vmatprep.subr.mxu0 0.0
    %424 = vmatpush1.xpose.msra.mxu0 0.0
    %425 = vmatprep.subr.mxu0 0.0
    %426 = vmatpush1.xpose.msra.mxu0 0.0
    %427 = vmatprep.subr.mxu0 0.0
    %428 = vmatpush1.xpose.msra.mxu0 0.0
    %429 = vmatprep.subr.mxu0 0.0
    %430 = vmatpush1.xpose.msra.mxu0 0.0
    %431 = vmatprep.subr.mxu0 0.0
    %432 = vmatpush1.xpose.msra.mxu0 0.0
    %433 = vmatprep.subr.mxu0 0.0
    %434 = vmatpush1.xpose.msra.mxu0 0.0
    %435 = vmatprep.subr.mxu0 0.0
    %436 = vmatpush1.xpose.msra.mxu0 0.0
    %437 = vmatprep.subr.mxu0 0.0
    %438 = vmatpush1.xpose.msra.mxu0 0.0
    %439 = vmatprep.mubr.f32.mxu0 %v300
    %440 = vmatmul.mubr.f32.gmra.mrb[0].mxu0 %v298
    %v441 = vpop.f32.mrb[0].mxu0
    %v442 = vadd.f32 %v372, %v441
    %v443 = vpop.f32.mrb[0].mxu0
    %444 = vdwg.mxu0
    %v445 = vld [vmem:[%s4] sm:$0xff]
    %v446 = vld [vmem:[%s4 + $0x8] sm:$0xff]
    %v447 = vld [vmem:[%s4 + $0x10] sm:$0xff]
    %v448 = vld [vmem:[%s4 + $0x18] sm:$0xff]
    %v449 = vld [vmem:[%s5] sm:$0x3]
    %v451 = vlaneseq
    %v452 = vshrl.u32 %v451, 7
    %v453 = vsub.s32 0, %v452
    %v454 = vrot.slane %v449, %v453
    %v455 = vlaneseq
    %v456 = vshrl.u32 %v455, 7
    %v457 = vsub.s32 1, %v456
    %v458 = vrot.slane %v449, %v457
    %vm461 = vcmask 130048
    %v463 = vsel %vm461, %v442, 0
    %465 = vmatprep.subr.mxu0 %v446
    %466 = vmatpush1.msra.mxu0 %v445
    %467 = vmatprep.subr.mxu0 %v448
    %468 = vmatpush1.msra.mxu0 %v447
    %469 = vmatprep.subr.mxu0 0.0
    %470 = vmatpush1.msra.mxu0 0.0
    %471 = vmatprep.subr.mxu0 0.0
    %472 = vmatpush1.msra.mxu0 0.0
    %473 = vmatprep.subr.mxu0 0.0
    %474 = vmatpush1.msra.mxu0 0.0
    %475 = vmatprep.subr.mxu0 0.0
    %476 = vmatpush1.msra.mxu0 0.0
    %477 = vmatprep.subr.mxu0 0.0
    %478 = vmatpush1.msra.mxu0 0.0
    %479 = vmatprep.subr.mxu0 0.0
    %480 = vmatpush1.msra.mxu0 0.0
    %481 = vmatprep.subr.mxu0 0.0
    %482 = vmatpush1.msra.mxu0 0.0
    %483 = vmatprep.subr.mxu0 0.0
    %484 = vmatpush1.msra.mxu0 0.0
    %485 = vmatprep.subr.mxu0 0.0
    %486 = vmatpush1.msra.mxu0 0.0
    %487 = vmatprep.subr.mxu0 0.0
    %488 = vmatpush1.msra.mxu0 0.0
    %489 = vmatprep.subr.mxu0 0.0
    %490 = vmatpush1.msra.mxu0 0.0
    %491 = vmatprep.subr.mxu0 0.0
    %492 = vmatpush1.msra.mxu0 0.0
    %493 = vmatprep.subr.mxu0 0.0
    %494 = vmatpush1.msra.mxu0 0.0
    %495 = vmatprep.subr.mxu0 0.0
    %496 = vmatpush1.msra.mxu0 0.0
    %497 = vmatprep.subr.mxu0 0.0
    %498 = vmatpush1.msra.mxu0 0.0
    %499 = vmatprep.subr.mxu0 0.0
    %500 = vmatpush1.msra.mxu0 0.0
    %501 = vmatprep.subr.mxu0 0.0
    %502 = vmatpush1.msra.mxu0 0.0
    %503 = vmatprep.subr.mxu0 0.0
    %504 = vmatpush1.msra.mxu0 0.0
    %505 = vmatprep.subr.mxu0 0.0
    %506 = vmatpush1.msra.mxu0 0.0
    %507 = vmatprep.subr.mxu0 0.0
    %508 = vmatpush1.msra.mxu0 0.0
    %509 = vmatprep.subr.mxu0 0.0
    %510 = vmatpush1.msra.mxu0 0.0
    %511 = vmatprep.subr.mxu0 0.0
    %512 = vmatpush1.msra.mxu0 0.0
    %513 = vmatprep.subr.mxu0 0.0
    %514 = vmatpush1.msra.mxu0 0.0
    %515 = vmatprep.subr.mxu0 0.0
    %516 = vmatpush1.msra.mxu0 0.0
    %517 = vmatprep.subr.mxu0 0.0
    %518 = vmatpush1.msra.mxu0 0.0
    %519 = vmatprep.subr.mxu0 0.0
    %520 = vmatpush1.msra.mxu0 0.0
    %521 = vmatprep.subr.mxu0 0.0
    %522 = vmatpush1.msra.mxu0 0.0
    %523 = vmatprep.subr.mxu0 0.0
    %524 = vmatpush1.msra.mxu0 0.0
    %525 = vmatprep.subr.mxu0 0.0
    %526 = vmatpush1.msra.mxu0 0.0
    %527 = vmatprep.subr.mxu0 0.0
    %528 = vmatpush1.msra.mxu0 0.0
    %529 = vmatprep.mubr.f32.mxu0 0.0
    %530 = vmatmul.mubr.f32.gmra.mrb[0].mxu0 %v463
    %v531 = vpop.f32.mrb[0].mxu0
    %v532 = vadd.f32 %v454, %v531
    %v533 = vpop.f32.mrb[0].mxu0
    %v534 = vadd.f32 %v458, %v533
    %535 = vdwg.mxu0
    %v536 = vmax.f32 %v532, 0.0
    %v537 = vmax.f32 %v534, 0.0
    %v538 = vlaneseq
    %v539 = vand.u32 %v538, 127
    %v540 = vadd.s32 %v539, 128
    %vm541 = vcmp.lt.s32.totalorder %v539, 0
    %v542 = vsub.s32 0, %v539
    %v543 = vsel %vm541, %v542, %v539
    %v544 = vshrl.u32 %v543, 6
    %v545 = vand.u32 %v543, 63
    %v546 = vsub.s32 0, %v545
    %v547 = vsel %vm541, %v546, %v545
    %vm548 = vcmp.lt.s32.totalorder %v540, 0
    %v549 = vsub.s32 0, %v540
    %v550 = vsel %vm548, %v549, %v540
    %v551 = vshrl.u32 %v550, 6
    %v552 = vand.u32 %v550, 63
    %v553 = vsub.s32 0, %v552
    %v554 = vsel %vm548, %v553, %v552
    %vm555 = vcmp.ne.s32.totalorder %v547, 0
    %vm556 = vcmp.ne.s32.totalorder %v554, 0
    %vm557 = vcmp.lt.s32.totalorder %v547, 0
    %vm558 = vcmp.lt.s32.totalorder %v554, 0
    %vm559 = vmand %vm557, %vm555
    %vm560 = vmand %vm558, %vm556
    %v561 = vadd.s32 %v547, 64
    %v562 = vadd.s32 %v554, 64
    %v563 = vsel %vm559, %v561, %v547
    %v564 = vsel %vm560, %v562, %v554
    %vm565 = vcmp.lt.s32.totalorder %v563, 32
    %vm566 = vcmp.lt.s32.totalorder %v564, 32
    %v567 = vld [vmem:[%s6] sm:$0xff]
    %v568 = vld [vmem:[%s6 + $0x8] sm:$0xff]
    %v569 = vld [vmem:[%s6 + $0x10] sm:$0xff]
    %v570 = vld [vmem:[%s6 + $0x18] sm:$0xff]
    %v571 = vld [vmem:[%s6 + $0x20] sm:$0xff]
    %v572 = vld [vmem:[%s6 + $0x28] sm:$0xff]
    %v573 = vld [vmem:[%s6 + $0x30] sm:$0xff]
    %v574 = vld [vmem:[%s6 + $0x38] sm:$0xff]
    %v575 = vld [vmem:[%s8] sm:$0x3]
    %v577 = vlaneseq
    %v578 = vshrl.u32 %v577, 7
    %v579 = vsub.s32 0, %v578
    %v580 = vrot.slane %v575, %v579
    %v581 = vlaneseq
    %v582 = vshrl.u32 %v581, 7
    %v583 = vsub.s32 1, %v582
    %v584 = vrot.slane %v575, %v583
    %vm587 = vcmask 261120
    %v589 = vsel %vm587, %v536, 0
    %591 = vmatprep.subr.mxu0 %v568
    %592 = vmatpush1.msra.mxu0 %v567
    %593 = vmatprep.subr.mxu0 %v570
    %594 = vmatpush1.msra.mxu0 %v569
    %595 = vmatprep.subr.mxu0 %v572
    %596 = vmatpush1.msra.mxu0 %v571
    %597 = vmatprep.subr.mxu0 %v574
    %598 = vmatpush1.msra.mxu0 %v573
    %599 = vmatprep.subr.mxu0 0.0
    %600 = vmatpush1.msra.mxu0 0.0
    %601 = vmatprep.subr.mxu0 0.0
    %602 = vmatpush1.msra.mxu0 0.0
    %603 = vmatprep.subr.mxu0 0.0
    %604 = vmatpush1.msra.mxu0 0.0
    %605 = vmatprep.subr.mxu0 0.0
    %606 = vmatpush1.msra.mxu0 0.0
    %607 = vmatprep.subr.mxu0 0.0
    %608 = vmatpush1.msra.mxu0 0.0
    %609 = vmatprep.subr.mxu0 0.0
    %610 = vmatpush1.msra.mxu0 0.0
    %611 = vmatprep.subr.mxu0 0.0
    %612 = vmatpush1.msra.mxu0 0.0
    %613 = vmatprep.subr.mxu0 0.0
    %614 = vmatpush1.msra.mxu0 0.0
    %615 = vmatprep.subr.mxu0 0.0
    %616 = vmatpush1.msra.mxu0 0.0
    %617 = vmatprep.subr.mxu0 0.0
    %618 = vmatpush1.msra.mxu0 0.0
    %619 = vmatprep.subr.mxu0 0.0
    %620 = vmatpush1.msra.mxu0 0.0
    %621 = vmatprep.subr.mxu0 0.0
    %622 = vmatpush1.msra.mxu0 0.0
    %623 = vmatprep.subr.mxu0 0.0
    %624 = vmatpush1.msra.mxu0 0.0
    %625 = vmatprep.subr.mxu0 0.0
    %626 = vmatpush1.msra.mxu0 0.0
    %627 = vmatprep.subr.mxu0 0.0
    %628 = vmatpush1.msra.mxu0 0.0
    %629 = vmatprep.subr.mxu0 0.0
    %630 = vmatpush1.msra.mxu0 0.0
    %631 = vmatprep.subr.mxu0 0.0
    %632 = vmatpush1.msra.mxu0 0.0
    %633 = vmatprep.subr.mxu0 0.0
    %634 = vmatpush1.msra.mxu0 0.0
    %635 = vmatprep.subr.mxu0 0.0
    %636 = vmatpush1.msra.mxu0 0.0
    %637 = vmatprep.subr.mxu0 0.0
    %638 = vmatpush1.msra.mxu0 0.0
    %639 = vmatprep.subr.mxu0 0.0
    %640 = vmatpush1.msra.mxu0 0.0
    %641 = vmatprep.subr.mxu0 0.0
    %642 = vmatpush1.msra.mxu0 0.0
    %643 = vmatprep.subr.mxu0 0.0
    %644 = vmatpush1.msra.mxu0 0.0
    %645 = vmatprep.subr.mxu0 0.0
    %646 = vmatpush1.msra.mxu0 0.0
    %647 = vmatprep.subr.mxu0 0.0
    %648 = vmatpush1.msra.mxu0 0.0
    %649 = vmatprep.subr.mxu0 0.0
    %650 = vmatpush1.msra.mxu0 0.0
    %651 = vmatprep.subr.mxu0 0.0
    %652 = vmatpush1.msra.mxu0 0.0
    %653 = vmatprep.subr.mxu0 0.0
    %654 = vmatpush1.msra.mxu0 0.0
    %655 = vmatprep.mubr.f32.mxu0 0.0
    %656 = vmatmul.mubr.f32.gmra.mrb[0].mxu0 %v589
    %v657 = vpop.f32.mrb[0].mxu0
    %v658 = vadd.f32 %v580, %v657
    %v659 = vpop.f32.mrb[0].mxu0
    %v660 = vadd.f32 %v584, %v659
    %661 = vdwg.mxu0
    %662 = vrot.lane.b32.xlu0 %v536, 96
    %v663 = vpop.permute.xlu0 %662
    %v664 = vsel %vm587, %v663, 0
    %666 = vmatprep.subr.mxu0 %v568
    %667 = vmatpush1.msra.mxu0 %v567
    %668 = vmatprep.subr.mxu0 %v570
    %669 = vmatpush1.msra.mxu0 %v569
    %670 = vmatprep.subr.mxu0 %v572
    %671 = vmatpush1.msra.mxu0 %v571
    %672 = vmatprep.subr.mxu0 %v574
    %673 = vmatpush1.msra.mxu0 %v573
    %674 = vmatprep.subr.mxu0 0.0
    %675 = vmatpush1.msra.mxu0 0.0
    %676 = vmatprep.subr.mxu0 0.0
    %677 = vmatpush1.msra.mxu0 0.0
    %678 = vmatprep.subr.mxu0 0.0
    %679 = vmatpush1.msra.mxu0 0.0
    %680 = vmatprep.subr.mxu0 0.0
    %681 = vmatpush1.msra.mxu0 0.0
    %682 = vmatprep.subr.mxu0 0.0
    %683 = vmatpush1.msra.mxu0 0.0
    %684 = vmatprep.subr.mxu0 0.0
    %685 = vmatpush1.msra.mxu0 0.0
    %686 = vmatprep.subr.mxu0 0.0
    %687 = vmatpush1.msra.mxu0 0.0
    %688 = vmatprep.subr.mxu0 0.0
    %689 = vmatpush1.msra.mxu0 0.0
    %690 = vmatprep.subr.mxu0 0.0
    %691 = vmatpush1.msra.mxu0 0.0
    %692 = vmatprep.subr.mxu0 0.0
    %693 = vmatpush1.msra.mxu0 0.0
    %694 = vmatprep.subr.mxu0 0.0
    %695 = vmatpush1.msra.mxu0 0.0
    %696 = vmatprep.subr.mxu0 0.0
    %697 = vmatpush1.msra.mxu0 0.0
    %698 = vmatprep.subr.mxu0 0.0
    %699 = vmatpush1.msra.mxu0 0.0
    %700 = vmatprep.subr.mxu0 0.0
    %701 = vmatpush1.msra.mxu0 0.0
    %702 = vmatprep.subr.mxu0 0.0
    %703 = vmatpush1.msra.mxu0 0.0
    %704 = vmatprep.subr.mxu0 0.0
    %705 = vmatpush1.msra.mxu0 0.0
    %706 = vmatprep.subr.mxu0 0.0
    %707 = vmatpush1.msra.mxu0 0.0
    %708 = vmatprep.subr.mxu0 0.0
    %709 = vmatpush1.msra.mxu0 0.0
    %710 = vmatprep.subr.mxu0 0.0
    %711 = vmatpush1.msra.mxu0 0.0
    %712 = vmatprep.subr.mxu0 0.0
    %713 = vmatpush1.msra.mxu0 0.0
    %714 = vmatprep.subr.mxu0 0.0
    %715 = vmatpush1.msra.mxu0 0.0
    %716 = vmatprep.subr.mxu0 0.0
    %717 = vmatpush1.msra.mxu0 0.0
    %718 = vmatprep.subr.mxu0 0.0
    %719 = vmatpush1.msra.mxu0 0.0
    %720 = vmatprep.subr.mxu0 0.0
    %721 = vmatpush1.msra.mxu0 0.0
    %722 = vmatprep.subr.mxu0 0.0
    %723 = vmatpush1.msra.mxu0 0.0
    %724 = vmatprep.subr.mxu0 0.0
    %725 = vmatpush1.msra.mxu0 0.0
    %726 = vmatprep.subr.mxu0 0.0
    %727 = vmatpush1.msra.mxu0 0.0
    %728 = vmatprep.subr.mxu0 0.0
    %729 = vmatpush1.msra.mxu0 0.0
    %730 = vmatprep.mubr.f32.mxu0 0.0
    %731 = vmatmul.mubr.f32.gmra.mrb[0].mxu0 %v664
    %v732 = vpop.f32.mrb[0].mxu0
    %v733 = vadd.f32 %v580, %v732
    %v734 = vpop.f32.mrb[0].mxu0
    %v735 = vadd.f32 %v584, %v734
    %736 = vdwg.mxu0
    %737 = vrot.lane.b32.xlu0 %v536, 64
    %v738 = vpop.permute.xlu0 %737
    %v739 = vsel %vm587, %v738, 0
    %741 = vmatprep.subr.mxu0 %v568
    %742 = vmatpush1.msra.mxu0 %v567
    %743 = vmatprep.subr.mxu0 %v570
    %744 = vmatpush1.msra.mxu0 %v569
    %745 = vmatprep.subr.mxu0 %v572
    %746 = vmatpush1.msra.mxu0 %v571
    %747 = vmatprep.subr.mxu0 %v574
    %748 = vmatpush1.msra.mxu0 %v573
    %749 = vmatprep.subr.mxu0 0.0
    %750 = vmatpush1.msra.mxu0 0.0
    %751 = vmatprep.subr.mxu0 0.0
    %752 = vmatpush1.msra.mxu0 0.0
    %753 = vmatprep.subr.mxu0 0.0
    %754 = vmatpush1.msra.mxu0 0.0
    %755 = vmatprep.subr.mxu0 0.0
    %756 = vmatpush1.msra.mxu0 0.0
    %757 = vmatprep.subr.mxu0 0.0
    %758 = vmatpush1.msra.mxu0 0.0
    %759 = vmatprep.subr.mxu0 0.0
    %760 = vmatpush1.msra.mxu0 0.0
    %761 = vmatprep.subr.mxu0 0.0
    %762 = vmatpush1.msra.mxu0 0.0
    %763 = vmatprep.subr.mxu0 0.0
    %764 = vmatpush1.msra.mxu0 0.0
    %765 = vmatprep.subr.mxu0 0.0
    %766 = vmatpush1.msra.mxu0 0.0
    %767 = vmatprep.subr.mxu0 0.0
    %768 = vmatpush1.msra.mxu0 0.0
    %769 = vmatprep.subr.mxu0 0.0
    %770 = vmatpush1.msra.mxu0 0.0
    %771 = vmatprep.subr.mxu0 0.0
    %772 = vmatpush1.msra.mxu0 0.0
    %773 = vmatprep.subr.mxu0 0.0
    %774 = vmatpush1.msra.mxu0 0.0
    %775 = vmatprep.subr.mxu0 0.0
    %776 = vmatpush1.msra.mxu0 0.0
    %777 = vmatprep.subr.mxu0 0.0
    %778 = vmatpush1.msra.mxu0 0.0
    %779 = vmatprep.subr.mxu0 0.0
    %780 = vmatpush1.msra.mxu0 0.0
    %781 = vmatprep.subr.mxu0 0.0
    %782 = vmatpush1.msra.mxu0 0.0
    %783 = vmatprep.subr.mxu0 0.0
    %784 = vmatpush1.msra.mxu0 0.0
    %785 = vmatprep.subr.mxu0 0.0
    %786 = vmatpush1.msra.mxu0 0.0
    %787 = vmatprep.subr.mxu0 0.0
    %788 = vmatpush1.msra.mxu0 0.0
    %789 = vmatprep.subr.mxu0 0.0
    %790 = vmatpush1.msra.mxu0 0.0
    %791 = vmatprep.subr.mxu0 0.0
    %792 = vmatpush1.msra.mxu0 0.0
    %793 = vmatprep.subr.mxu0 0.0
    %794 = vmatpush1.msra.mxu0 0.0
    %795 = vmatprep.subr.mxu0 0.0
    %796 = vmatpush1.msra.mxu0 0.0
    %797 = vmatprep.subr.mxu0 0.0
    %798 = vmatpush1.msra.mxu0 0.0
    %799 = vmatprep.subr.mxu0 0.0
    %800 = vmatpush1.msra.mxu0 0.0
    %801 = vmatprep.subr.mxu0 0.0
    %802 = vmatpush1.msra.mxu0 0.0
    %803 = vmatprep.subr.mxu0 0.0
    %804 = vmatpush1.msra.mxu0 0.0
    %805 = vmatprep.mubr.f32.mxu0 0.0
    %806 = vmatmul.mubr.f32.gmra.mrb[0].mxu0 %v739
    %v807 = vpop.f32.mrb[0].mxu0
    %v808 = vadd.f32 %v580, %v807
    %v809 = vpop.f32.mrb[0].mxu0
    %v810 = vadd.f32 %v584, %v809
    %811 = vdwg.mxu0
    %812 = vrot.lane.b32.xlu0 %v536, 32
    %v813 = vpop.permute.xlu0 %812
    %v814 = vsel %vm587, %v813, 0
    %816 = vmatprep.subr.mxu0 %v568
    %817 = vmatpush1.msra.mxu0 %v567
    %818 = vmatprep.subr.mxu0 %v570
    %819 = vmatpush1.msra.mxu0 %v569
    %820 = vmatprep.subr.mxu0 %v572
    %821 = vmatpush1.msra.mxu0 %v571
    %822 = vmatprep.subr.mxu0 %v574
    %823 = vmatpush1.msra.mxu0 %v573
    %824 = vmatprep.subr.mxu0 0.0
    %825 = vmatpush1.msra.mxu0 0.0
    %826 = vmatprep.subr.mxu0 0.0
    %827 = vmatpush1.msra.mxu0 0.0
    %828 = vmatprep.subr.mxu0 0.0
    %829 = vmatpush1.msra.mxu0 0.0
    %830 = vmatprep.subr.mxu0 0.0
    %831 = vmatpush1.msra.mxu0 0.0
    %832 = vmatprep.subr.mxu0 0.0
    %833 = vmatpush1.msra.mxu0 0.0
    %834 = vmatprep.subr.mxu0 0.0
    %835 = vmatpush1.msra.mxu0 0.0
    %836 = vmatprep.subr.mxu0 0.0
    %837 = vmatpush1.msra.mxu0 0.0
    %838 = vmatprep.subr.mxu0 0.0
    %839 = vmatpush1.msra.mxu0 0.0
    %840 = vmatprep.subr.mxu0 0.0
    %841 = vmatpush1.msra.mxu0 0.0
    %842 = vmatprep.subr.mxu0 0.0
    %843 = vmatpush1.msra.mxu0 0.0
    %844 = vmatprep.subr.mxu0 0.0
    %845 = vmatpush1.msra.mxu0 0.0
    %846 = vmatprep.subr.mxu0 0.0
    %847 = vmatpush1.msra.mxu0 0.0
    %848 = vmatprep.subr.mxu0 0.0
    %849 = vmatpush1.msra.mxu0 0.0
    %850 = vmatprep.subr.mxu0 0.0
    %851 = vmatpush1.msra.mxu0 0.0
    %852 = vmatprep.subr.mxu0 0.0
    %853 = vmatpush1.msra.mxu0 0.0
    %854 = vmatprep.subr.mxu0 0.0
    %855 = vmatpush1.msra.mxu0 0.0
    %856 = vmatprep.subr.mxu0 0.0
    %857 = vmatpush1.msra.mxu0 0.0
    %858 = vmatprep.subr.mxu0 0.0
    %859 = vmatpush1.msra.mxu0 0.0
    %860 = vmatprep.subr.mxu0 0.0
    %861 = vmatpush1.msra.mxu0 0.0
    %862 = vmatprep.subr.mxu0 0.0
    %863 = vmatpush1.msra.mxu0 0.0
    %864 = vmatprep.subr.mxu0 0.0
    %865 = vmatpush1.msra.mxu0 0.0
    %866 = vmatprep.subr.mxu0 0.0
    %867 = vmatpush1.msra.mxu0 0.0
    %868 = vmatprep.subr.mxu0 0.0
    %869 = vmatpush1.msra.mxu0 0.0
    %870 = vmatprep.subr.mxu0 0.0
    %871 = vmatpush1.msra.mxu0 0.0
    %872 = vmatprep.subr.mxu0 0.0
    %873 = vmatpush1.msra.mxu0 0.0
    %874 = vmatprep.subr.mxu0 0.0
    %875 = vmatpush1.msra.mxu0 0.0
    %876 = vmatprep.subr.mxu0 0.0
    %877 = vmatpush1.msra.mxu0 0.0
    %878 = vmatprep.subr.mxu0 0.0
    %879 = vmatpush1.msra.mxu0 0.0
    %880 = vmatprep.mubr.f32.mxu0 0.0
    %881 = vmatmul.mubr.f32.gmra.mrb[0].mxu0 %v814
    %v882 = vpop.f32.mrb[0].mxu0
    %v883 = vadd.f32 %v580, %v882
    %v884 = vpop.f32.mrb[0].mxu0
    %v885 = vadd.f32 %v584, %v884
    %886 = vdwg.mxu0
    %v888 = vsel %vm587, %v537, 0
    %890 = vmatprep.subr.mxu0 %v568
    %891 = vmatpush1.msra.mxu0 %v567
    %892 = vmatprep.subr.mxu0 %v570
    %893 = vmatpush1.msra.mxu0 %v569
    %894 = vmatprep.subr.mxu0 %v572
    %895 = vmatpush1.msra.mxu0 %v571
    %896 = vmatprep.subr.mxu0 %v574
    %897 = vmatpush1.msra.mxu0 %v573
    %898 = vmatprep.subr.mxu0 0.0
    %899 = vmatpush1.msra.mxu0 0.0
    %900 = vmatprep.subr.mxu0 0.0
    %901 = vmatpush1.msra.mxu0 0.0
    %902 = vmatprep.subr.mxu0 0.0
    %903 = vmatpush1.msra.mxu0 0.0
    %904 = vmatprep.subr.mxu0 0.0
    %905 = vmatpush1.msra.mxu0 0.0
    %906 = vmatprep.subr.mxu0 0.0
    %907 = vmatpush1.msra.mxu0 0.0
    %908 = vmatprep.subr.mxu0 0.0
    %909 = vmatpush1.msra.mxu0 0.0
    %910 = vmatprep.subr.mxu0 0.0
    %911 = vmatpush1.msra.mxu0 0.0
    %912 = vmatprep.subr.mxu0 0.0
    %913 = vmatpush1.msra.mxu0 0.0
    %914 = vmatprep.subr.mxu0 0.0
    %915 = vmatpush1.msra.mxu0 0.0
    %916 = vmatprep.subr.mxu0 0.0
    %917 = vmatpush1.msra.mxu0 0.0
    %918 = vmatprep.subr.mxu0 0.0
    %919 = vmatpush1.msra.mxu0 0.0
    %920 = vmatprep.subr.mxu0 0.0
    %921 = vmatpush1.msra.mxu0 0.0
    %922 = vmatprep.subr.mxu0 0.0
    %923 = vmatpush1.msra.mxu0 0.0
    %924 = vmatprep.subr.mxu0 0.0
    %925 = vmatpush1.msra.mxu0 0.0
    %926 = vmatprep.subr.mxu0 0.0
    %927 = vmatpush1.msra.mxu0 0.0
    %928 = vmatprep.subr.mxu0 0.0
    %929 = vmatpush1.msra.mxu0 0.0
    %930 = vmatprep.subr.mxu0 0.0
    %931 = vmatpush1.msra.mxu0 0.0
    %932 = vmatprep.subr.mxu0 0.0
    %933 = vmatpush1.msra.mxu0 0.0
    %934 = vmatprep.subr.mxu0 0.0
    %935 = vmatpush1.msra.mxu0 0.0
    %936 = vmatprep.subr.mxu0 0.0
    %937 = vmatpush1.msra.mxu0 0.0
    %938 = vmatprep.subr.mxu0 0.0
    %939 = vmatpush1.msra.mxu0 0.0
    %940 = vmatprep.subr.mxu0 0.0
    %941 = vmatpush1.msra.mxu0 0.0
    %942 = vmatprep.subr.mxu0 0.0
    %943 = vmatpush1.msra.mxu0 0.0
    %944 = vmatprep.subr.mxu0 0.0
    %945 = vmatpush1.msra.mxu0 0.0
    %946 = vmatprep.subr.mxu0 0.0
    %947 = vmatpush1.msra.mxu0 0.0
    %948 = vmatprep.subr.mxu0 0.0
    %949 = vmatpush1.msra.mxu0 0.0
    %950 = vmatprep.subr.mxu0 0.0
    %951 = vmatpush1.msra.mxu0 0.0
    %952 = vmatprep.subr.mxu0 0.0
    %953 = vmatpush1.msra.mxu0 0.0
    %954 = vmatprep.mubr.f32.mxu0 0.0
    %955 = vmatmul.mubr.f32.gmra.mrb[0].mxu0 %v888
    %v956 = vpop.f32.mrb[0].mxu0
    %v957 = vadd.f32 %v580, %v956
    %v958 = vpop.f32.mrb[0].mxu0
    %v959 = vadd.f32 %v584, %v958
    %960 = vdwg.mxu0
    %961 = vrot.lane.b32.xlu0 %v537, 96
    %v962 = vpop.permute.xlu0 %961
    %v963 = vsel %vm587, %v962, 0
    %965 = vmatprep.subr.mxu0 %v568
    %966 = vmatpush1.msra.mxu0 %v567
    %967 = vmatprep.subr.mxu0 %v570
    %968 = vmatpush1.msra.mxu0 %v569
    %969 = vmatprep.subr.mxu0 %v572
    %970 = vmatpush1.msra.mxu0 %v571
    %971 = vmatprep.subr.mxu0 %v574
    %972 = vmatpush1.msra.mxu0 %v573
    %973 = vmatprep.subr.mxu0 0.0
    %974 = vmatpush1.msra.mxu0 0.0
    %975 = vmatprep.subr.mxu0 0.0
    %976 = vmatpush1.msra.mxu0 0.0
    %977 = vmatprep.subr.mxu0 0.0
    %978 = vmatpush1.msra.mxu0 0.0
    %979 = vmatprep.subr.mxu0 0.0
    %980 = vmatpush1.msra.mxu0 0.0
    %981 = vmatprep.subr.mxu0 0.0
    %982 = vmatpush1.msra.mxu0 0.0
    %983 = vmatprep.subr.mxu0 0.0
    %984 = vmatpush1.msra.mxu0 0.0
    %985 = vmatprep.subr.mxu0 0.0
    %986 = vmatpush1.msra.mxu0 0.0
    %987 = vmatprep.subr.mxu0 0.0
    %988 = vmatpush1.msra.mxu0 0.0
    %989 = vmatprep.subr.mxu0 0.0
    %990 = vmatpush1.msra.mxu0 0.0
    %991 = vmatprep.subr.mxu0 0.0
    %992 = vmatpush1.msra.mxu0 0.0
    %993 = vmatprep.subr.mxu0 0.0
    %994 = vmatpush1.msra.mxu0 0.0
    %995 = vmatprep.subr.mxu0 0.0
    %996 = vmatpush1.msra.mxu0 0.0
    %997 = vmatprep.subr.mxu0 0.0
    %998 = vmatpush1.msra.mxu0 0.0
    %999 = vmatprep.subr.mxu0 0.0
    %1000 = vmatpush1.msra.mxu0 0.0
    %1001 = vmatprep.subr.mxu0 0.0
    %1002 = vmatpush1.msra.mxu0 0.0
    %1003 = vmatprep.subr.mxu0 0.0
    %1004 = vmatpush1.msra.mxu0 0.0
    %1005 = vmatprep.subr.mxu0 0.0
    %1006 = vmatpush1.msra.mxu0 0.0
    %1007 = vmatprep.subr.mxu0 0.0
    %1008 = vmatpush1.msra.mxu0 0.0
    %1009 = vmatprep.subr.mxu0 0.0
    %1010 = vmatpush1.msra.mxu0 0.0
    %1011 = vmatprep.subr.mxu0 0.0
    %1012 = vmatpush1.msra.mxu0 0.0
    %1013 = vmatprep.subr.mxu0 0.0
    %1014 = vmatpush1.msra.mxu0 0.0
    %1015 = vmatprep.subr.mxu0 0.0
    %1016 = vmatpush1.msra.mxu0 0.0
    %1017 = vmatprep.subr.mxu0 0.0
    %1018 = vmatpush1.msra.mxu0 0.0
    %1019 = vmatprep.subr.mxu0 0.0
    %1020 = vmatpush1.msra.mxu0 0.0
    %1021 = vmatprep.subr.mxu0 0.0
    %1022 = vmatpush1.msra.mxu0 0.0
    %1023 = vmatprep.subr.mxu0 0.0
    %1024 = vmatpush1.msra.mxu0 0.0
    %1025 = vmatprep.subr.mxu0 0.0
    %1026 = vmatpush1.msra.mxu0 0.0
    %1027 = vmatprep.subr.mxu0 0.0
    %1028 = vmatpush1.msra.mxu0 0.0
    %1029 = vmatprep.mubr.f32.mxu0 0.0
    %1030 = vmatmul.mubr.f32.gmra.mrb[0].mxu0 %v963
    %v1031 = vpop.f32.mrb[0].mxu0
    %v1032 = vadd.f32 %v580, %v1031
    %v1033 = vpop.f32.mrb[0].mxu0
    %v1034 = vadd.f32 %v584, %v1033
    %1035 = vdwg.mxu0
    %1036 = vrot.lane.b32.xlu0 %v537, 64
    %v1037 = vpop.permute.xlu0 %1036
    %v1038 = vsel %vm587, %v1037, 0
    %1040 = vmatprep.subr.mxu0 %v568
    %1041 = vmatpush1.msra.mxu0 %v567
    %1042 = vmatprep.subr.mxu0 %v570
    %1043 = vmatpush1.msra.mxu0 %v569
    %1044 = vmatprep.subr.mxu0 %v572
    %1045 = vmatpush1.msra.mxu0 %v571
    %1046 = vmatprep.subr.mxu0 %v574
    %1047 = vmatpush1.msra.mxu0 %v573
    %1048 = vmatprep.subr.mxu0 0.0
    %1049 = vmatpush1.msra.mxu0 0.0
    %1050 = vmatprep.subr.mxu0 0.0
    %1051 = vmatpush1.msra.mxu0 0.0
    %1052 = vmatprep.subr.mxu0 0.0
    %1053 = vmatpush1.msra.mxu0 0.0
    %1054 = vmatprep.subr.mxu0 0.0
    %1055 = vmatpush1.msra.mxu0 0.0
    %1056 = vmatprep.subr.mxu0 0.0
    %1057 = vmatpush1.msra.mxu0 0.0
    %1058 = vmatprep.subr.mxu0 0.0
    %1059 = vmatpush1.msra.mxu0 0.0
    %1060 = vmatprep.subr.mxu0 0.0
    %1061 = vmatpush1.msra.mxu0 0.0
    %1062 = vmatprep.subr.mxu0 0.0
    %1063 = vmatpush1.msra.mxu0 0.0
    %1064 = vmatprep.subr.mxu0 0.0
    %1065 = vmatpush1.msra.mxu0 0.0
    %1066 = vmatprep.subr.mxu0 0.0
    %1067 = vmatpush1.msra.mxu0 0.0
    %1068 = vmatprep.subr.mxu0 0.0
    %1069 = vmatpush1.msra.mxu0 0.0
    %1070 = vmatprep.subr.mxu0 0.0
    %1071 = vmatpush1.msra.mxu0 0.0
    %1072 = vmatprep.subr.mxu0 0.0
    %1073 = vmatpush1.msra.mxu0 0.0
    %1074 = vmatprep.subr.mxu0 0.0
    %1075 = vmatpush1.msra.mxu0 0.0
    %1076 = vmatprep.subr.mxu0 0.0
    %1077 = vmatpush1.msra.mxu0 0.0
    %1078 = vmatprep.subr.mxu0 0.0
    %1079 = vmatpush1.msra.mxu0 0.0
    %1080 = vmatprep.subr.mxu0 0.0
    %1081 = vmatpush1.msra.mxu0 0.0
    %1082 = vmatprep.subr.mxu0 0.0
    %1083 = vmatpush1.msra.mxu0 0.0
    %1084 = vmatprep.subr.mxu0 0.0
    %1085 = vmatpush1.msra.mxu0 0.0
    %1086 = vmatprep.subr.mxu0 0.0
    %1087 = vmatpush1.msra.mxu0 0.0
    %1088 = vmatprep.subr.mxu0 0.0
    %1089 = vmatpush1.msra.mxu0 0.0
    %1090 = vmatprep.subr.mxu0 0.0
    %1091 = vmatpush1.msra.mxu0 0.0
    %1092 = vmatprep.subr.mxu0 0.0
    %1093 = vmatpush1.msra.mxu0 0.0
    %1094 = vmatprep.subr.mxu0 0.0
    %1095 = vmatpush1.msra.mxu0 0.0
    %1096 = vmatprep.subr.mxu0 0.0
    %1097 = vmatpush1.msra.mxu0 0.0
    %1098 = vmatprep.subr.mxu0 0.0
    %1099 = vmatpush1.msra.mxu0 0.0
    %1100 = vmatprep.subr.mxu0 0.0
    %1101 = vmatpush1.msra.mxu0 0.0
    %1102 = vmatprep.subr.mxu0 0.0
    %1103 = vmatpush1.msra.mxu0 0.0
    %1104 = vmatprep.mubr.f32.mxu0 0.0
    %1105 = vmatmul.mubr.f32.gmra.mrb[0].mxu0 %v1038
    %v1106 = vpop.f32.mrb[0].mxu0
    %v1107 = vadd.f32 %v580, %v1106
    %v1108 = vpop.f32.mrb[0].mxu0
    %v1109 = vadd.f32 %v584, %v1108
    %1110 = vdwg.mxu0
    %1111 = vrot.lane.b32.xlu0 %v537, 32
    %v1112 = vpop.permute.xlu0 %1111
    %v1113 = vsel %vm587, %v1112, 0
    %1115 = vmatprep.subr.mxu0 %v568
    %1116 = vmatpush1.msra.mxu0 %v567
    %1117 = vmatprep.subr.mxu0 %v570
    %1118 = vmatpush1.msra.mxu0 %v569
    %1119 = vmatprep.subr.mxu0 %v572
    %1120 = vmatpush1.msra.mxu0 %v571
    %1121 = vmatprep.subr.mxu0 %v574
    %1122 = vmatpush1.msra.mxu0 %v573
    %1123 = vmatprep.subr.mxu0 0.0
    %1124 = vmatpush1.msra.mxu0 0.0
    %1125 = vmatprep.subr.mxu0 0.0
    %1126 = vmatpush1.msra.mxu0 0.0
    %1127 = vmatprep.subr.mxu0 0.0
    %1128 = vmatpush1.msra.mxu0 0.0
    %1129 = vmatprep.subr.mxu0 0.0
    %1130 = vmatpush1.msra.mxu0 0.0
    %1131 = vmatprep.subr.mxu0 0.0
    %1132 = vmatpush1.msra.mxu0 0.0
    %1133 = vmatprep.subr.mxu0 0.0
    %1134 = vmatpush1.msra.mxu0 0.0
    %1135 = vmatprep.subr.mxu0 0.0
    %1136 = vmatpush1.msra.mxu0 0.0
    %1137 = vmatprep.subr.mxu0 0.0
    %1138 = vmatpush1.msra.mxu0 0.0
    %1139 = vmatprep.subr.mxu0 0.0
    %1140 = vmatpush1.msra.mxu0 0.0
    %1141 = vmatprep.subr.mxu0 0.0
    %1142 = vmatpush1.msra.mxu0 0.0
    %1143 = vmatprep.subr.mxu0 0.0
    %1144 = vmatpush1.msra.mxu0 0.0
    %1145 = vmatprep.subr.mxu0 0.0
    %1146 = vmatpush1.msra.mxu0 0.0
    %1147 = vmatprep.subr.mxu0 0.0
    %1148 = vmatpush1.msra.mxu0 0.0
    %1149 = vmatprep.subr.mxu0 0.0
    %1150 = vmatpush1.msra.mxu0 0.0
    %1151 = vmatprep.subr.mxu0 0.0
    %1152 = vmatpush1.msra.mxu0 0.0
    %1153 = vmatprep.subr.mxu0 0.0
    %1154 = vmatpush1.msra.mxu0 0.0
    %1155 = vmatprep.subr.mxu0 0.0
    %1156 = vmatpush1.msra.mxu0 0.0
    %1157 = vmatprep.subr.mxu0 0.0
    %1158 = vmatpush1.msra.mxu0 0.0
    %1159 = vmatprep.subr.mxu0 0.0
    %1160 = vmatpush1.msra.mxu0 0.0
    %1161 = vmatprep.subr.mxu0 0.0
    %1162 = vmatpush1.msra.mxu0 0.0
    %1163 = vmatprep.subr.mxu0 0.0
    %1164 = vmatpush1.msra.mxu0 0.0
    %1165 = vmatprep.subr.mxu0 0.0
    %1166 = vmatpush1.msra.mxu0 0.0
    %1167 = vmatprep.subr.mxu0 0.0
    %1168 = vmatpush1.msra.mxu0 0.0
    %1169 = vmatprep.subr.mxu0 0.0
    %1170 = vmatpush1.msra.mxu0 0.0
    %1171 = vmatprep.subr.mxu0 0.0
    %1172 = vmatpush1.msra.mxu0 0.0
    %1173 = vmatprep.subr.mxu0 0.0
    %1174 = vmatpush1.msra.mxu0 0.0
    %1175 = vmatprep.subr.mxu0 0.0
    %1176 = vmatpush1.msra.mxu0 0.0
    %1177 = vmatprep.subr.mxu0 0.0
    %1178 = vmatpush1.msra.mxu0 0.0
    %1179 = vmatprep.mubr.f32.mxu0 0.0
    %1180 = vmatmul.mubr.f32.gmra.mrb[0].mxu0 %v1113
    %v1181 = vpop.f32.mrb[0].mxu0
    %v1182 = vadd.f32 %v580, %v1181
    %v1183 = vpop.f32.mrb[0].mxu0
    %v1184 = vadd.f32 %v584, %v1183
    %1185 = vdwg.mxu0
    %v1186 = vld [vmem:[%s13] sm:$0x3]
    %v1187 = vld [vmem:[%s14] sm:$0x3]
    %v1188 = vld [vmem:[%s7] sm:$0xff]
    %v1189 = vld [vmem:[%s7 + $0x8] sm:$0xff]
    %v1190 = vld [vmem:[%s7 + $0x10] sm:$0xff]
    %v1191 = vld [vmem:[%s7 + $0x18] sm:$0xff]
    %v1192 = vld [vmem:[%s7 + $0x20] sm:$0xff]
    %v1193 = vld [vmem:[%s7 + $0x28] sm:$0xff]
    %v1194 = vld [vmem:[%s7 + $0x30] sm:$0xff]
    %v1195 = vld [vmem:[%s7 + $0x38] sm:$0xff]
    %v1196 = vld [vmem:[%s7 + $0x40] sm:$0xff]
    %v1197 = vld [vmem:[%s7 + $0x48] sm:$0xff]
    %v1198 = vld [vmem:[%s7 + $0x50] sm:$0xff]
    %v1199 = vld [vmem:[%s7 + $0x58] sm:$0xff]
    %v1200 = vld [vmem:[%s7 + $0x60] sm:$0xff]
    %v1201 = vld [vmem:[%s7 + $0x68] sm:$0xff]
    %v1202 = vld [vmem:[%s7 + $0x70] sm:$0xff]
    %v1203 = vld [vmem:[%s7 + $0x78] sm:$0xff]
    %v1204 = vsel %vm565, %v658, %v1182
    %v1205 = vsel %vm566, %v660, %v1184
    %vm1206 = vcmask 523264
    %v1208 = vsel %vm1206, %v1186, 0
    %1210 = vmatprep.subr.mxu0 %v1189
    %1211 = vmatpush1.msra.mxu0 %v1188
    %1212 = vmatprep.subr.mxu0 %v1191
    %1213 = vmatpush1.msra.mxu0 %v1190
    %1214 = vmatprep.subr.mxu0 %v1193
    %1215 = vmatpush1.msra.mxu0 %v1192
    %1216 = vmatprep.subr.mxu0 %v1195
    %1217 = vmatpush1.msra.mxu0 %v1194
    %1218 = vmatprep.subr.mxu0 %v1197
    %1219 = vmatpush1.msra.mxu0 %v1196
    %1220 = vmatprep.subr.mxu0 %v1199
    %1221 = vmatpush1.msra.mxu0 %v1198
    %1222 = vmatprep.subr.mxu0 %v1201
    %1223 = vmatpush1.msra.mxu0 %v1200
    %1224 = vmatprep.subr.mxu0 %v1203
    %1225 = vmatpush1.msra.mxu0 %v1202
    %1226 = vmatprep.subr.mxu0 0.0
    %1227 = vmatpush1.msra.mxu0 0.0
    %1228 = vmatprep.subr.mxu0 0.0
    %1229 = vmatpush1.msra.mxu0 0.0
    %1230 = vmatprep.subr.mxu0 0.0
    %1231 = vmatpush1.msra.mxu0 0.0
    %1232 = vmatprep.subr.mxu0 0.0
    %1233 = vmatpush1.msra.mxu0 0.0
    %1234 = vmatprep.subr.mxu0 0.0
    %1235 = vmatpush1.msra.mxu0 0.0
    %1236 = vmatprep.subr.mxu0 0.0
    %1237 = vmatpush1.msra.mxu0 0.0
    %1238 = vmatprep.subr.mxu0 0.0
    %1239 = vmatpush1.msra.mxu0 0.0
    %1240 = vmatprep.subr.mxu0 0.0
    %1241 = vmatpush1.msra.mxu0 0.0
    %1242 = vmatprep.subr.mxu0 0.0
    %1243 = vmatpush1.msra.mxu0 0.0
    %1244 = vmatprep.subr.mxu0 0.0
    %1245 = vmatpush1.msra.mxu0 0.0
    %1246 = vmatprep.subr.mxu0 0.0
    %1247 = vmatpush1.msra.mxu0 0.0
    %1248 = vmatprep.subr.mxu0 0.0
    %1249 = vmatpush1.msra.mxu0 0.0
    %1250 = vmatprep.subr.mxu0 0.0
    %1251 = vmatpush1.msra.mxu0 0.0
    %1252 = vmatprep.subr.mxu0 0.0
    %1253 = vmatpush1.msra.mxu0 0.0
    %1254 = vmatprep.subr.mxu0 0.0
    %1255 = vmatpush1.msra.mxu0 0.0
    %1256 = vmatprep.subr.mxu0 0.0
    %1257 = vmatpush1.msra.mxu0 0.0
    %1258 = vmatprep.subr.mxu0 0.0
    %1259 = vmatpush1.msra.mxu0 0.0
    %1260 = vmatprep.subr.mxu0 0.0
    %1261 = vmatpush1.msra.mxu0 0.0
    %1262 = vmatprep.subr.mxu0 0.0
    %1263 = vmatpush1.msra.mxu0 0.0
    %1264 = vmatprep.subr.mxu0 0.0
    %1265 = vmatpush1.msra.mxu0 0.0
    %1266 = vmatprep.subr.mxu0 0.0
    %1267 = vmatpush1.msra.mxu0 0.0
    %1268 = vmatprep.subr.mxu0 0.0
    %1269 = vmatpush1.msra.mxu0 0.0
    %1270 = vmatprep.subr.mxu0 0.0
    %1271 = vmatpush1.msra.mxu0 0.0
    %1272 = vmatprep.subr.mxu0 0.0
    %1273 = vmatpush1.msra.mxu0 0.0
    %1274 = vmatprep.mubr.f32.mxu0 0.0
    %1275 = vmatmul.mubr.f32.gmra.mrb[0].mxu0 %v1208
    %v1276 = vpop.f32.mrb[0].mxu0
    %v1277 = vadd.f32 0.0, %v1276
    %v1278 = vpop.f32.mrb[0].mxu0
    %v1279 = vadd.f32 0.0, %v1278
    %1280 = vdwg.mxu0
    %v1281 = vadd.f32 %v1204, %v1277
    %v1282 = vadd.f32 %v1205, %v1279
    %v1283 = vxor.u32 %v1281, 2147483648
    %v1284 = vxor.u32 %v1282, 2147483648
    %v1285 = vmul.f32 %v1283, 1.442695
    %v1286 = vpow.pop %v1285
    %v1287 = vmul.f32 %v1284, 1.442695
    %v1288 = vpow.pop %v1287
    %v1289 = vadd.f32 %v1286, 1.0
    %v1290 = vadd.f32 %v1288, 1.0
    %v1291 = vrcp.pop %v1289
    %v1292 = vmul.f32 1.0, %v1291
    %v1293 = vrcp.pop %v1290
    %v1294 = vmul.f32 1.0, %v1293
    %v1295 = vtanh.pop %v1282
    %1297 = vrot.lane.b32.xlu0 %v1187, 64
    %v1298 = vpop.permute.xlu0 %1297
    %v1300 = vmul.f32 %v1292, %v1298
    %v1301 = vmul.f32 %v1292, %v1295
    %1303 = vrot.lane.b32.xlu0 %v1301, 64
    %v1304 = vpop.permute.xlu0 %1303
    %v1306 = vadd.f32 %v1300, %v1304
    %v1307 = vtanh.pop %v1306
    %v1308 = vmul.f32 %v1294, %v1307
    %v1309 = vsel %vm565, %v733, %v1107
    %v1310 = vsel %vm566, %v735, %v1109
    %1312 = vrot.lane.b32.xlu0 %v1308, 64
    %v1313 = vpop.permute.xlu0 %1312
    %v1314 = vsel %vm1206, %v1313, 0
    %1316 = vmatprep.subr.mxu0 %v1189
    %1317 = vmatpush1.msra.mxu0 %v1188
    %1318 = vmatprep.subr.mxu0 %v1191
    %1319 = vmatpush1.msra.mxu0 %v1190
    %1320 = vmatprep.subr.mxu0 %v1193
    %1321 = vmatpush1.msra.mxu0 %v1192
    %1322 = vmatprep.subr.mxu0 %v1195
    %1323 = vmatpush1.msra.mxu0 %v1194
    %1324 = vmatprep.subr.mxu0 %v1197
    %1325 = vmatpush1.msra.mxu0 %v1196
    %1326 = vmatprep.subr.mxu0 %v1199
    %1327 = vmatpush1.msra.mxu0 %v1198
    %1328 = vmatprep.subr.mxu0 %v1201
    %1329 = vmatpush1.msra.mxu0 %v1200
    %1330 = vmatprep.subr.mxu0 %v1203
    %1331 = vmatpush1.msra.mxu0 %v1202
    %1332 = vmatprep.subr.mxu0 0.0
    %1333 = vmatpush1.msra.mxu0 0.0
    %1334 = vmatprep.subr.mxu0 0.0
    %1335 = vmatpush1.msra.mxu0 0.0
    %1336 = vmatprep.subr.mxu0 0.0
    %1337 = vmatpush1.msra.mxu0 0.0
    %1338 = vmatprep.subr.mxu0 0.0
    %1339 = vmatpush1.msra.mxu0 0.0
    %1340 = vmatprep.subr.mxu0 0.0
    %1341 = vmatpush1.msra.mxu0 0.0
    %1342 = vmatprep.subr.mxu0 0.0
    %1343 = vmatpush1.msra.mxu0 0.0
    %1344 = vmatprep.subr.mxu0 0.0
    %1345 = vmatpush1.msra.mxu0 0.0
    %1346 = vmatprep.subr.mxu0 0.0
    %1347 = vmatpush1.msra.mxu0 0.0
    %1348 = vmatprep.subr.mxu0 0.0
    %1349 = vmatpush1.msra.mxu0 0.0
    %1350 = vmatprep.subr.mxu0 0.0
    %1351 = vmatpush1.msra.mxu0 0.0
    %1352 = vmatprep.subr.mxu0 0.0
    %1353 = vmatpush1.msra.mxu0 0.0
    %1354 = vmatprep.subr.mxu0 0.0
    %1355 = vmatpush1.msra.mxu0 0.0
    %1356 = vmatprep.subr.mxu0 0.0
    %1357 = vmatpush1.msra.mxu0 0.0
    %1358 = vmatprep.subr.mxu0 0.0
    %1359 = vmatpush1.msra.mxu0 0.0
    %1360 = vmatprep.subr.mxu0 0.0
    %1361 = vmatpush1.msra.mxu0 0.0
    %1362 = vmatprep.subr.mxu0 0.0
    %1363 = vmatpush1.msra.mxu0 0.0
    %1364 = vmatprep.subr.mxu0 0.0
    %1365 = vmatpush1.msra.mxu0 0.0
    %1366 = vmatprep.subr.mxu0 0.0
    %1367 = vmatpush1.msra.mxu0 0.0
    %1368 = vmatprep.subr.mxu0 0.0
    %1369 = vmatpush1.msra.mxu0 0.0
    %1370 = vmatprep.subr.mxu0 0.0
    %1371 = vmatpush1.msra.mxu0 0.0
    %1372 = vmatprep.subr.mxu0 0.0
    %1373 = vmatpush1.msra.mxu0 0.0
    %1374 = vmatprep.subr.mxu0 0.0
    %1375 = vmatpush1.msra.mxu0 0.0
    %1376 = vmatprep.subr.mxu0 0.0
    %1377 = vmatpush1.msra.mxu0 0.0
    %1378 = vmatprep.subr.mxu0 0.0
    %1379 = vmatpush1.msra.mxu0 0.0
    %1380 = vmatprep.mubr.f32.mxu0 0.0
    %1381 = vmatmul.mubr.f32.gmra.mrb[0].mxu0 %v1314
    %v1382 = vpop.f32.mrb[0].mxu0
    %v1383 = vadd.f32 0.0, %v1382
    %v1384 = vpop.f32.mrb[0].mxu0
    %v1385 = vadd.f32 0.0, %v1384
    %1386 = vdwg.mxu0
    %v1387 = vadd.f32 %v1309, %v1383
    %v1388 = vadd.f32 %v1310, %v1385
    %v1389 = vxor.u32 %v1387, 2147483648
    %v1390 = vxor.u32 %v1388, 2147483648
    %v1391 = vmul.f32 %v1389, 1.442695
    %v1392 = vpow.pop %v1391
    %v1393 = vmul.f32 %v1390, 1.442695
    %v1394 = vpow.pop %v1393
    %v1395 = vadd.f32 %v1392, 1.0
    %v1396 = vadd.f32 %v1394, 1.0
    %v1397 = vrcp.pop %v1395
    %v1398 = vmul.f32 1.0, %v1397
    %v1399 = vrcp.pop %v1396
    %v1400 = vmul.f32 1.0, %v1399
    %v1401 = vtanh.pop %v1388
    %v1402 = vmul.f32 %v1398, %v1306
    %v1403 = vmul.f32 %v1398, %v1401
    %1405 = vrot.lane.b32.xlu0 %v1403, 64
    %v1406 = vpop.permute.xlu0 %1405
    %v1408 = vadd.f32 %v1402, %v1406
    %v1409 = vtanh.pop %v1408
    %v1410 = vmul.f32 %v1400, %v1409
    %v1411 = vsel %vm565, %v808, %v1032
    %v1412 = vsel %vm566, %v810, %v1034
    %1414 = vrot.lane.b32.xlu0 %v1410, 64
    %v1415 = vpop.permute.xlu0 %1414
    %v1416 = vsel %vm1206, %v1415, 0
    %1418 = vmatprep.subr.mxu0 %v1189
    %1419 = vmatpush1.msra.mxu0 %v1188
    %1420 = vmatprep.subr.mxu0 %v1191
    %1421 = vmatpush1.msra.mxu0 %v1190
    %1422 = vmatprep.subr.mxu0 %v1193
    %1423 = vmatpush1.msra.mxu0 %v1192
    %1424 = vmatprep.subr.mxu0 %v1195
    %1425 = vmatpush1.msra.mxu0 %v1194
    %1426 = vmatprep.subr.mxu0 %v1197
    %1427 = vmatpush1.msra.mxu0 %v1196
    %1428 = vmatprep.subr.mxu0 %v1199
    %1429 = vmatpush1.msra.mxu0 %v1198
    %1430 = vmatprep.subr.mxu0 %v1201
    %1431 = vmatpush1.msra.mxu0 %v1200
    %1432 = vmatprep.subr.mxu0 %v1203
    %1433 = vmatpush1.msra.mxu0 %v1202
    %1434 = vmatprep.subr.mxu0 0.0
    %1435 = vmatpush1.msra.mxu0 0.0
    %1436 = vmatprep.subr.mxu0 0.0
    %1437 = vmatpush1.msra.mxu0 0.0
    %1438 = vmatprep.subr.mxu0 0.0
    %1439 = vmatpush1.msra.mxu0 0.0
    %1440 = vmatprep.subr.mxu0 0.0
    %1441 = vmatpush1.msra.mxu0 0.0
    %1442 = vmatprep.subr.mxu0 0.0
    %1443 = vmatpush1.msra.mxu0 0.0
    %1444 = vmatprep.subr.mxu0 0.0
    %1445 = vmatpush1.msra.mxu0 0.0
    %1446 = vmatprep.subr.mxu0 0.0
    %1447 = vmatpush1.msra.mxu0 0.0
    %1448 = vmatprep.subr.mxu0 0.0
    %1449 = vmatpush1.msra.mxu0 0.0
    %1450 = vmatprep.subr.mxu0 0.0
    %1451 = vmatpush1.msra.mxu0 0.0
    %1452 = vmatprep.subr.mxu0 0.0
    %1453 = vmatpush1.msra.mxu0 0.0
    %1454 = vmatprep.subr.mxu0 0.0
    %1455 = vmatpush1.msra.mxu0 0.0
    %1456 = vmatprep.subr.mxu0 0.0
    %1457 = vmatpush1.msra.mxu0 0.0
    %1458 = vmatprep.subr.mxu0 0.0
    %1459 = vmatpush1.msra.mxu0 0.0
    %1460 = vmatprep.subr.mxu0 0.0
    %1461 = vmatpush1.msra.mxu0 0.0
    %1462 = vmatprep.subr.mxu0 0.0
    %1463 = vmatpush1.msra.mxu0 0.0
    %1464 = vmatprep.subr.mxu0 0.0
    %1465 = vmatpush1.msra.mxu0 0.0
    %1466 = vmatprep.subr.mxu0 0.0
    %1467 = vmatpush1.msra.mxu0 0.0
    %1468 = vmatprep.subr.mxu0 0.0
    %1469 = vmatpush1.msra.mxu0 0.0
    %1470 = vmatprep.subr.mxu0 0.0
    %1471 = vmatpush1.msra.mxu0 0.0
    %1472 = vmatprep.subr.mxu0 0.0
    %1473 = vmatpush1.msra.mxu0 0.0
    %1474 = vmatprep.subr.mxu0 0.0
    %1475 = vmatpush1.msra.mxu0 0.0
    %1476 = vmatprep.subr.mxu0 0.0
    %1477 = vmatpush1.msra.mxu0 0.0
    %1478 = vmatprep.subr.mxu0 0.0
    %1479 = vmatpush1.msra.mxu0 0.0
    %1480 = vmatprep.subr.mxu0 0.0
    %1481 = vmatpush1.msra.mxu0 0.0
    %1482 = vmatprep.mubr.f32.mxu0 0.0
    %1483 = vmatmul.mubr.f32.gmra.mrb[0].mxu0 %v1416
    %v1484 = vpop.f32.mrb[0].mxu0
    %v1485 = vadd.f32 0.0, %v1484
    %v1486 = vpop.f32.mrb[0].mxu0
    %v1487 = vadd.f32 0.0, %v1486
    %1488 = vdwg.mxu0
    %v1489 = vadd.f32 %v1411, %v1485
    %v1490 = vadd.f32 %v1412, %v1487
    %v1491 = vxor.u32 %v1489, 2147483648
    %v1492 = vxor.u32 %v1490, 2147483648
    %v1493 = vmul.f32 %v1491, 1.442695
    %v1494 = vpow.pop %v1493
    %v1495 = vmul.f32 %v1492, 1.442695
    %v1496 = vpow.pop %v1495
    %v1497 = vadd.f32 %v1494, 1.0
    %v1498 = vadd.f32 %v1496, 1.0
    %v1499 = vrcp.pop %v1497
    %v1500 = vmul.f32 1.0, %v1499
    %v1501 = vrcp.pop %v1498
    %v1502 = vmul.f32 1.0, %v1501
    %v1503 = vtanh.pop %v1490
    %v1504 = vmul.f32 %v1500, %v1408
    %v1505 = vmul.f32 %v1500, %v1503
    %1507 = vrot.lane.b32.xlu0 %v1505, 64
    %v1508 = vpop.permute.xlu0 %1507
    %v1510 = vadd.f32 %v1504, %v1508
    %v1511 = vtanh.pop %v1510
    %v1512 = vmul.f32 %v1502, %v1511
    %v1513 = vsel %vm565, %v883, %v957
    %v1514 = vsel %vm566, %v885, %v959
    %1516 = vrot.lane.b32.xlu0 %v1512, 64
    %v1517 = vpop.permute.xlu0 %1516
    %v1518 = vsel %vm1206, %v1517, 0
    %1520 = vmatprep.subr.mxu0 %v1189
    %1521 = vmatpush1.msra.mxu0 %v1188
    %1522 = vmatprep.subr.mxu0 %v1191
    %1523 = vmatpush1.msra.mxu0 %v1190
    %1524 = vmatprep.subr.mxu0 %v1193
    %1525 = vmatpush1.msra.mxu0 %v1192
    %1526 = vmatprep.subr.mxu0 %v1195
    %1527 = vmatpush1.msra.mxu0 %v1194
    %1528 = vmatprep.subr.mxu0 %v1197
    %1529 = vmatpush1.msra.mxu0 %v1196
    %1530 = vmatprep.subr.mxu0 %v1199
    %1531 = vmatpush1.msra.mxu0 %v1198
    %1532 = vmatprep.subr.mxu0 %v1201
    %1533 = vmatpush1.msra.mxu0 %v1200
    %1534 = vmatprep.subr.mxu0 %v1203
    %1535 = vmatpush1.msra.mxu0 %v1202
    %1536 = vmatprep.subr.mxu0 0.0
    %1537 = vmatpush1.msra.mxu0 0.0
    %1538 = vmatprep.subr.mxu0 0.0
    %1539 = vmatpush1.msra.mxu0 0.0
    %1540 = vmatprep.subr.mxu0 0.0
    %1541 = vmatpush1.msra.mxu0 0.0
    %1542 = vmatprep.subr.mxu0 0.0
    %1543 = vmatpush1.msra.mxu0 0.0
    %1544 = vmatprep.subr.mxu0 0.0
    %1545 = vmatpush1.msra.mxu0 0.0
    %1546 = vmatprep.subr.mxu0 0.0
    %1547 = vmatpush1.msra.mxu0 0.0
    %1548 = vmatprep.subr.mxu0 0.0
    %1549 = vmatpush1.msra.mxu0 0.0
    %1550 = vmatprep.subr.mxu0 0.0
    %1551 = vmatpush1.msra.mxu0 0.0
    %1552 = vmatprep.subr.mxu0 0.0
    %1553 = vmatpush1.msra.mxu0 0.0
    %1554 = vmatprep.subr.mxu0 0.0
    %1555 = vmatpush1.msra.mxu0 0.0
    %1556 = vmatprep.subr.mxu0 0.0
    %1557 = vmatpush1.msra.mxu0 0.0
    %1558 = vmatprep.subr.mxu0 0.0
    %1559 = vmatpush1.msra.mxu0 0.0
    %1560 = vmatprep.subr.mxu0 0.0
    %1561 = vmatpush1.msra.mxu0 0.0
    %1562 = vmatprep.subr.mxu0 0.0
    %1563 = vmatpush1.msra.mxu0 0.0
    %1564 = vmatprep.subr.mxu0 0.0
    %1565 = vmatpush1.msra.mxu0 0.0
    %1566 = vmatprep.subr.mxu0 0.0
    %1567 = vmatpush1.msra.mxu0 0.0
    %1568 = vmatprep.subr.mxu0 0.0
    %1569 = vmatpush1.msra.mxu0 0.0
    %1570 = vmatprep.subr.mxu0 0.0
    %1571 = vmatpush1.msra.mxu0 0.0
    %1572 = vmatprep.subr.mxu0 0.0
    %1573 = vmatpush1.msra.mxu0 0.0
    %1574 = vmatprep.subr.mxu0 0.0
    %1575 = vmatpush1.msra.mxu0 0.0
    %1576 = vmatprep.subr.mxu0 0.0
    %1577 = vmatpush1.msra.mxu0 0.0
    %1578 = vmatprep.subr.mxu0 0.0
    %1579 = vmatpush1.msra.mxu0 0.0
    %1580 = vmatprep.subr.mxu0 0.0
    %1581 = vmatpush1.msra.mxu0 0.0
    %1582 = vmatprep.subr.mxu0 0.0
    %1583 = vmatpush1.msra.mxu0 0.0
    %1584 = vmatprep.mubr.f32.mxu0 0.0
    %1585 = vmatmul.mubr.f32.gmra.mrb[0].mxu0 %v1518
    %v1586 = vpop.f32.mrb[0].mxu0
    %v1587 = vadd.f32 0.0, %v1586
    %v1588 = vpop.f32.mrb[0].mxu0
    %v1589 = vadd.f32 0.0, %v1588
    %1590 = vdwg.mxu0
    %v1591 = vadd.f32 %v1513, %v1587
    %v1592 = vadd.f32 %v1514, %v1589
    %v1593 = vxor.u32 %v1591, 2147483648
    %v1594 = vxor.u32 %v1592, 2147483648
    %v1595 = vmul.f32 %v1593, 1.442695
    %v1596 = vpow.pop %v1595
    %v1597 = vmul.f32 %v1594, 1.442695
    %v1598 = vpow.pop %v1597
    %v1599 = vadd.f32 %v1596, 1.0
    %v1600 = vadd.f32 %v1598, 1.0
    %v1601 = vrcp.pop %v1599
    %v1602 = vmul.f32 1.0, %v1601
    %v1603 = vrcp.pop %v1600
    %v1604 = vmul.f32 1.0, %v1603
    %v1605 = vtanh.pop %v1592
    %v1606 = vmul.f32 %v1602, %v1510
    %v1607 = vmul.f32 %v1602, %v1605
    %1609 = vrot.lane.b32.xlu0 %v1607, 64
    %v1610 = vpop.permute.xlu0 %1609
    %v1612 = vadd.f32 %v1606, %v1610
    %v1613 = vtanh.pop %v1612
    %v1614 = vmul.f32 %v1604, %v1613
    %v1615 = vsel %vm565, %v957, %v883
    %v1616 = vsel %vm566, %v959, %v885
    %1618 = vrot.lane.b32.xlu0 %v1614, 64
    %v1619 = vpop.permute.xlu0 %1618
    %v1620 = vsel %vm1206, %v1619, 0
    %1622 = vmatprep.subr.mxu0 %v1189
    %1623 = vmatpush1.msra.mxu0 %v1188
    %1624 = vmatprep.subr.mxu0 %v1191
    %1625 = vmatpush1.msra.mxu0 %v1190
    %1626 = vmatprep.subr.mxu0 %v1193
    %1627 = vmatpush1.msra.mxu0 %v1192
    %1628 = vmatprep.subr.mxu0 %v1195
    %1629 = vmatpush1.msra.mxu0 %v1194
    %1630 = vmatprep.subr.mxu0 %v1197
    %1631 = vmatpush1.msra.mxu0 %v1196
    %1632 = vmatprep.subr.mxu0 %v1199
    %1633 = vmatpush1.msra.mxu0 %v1198
    %1634 = vmatprep.subr.mxu0 %v1201
    %1635 = vmatpush1.msra.mxu0 %v1200
    %1636 = vmatprep.subr.mxu0 %v1203
    %1637 = vmatpush1.msra.mxu0 %v1202
    %1638 = vmatprep.subr.mxu0 0.0
    %1639 = vmatpush1.msra.mxu0 0.0
    %1640 = vmatprep.subr.mxu0 0.0
    %1641 = vmatpush1.msra.mxu0 0.0
    %1642 = vmatprep.subr.mxu0 0.0
    %1643 = vmatpush1.msra.mxu0 0.0
    %1644 = vmatprep.subr.mxu0 0.0
    %1645 = vmatpush1.msra.mxu0 0.0
    %1646 = vmatprep.subr.mxu0 0.0
    %1647 = vmatpush1.msra.mxu0 0.0
    %1648 = vmatprep.subr.mxu0 0.0
    %1649 = vmatpush1.msra.mxu0 0.0
    %1650 = vmatprep.subr.mxu0 0.0
    %1651 = vmatpush1.msra.mxu0 0.0
    %1652 = vmatprep.subr.mxu0 0.0
    %1653 = vmatpush1.msra.mxu0 0.0
    %1654 = vmatprep.subr.mxu0 0.0
    %1655 = vmatpush1.msra.mxu0 0.0
    %1656 = vmatprep.subr.mxu0 0.0
    %1657 = vmatpush1.msra.mxu0 0.0
    %1658 = vmatprep.subr.mxu0 0.0
    %1659 = vmatpush1.msra.mxu0 0.0
    %1660 = vmatprep.subr.mxu0 0.0
    %1661 = vmatpush1.msra.mxu0 0.0
    %1662 = vmatprep.subr.mxu0 0.0
    %1663 = vmatpush1.msra.mxu0 0.0
    %1664 = vmatprep.subr.mxu0 0.0
    %1665 = vmatpush1.msra.mxu0 0.0
    %1666 = vmatprep.subr.mxu0 0.0
    %1667 = vmatpush1.msra.mxu0 0.0
    %1668 = vmatprep.subr.mxu0 0.0
    %1669 = vmatpush1.msra.mxu0 0.0
    %1670 = vmatprep.subr.mxu0 0.0
    %1671 = vmatpush1.msra.mxu0 0.0
    %1672 = vmatprep.subr.mxu0 0.0
    %1673 = vmatpush1.msra.mxu0 0.0
    %1674 = vmatprep.subr.mxu0 0.0
    %1675 = vmatpush1.msra.mxu0 0.0
    %1676 = vmatprep.subr.mxu0 0.0
    %1677 = vmatpush1.msra.mxu0 0.0
    %1678 = vmatprep.subr.mxu0 0.0
    %1679 = vmatpush1.msra.mxu0 0.0
    %1680 = vmatprep.subr.mxu0 0.0
    %1681 = vmatpush1.msra.mxu0 0.0
    %1682 = vmatprep.subr.mxu0 0.0
    %1683 = vmatpush1.msra.mxu0 0.0
    %1684 = vmatprep.subr.mxu0 0.0
    %1685 = vmatpush1.msra.mxu0 0.0
    %1686 = vmatprep.mubr.f32.mxu0 0.0
    %1687 = vmatmul.mubr.f32.gmra.mrb[0].mxu0 %v1620
    %v1688 = vpop.f32.mrb[0].mxu0
    %v1689 = vadd.f32 0.0, %v1688
    %v1690 = vpop.f32.mrb[0].mxu0
    %v1691 = vadd.f32 0.0, %v1690
    %1692 = vdwg.mxu0
    %v1693 = vadd.f32 %v1615, %v1689
    %v1694 = vadd.f32 %v1616, %v1691
    %v1695 = vxor.u32 %v1693, 2147483648
    %v1696 = vxor.u32 %v1694, 2147483648
    %v1697 = vmul.f32 %v1695, 1.442695
    %v1698 = vpow.pop %v1697
    %v1699 = vmul.f32 %v1696, 1.442695
    %v1700 = vpow.pop %v1699
    %v1701 = vadd.f32 %v1698, 1.0
    %v1702 = vadd.f32 %v1700, 1.0
    %v1703 = vrcp.pop %v1701
    %v1704 = vmul.f32 1.0, %v1703
    %v1705 = vrcp.pop %v1702
    %v1706 = vmul.f32 1.0, %v1705
    %v1707 = vtanh.pop %v1694
    %v1708 = vmul.f32 %v1704, %v1612
    %v1709 = vmul.f32 %v1704, %v1707
    %1711 = vrot.lane.b32.xlu0 %v1709, 64
    %v1712 = vpop.permute.xlu0 %1711
    %v1714 = vadd.f32 %v1708, %v1712
    %v1715 = vtanh.pop %v1714
    %v1716 = vmul.f32 %v1706, %v1715
    %v1717 = vsel %vm565, %v1032, %v808
    %v1718 = vsel %vm566, %v1034, %v810
    %1720 = vrot.lane.b32.xlu0 %v1716, 64
    %v1721 = vpop.permute.xlu0 %1720
    %v1722 = vsel %vm1206, %v1721, 0
    %1724 = vmatprep.subr.mxu0 %v1189
    %1725 = vmatpush1.msra.mxu0 %v1188
    %1726 = vmatprep.subr.mxu0 %v1191
    %1727 = vmatpush1.msra.mxu0 %v1190
    %1728 = vmatprep.subr.mxu0 %v1193
    %1729 = vmatpush1.msra.mxu0 %v1192
    %1730 = vmatprep.subr.mxu0 %v1195
    %1731 = vmatpush1.msra.mxu0 %v1194
    %1732 = vmatprep.subr.mxu0 %v1197
    %1733 = vmatpush1.msra.mxu0 %v1196
    %1734 = vmatprep.subr.mxu0 %v1199
    %1735 = vmatpush1.msra.mxu0 %v1198
    %1736 = vmatprep.subr.mxu0 %v1201
    %1737 = vmatpush1.msra.mxu0 %v1200
    %1738 = vmatprep.subr.mxu0 %v1203
    %1739 = vmatpush1.msra.mxu0 %v1202
    %1740 = vmatprep.subr.mxu0 0.0
    %1741 = vmatpush1.msra.mxu0 0.0
    %1742 = vmatprep.subr.mxu0 0.0
    %1743 = vmatpush1.msra.mxu0 0.0
    %1744 = vmatprep.subr.mxu0 0.0
    %1745 = vmatpush1.msra.mxu0 0.0
    %1746 = vmatprep.subr.mxu0 0.0
    %1747 = vmatpush1.msra.mxu0 0.0
    %1748 = vmatprep.subr.mxu0 0.0
    %1749 = vmatpush1.msra.mxu0 0.0
    %1750 = vmatprep.subr.mxu0 0.0
    %1751 = vmatpush1.msra.mxu0 0.0
    %1752 = vmatprep.subr.mxu0 0.0
    %1753 = vmatpush1.msra.mxu0 0.0
    %1754 = vmatprep.subr.mxu0 0.0
    %1755 = vmatpush1.msra.mxu0 0.0
    %1756 = vmatprep.subr.mxu0 0.0
    %1757 = vmatpush1.msra.mxu0 0.0
    %1758 = vmatprep.subr.mxu0 0.0
    %1759 = vmatpush1.msra.mxu0 0.0
    %1760 = vmatprep.subr.mxu0 0.0
    %1761 = vmatpush1.msra.mxu0 0.0
    %1762 = vmatprep.subr.mxu0 0.0
    %1763 = vmatpush1.msra.mxu0 0.0
    %1764 = vmatprep.subr.mxu0 0.0
    %1765 = vmatpush1.msra.mxu0 0.0
    %1766 = vmatprep.subr.mxu0 0.0
    %1767 = vmatpush1.msra.mxu0 0.0
    %1768 = vmatprep.subr.mxu0 0.0
    %1769 = vmatpush1.msra.mxu0 0.0
    %1770 = vmatprep.subr.mxu0 0.0
    %1771 = vmatpush1.msra.mxu0 0.0
    %1772 = vmatprep.subr.mxu0 0.0
    %1773 = vmatpush1.msra.mxu0 0.0
    %1774 = vmatprep.subr.mxu0 0.0
    %1775 = vmatpush1.msra.mxu0 0.0
    %1776 = vmatprep.subr.mxu0 0.0
    %1777 = vmatpush1.msra.mxu0 0.0
    %1778 = vmatprep.subr.mxu0 0.0
    %1779 = vmatpush1.msra.mxu0 0.0
    %1780 = vmatprep.subr.mxu0 0.0
    %1781 = vmatpush1.msra.mxu0 0.0
    %1782 = vmatprep.subr.mxu0 0.0
    %1783 = vmatpush1.msra.mxu0 0.0
    %1784 = vmatprep.subr.mxu0 0.0
    %1785 = vmatpush1.msra.mxu0 0.0
    %1786 = vmatprep.subr.mxu0 0.0
    %1787 = vmatpush1.msra.mxu0 0.0
    %1788 = vmatprep.mubr.f32.mxu0 0.0
    %1789 = vmatmul.mubr.f32.gmra.mrb[0].mxu0 %v1722
    %v1790 = vpop.f32.mrb[0].mxu0
    %v1791 = vadd.f32 0.0, %v1790
    %v1792 = vpop.f32.mrb[0].mxu0
    %v1793 = vadd.f32 0.0, %v1792
    %1794 = vdwg.mxu0
    %v1795 = vadd.f32 %v1717, %v1791
    %v1796 = vadd.f32 %v1718, %v1793
    %v1797 = vxor.u32 %v1795, 2147483648
    %v1798 = vxor.u32 %v1796, 2147483648
    %v1799 = vmul.f32 %v1797, 1.442695
    %v1800 = vpow.pop %v1799
    %v1801 = vmul.f32 %v1798, 1.442695
    %v1802 = vpow.pop %v1801
    %v1803 = vadd.f32 %v1800, 1.0
    %v1804 = vadd.f32 %v1802, 1.0
    %v1805 = vrcp.pop %v1803
    %v1806 = vmul.f32 1.0, %v1805
    %v1807 = vrcp.pop %v1804
    %v1808 = vmul.f32 1.0, %v1807
    %v1809 = vtanh.pop %v1796
    %v1810 = vmul.f32 %v1806, %v1714
    %v1811 = vmul.f32 %v1806, %v1809
    %1813 = vrot.lane.b32.xlu0 %v1811, 64
    %v1814 = vpop.permute.xlu0 %1813
    %v1816 = vadd.f32 %v1810, %v1814
    %v1817 = vtanh.pop %v1816
    %v1818 = vmul.f32 %v1808, %v1817
    %v1819 = vsel %vm565, %v1107, %v733
    %v1820 = vsel %vm566, %v1109, %v735
    %1822 = vrot.lane.b32.xlu0 %v1818, 64
    %v1823 = vpop.permute.xlu0 %1822
    %v1824 = vsel %vm1206, %v1823, 0
    %1826 = vmatprep.subr.mxu0 %v1189
    %1827 = vmatpush1.msra.mxu0 %v1188
    %1828 = vmatprep.subr.mxu0 %v1191
    %1829 = vmatpush1.msra.mxu0 %v1190
    %1830 = vmatprep.subr.mxu0 %v1193
    %1831 = vmatpush1.msra.mxu0 %v1192
    %1832 = vmatprep.subr.mxu0 %v1195
    %1833 = vmatpush1.msra.mxu0 %v1194
    %1834 = vmatprep.subr.mxu0 %v1197
    %1835 = vmatpush1.msra.mxu0 %v1196
    %1836 = vmatprep.subr.mxu0 %v1199
    %1837 = vmatpush1.msra.mxu0 %v1198
    %1838 = vmatprep.subr.mxu0 %v1201
    %1839 = vmatpush1.msra.mxu0 %v1200
    %1840 = vmatprep.subr.mxu0 %v1203
    %1841 = vmatpush1.msra.mxu0 %v1202
    %1842 = vmatprep.subr.mxu0 0.0
    %1843 = vmatpush1.msra.mxu0 0.0
    %1844 = vmatprep.subr.mxu0 0.0
    %1845 = vmatpush1.msra.mxu0 0.0
    %1846 = vmatprep.subr.mxu0 0.0
    %1847 = vmatpush1.msra.mxu0 0.0
    %1848 = vmatprep.subr.mxu0 0.0
    %1849 = vmatpush1.msra.mxu0 0.0
    %1850 = vmatprep.subr.mxu0 0.0
    %1851 = vmatpush1.msra.mxu0 0.0
    %1852 = vmatprep.subr.mxu0 0.0
    %1853 = vmatpush1.msra.mxu0 0.0
    %1854 = vmatprep.subr.mxu0 0.0
    %1855 = vmatpush1.msra.mxu0 0.0
    %1856 = vmatprep.subr.mxu0 0.0
    %1857 = vmatpush1.msra.mxu0 0.0
    %1858 = vmatprep.subr.mxu0 0.0
    %1859 = vmatpush1.msra.mxu0 0.0
    %1860 = vmatprep.subr.mxu0 0.0
    %1861 = vmatpush1.msra.mxu0 0.0
    %1862 = vmatprep.subr.mxu0 0.0
    %1863 = vmatpush1.msra.mxu0 0.0
    %1864 = vmatprep.subr.mxu0 0.0
    %1865 = vmatpush1.msra.mxu0 0.0
    %1866 = vmatprep.subr.mxu0 0.0
    %1867 = vmatpush1.msra.mxu0 0.0
    %1868 = vmatprep.subr.mxu0 0.0
    %1869 = vmatpush1.msra.mxu0 0.0
    %1870 = vmatprep.subr.mxu0 0.0
    %1871 = vmatpush1.msra.mxu0 0.0
    %1872 = vmatprep.subr.mxu0 0.0
    %1873 = vmatpush1.msra.mxu0 0.0
    %1874 = vmatprep.subr.mxu0 0.0
    %1875 = vmatpush1.msra.mxu0 0.0
    %1876 = vmatprep.subr.mxu0 0.0
    %1877 = vmatpush1.msra.mxu0 0.0
    %1878 = vmatprep.subr.mxu0 0.0
    %1879 = vmatpush1.msra.mxu0 0.0
    %1880 = vmatprep.subr.mxu0 0.0
    %1881 = vmatpush1.msra.mxu0 0.0
    %1882 = vmatprep.subr.mxu0 0.0
    %1883 = vmatpush1.msra.mxu0 0.0
    %1884 = vmatprep.subr.mxu0 0.0
    %1885 = vmatpush1.msra.mxu0 0.0
    %1886 = vmatprep.subr.mxu0 0.0
    %1887 = vmatpush1.msra.mxu0 0.0
    %1888 = vmatprep.subr.mxu0 0.0
    %1889 = vmatpush1.msra.mxu0 0.0
    %1890 = vmatprep.mubr.f32.mxu0 0.0
    %1891 = vmatmul.mubr.f32.gmra.mrb[0].mxu0 %v1824
    %v1892 = vpop.f32.mrb[0].mxu0
    %v1893 = vadd.f32 0.0, %v1892
    %v1894 = vpop.f32.mrb[0].mxu0
    %v1895 = vadd.f32 0.0, %v1894
    %1896 = vdwg.mxu0
    %v1897 = vadd.f32 %v1819, %v1893
    %v1898 = vadd.f32 %v1820, %v1895
    %v1899 = vxor.u32 %v1897, 2147483648
    %v1900 = vxor.u32 %v1898, 2147483648
    %v1901 = vmul.f32 %v1899, 1.442695
    %v1902 = vpow.pop %v1901
    %v1903 = vmul.f32 %v1900, 1.442695
    %v1904 = vpow.pop %v1903
    %v1905 = vadd.f32 %v1902, 1.0
    %v1906 = vadd.f32 %v1904, 1.0
    %v1907 = vrcp.pop %v1905
    %v1908 = vmul.f32 1.0, %v1907
    %v1909 = vrcp.pop %v1906
    %v1910 = vmul.f32 1.0, %v1909
    %v1911 = vtanh.pop %v1898
    %v1912 = vmul.f32 %v1908, %v1816
    %v1913 = vmul.f32 %v1908, %v1911
    %1915 = vrot.lane.b32.xlu0 %v1913, 64
    %v1916 = vpop.permute.xlu0 %1915
    %v1918 = vadd.f32 %v1912, %v1916
    %v1919 = vtanh.pop %v1918
    %v1920 = vmul.f32 %v1910, %v1919
    %v1921 = vsel %vm565, %v1182, %v658
    %v1922 = vsel %vm566, %v1184, %v660
    %1924 = vrot.lane.b32.xlu0 %v1920, 64
    %v1925 = vpop.permute.xlu0 %1924
    %v1926 = vsel %vm1206, %v1925, 0
    %1928 = vmatprep.subr.mxu0 %v1189
    %1929 = vmatpush1.msra.mxu0 %v1188
    %1930 = vmatprep.subr.mxu0 %v1191
    %1931 = vmatpush1.msra.mxu0 %v1190
    %1932 = vmatprep.subr.mxu0 %v1193
    %1933 = vmatpush1.msra.mxu0 %v1192
    %1934 = vmatprep.subr.mxu0 %v1195
    %1935 = vmatpush1.msra.mxu0 %v1194
    %1936 = vmatprep.subr.mxu0 %v1197
    %1937 = vmatpush1.msra.mxu0 %v1196
    %1938 = vmatprep.subr.mxu0 %v1199
    %1939 = vmatpush1.msra.mxu0 %v1198
    %1940 = vmatprep.subr.mxu0 %v1201
    %1941 = vmatpush1.msra.mxu0 %v1200
    %1942 = vmatprep.subr.mxu0 %v1203
    %1943 = vmatpush1.msra.mxu0 %v1202
    %1944 = vmatprep.subr.mxu0 0.0
    %1945 = vmatpush1.msra.mxu0 0.0
    %1946 = vmatprep.subr.mxu0 0.0
    %1947 = vmatpush1.msra.mxu0 0.0
    %1948 = vmatprep.subr.mxu0 0.0
    %1949 = vmatpush1.msra.mxu0 0.0
    %1950 = vmatprep.subr.mxu0 0.0
    %1951 = vmatpush1.msra.mxu0 0.0
    %1952 = vmatprep.subr.mxu0 0.0
    %1953 = vmatpush1.msra.mxu0 0.0
    %1954 = vmatprep.subr.mxu0 0.0
    %1955 = vmatpush1.msra.mxu0 0.0
    %1956 = vmatprep.subr.mxu0 0.0
    %1957 = vmatpush1.msra.mxu0 0.0
    %1958 = vmatprep.subr.mxu0 0.0
    %1959 = vmatpush1.msra.mxu0 0.0
    %1960 = vmatprep.subr.mxu0 0.0
    %1961 = vmatpush1.msra.mxu0 0.0
    %1962 = vmatprep.subr.mxu0 0.0
    %1963 = vmatpush1.msra.mxu0 0.0
    %1964 = vmatprep.subr.mxu0 0.0
    %1965 = vmatpush1.msra.mxu0 0.0
    %1966 = vmatprep.subr.mxu0 0.0
    %1967 = vmatpush1.msra.mxu0 0.0
    %1968 = vmatprep.subr.mxu0 0.0
    %1969 = vmatpush1.msra.mxu0 0.0
    %1970 = vmatprep.subr.mxu0 0.0
    %1971 = vmatpush1.msra.mxu0 0.0
    %1972 = vmatprep.subr.mxu0 0.0
    %1973 = vmatpush1.msra.mxu0 0.0
    %1974 = vmatprep.subr.mxu0 0.0
    %1975 = vmatpush1.msra.mxu0 0.0
    %1976 = vmatprep.subr.mxu0 0.0
    %1977 = vmatpush1.msra.mxu0 0.0
    %1978 = vmatprep.subr.mxu0 0.0
    %1979 = vmatpush1.msra.mxu0 0.0
    %1980 = vmatprep.subr.mxu0 0.0
    %1981 = vmatpush1.msra.mxu0 0.0
    %1982 = vmatprep.subr.mxu0 0.0
    %1983 = vmatpush1.msra.mxu0 0.0
    %1984 = vmatprep.subr.mxu0 0.0
    %1985 = vmatpush1.msra.mxu0 0.0
    %1986 = vmatprep.subr.mxu0 0.0
    %1987 = vmatpush1.msra.mxu0 0.0
    %1988 = vmatprep.subr.mxu0 0.0
    %1989 = vmatpush1.msra.mxu0 0.0
    %1990 = vmatprep.subr.mxu0 0.0
    %1991 = vmatpush1.msra.mxu0 0.0
    %1992 = vmatprep.mubr.f32.mxu0 0.0
    %1993 = vmatmul.mubr.f32.gmra.mrb[0].mxu0 %v1926
    %v1994 = vpop.f32.mrb[0].mxu0
    %v1995 = vadd.f32 0.0, %v1994
    %v1996 = vpop.f32.mrb[0].mxu0
    %v1997 = vadd.f32 0.0, %v1996
    %1998 = vdwg.mxu0
    %v1999 = vadd.f32 %v1921, %v1995
    %v2000 = vadd.f32 %v1922, %v1997
    %v2001 = vxor.u32 %v1999, 2147483648
    %v2002 = vxor.u32 %v2000, 2147483648
    %v2003 = vmul.f32 %v2001, 1.442695
    %v2004 = vpow.pop %v2003
    %v2005 = vmul.f32 %v2002, 1.442695
    %v2006 = vpow.pop %v2005
    %v2007 = vadd.f32 %v2004, 1.0
    %v2008 = vadd.f32 %v2006, 1.0
    %v2009 = vrcp.pop %v2007
    %v2010 = vmul.f32 1.0, %v2009
    %v2011 = vrcp.pop %v2008
    %v2012 = vmul.f32 1.0, %v2011
    %v2013 = vtanh.pop %v2000
    %v2014 = vmul.f32 %v2010, %v1918
    %v2015 = vmul.f32 %v2010, %v2013
    %2017 = vrot.lane.b32.xlu0 %v2015, 64
    %v2018 = vpop.permute.xlu0 %2017
    %v2020 = vadd.f32 %v2014, %v2018
    %v2021 = vtanh.pop %v2020
    %v2022 = vmul.f32 %v2012, %v2021
    %v2023 = vld [vmem:[%s9] sm:$0xff]
    %v2024 = vld [vmem:[%s9 + $0x8] sm:$0xff]
    %v2025 = vld [vmem:[%s9 + $0x10] sm:$0xff]
    %v2026 = vld [vmem:[%s9 + $0x18] sm:$0xff]
    %v2027 = vld [vmem:[%s9 + $0x20] sm:$0xff]
    %v2028 = vld [vmem:[%s9 + $0x28] sm:$0xff]
    %v2029 = vld [vmem:[%s9 + $0x30] sm:$0xff]
    %v2030 = vld [vmem:[%s9 + $0x38] sm:$0xff]
    %v2031 = vld [vmem:[%s9 + $0x40] sm:$0xff]
    %v2032 = vld [vmem:[%s9 + $0x48] sm:$0xff]
    %v2033 = vld [vmem:[%s9 + $0x50] sm:$0xff]
    %v2034 = vld [vmem:[%s9 + $0x58] sm:$0xff]
    %v2035 = vld [vmem:[%s9 + $0x60] sm:$0xff]
    %v2036 = vld [vmem:[%s9 + $0x68] sm:$0xff]
    %v2037 = vld [vmem:[%s9 + $0x70] sm:$0xff]
    %v2038 = vld [vmem:[%s9 + $0x78] sm:$0xff]
    %v2039 = vld [vmem:[%s9 + $0x80] sm:$0xff]
    %v2040 = vld [vmem:[%s9 + $0x88] sm:$0xff]
    %v2041 = vld [vmem:[%s9 + $0x90] sm:$0xff]
    %v2042 = vld [vmem:[%s9 + $0x98] sm:$0xff]
    %v2043 = vld [vmem:[%s9 + $0xa0] sm:$0xff]
    %v2044 = vld [vmem:[%s9 + $0xa8] sm:$0xff]
    %v2045 = vld [vmem:[%s9 + $0xb0] sm:$0xff]
    %v2046 = vld [vmem:[%s9 + $0xb8] sm:$0xff]
    %v2047 = vld [vmem:[%s9 + $0xc0] sm:$0xff]
    %v2048 = vld [vmem:[%s9 + $0xc8] sm:$0xff]
    %v2049 = vld [vmem:[%s9 + $0xd0] sm:$0xff]
    %v2050 = vld [vmem:[%s9 + $0xd8] sm:$0xff]
    %v2051 = vld [vmem:[%s9 + $0xe0] sm:$0xff]
    %v2052 = vld [vmem:[%s9 + $0xe8] sm:$0xff]
    %v2053 = vld [vmem:[%s9 + $0xf0] sm:$0xff]
    %v2054 = vld [vmem:[%s9 + $0xf8] sm:$0xff]
    %v2055 = vld [vmem:[%s9 + $0x100] sm:$0xff]
    %v2056 = vld [vmem:[%s9 + $0x108] sm:$0xff]
    %v2057 = vld [vmem:[%s9 + $0x110] sm:$0xff]
    %v2058 = vld [vmem:[%s9 + $0x118] sm:$0xff]
    %v2059 = vld [vmem:[%s9 + $0x120] sm:$0xff]
    %v2060 = vld [vmem:[%s9 + $0x128] sm:$0xff]
    %v2061 = vld [vmem:[%s9 + $0x130] sm:$0xff]
    %v2062 = vld [vmem:[%s9 + $0x138] sm:$0xff]
    %v2063 = vld [vmem:[%s9 + $0x140] sm:$0xff]
    %v2064 = vld [vmem:[%s9 + $0x148] sm:$0xff]
    %v2065 = vld [vmem:[%s9 + $0x150] sm:$0xff]
    %v2066 = vld [vmem:[%s9 + $0x158] sm:$0xff]
    %v2067 = vld [vmem:[%s9 + $0x160] sm:$0xff]
    %v2068 = vld [vmem:[%s9 + $0x168] sm:$0xff]
    %v2069 = vld [vmem:[%s9 + $0x170] sm:$0xff]
    %v2070 = vld [vmem:[%s9 + $0x178] sm:$0xff]
    %v2071 = vld [vmem:[%s9 + $0x180] sm:$0xff]
    %v2072 = vld [vmem:[%s9 + $0x188] sm:$0xff]
    %v2073 = vld [vmem:[%s9 + $0x190] sm:$0xff]
    %v2074 = vld [vmem:[%s9 + $0x198] sm:$0xff]
    %v2075 = vld [vmem:[%s9 + $0x1a0] sm:$0xff]
    %v2076 = vld [vmem:[%s9 + $0x1a8] sm:$0xff]
    %v2077 = vld [vmem:[%s9 + $0x1b0] sm:$0xff]
    %v2078 = vld [vmem:[%s9 + $0x1b8] sm:$0xff]
    %v2079 = vld [vmem:[%s9 + $0x1c0] sm:$0xff]
    %v2080 = vld [vmem:[%s9 + $0x1c8] sm:$0xff]
    %v2081 = vld [vmem:[%s9 + $0x1d0] sm:$0xff]
    %v2082 = vld [vmem:[%s9 + $0x1d8] sm:$0xff]
    %v2083 = vld [vmem:[%s9 + $0x1e0] sm:$0xff]
    %v2084 = vld [vmem:[%s9 + $0x1e8] sm:$0xff]
    %v2085 = vld [vmem:[%s9 + $0x1f0] sm:$0xff]
    %v2086 = vld [vmem:[%s9 + $0x1f8] sm:$0xff]
    %2087 = vmatprep.subr.mxu0 %v2024
    %2088 = vmatpush1.msra.mxu0 %v2023
    %2089 = vmatprep.subr.mxu0 %v2026
    %2090 = vmatpush1.msra.mxu0 %v2025
    %2091 = vmatprep.subr.mxu0 %v2028
    %2092 = vmatpush1.msra.mxu0 %v2027
    %2093 = vmatprep.subr.mxu0 %v2030
    %2094 = vmatpush1.msra.mxu0 %v2029
    %2095 = vmatprep.subr.mxu0 %v2032
    %2096 = vmatpush1.msra.mxu0 %v2031
    %2097 = vmatprep.subr.mxu0 %v2034
    %2098 = vmatpush1.msra.mxu0 %v2033
    %2099 = vmatprep.subr.mxu0 %v2036
    %2100 = vmatpush1.msra.mxu0 %v2035
    %2101 = vmatprep.subr.mxu0 %v2038
    %2102 = vmatpush1.msra.mxu0 %v2037
    %2103 = vmatprep.subr.mxu0 %v2040
    %2104 = vmatpush1.msra.mxu0 %v2039
    %2105 = vmatprep.subr.mxu0 %v2042
    %2106 = vmatpush1.msra.mxu0 %v2041
    %2107 = vmatprep.subr.mxu0 %v2044
    %2108 = vmatpush1.msra.mxu0 %v2043
    %2109 = vmatprep.subr.mxu0 %v2046
    %2110 = vmatpush1.msra.mxu0 %v2045
    %2111 = vmatprep.subr.mxu0 %v2048
    %2112 = vmatpush1.msra.mxu0 %v2047
    %2113 = vmatprep.subr.mxu0 %v2050
    %2114 = vmatpush1.msra.mxu0 %v2049
    %2115 = vmatprep.subr.mxu0 %v2052
    %2116 = vmatpush1.msra.mxu0 %v2051
    %2117 = vmatprep.subr.mxu0 %v2054
    %2118 = vmatpush1.msra.mxu0 %v2053
    %2119 = vmatprep.subr.mxu0 %v2056
    %2120 = vmatpush1.msra.mxu0 %v2055
    %2121 = vmatprep.subr.mxu0 %v2058
    %2122 = vmatpush1.msra.mxu0 %v2057
    %2123 = vmatprep.subr.mxu0 %v2060
    %2124 = vmatpush1.msra.mxu0 %v2059
    %2125 = vmatprep.subr.mxu0 %v2062
    %2126 = vmatpush1.msra.mxu0 %v2061
    %2127 = vmatprep.subr.mxu0 %v2064
    %2128 = vmatpush1.msra.mxu0 %v2063
    %2129 = vmatprep.subr.mxu0 %v2066
    %2130 = vmatpush1.msra.mxu0 %v2065
    %2131 = vmatprep.subr.mxu0 %v2068
    %2132 = vmatpush1.msra.mxu0 %v2067
    %2133 = vmatprep.subr.mxu0 %v2070
    %2134 = vmatpush1.msra.mxu0 %v2069
    %2135 = vmatprep.subr.mxu0 %v2072
    %2136 = vmatpush1.msra.mxu0 %v2071
    %2137 = vmatprep.subr.mxu0 %v2074
    %2138 = vmatpush1.msra.mxu0 %v2073
    %2139 = vmatprep.subr.mxu0 %v2076
    %2140 = vmatpush1.msra.mxu0 %v2075
    %2141 = vmatprep.subr.mxu0 %v2078
    %2142 = vmatpush1.msra.mxu0 %v2077
    %2143 = vmatprep.subr.mxu0 %v2080
    %2144 = vmatpush1.msra.mxu0 %v2079
    %2145 = vmatprep.subr.mxu0 %v2082
    %2146 = vmatpush1.msra.mxu0 %v2081
    %2147 = vmatprep.subr.mxu0 %v2084
    %2148 = vmatpush1.msra.mxu0 %v2083
    %2149 = vmatprep.subr.mxu0 %v2086
    %2150 = vmatpush1.msra.mxu0 %v2085
    %2151 = vmatprep.mubr.f32.mxu0 %v537
    %2152 = vmatmul.mubr.f32.gmra.mrb[0].mxu0 %v536
    %v2153 = vpop.f32.mrb[0].mxu0
    %v2154 = vadd.f32 0.0, %v2153
    %v2155 = vpop.f32.mrb[0].mxu0
    %v2156 = vadd.f32 0.0, %v2155
    %2157 = vdwg.mxu0
    %v2158 = vld [vmem:[%s10] sm:$0xff]
    %v2159 = vld [vmem:[%s10 + $0x8] sm:$0xff]
    %v2160 = vld [vmem:[%s12] sm:$0x3]
    %v2162 = vlaneseq
    %v2163 = vshrl.u32 %v2162, 7
    %v2164 = vsub.s32 0, %v2163
    %v2165 = vrot.slane %v2160, %v2164
    %v2166 = vlaneseq
    %v2167 = vshrl.u32 %v2166, 7
    %v2168 = vsub.s32 1, %v2167
    %v2169 = vrot.slane %v2160, %v2168
    %vm2172 = vcmask 64512
    %v2174 = vsel %vm2172, %v2154, 0
    %2176 = vmatprep.subr.mxu0 %v2159
    %2177 = vmatpush1.msra.mxu0 %v2158
    %2178 = vmatprep.subr.mxu0 0.0
    %2179 = vmatpush1.msra.mxu0 0.0
    %2180 = vmatprep.subr.mxu0 0.0
    %2181 = vmatpush1.msra.mxu0 0.0
    %2182 = vmatprep.subr.mxu0 0.0
    %2183 = vmatpush1.msra.mxu0 0.0
    %2184 = vmatprep.subr.mxu0 0.0
    %2185 = vmatpush1.msra.mxu0 0.0
    %2186 = vmatprep.subr.mxu0 0.0
    %2187 = vmatpush1.msra.mxu0 0.0
    %2188 = vmatprep.subr.mxu0 0.0
    %2189 = vmatpush1.msra.mxu0 0.0
    %2190 = vmatprep.subr.mxu0 0.0
    %2191 = vmatpush1.msra.mxu0 0.0
    %2192 = vmatprep.subr.mxu0 0.0
    %2193 = vmatpush1.msra.mxu0 0.0
    %2194 = vmatprep.subr.mxu0 0.0
    %2195 = vmatpush1.msra.mxu0 0.0
    %2196 = vmatprep.subr.mxu0 0.0
    %2197 = vmatpush1.msra.mxu0 0.0
    %2198 = vmatprep.subr.mxu0 0.0
    %2199 = vmatpush1.msra.mxu0 0.0
    %2200 = vmatprep.subr.mxu0 0.0
    %2201 = vmatpush1.msra.mxu0 0.0
    %2202 = vmatprep.subr.mxu0 0.0
    %2203 = vmatpush1.msra.mxu0 0.0
    %2204 = vmatprep.subr.mxu0 0.0
    %2205 = vmatpush1.msra.mxu0 0.0
    %2206 = vmatprep.subr.mxu0 0.0
    %2207 = vmatpush1.msra.mxu0 0.0
    %2208 = vmatprep.subr.mxu0 0.0
    %2209 = vmatpush1.msra.mxu0 0.0
    %2210 = vmatprep.subr.mxu0 0.0
    %2211 = vmatpush1.msra.mxu0 0.0
    %2212 = vmatprep.subr.mxu0 0.0
    %2213 = vmatpush1.msra.mxu0 0.0
    %2214 = vmatprep.subr.mxu0 0.0
    %2215 = vmatpush1.msra.mxu0 0.0
    %2216 = vmatprep.subr.mxu0 0.0
    %2217 = vmatpush1.msra.mxu0 0.0
    %2218 = vmatprep.subr.mxu0 0.0
    %2219 = vmatpush1.msra.mxu0 0.0
    %2220 = vmatprep.subr.mxu0 0.0
    %2221 = vmatpush1.msra.mxu0 0.0
    %2222 = vmatprep.subr.mxu0 0.0
    %2223 = vmatpush1.msra.mxu0 0.0
    %2224 = vmatprep.subr.mxu0 0.0
    %2225 = vmatpush1.msra.mxu0 0.0
    %2226 = vmatprep.subr.mxu0 0.0
    %2227 = vmatpush1.msra.mxu0 0.0
    %2228 = vmatprep.subr.mxu0 0.0
    %2229 = vmatpush1.msra.mxu0 0.0
    %2230 = vmatprep.subr.mxu0 0.0
    %2231 = vmatpush1.msra.mxu0 0.0
    %2232 = vmatprep.subr.mxu0 0.0
    %2233 = vmatpush1.msra.mxu0 0.0
    %2234 = vmatprep.subr.mxu0 0.0
    %2235 = vmatpush1.msra.mxu0 0.0
    %2236 = vmatprep.subr.mxu0 0.0
    %2237 = vmatpush1.msra.mxu0 0.0
    %2238 = vmatprep.subr.mxu0 0.0
    %2239 = vmatpush1.msra.mxu0 0.0
    %2240 = vmatprep.mubr.f32.mxu0 0.0
    %2241 = vmatmul.mubr.f32.gmra.mrb[0].mxu0 %v2174
    %v2242 = vpop.f32.mrb[0].mxu0
    %v2243 = vadd.f32 %v2165, %v2242
    %v2244 = vpop.f32.mrb[0].mxu0
    %v2245 = vadd.f32 %v2169, %v2244
    %2246 = vdwg.mxu0
    %2247 = vrot.lane.b32.xlu0 %v2154, 120
    %v2248 = vpop.permute.xlu0 %2247
    %v2249 = vsel %vm2172, %v2248, 0
    %2251 = vmatprep.subr.mxu0 %v2159
    %2252 = vmatpush1.msra.mxu0 %v2158
    %2253 = vmatprep.subr.mxu0 0.0
    %2254 = vmatpush1.msra.mxu0 0.0
    %2255 = vmatprep.subr.mxu0 0.0
    %2256 = vmatpush1.msra.mxu0 0.0
    %2257 = vmatprep.subr.mxu0 0.0
    %2258 = vmatpush1.msra.mxu0 0.0
    %2259 = vmatprep.subr.mxu0 0.0
    %2260 = vmatpush1.msra.mxu0 0.0
    %2261 = vmatprep.subr.mxu0 0.0
    %2262 = vmatpush1.msra.mxu0 0.0
    %2263 = vmatprep.subr.mxu0 0.0
    %2264 = vmatpush1.msra.mxu0 0.0
    %2265 = vmatprep.subr.mxu0 0.0
    %2266 = vmatpush1.msra.mxu0 0.0
    %2267 = vmatprep.subr.mxu0 0.0
    %2268 = vmatpush1.msra.mxu0 0.0
    %2269 = vmatprep.subr.mxu0 0.0
    %2270 = vmatpush1.msra.mxu0 0.0
    %2271 = vmatprep.subr.mxu0 0.0
    %2272 = vmatpush1.msra.mxu0 0.0
    %2273 = vmatprep.subr.mxu0 0.0
    %2274 = vmatpush1.msra.mxu0 0.0
    %2275 = vmatprep.subr.mxu0 0.0
    %2276 = vmatpush1.msra.mxu0 0.0
    %2277 = vmatprep.subr.mxu0 0.0
    %2278 = vmatpush1.msra.mxu0 0.0
    %2279 = vmatprep.subr.mxu0 0.0
    %2280 = vmatpush1.msra.mxu0 0.0
    %2281 = vmatprep.subr.mxu0 0.0
    %2282 = vmatpush1.msra.mxu0 0.0
    %2283 = vmatprep.subr.mxu0 0.0
    %2284 = vmatpush1.msra.mxu0 0.0
    %2285 = vmatprep.subr.mxu0 0.0
    %2286 = vmatpush1.msra.mxu0 0.0
    %2287 = vmatprep.subr.mxu0 0.0
    %2288 = vmatpush1.msra.mxu0 0.0
    %2289 = vmatprep.subr.mxu0 0.0
    %2290 = vmatpush1.msra.mxu0 0.0
    %2291 = vmatprep.subr.mxu0 0.0
    %2292 = vmatpush1.msra.mxu0 0.0
    %2293 = vmatprep.subr.mxu0 0.0
    %2294 = vmatpush1.msra.mxu0 0.0
    %2295 = vmatprep.subr.mxu0 0.0
    %2296 = vmatpush1.msra.mxu0 0.0
    %2297 = vmatprep.subr.mxu0 0.0
    %2298 = vmatpush1.msra.mxu0 0.0
    %2299 = vmatprep.subr.mxu0 0.0
    %2300 = vmatpush1.msra.mxu0 0.0
    %2301 = vmatprep.subr.mxu0 0.0
    %2302 = vmatpush1.msra.mxu0 0.0
    %2303 = vmatprep.subr.mxu0 0.0
    %2304 = vmatpush1.msra.mxu0 0.0
    %2305 = vmatprep.subr.mxu0 0.0
    %2306 = vmatpush1.msra.mxu0 0.0
    %2307 = vmatprep.subr.mxu0 0.0
    %2308 = vmatpush1.msra.mxu0 0.0
    %2309 = vmatprep.subr.mxu0 0.0
    %2310 = vmatpush1.msra.mxu0 0.0
    %2311 = vmatprep.subr.mxu0 0.0
    %2312 = vmatpush1.msra.mxu0 0.0
    %2313 = vmatprep.subr.mxu0 0.0
    %2314 = vmatpush1.msra.mxu0 0.0
    %2315 = vmatprep.mubr.f32.mxu0 0.0
    %2316 = vmatmul.mubr.f32.gmra.mrb[0].mxu0 %v2249
    %v2317 = vpop.f32.mrb[0].mxu0
    %v2318 = vadd.f32 %v2165, %v2317
    %v2319 = vpop.f32.mrb[0].mxu0
    %v2320 = vadd.f32 %v2169, %v2319
    %2321 = vdwg.mxu0
    %2322 = vrot.lane.b32.xlu0 %v2154, 112
    %v2323 = vpop.permute.xlu0 %2322
    %v2324 = vsel %vm2172, %v2323, 0
    %2326 = vmatprep.subr.mxu0 %v2159
    %2327 = vmatpush1.msra.mxu0 %v2158
    %2328 = vmatprep.subr.mxu0 0.0
    %2329 = vmatpush1.msra.mxu0 0.0
    %2330 = vmatprep.subr.mxu0 0.0
    %2331 = vmatpush1.msra.mxu0 0.0
    %2332 = vmatprep.subr.mxu0 0.0
    %2333 = vmatpush1.msra.mxu0 0.0
    %2334 = vmatprep.subr.mxu0 0.0
    %2335 = vmatpush1.msra.mxu0 0.0
    %2336 = vmatprep.subr.mxu0 0.0
    %2337 = vmatpush1.msra.mxu0 0.0
    %2338 = vmatprep.subr.mxu0 0.0
    %2339 = vmatpush1.msra.mxu0 0.0
    %2340 = vmatprep.subr.mxu0 0.0
    %2341 = vmatpush1.msra.mxu0 0.0
    %2342 = vmatprep.subr.mxu0 0.0
    %2343 = vmatpush1.msra.mxu0 0.0
    %2344 = vmatprep.subr.mxu0 0.0
    %2345 = vmatpush1.msra.mxu0 0.0
    %2346 = vmatprep.subr.mxu0 0.0
    %2347 = vmatpush1.msra.mxu0 0.0
    %2348 = vmatprep.subr.mxu0 0.0
    %2349 = vmatpush1.msra.mxu0 0.0
    %2350 = vmatprep.subr.mxu0 0.0
    %2351 = vmatpush1.msra.mxu0 0.0
    %2352 = vmatprep.subr.mxu0 0.0
    %2353 = vmatpush1.msra.mxu0 0.0
    %2354 = vmatprep.subr.mxu0 0.0
    %2355 = vmatpush1.msra.mxu0 0.0
    %2356 = vmatprep.subr.mxu0 0.0
    %2357 = vmatpush1.msra.mxu0 0.0
    %2358 = vmatprep.subr.mxu0 0.0
    %2359 = vmatpush1.msra.mxu0 0.0
    %2360 = vmatprep.subr.mxu0 0.0
    %2361 = vmatpush1.msra.mxu0 0.0
    %2362 = vmatprep.subr.mxu0 0.0
    %2363 = vmatpush1.msra.mxu0 0.0
    %2364 = vmatprep.subr.mxu0 0.0
    %2365 = vmatpush1.msra.mxu0 0.0
    %2366 = vmatprep.subr.mxu0 0.0
    %2367 = vmatpush1.msra.mxu0 0.0
    %2368 = vmatprep.subr.mxu0 0.0
    %2369 = vmatpush1.msra.mxu0 0.0
    %2370 = vmatprep.subr.mxu0 0.0
    %2371 = vmatpush1.msra.mxu0 0.0
    %2372 = vmatprep.subr.mxu0 0.0
    %2373 = vmatpush1.msra.mxu0 0.0
    %2374 = vmatprep.subr.mxu0 0.0
    %2375 = vmatpush1.msra.mxu0 0.0
    %2376 = vmatprep.subr.mxu0 0.0
    %2377 = vmatpush1.msra.mxu0 0.0
    %2378 = vmatprep.subr.mxu0 0.0
    %2379 = vmatpush1.msra.mxu0 0.0
    %2380 = vmatprep.subr.mxu0 0.0
    %2381 = vmatpush1.msra.mxu0 0.0
    %2382 = vmatprep.subr.mxu0 0.0
    %2383 = vmatpush1.msra.mxu0 0.0
    %2384 = vmatprep.subr.mxu0 0.0
    %2385 = vmatpush1.msra.mxu0 0.0
    %2386 = vmatprep.subr.mxu0 0.0
    %2387 = vmatpush1.msra.mxu0 0.0
    %2388 = vmatprep.subr.mxu0 0.0
    %2389 = vmatpush1.msra.mxu0 0.0
    %2390 = vmatprep.mubr.f32.mxu0 0.0
    %2391 = vmatmul.mubr.f32.gmra.mrb[0].mxu0 %v2324
    %v2392 = vpop.f32.mrb[0].mxu0
    %v2393 = vadd.f32 %v2165, %v2392
    %v2394 = vpop.f32.mrb[0].mxu0
    %v2395 = vadd.f32 %v2169, %v2394
    %2396 = vdwg.mxu0
    %2397 = vrot.lane.b32.xlu0 %v2154, 104
    %v2398 = vpop.permute.xlu0 %2397
    %v2399 = vsel %vm2172, %v2398, 0
    %2401 = vmatprep.subr.mxu0 %v2159
    %2402 = vmatpush1.msra.mxu0 %v2158
    %2403 = vmatprep.subr.mxu0 0.0
    %2404 = vmatpush1.msra.mxu0 0.0
    %2405 = vmatprep.subr.mxu0 0.0
    %2406 = vmatpush1.msra.mxu0 0.0
    %2407 = vmatprep.subr.mxu0 0.0
    %2408 = vmatpush1.msra.mxu0 0.0
    %2409 = vmatprep.subr.mxu0 0.0
    %2410 = vmatpush1.msra.mxu0 0.0
    %2411 = vmatprep.subr.mxu0 0.0
    %2412 = vmatpush1.msra.mxu0 0.0
    %2413 = vmatprep.subr.mxu0 0.0
    %2414 = vmatpush1.msra.mxu0 0.0
    %2415 = vmatprep.subr.mxu0 0.0
    %2416 = vmatpush1.msra.mxu0 0.0
    %2417 = vmatprep.subr.mxu0 0.0
    %2418 = vmatpush1.msra.mxu0 0.0
    %2419 = vmatprep.subr.mxu0 0.0
    %2420 = vmatpush1.msra.mxu0 0.0
    %2421 = vmatprep.subr.mxu0 0.0
    %2422 = vmatpush1.msra.mxu0 0.0
    %2423 = vmatprep.subr.mxu0 0.0
    %2424 = vmatpush1.msra.mxu0 0.0
    %2425 = vmatprep.subr.mxu0 0.0
    %2426 = vmatpush1.msra.mxu0 0.0
    %2427 = vmatprep.subr.mxu0 0.0
    %2428 = vmatpush1.msra.mxu0 0.0
    %2429 = vmatprep.subr.mxu0 0.0
    %2430 = vmatpush1.msra.mxu0 0.0
    %2431 = vmatprep.subr.mxu0 0.0
    %2432 = vmatpush1.msra.mxu0 0.0
    %2433 = vmatprep.subr.mxu0 0.0
    %2434 = vmatpush1.msra.mxu0 0.0
    %2435 = vmatprep.subr.mxu0 0.0
    %2436 = vmatpush1.msra.mxu0 0.0
    %2437 = vmatprep.subr.mxu0 0.0
    %2438 = vmatpush1.msra.mxu0 0.0
    %2439 = vmatprep.subr.mxu0 0.0
    %2440 = vmatpush1.msra.mxu0 0.0
    %2441 = vmatprep.subr.mxu0 0.0
    %2442 = vmatpush1.msra.mxu0 0.0
    %2443 = vmatprep.subr.mxu0 0.0
    %2444 = vmatpush1.msra.mxu0 0.0
    %2445 = vmatprep.subr.mxu0 0.0
    %2446 = vmatpush1.msra.mxu0 0.0
    %2447 = vmatprep.subr.mxu0 0.0
    %2448 = vmatpush1.msra.mxu0 0.0
    %2449 = vmatprep.subr.mxu0 0.0
    %2450 = vmatpush1.msra.mxu0 0.0
    %2451 = vmatprep.subr.mxu0 0.0
    %2452 = vmatpush1.msra.mxu0 0.0
    %2453 = vmatprep.subr.mxu0 0.0
    %2454 = vmatpush1.msra.mxu0 0.0
    %2455 = vmatprep.subr.mxu0 0.0
    %2456 = vmatpush1.msra.mxu0 0.0
    %2457 = vmatprep.subr.mxu0 0.0
    %2458 = vmatpush1.msra.mxu0 0.0
    %2459 = vmatprep.subr.mxu0 0.0
    %2460 = vmatpush1.msra.mxu0 0.0
    %2461 = vmatprep.subr.mxu0 0.0
    %2462 = vmatpush1.msra.mxu0 0.0
    %2463 = vmatprep.subr.mxu0 0.0
    %2464 = vmatpush1.msra.mxu0 0.0
    %2465 = vmatprep.mubr.f32.mxu0 0.0
    %2466 = vmatmul.mubr.f32.gmra.mrb[0].mxu0 %v2399
    %v2467 = vpop.f32.mrb[0].mxu0
    %v2468 = vadd.f32 %v2165, %v2467
    %v2469 = vpop.f32.mrb[0].mxu0
    %v2470 = vadd.f32 %v2169, %v2469
    %2471 = vdwg.mxu0
    %2472 = vrot.lane.b32.xlu0 %v2154, 96
    %v2473 = vpop.permute.xlu0 %2472
    %v2474 = vsel %vm2172, %v2473, 0
    %2476 = vmatprep.subr.mxu0 %v2159
    %2477 = vmatpush1.msra.mxu0 %v2158
    %2478 = vmatprep.subr.mxu0 0.0
    %2479 = vmatpush1.msra.mxu0 0.0
    %2480 = vmatprep.subr.mxu0 0.0
    %2481 = vmatpush1.msra.mxu0 0.0
    %2482 = vmatprep.subr.mxu0 0.0
    %2483 = vmatpush1.msra.mxu0 0.0
    %2484 = vmatprep.subr.mxu0 0.0
    %2485 = vmatpush1.msra.mxu0 0.0
    %2486 = vmatprep.subr.mxu0 0.0
    %2487 = vmatpush1.msra.mxu0 0.0
    %2488 = vmatprep.subr.mxu0 0.0
    %2489 = vmatpush1.msra.mxu0 0.0
    %2490 = vmatprep.subr.mxu0 0.0
    %2491 = vmatpush1.msra.mxu0 0.0
    %2492 = vmatprep.subr.mxu0 0.0
    %2493 = vmatpush1.msra.mxu0 0.0
    %2494 = vmatprep.subr.mxu0 0.0
    %2495 = vmatpush1.msra.mxu0 0.0
    %2496 = vmatprep.subr.mxu0 0.0
    %2497 = vmatpush1.msra.mxu0 0.0
    %2498 = vmatprep.subr.mxu0 0.0
    %2499 = vmatpush1.msra.mxu0 0.0
    %2500 = vmatprep.subr.mxu0 0.0
    %2501 = vmatpush1.msra.mxu0 0.0
    %2502 = vmatprep.subr.mxu0 0.0
    %2503 = vmatpush1.msra.mxu0 0.0
    %2504 = vmatprep.subr.mxu0 0.0
    %2505 = vmatpush1.msra.mxu0 0.0
    %2506 = vmatprep.subr.mxu0 0.0
    %2507 = vmatpush1.msra.mxu0 0.0
    %2508 = vmatprep.subr.mxu0 0.0
    %2509 = vmatpush1.msra.mxu0 0.0
    %2510 = vmatprep.subr.mxu0 0.0
    %2511 = vmatpush1.msra.mxu0 0.0
    %2512 = vmatprep.subr.mxu0 0.0
    %2513 = vmatpush1.msra.mxu0 0.0
    %2514 = vmatprep.subr.mxu0 0.0
    %2515 = vmatpush1.msra.mxu0 0.0
    %2516 = vmatprep.subr.mxu0 0.0
    %2517 = vmatpush1.msra.mxu0 0.0
    %2518 = vmatprep.subr.mxu0 0.0
    %2519 = vmatpush1.msra.mxu0 0.0
    %2520 = vmatprep.subr.mxu0 0.0
    %2521 = vmatpush1.msra.mxu0 0.0
    %2522 = vmatprep.subr.mxu0 0.0
    %2523 = vmatpush1.msra.mxu0 0.0
    %2524 = vmatprep.subr.mxu0 0.0
    %2525 = vmatpush1.msra.mxu0 0.0
    %2526 = vmatprep.subr.mxu0 0.0
    %2527 = vmatpush1.msra.mxu0 0.0
    %2528 = vmatprep.subr.mxu0 0.0
    %2529 = vmatpush1.msra.mxu0 0.0
    %2530 = vmatprep.subr.mxu0 0.0
    %2531 = vmatpush1.msra.mxu0 0.0
    %2532 = vmatprep.subr.mxu0 0.0
    %2533 = vmatpush1.msra.mxu0 0.0
    %2534 = vmatprep.subr.mxu0 0.0
    %2535 = vmatpush1.msra.mxu0 0.0
    %2536 = vmatprep.subr.mxu0 0.0
    %2537 = vmatpush1.msra.mxu0 0.0
    %2538 = vmatprep.subr.mxu0 0.0
    %2539 = vmatpush1.msra.mxu0 0.0
    %2540 = vmatprep.mubr.f32.mxu0 0.0
    %2541 = vmatmul.mubr.f32.gmra.mrb[0].mxu0 %v2474
    %v2542 = vpop.f32.mrb[0].mxu0
    %v2543 = vadd.f32 %v2165, %v2542
    %v2544 = vpop.f32.mrb[0].mxu0
    %v2545 = vadd.f32 %v2169, %v2544
    %2546 = vdwg.mxu0
    %2547 = vrot.lane.b32.xlu0 %v2154, 88
    %v2548 = vpop.permute.xlu0 %2547
    %v2549 = vsel %vm2172, %v2548, 0
    %2551 = vmatprep.subr.mxu0 %v2159
    %2552 = vmatpush1.msra.mxu0 %v2158
    %2553 = vmatprep.subr.mxu0 0.0
    %2554 = vmatpush1.msra.mxu0 0.0
    %2555 = vmatprep.subr.mxu0 0.0
    %2556 = vmatpush1.msra.mxu0 0.0
    %2557 = vmatprep.subr.mxu0 0.0
    %2558 = vmatpush1.msra.mxu0 0.0
    %2559 = vmatprep.subr.mxu0 0.0
    %2560 = vmatpush1.msra.mxu0 0.0
    %2561 = vmatprep.subr.mxu0 0.0
    %2562 = vmatpush1.msra.mxu0 0.0
    %2563 = vmatprep.subr.mxu0 0.0
    %2564 = vmatpush1.msra.mxu0 0.0
    %2565 = vmatprep.subr.mxu0 0.0
    %2566 = vmatpush1.msra.mxu0 0.0
    %2567 = vmatprep.subr.mxu0 0.0
    %2568 = vmatpush1.msra.mxu0 0.0
    %2569 = vmatprep.subr.mxu0 0.0
    %2570 = vmatpush1.msra.mxu0 0.0
    %2571 = vmatprep.subr.mxu0 0.0
    %2572 = vmatpush1.msra.mxu0 0.0
    %2573 = vmatprep.subr.mxu0 0.0
    %2574 = vmatpush1.msra.mxu0 0.0
    %2575 = vmatprep.subr.mxu0 0.0
    %2576 = vmatpush1.msra.mxu0 0.0
    %2577 = vmatprep.subr.mxu0 0.0
    %2578 = vmatpush1.msra.mxu0 0.0
    %2579 = vmatprep.subr.mxu0 0.0
    %2580 = vmatpush1.msra.mxu0 0.0
    %2581 = vmatprep.subr.mxu0 0.0
    %2582 = vmatpush1.msra.mxu0 0.0
    %2583 = vmatprep.subr.mxu0 0.0
    %2584 = vmatpush1.msra.mxu0 0.0
    %2585 = vmatprep.subr.mxu0 0.0
    %2586 = vmatpush1.msra.mxu0 0.0
    %2587 = vmatprep.subr.mxu0 0.0
    %2588 = vmatpush1.msra.mxu0 0.0
    %2589 = vmatprep.subr.mxu0 0.0
    %2590 = vmatpush1.msra.mxu0 0.0
    %2591 = vmatprep.subr.mxu0 0.0
    %2592 = vmatpush1.msra.mxu0 0.0
    %2593 = vmatprep.subr.mxu0 0.0
    %2594 = vmatpush1.msra.mxu0 0.0
    %2595 = vmatprep.subr.mxu0 0.0
    %2596 = vmatpush1.msra.mxu0 0.0
    %2597 = vmatprep.subr.mxu0 0.0
    %2598 = vmatpush1.msra.mxu0 0.0
    %2599 = vmatprep.subr.mxu0 0.0
    %2600 = vmatpush1.msra.mxu0 0.0
    %2601 = vmatprep.subr.mxu0 0.0
    %2602 = vmatpush1.msra.mxu0 0.0
    %2603 = vmatprep.subr.mxu0 0.0
    %2604 = vmatpush1.msra.mxu0 0.0
    %2605 = vmatprep.subr.mxu0 0.0
    %2606 = vmatpush1.msra.mxu0 0.0
    %2607 = vmatprep.subr.mxu0 0.0
    %2608 = vmatpush1.msra.mxu0 0.0
    %2609 = vmatprep.subr.mxu0 0.0
    %2610 = vmatpush1.msra.mxu0 0.0
    %2611 = vmatprep.subr.mxu0 0.0
    %2612 = vmatpush1.msra.mxu0 0.0
    %2613 = vmatprep.subr.mxu0 0.0
    %2614 = vmatpush1.msra.mxu0 0.0
    %2615 = vmatprep.mubr.f32.mxu0 0.0
    %2616 = vmatmul.mubr.f32.gmra.mrb[0].mxu0 %v2549
    %v2617 = vpop.f32.mrb[0].mxu0
    %v2618 = vadd.f32 %v2165, %v2617
    %v2619 = vpop.f32.mrb[0].mxu0
    %v2620 = vadd.f32 %v2169, %v2619
    %2621 = vdwg.mxu0
    %2622 = vrot.lane.b32.xlu0 %v2154, 80
    %v2623 = vpop.permute.xlu0 %2622
    %v2624 = vsel %vm2172, %v2623, 0
    %2626 = vmatprep.subr.mxu0 %v2159
    %2627 = vmatpush1.msra.mxu0 %v2158
    %2628 = vmatprep.subr.mxu0 0.0
    %2629 = vmatpush1.msra.mxu0 0.0
    %2630 = vmatprep.subr.mxu0 0.0
    %2631 = vmatpush1.msra.mxu0 0.0
    %2632 = vmatprep.subr.mxu0 0.0
    %2633 = vmatpush1.msra.mxu0 0.0
    %2634 = vmatprep.subr.mxu0 0.0
    %2635 = vmatpush1.msra.mxu0 0.0
    %2636 = vmatprep.subr.mxu0 0.0
    %2637 = vmatpush1.msra.mxu0 0.0
    %2638 = vmatprep.subr.mxu0 0.0
    %2639 = vmatpush1.msra.mxu0 0.0
    %2640 = vmatprep.subr.mxu0 0.0
    %2641 = vmatpush1.msra.mxu0 0.0
    %2642 = vmatprep.subr.mxu0 0.0
    %2643 = vmatpush1.msra.mxu0 0.0
    %2644 = vmatprep.subr.mxu0 0.0
    %2645 = vmatpush1.msra.mxu0 0.0
    %2646 = vmatprep.subr.mxu0 0.0
    %2647 = vmatpush1.msra.mxu0 0.0
    %2648 = vmatprep.subr.mxu0 0.0
    %2649 = vmatpush1.msra.mxu0 0.0
    %2650 = vmatprep.subr.mxu0 0.0
    %2651 = vmatpush1.msra.mxu0 0.0
    %2652 = vmatprep.subr.mxu0 0.0
    %2653 = vmatpush1.msra.mxu0 0.0
    %2654 = vmatprep.subr.mxu0 0.0
    %2655 = vmatpush1.msra.mxu0 0.0
    %2656 = vmatprep.subr.mxu0 0.0
    %2657 = vmatpush1.msra.mxu0 0.0
    %2658 = vmatprep.subr.mxu0 0.0
    %2659 = vmatpush1.msra.mxu0 0.0
    %2660 = vmatprep.subr.mxu0 0.0
    %2661 = vmatpush1.msra.mxu0 0.0
    %2662 = vmatprep.subr.mxu0 0.0
    %2663 = vmatpush1.msra.mxu0 0.0
    %2664 = vmatprep.subr.mxu0 0.0
    %2665 = vmatpush1.msra.mxu0 0.0
    %2666 = vmatprep.subr.mxu0 0.0
    %2667 = vmatpush1.msra.mxu0 0.0
    %2668 = vmatprep.subr.mxu0 0.0
    %2669 = vmatpush1.msra.mxu0 0.0
    %2670 = vmatprep.subr.mxu0 0.0
    %2671 = vmatpush1.msra.mxu0 0.0
    %2672 = vmatprep.subr.mxu0 0.0
    %2673 = vmatpush1.msra.mxu0 0.0
    %2674 = vmatprep.subr.mxu0 0.0
    %2675 = vmatpush1.msra.mxu0 0.0
    %2676 = vmatprep.subr.mxu0 0.0
    %2677 = vmatpush1.msra.mxu0 0.0
    %2678 = vmatprep.subr.mxu0 0.0
    %2679 = vmatpush1.msra.mxu0 0.0
    %2680 = vmatprep.subr.mxu0 0.0
    %2681 = vmatpush1.msra.mxu0 0.0
    %2682 = vmatprep.subr.mxu0 0.0
    %2683 = vmatpush1.msra.mxu0 0.0
    %2684 = vmatprep.subr.mxu0 0.0
    %2685 = vmatpush1.msra.mxu0 0.0
    %2686 = vmatprep.subr.mxu0 0.0
    %2687 = vmatpush1.msra.mxu0 0.0
    %2688 = vmatprep.subr.mxu0 0.0
    %2689 = vmatpush1.msra.mxu0 0.0
    %2690 = vmatprep.mubr.f32.mxu0 0.0
    %2691 = vmatmul.mubr.f32.gmra.mrb[0].mxu0 %v2624
    %v2692 = vpop.f32.mrb[0].mxu0
    %v2693 = vadd.f32 %v2165, %v2692
    %v2694 = vpop.f32.mrb[0].mxu0
    %v2695 = vadd.f32 %v2169, %v2694
    %2696 = vdwg.mxu0
    %2697 = vrot.lane.b32.xlu0 %v2154, 72
    %v2698 = vpop.permute.xlu0 %2697
    %v2699 = vsel %vm2172, %v2698, 0
    %2701 = vmatprep.subr.mxu0 %v2159
    %2702 = vmatpush1.msra.mxu0 %v2158
    %2703 = vmatprep.subr.mxu0 0.0
    %2704 = vmatpush1.msra.mxu0 0.0
    %2705 = vmatprep.subr.mxu0 0.0
    %2706 = vmatpush1.msra.mxu0 0.0
    %2707 = vmatprep.subr.mxu0 0.0
    %2708 = vmatpush1.msra.mxu0 0.0
    %2709 = vmatprep.subr.mxu0 0.0
    %2710 = vmatpush1.msra.mxu0 0.0
    %2711 = vmatprep.subr.mxu0 0.0
    %2712 = vmatpush1.msra.mxu0 0.0
    %2713 = vmatprep.subr.mxu0 0.0
    %2714 = vmatpush1.msra.mxu0 0.0
    %2715 = vmatprep.subr.mxu0 0.0
    %2716 = vmatpush1.msra.mxu0 0.0
    %2717 = vmatprep.subr.mxu0 0.0
    %2718 = vmatpush1.msra.mxu0 0.0
    %2719 = vmatprep.subr.mxu0 0.0
    %2720 = vmatpush1.msra.mxu0 0.0
    %2721 = vmatprep.subr.mxu0 0.0
    %2722 = vmatpush1.msra.mxu0 0.0
    %2723 = vmatprep.subr.mxu0 0.0
    %2724 = vmatpush1.msra.mxu0 0.0
    %2725 = vmatprep.subr.mxu0 0.0
    %2726 = vmatpush1.msra.mxu0 0.0
    %2727 = vmatprep.subr.mxu0 0.0
    %2728 = vmatpush1.msra.mxu0 0.0
    %2729 = vmatprep.subr.mxu0 0.0
    %2730 = vmatpush1.msra.mxu0 0.0
    %2731 = vmatprep.subr.mxu0 0.0
    %2732 = vmatpush1.msra.mxu0 0.0
    %2733 = vmatprep.subr.mxu0 0.0
    %2734 = vmatpush1.msra.mxu0 0.0
    %2735 = vmatprep.subr.mxu0 0.0
    %2736 = vmatpush1.msra.mxu0 0.0
    %2737 = vmatprep.subr.mxu0 0.0
    %2738 = vmatpush1.msra.mxu0 0.0
    %2739 = vmatprep.subr.mxu0 0.0
    %2740 = vmatpush1.msra.mxu0 0.0
    %2741 = vmatprep.subr.mxu0 0.0
    %2742 = vmatpush1.msra.mxu0 0.0
    %2743 = vmatprep.subr.mxu0 0.0
    %2744 = vmatpush1.msra.mxu0 0.0
    %2745 = vmatprep.subr.mxu0 0.0
    %2746 = vmatpush1.msra.mxu0 0.0
    %2747 = vmatprep.subr.mxu0 0.0
    %2748 = vmatpush1.msra.mxu0 0.0
    %2749 = vmatprep.subr.mxu0 0.0
    %2750 = vmatpush1.msra.mxu0 0.0
    %2751 = vmatprep.subr.mxu0 0.0
    %2752 = vmatpush1.msra.mxu0 0.0
    %2753 = vmatprep.subr.mxu0 0.0
    %2754 = vmatpush1.msra.mxu0 0.0
    %2755 = vmatprep.subr.mxu0 0.0
    %2756 = vmatpush1.msra.mxu0 0.0
    %2757 = vmatprep.subr.mxu0 0.0
    %2758 = vmatpush1.msra.mxu0 0.0
    %2759 = vmatprep.subr.mxu0 0.0
    %2760 = vmatpush1.msra.mxu0 0.0
    %2761 = vmatprep.subr.mxu0 0.0
    %2762 = vmatpush1.msra.mxu0 0.0
    %2763 = vmatprep.subr.mxu0 0.0
    %2764 = vmatpush1.msra.mxu0 0.0
    %2765 = vmatprep.mubr.f32.mxu0 0.0
    %2766 = vmatmul.mubr.f32.gmra.mrb[0].mxu0 %v2699
    %v2767 = vpop.f32.mrb[0].mxu0
    %v2768 = vadd.f32 %v2165, %v2767
    %v2769 = vpop.f32.mrb[0].mxu0
    %v2770 = vadd.f32 %v2169, %v2769
    %2771 = vdwg.mxu0
    %2772 = vrot.lane.b32.xlu0 %v2154, 64
    %v2773 = vpop.permute.xlu0 %2772
    %v2774 = vsel %vm2172, %v2773, 0
    %2776 = vmatprep.subr.mxu0 %v2159
    %2777 = vmatpush1.msra.mxu0 %v2158
    %2778 = vmatprep.subr.mxu0 0.0
    %2779 = vmatpush1.msra.mxu0 0.0
    %2780 = vmatprep.subr.mxu0 0.0
    %2781 = vmatpush1.msra.mxu0 0.0
    %2782 = vmatprep.subr.mxu0 0.0
    %2783 = vmatpush1.msra.mxu0 0.0
    %2784 = vmatprep.subr.mxu0 0.0
    %2785 = vmatpush1.msra.mxu0 0.0
    %2786 = vmatprep.subr.mxu0 0.0
    %2787 = vmatpush1.msra.mxu0 0.0
    %2788 = vmatprep.subr.mxu0 0.0
    %2789 = vmatpush1.msra.mxu0 0.0
    %2790 = vmatprep.subr.mxu0 0.0
    %2791 = vmatpush1.msra.mxu0 0.0
    %2792 = vmatprep.subr.mxu0 0.0
    %2793 = vmatpush1.msra.mxu0 0.0
    %2794 = vmatprep.subr.mxu0 0.0
    %2795 = vmatpush1.msra.mxu0 0.0
    %2796 = vmatprep.subr.mxu0 0.0
    %2797 = vmatpush1.msra.mxu0 0.0
    %2798 = vmatprep.subr.mxu0 0.0
    %2799 = vmatpush1.msra.mxu0 0.0
    %2800 = vmatprep.subr.mxu0 0.0
    %2801 = vmatpush1.msra.mxu0 0.0
    %2802 = vmatprep.subr.mxu0 0.0
    %2803 = vmatpush1.msra.mxu0 0.0
    %2804 = vmatprep.subr.mxu0 0.0
    %2805 = vmatpush1.msra.mxu0 0.0
    %2806 = vmatprep.subr.mxu0 0.0
    %2807 = vmatpush1.msra.mxu0 0.0
    %2808 = vmatprep.subr.mxu0 0.0
    %2809 = vmatpush1.msra.mxu0 0.0
    %2810 = vmatprep.subr.mxu0 0.0
    %2811 = vmatpush1.msra.mxu0 0.0
    %2812 = vmatprep.subr.mxu0 0.0
    %2813 = vmatpush1.msra.mxu0 0.0
    %2814 = vmatprep.subr.mxu0 0.0
    %2815 = vmatpush1.msra.mxu0 0.0
    %2816 = vmatprep.subr.mxu0 0.0
    %2817 = vmatpush1.msra.mxu0 0.0
    %2818 = vmatprep.subr.mxu0 0.0
    %2819 = vmatpush1.msra.mxu0 0.0
    %2820 = vmatprep.subr.mxu0 0.0
    %2821 = vmatpush1.msra.mxu0 0.0
    %2822 = vmatprep.subr.mxu0 0.0
    %2823 = vmatpush1.msra.mxu0 0.0
    %2824 = vmatprep.subr.mxu0 0.0
    %2825 = vmatpush1.msra.mxu0 0.0
    %2826 = vmatprep.subr.mxu0 0.0
    %2827 = vmatpush1.msra.mxu0 0.0
    %2828 = vmatprep.subr.mxu0 0.0
    %2829 = vmatpush1.msra.mxu0 0.0
    %2830 = vmatprep.subr.mxu0 0.0
    %2831 = vmatpush1.msra.mxu0 0.0
    %2832 = vmatprep.subr.mxu0 0.0
    %2833 = vmatpush1.msra.mxu0 0.0
    %2834 = vmatprep.subr.mxu0 0.0
    %2835 = vmatpush1.msra.mxu0 0.0
    %2836 = vmatprep.subr.mxu0 0.0
    %2837 = vmatpush1.msra.mxu0 0.0
    %2838 = vmatprep.subr.mxu0 0.0
    %2839 = vmatpush1.msra.mxu0 0.0
    %2840 = vmatprep.mubr.f32.mxu0 0.0
    %2841 = vmatmul.mubr.f32.gmra.mrb[0].mxu0 %v2774
    %v2842 = vpop.f32.mrb[0].mxu0
    %v2843 = vadd.f32 %v2165, %v2842
    %v2844 = vpop.f32.mrb[0].mxu0
    %v2845 = vadd.f32 %v2169, %v2844
    %2846 = vdwg.mxu0
    %2847 = vrot.lane.b32.xlu0 %v2154, 56
    %v2848 = vpop.permute.xlu0 %2847
    %v2849 = vsel %vm2172, %v2848, 0
    %2851 = vmatprep.subr.mxu0 %v2159
    %2852 = vmatpush1.msra.mxu0 %v2158
    %2853 = vmatprep.subr.mxu0 0.0
    %2854 = vmatpush1.msra.mxu0 0.0
    %2855 = vmatprep.subr.mxu0 0.0
    %2856 = vmatpush1.msra.mxu0 0.0
    %2857 = vmatprep.subr.mxu0 0.0
    %2858 = vmatpush1.msra.mxu0 0.0
    %2859 = vmatprep.subr.mxu0 0.0
    %2860 = vmatpush1.msra.mxu0 0.0
    %2861 = vmatprep.subr.mxu0 0.0
    %2862 = vmatpush1.msra.mxu0 0.0
    %2863 = vmatprep.subr.mxu0 0.0
    %2864 = vmatpush1.msra.mxu0 0.0
    %2865 = vmatprep.subr.mxu0 0.0
    %2866 = vmatpush1.msra.mxu0 0.0
    %2867 = vmatprep.subr.mxu0 0.0
    %2868 = vmatpush1.msra.mxu0 0.0
    %2869 = vmatprep.subr.mxu0 0.0
    %2870 = vmatpush1.msra.mxu0 0.0
    %2871 = vmatprep.subr.mxu0 0.0
    %2872 = vmatpush1.msra.mxu0 0.0
    %2873 = vmatprep.subr.mxu0 0.0
    %2874 = vmatpush1.msra.mxu0 0.0
    %2875 = vmatprep.subr.mxu0 0.0
    %2876 = vmatpush1.msra.mxu0 0.0
    %2877 = vmatprep.subr.mxu0 0.0
    %2878 = vmatpush1.msra.mxu0 0.0
    %2879 = vmatprep.subr.mxu0 0.0
    %2880 = vmatpush1.msra.mxu0 0.0
    %2881 = vmatprep.subr.mxu0 0.0
    %2882 = vmatpush1.msra.mxu0 0.0
    %2883 = vmatprep.subr.mxu0 0.0
    %2884 = vmatpush1.msra.mxu0 0.0
    %2885 = vmatprep.subr.mxu0 0.0
    %2886 = vmatpush1.msra.mxu0 0.0
    %2887 = vmatprep.subr.mxu0 0.0
    %2888 = vmatpush1.msra.mxu0 0.0
    %2889 = vmatprep.subr.mxu0 0.0
    %2890 = vmatpush1.msra.mxu0 0.0
    %2891 = vmatprep.subr.mxu0 0.0
    %2892 = vmatpush1.msra.mxu0 0.0
    %2893 = vmatprep.subr.mxu0 0.0
    %2894 = vmatpush1.msra.mxu0 0.0
    %2895 = vmatprep.subr.mxu0 0.0
    %2896 = vmatpush1.msra.mxu0 0.0
    %2897 = vmatprep.subr.mxu0 0.0
    %2898 = vmatpush1.msra.mxu0 0.0
    %2899 = vmatprep.subr.mxu0 0.0
    %2900 = vmatpush1.msra.mxu0 0.0
    %2901 = vmatprep.subr.mxu0 0.0
    %2902 = vmatpush1.msra.mxu0 0.0
    %2903 = vmatprep.subr.mxu0 0.0
    %2904 = vmatpush1.msra.mxu0 0.0
    %2905 = vmatprep.subr.mxu0 0.0
    %2906 = vmatpush1.msra.mxu0 0.0
    %2907 = vmatprep.subr.mxu0 0.0
    %2908 = vmatpush1.msra.mxu0 0.0
    %2909 = vmatprep.subr.mxu0 0.0
    %2910 = vmatpush1.msra.mxu0 0.0
    %2911 = vmatprep.subr.mxu0 0.0
    %2912 = vmatpush1.msra.mxu0 0.0
    %2913 = vmatprep.subr.mxu0 0.0
    %2914 = vmatpush1.msra.mxu0 0.0
    %2915 = vmatprep.mubr.f32.mxu0 0.0
    %2916 = vmatmul.mubr.f32.gmra.mrb[0].mxu0 %v2849
    %v2917 = vpop.f32.mrb[0].mxu0
    %v2918 = vadd.f32 %v2165, %v2917
    %v2919 = vpop.f32.mrb[0].mxu0
    %v2920 = vadd.f32 %v2169, %v2919
    %2921 = vdwg.mxu0
    %2922 = vrot.lane.b32.xlu0 %v2154, 48
    %v2923 = vpop.permute.xlu0 %2922
    %v2924 = vsel %vm2172, %v2923, 0
    %2926 = vmatprep.subr.mxu0 %v2159
    %2927 = vmatpush1.msra.mxu0 %v2158
    %2928 = vmatprep.subr.mxu0 0.0
    %2929 = vmatpush1.msra.mxu0 0.0
    %2930 = vmatprep.subr.mxu0 0.0
    %2931 = vmatpush1.msra.mxu0 0.0
    %2932 = vmatprep.subr.mxu0 0.0
    %2933 = vmatpush1.msra.mxu0 0.0
    %2934 = vmatprep.subr.mxu0 0.0
    %2935 = vmatpush1.msra.mxu0 0.0
    %2936 = vmatprep.subr.mxu0 0.0
    %2937 = vmatpush1.msra.mxu0 0.0
    %2938 = vmatprep.subr.mxu0 0.0
    %2939 = vmatpush1.msra.mxu0 0.0
    %2940 = vmatprep.subr.mxu0 0.0
    %2941 = vmatpush1.msra.mxu0 0.0
    %2942 = vmatprep.subr.mxu0 0.0
    %2943 = vmatpush1.msra.mxu0 0.0
    %2944 = vmatprep.subr.mxu0 0.0
    %2945 = vmatpush1.msra.mxu0 0.0
    %2946 = vmatprep.subr.mxu0 0.0
    %2947 = vmatpush1.msra.mxu0 0.0
    %2948 = vmatprep.subr.mxu0 0.0
    %2949 = vmatpush1.msra.mxu0 0.0
    %2950 = vmatprep.subr.mxu0 0.0
    %2951 = vmatpush1.msra.mxu0 0.0
    %2952 = vmatprep.subr.mxu0 0.0
    %2953 = vmatpush1.msra.mxu0 0.0
    %2954 = vmatprep.subr.mxu0 0.0
    %2955 = vmatpush1.msra.mxu0 0.0
    %2956 = vmatprep.subr.mxu0 0.0
    %2957 = vmatpush1.msra.mxu0 0.0
    %2958 = vmatprep.subr.mxu0 0.0
    %2959 = vmatpush1.msra.mxu0 0.0
    %2960 = vmatprep.subr.mxu0 0.0
    %2961 = vmatpush1.msra.mxu0 0.0
    %2962 = vmatprep.subr.mxu0 0.0
    %2963 = vmatpush1.msra.mxu0 0.0
    %2964 = vmatprep.subr.mxu0 0.0
    %2965 = vmatpush1.msra.mxu0 0.0
    %2966 = vmatprep.subr.mxu0 0.0
    %2967 = vmatpush1.msra.mxu0 0.0
    %2968 = vmatprep.subr.mxu0 0.0
    %2969 = vmatpush1.msra.mxu0 0.0
    %2970 = vmatprep.subr.mxu0 0.0
    %2971 = vmatpush1.msra.mxu0 0.0
    %2972 = vmatprep.subr.mxu0 0.0
    %2973 = vmatpush1.msra.mxu0 0.0
    %2974 = vmatprep.subr.mxu0 0.0
    %2975 = vmatpush1.msra.mxu0 0.0
    %2976 = vmatprep.subr.mxu0 0.0
    %2977 = vmatpush1.msra.mxu0 0.0
    %2978 = vmatprep.subr.mxu0 0.0
    %2979 = vmatpush1.msra.mxu0 0.0
    %2980 = vmatprep.subr.mxu0 0.0
    %2981 = vmatpush1.msra.mxu0 0.0
    %2982 = vmatprep.subr.mxu0 0.0
    %2983 = vmatpush1.msra.mxu0 0.0
    %2984 = vmatprep.subr.mxu0 0.0
    %2985 = vmatpush1.msra.mxu0 0.0
    %2986 = vmatprep.subr.mxu0 0.0
    %2987 = vmatpush1.msra.mxu0 0.0
    %2988 = vmatprep.subr.mxu0 0.0
    %2989 = vmatpush1.msra.mxu0 0.0
    %2990 = vmatprep.mubr.f32.mxu0 0.0
    %2991 = vmatmul.mubr.f32.gmra.mrb[0].mxu0 %v2924
    %v2992 = vpop.f32.mrb[0].mxu0
    %v2993 = vadd.f32 %v2165, %v2992
    %v2994 = vpop.f32.mrb[0].mxu0
    %v2995 = vadd.f32 %v2169, %v2994
    %2996 = vdwg.mxu0
    %2997 = vrot.lane.b32.xlu0 %v2154, 40
    %v2998 = vpop.permute.xlu0 %2997
    %v2999 = vsel %vm2172, %v2998, 0
    %3001 = vmatprep.subr.mxu0 %v2159
    %3002 = vmatpush1.msra.mxu0 %v2158
    %3003 = vmatprep.subr.mxu0 0.0
    %3004 = vmatpush1.msra.mxu0 0.0
    %3005 = vmatprep.subr.mxu0 0.0
    %3006 = vmatpush1.msra.mxu0 0.0
    %3007 = vmatprep.subr.mxu0 0.0
    %3008 = vmatpush1.msra.mxu0 0.0
    %3009 = vmatprep.subr.mxu0 0.0
    %3010 = vmatpush1.msra.mxu0 0.0
    %3011 = vmatprep.subr.mxu0 0.0
    %3012 = vmatpush1.msra.mxu0 0.0
    %3013 = vmatprep.subr.mxu0 0.0
    %3014 = vmatpush1.msra.mxu0 0.0
    %3015 = vmatprep.subr.mxu0 0.0
    %3016 = vmatpush1.msra.mxu0 0.0
    %3017 = vmatprep.subr.mxu0 0.0
    %3018 = vmatpush1.msra.mxu0 0.0
    %3019 = vmatprep.subr.mxu0 0.0
    %3020 = vmatpush1.msra.mxu0 0.0
    %3021 = vmatprep.subr.mxu0 0.0
    %3022 = vmatpush1.msra.mxu0 0.0
    %3023 = vmatprep.subr.mxu0 0.0
    %3024 = vmatpush1.msra.mxu0 0.0
    %3025 = vmatprep.subr.mxu0 0.0
    %3026 = vmatpush1.msra.mxu0 0.0
    %3027 = vmatprep.subr.mxu0 0.0
    %3028 = vmatpush1.msra.mxu0 0.0
    %3029 = vmatprep.subr.mxu0 0.0
    %3030 = vmatpush1.msra.mxu0 0.0
    %3031 = vmatprep.subr.mxu0 0.0
    %3032 = vmatpush1.msra.mxu0 0.0
    %3033 = vmatprep.subr.mxu0 0.0
    %3034 = vmatpush1.msra.mxu0 0.0
    %3035 = vmatprep.subr.mxu0 0.0
    %3036 = vmatpush1.msra.mxu0 0.0
    %3037 = vmatprep.subr.mxu0 0.0
    %3038 = vmatpush1.msra.mxu0 0.0
    %3039 = vmatprep.subr.mxu0 0.0
    %3040 = vmatpush1.msra.mxu0 0.0
    %3041 = vmatprep.subr.mxu0 0.0
    %3042 = vmatpush1.msra.mxu0 0.0
    %3043 = vmatprep.subr.mxu0 0.0
    %3044 = vmatpush1.msra.mxu0 0.0
    %3045 = vmatprep.subr.mxu0 0.0
    %3046 = vmatpush1.msra.mxu0 0.0
    %3047 = vmatprep.subr.mxu0 0.0
    %3048 = vmatpush1.msra.mxu0 0.0
    %3049 = vmatprep.subr.mxu0 0.0
    %3050 = vmatpush1.msra.mxu0 0.0
    %3051 = vmatprep.subr.mxu0 0.0
    %3052 = vmatpush1.msra.mxu0 0.0
    %3053 = vmatprep.subr.mxu0 0.0
    %3054 = vmatpush1.msra.mxu0 0.0
    %3055 = vmatprep.subr.mxu0 0.0
    %3056 = vmatpush1.msra.mxu0 0.0
    %3057 = vmatprep.subr.mxu0 0.0
    %3058 = vmatpush1.msra.mxu0 0.0
    %3059 = vmatprep.subr.mxu0 0.0
    %3060 = vmatpush1.msra.mxu0 0.0
    %3061 = vmatprep.subr.mxu0 0.0
    %3062 = vmatpush1.msra.mxu0 0.0
    %3063 = vmatprep.subr.mxu0 0.0
    %3064 = vmatpush1.msra.mxu0 0.0
    %3065 = vmatprep.mubr.f32.mxu0 0.0
    %3066 = vmatmul.mubr.f32.gmra.mrb[0].mxu0 %v2999
    %v3067 = vpop.f32.mrb[0].mxu0
    %v3068 = vadd.f32 %v2165, %v3067
    %v3069 = vpop.f32.mrb[0].mxu0
    %v3070 = vadd.f32 %v2169, %v3069
    %3071 = vdwg.mxu0
    %3072 = vrot.lane.b32.xlu0 %v2154, 32
    %v3073 = vpop.permute.xlu0 %3072
    %v3074 = vsel %vm2172, %v3073, 0
    %3076 = vmatprep.subr.mxu0 %v2159
    %3077 = vmatpush1.msra.mxu0 %v2158
    %3078 = vmatprep.subr.mxu0 0.0
    %3079 = vmatpush1.msra.mxu0 0.0
    %3080 = vmatprep.subr.mxu0 0.0
    %3081 = vmatpush1.msra.mxu0 0.0
    %3082 = vmatprep.subr.mxu0 0.0
    %3083 = vmatpush1.msra.mxu0 0.0
    %3084 = vmatprep.subr.mxu0 0.0
    %3085 = vmatpush1.msra.mxu0 0.0
    %3086 = vmatprep.subr.mxu0 0.0
    %3087 = vmatpush1.msra.mxu0 0.0
    %3088 = vmatprep.subr.mxu0 0.0
    %3089 = vmatpush1.msra.mxu0 0.0
    %3090 = vmatprep.subr.mxu0 0.0
    %3091 = vmatpush1.msra.mxu0 0.0
    %3092 = vmatprep.subr.mxu0 0.0
    %3093 = vmatpush1.msra.mxu0 0.0
    %3094 = vmatprep.subr.mxu0 0.0
    %3095 = vmatpush1.msra.mxu0 0.0
    %3096 = vmatprep.subr.mxu0 0.0
    %3097 = vmatpush1.msra.mxu0 0.0
    %3098 = vmatprep.subr.mxu0 0.0
    %3099 = vmatpush1.msra.mxu0 0.0
    %3100 = vmatprep.subr.mxu0 0.0
    %3101 = vmatpush1.msra.mxu0 0.0
    %3102 = vmatprep.subr.mxu0 0.0
    %3103 = vmatpush1.msra.mxu0 0.0
    %3104 = vmatprep.subr.mxu0 0.0
    %3105 = vmatpush1.msra.mxu0 0.0
    %3106 = vmatprep.subr.mxu0 0.0
    %3107 = vmatpush1.msra.mxu0 0.0
    %3108 = vmatprep.subr.mxu0 0.0
    %3109 = vmatpush1.msra.mxu0 0.0
    %3110 = vmatprep.subr.mxu0 0.0
    %3111 = vmatpush1.msra.mxu0 0.0
    %3112 = vmatprep.subr.mxu0 0.0
    %3113 = vmatpush1.msra.mxu0 0.0
    %3114 = vmatprep.subr.mxu0 0.0
    %3115 = vmatpush1.msra.mxu0 0.0
    %3116 = vmatprep.subr.mxu0 0.0
    %3117 = vmatpush1.msra.mxu0 0.0
    %3118 = vmatprep.subr.mxu0 0.0
    %3119 = vmatpush1.msra.mxu0 0.0
    %3120 = vmatprep.subr.mxu0 0.0
    %3121 = vmatpush1.msra.mxu0 0.0
    %3122 = vmatprep.subr.mxu0 0.0
    %3123 = vmatpush1.msra.mxu0 0.0
    %3124 = vmatprep.subr.mxu0 0.0
    %3125 = vmatpush1.msra.mxu0 0.0
    %3126 = vmatprep.subr.mxu0 0.0
    %3127 = vmatpush1.msra.mxu0 0.0
    %3128 = vmatprep.subr.mxu0 0.0
    %3129 = vmatpush1.msra.mxu0 0.0
    %3130 = vmatprep.subr.mxu0 0.0
    %3131 = vmatpush1.msra.mxu0 0.0
    %3132 = vmatprep.subr.mxu0 0.0
    %3133 = vmatpush1.msra.mxu0 0.0
    %3134 = vmatprep.subr.mxu0 0.0
    %3135 = vmatpush1.msra.mxu0 0.0
    %3136 = vmatprep.subr.mxu0 0.0
    %3137 = vmatpush1.msra.mxu0 0.0
    %3138 = vmatprep.subr.mxu0 0.0
    %3139 = vmatpush1.msra.mxu0 0.0
    %3140 = vmatprep.mubr.f32.mxu0 0.0
    %3141 = vmatmul.mubr.f32.gmra.mrb[0].mxu0 %v3074
    %v3142 = vpop.f32.mrb[0].mxu0
    %v3143 = vadd.f32 %v2165, %v3142
    %v3144 = vpop.f32.mrb[0].mxu0
    %v3145 = vadd.f32 %v2169, %v3144
    %3146 = vdwg.mxu0
    %3147 = vrot.lane.b32.xlu0 %v2154, 24
    %v3148 = vpop.permute.xlu0 %3147
    %v3149 = vsel %vm2172, %v3148, 0
    %3151 = vmatprep.subr.mxu0 %v2159
    %3152 = vmatpush1.msra.mxu0 %v2158
    %3153 = vmatprep.subr.mxu0 0.0
    %3154 = vmatpush1.msra.mxu0 0.0
    %3155 = vmatprep.subr.mxu0 0.0
    %3156 = vmatpush1.msra.mxu0 0.0
    %3157 = vmatprep.subr.mxu0 0.0
    %3158 = vmatpush1.msra.mxu0 0.0
    %3159 = vmatprep.subr.mxu0 0.0
    %3160 = vmatpush1.msra.mxu0 0.0
    %3161 = vmatprep.subr.mxu0 0.0
    %3162 = vmatpush1.msra.mxu0 0.0
    %3163 = vmatprep.subr.mxu0 0.0
    %3164 = vmatpush1.msra.mxu0 0.0
    %3165 = vmatprep.subr.mxu0 0.0
    %3166 = vmatpush1.msra.mxu0 0.0
    %3167 = vmatprep.subr.mxu0 0.0
    %3168 = vmatpush1.msra.mxu0 0.0
    %3169 = vmatprep.subr.mxu0 0.0
    %3170 = vmatpush1.msra.mxu0 0.0
    %3171 = vmatprep.subr.mxu0 0.0
    %3172 = vmatpush1.msra.mxu0 0.0
    %3173 = vmatprep.subr.mxu0 0.0
    %3174 = vmatpush1.msra.mxu0 0.0
    %3175 = vmatprep.subr.mxu0 0.0
    %3176 = vmatpush1.msra.mxu0 0.0
    %3177 = vmatprep.subr.mxu0 0.0
    %3178 = vmatpush1.msra.mxu0 0.0
    %3179 = vmatprep.subr.mxu0 0.0
    %3180 = vmatpush1.msra.mxu0 0.0
    %3181 = vmatprep.subr.mxu0 0.0
    %3182 = vmatpush1.msra.mxu0 0.0
    %3183 = vmatprep.subr.mxu0 0.0
    %3184 = vmatpush1.msra.mxu0 0.0
    %3185 = vmatprep.subr.mxu0 0.0
    %3186 = vmatpush1.msra.mxu0 0.0
    %3187 = vmatprep.subr.mxu0 0.0
    %3188 = vmatpush1.msra.mxu0 0.0
    %3189 = vmatprep.subr.mxu0 0.0
    %3190 = vmatpush1.msra.mxu0 0.0
    %3191 = vmatprep.subr.mxu0 0.0
    %3192 = vmatpush1.msra.mxu0 0.0
    %3193 = vmatprep.subr.mxu0 0.0
    %3194 = vmatpush1.msra.mxu0 0.0
    %3195 = vmatprep.subr.mxu0 0.0
    %3196 = vmatpush1.msra.mxu0 0.0
    %3197 = vmatprep.subr.mxu0 0.0
    %3198 = vmatpush1.msra.mxu0 0.0
    %3199 = vmatprep.subr.mxu0 0.0
    %3200 = vmatpush1.msra.mxu0 0.0
    %3201 = vmatprep.subr.mxu0 0.0
    %3202 = vmatpush1.msra.mxu0 0.0
    %3203 = vmatprep.subr.mxu0 0.0
    %3204 = vmatpush1.msra.mxu0 0.0
    %3205 = vmatprep.subr.mxu0 0.0
    %3206 = vmatpush1.msra.mxu0 0.0
    %3207 = vmatprep.subr.mxu0 0.0
    %3208 = vmatpush1.msra.mxu0 0.0
    %3209 = vmatprep.subr.mxu0 0.0
    %3210 = vmatpush1.msra.mxu0 0.0
    %3211 = vmatprep.subr.mxu0 0.0
    %3212 = vmatpush1.msra.mxu0 0.0
    %3213 = vmatprep.subr.mxu0 0.0
    %3214 = vmatpush1.msra.mxu0 0.0
    %3215 = vmatprep.mubr.f32.mxu0 0.0
    %3216 = vmatmul.mubr.f32.gmra.mrb[0].mxu0 %v3149
    %v3217 = vpop.f32.mrb[0].mxu0
    %v3218 = vadd.f32 %v2165, %v3217
    %v3219 = vpop.f32.mrb[0].mxu0
    %v3220 = vadd.f32 %v2169, %v3219
    %3221 = vdwg.mxu0
    %3222 = vrot.lane.b32.xlu0 %v2154, 16
    %v3223 = vpop.permute.xlu0 %3222
    %v3224 = vsel %vm2172, %v3223, 0
    %3226 = vmatprep.subr.mxu0 %v2159
    %3227 = vmatpush1.msra.mxu0 %v2158
    %3228 = vmatprep.subr.mxu0 0.0
    %3229 = vmatpush1.msra.mxu0 0.0
    %3230 = vmatprep.subr.mxu0 0.0
    %3231 = vmatpush1.msra.mxu0 0.0
    %3232 = vmatprep.subr.mxu0 0.0
    %3233 = vmatpush1.msra.mxu0 0.0
    %3234 = vmatprep.subr.mxu0 0.0
    %3235 = vmatpush1.msra.mxu0 0.0
    %3236 = vmatprep.subr.mxu0 0.0
    %3237 = vmatpush1.msra.mxu0 0.0
    %3238 = vmatprep.subr.mxu0 0.0
    %3239 = vmatpush1.msra.mxu0 0.0
    %3240 = vmatprep.subr.mxu0 0.0
    %3241 = vmatpush1.msra.mxu0 0.0
    %3242 = vmatprep.subr.mxu0 0.0
    %3243 = vmatpush1.msra.mxu0 0.0
    %3244 = vmatprep.subr.mxu0 0.0
    %3245 = vmatpush1.msra.mxu0 0.0
    %3246 = vmatprep.subr.mxu0 0.0
    %3247 = vmatpush1.msra.mxu0 0.0
    %3248 = vmatprep.subr.mxu0 0.0
    %3249 = vmatpush1.msra.mxu0 0.0
    %3250 = vmatprep.subr.mxu0 0.0
    %3251 = vmatpush1.msra.mxu0 0.0
    %3252 = vmatprep.subr.mxu0 0.0
    %3253 = vmatpush1.msra.mxu0 0.0
    %3254 = vmatprep.subr.mxu0 0.0
    %3255 = vmatpush1.msra.mxu0 0.0
    %3256 = vmatprep.subr.mxu0 0.0
    %3257 = vmatpush1.msra.mxu0 0.0
    %3258 = vmatprep.subr.mxu0 0.0
    %3259 = vmatpush1.msra.mxu0 0.0
    %3260 = vmatprep.subr.mxu0 0.0
    %3261 = vmatpush1.msra.mxu0 0.0
    %3262 = vmatprep.subr.mxu0 0.0
    %3263 = vmatpush1.msra.mxu0 0.0
    %3264 = vmatprep.subr.mxu0 0.0
    %3265 = vmatpush1.msra.mxu0 0.0
    %3266 = vmatprep.subr.mxu0 0.0
    %3267 = vmatpush1.msra.mxu0 0.0
    %3268 = vmatprep.subr.mxu0 0.0
    %3269 = vmatpush1.msra.mxu0 0.0
    %3270 = vmatprep.subr.mxu0 0.0
    %3271 = vmatpush1.msra.mxu0 0.0
    %3272 = vmatprep.subr.mxu0 0.0
    %3273 = vmatpush1.msra.mxu0 0.0
    %3274 = vmatprep.subr.mxu0 0.0
    %3275 = vmatpush1.msra.mxu0 0.0
    %3276 = vmatprep.subr.mxu0 0.0
    %3277 = vmatpush1.msra.mxu0 0.0
    %3278 = vmatprep.subr.mxu0 0.0
    %3279 = vmatpush1.msra.mxu0 0.0
    %3280 = vmatprep.subr.mxu0 0.0
    %3281 = vmatpush1.msra.mxu0 0.0
    %3282 = vmatprep.subr.mxu0 0.0
    %3283 = vmatpush1.msra.mxu0 0.0
    %3284 = vmatprep.subr.mxu0 0.0
    %3285 = vmatpush1.msra.mxu0 0.0
    %3286 = vmatprep.subr.mxu0 0.0
    %3287 = vmatpush1.msra.mxu0 0.0
    %3288 = vmatprep.subr.mxu0 0.0
    %3289 = vmatpush1.msra.mxu0 0.0
    %3290 = vmatprep.mubr.f32.mxu0 0.0
    %3291 = vmatmul.mubr.f32.gmra.mrb[0].mxu0 %v3224
    %v3292 = vpop.f32.mrb[0].mxu0
    %v3293 = vadd.f32 %v2165, %v3292
    %v3294 = vpop.f32.mrb[0].mxu0
    %v3295 = vadd.f32 %v2169, %v3294
    %3296 = vdwg.mxu0
    %3297 = vrot.lane.b32.xlu0 %v2154, 8
    %v3298 = vpop.permute.xlu0 %3297
    %v3299 = vsel %vm2172, %v3298, 0
    %3301 = vmatprep.subr.mxu0 %v2159
    %3302 = vmatpush1.msra.mxu0 %v2158
    %3303 = vmatprep.subr.mxu0 0.0
    %3304 = vmatpush1.msra.mxu0 0.0
    %3305 = vmatprep.subr.mxu0 0.0
    %3306 = vmatpush1.msra.mxu0 0.0
    %3307 = vmatprep.subr.mxu0 0.0
    %3308 = vmatpush1.msra.mxu0 0.0
    %3309 = vmatprep.subr.mxu0 0.0
    %3310 = vmatpush1.msra.mxu0 0.0
    %3311 = vmatprep.subr.mxu0 0.0
    %3312 = vmatpush1.msra.mxu0 0.0
    %3313 = vmatprep.subr.mxu0 0.0
    %3314 = vmatpush1.msra.mxu0 0.0
    %3315 = vmatprep.subr.mxu0 0.0
    %3316 = vmatpush1.msra.mxu0 0.0
    %3317 = vmatprep.subr.mxu0 0.0
    %3318 = vmatpush1.msra.mxu0 0.0
    %3319 = vmatprep.subr.mxu0 0.0
    %3320 = vmatpush1.msra.mxu0 0.0
    %3321 = vmatprep.subr.mxu0 0.0
    %3322 = vmatpush1.msra.mxu0 0.0
    %3323 = vmatprep.subr.mxu0 0.0
    %3324 = vmatpush1.msra.mxu0 0.0
    %3325 = vmatprep.subr.mxu0 0.0
    %3326 = vmatpush1.msra.mxu0 0.0
    %3327 = vmatprep.subr.mxu0 0.0
    %3328 = vmatpush1.msra.mxu0 0.0
    %3329 = vmatprep.subr.mxu0 0.0
    %3330 = vmatpush1.msra.mxu0 0.0
    %3331 = vmatprep.subr.mxu0 0.0
    %3332 = vmatpush1.msra.mxu0 0.0
    %3333 = vmatprep.subr.mxu0 0.0
    %3334 = vmatpush1.msra.mxu0 0.0
    %3335 = vmatprep.subr.mxu0 0.0
    %3336 = vmatpush1.msra.mxu0 0.0
    %3337 = vmatprep.subr.mxu0 0.0
    %3338 = vmatpush1.msra.mxu0 0.0
    %3339 = vmatprep.subr.mxu0 0.0
    %3340 = vmatpush1.msra.mxu0 0.0
    %3341 = vmatprep.subr.mxu0 0.0
    %3342 = vmatpush1.msra.mxu0 0.0
    %3343 = vmatprep.subr.mxu0 0.0
    %3344 = vmatpush1.msra.mxu0 0.0
    %3345 = vmatprep.subr.mxu0 0.0
    %3346 = vmatpush1.msra.mxu0 0.0
    %3347 = vmatprep.subr.mxu0 0.0
    %3348 = vmatpush1.msra.mxu0 0.0
    %3349 = vmatprep.subr.mxu0 0.0
    %3350 = vmatpush1.msra.mxu0 0.0
    %3351 = vmatprep.subr.mxu0 0.0
    %3352 = vmatpush1.msra.mxu0 0.0
    %3353 = vmatprep.subr.mxu0 0.0
    %3354 = vmatpush1.msra.mxu0 0.0
    %3355 = vmatprep.subr.mxu0 0.0
    %3356 = vmatpush1.msra.mxu0 0.0
    %3357 = vmatprep.subr.mxu0 0.0
    %3358 = vmatpush1.msra.mxu0 0.0
    %3359 = vmatprep.subr.mxu0 0.0
    %3360 = vmatpush1.msra.mxu0 0.0
    %3361 = vmatprep.subr.mxu0 0.0
    %3362 = vmatpush1.msra.mxu0 0.0
    %3363 = vmatprep.subr.mxu0 0.0
    %3364 = vmatpush1.msra.mxu0 0.0
    %3365 = vmatprep.mubr.f32.mxu0 0.0
    %3366 = vmatmul.mubr.f32.gmra.mrb[0].mxu0 %v3299
    %v3367 = vpop.f32.mrb[0].mxu0
    %v3368 = vadd.f32 %v2165, %v3367
    %v3369 = vpop.f32.mrb[0].mxu0
    %v3370 = vadd.f32 %v2169, %v3369
    %3371 = vdwg.mxu0
    %v3373 = vsel %vm2172, %v2156, 0
    %3375 = vmatprep.subr.mxu0 %v2159
    %3376 = vmatpush1.msra.mxu0 %v2158
    %3377 = vmatprep.subr.mxu0 0.0
    %3378 = vmatpush1.msra.mxu0 0.0
    %3379 = vmatprep.subr.mxu0 0.0
    %3380 = vmatpush1.msra.mxu0 0.0
    %3381 = vmatprep.subr.mxu0 0.0
    %3382 = vmatpush1.msra.mxu0 0.0
    %3383 = vmatprep.subr.mxu0 0.0
    %3384 = vmatpush1.msra.mxu0 0.0
    %3385 = vmatprep.subr.mxu0 0.0
    %3386 = vmatpush1.msra.mxu0 0.0
    %3387 = vmatprep.subr.mxu0 0.0
    %3388 = vmatpush1.msra.mxu0 0.0
    %3389 = vmatprep.subr.mxu0 0.0
    %3390 = vmatpush1.msra.mxu0 0.0
    %3391 = vmatprep.subr.mxu0 0.0
    %3392 = vmatpush1.msra.mxu0 0.0
    %3393 = vmatprep.subr.mxu0 0.0
    %3394 = vmatpush1.msra.mxu0 0.0
    %3395 = vmatprep.subr.mxu0 0.0
    %3396 = vmatpush1.msra.mxu0 0.0
    %3397 = vmatprep.subr.mxu0 0.0
    %3398 = vmatpush1.msra.mxu0 0.0
    %3399 = vmatprep.subr.mxu0 0.0
    %3400 = vmatpush1.msra.mxu0 0.0
    %3401 = vmatprep.subr.mxu0 0.0
    %3402 = vmatpush1.msra.mxu0 0.0
    %3403 = vmatprep.subr.mxu0 0.0
    %3404 = vmatpush1.msra.mxu0 0.0
    %3405 = vmatprep.subr.mxu0 0.0
    %3406 = vmatpush1.msra.mxu0 0.0
    %3407 = vmatprep.subr.mxu0 0.0
    %3408 = vmatpush1.msra.mxu0 0.0
    %3409 = vmatprep.subr.mxu0 0.0
    %3410 = vmatpush1.msra.mxu0 0.0
    %3411 = vmatprep.subr.mxu0 0.0
    %3412 = vmatpush1.msra.mxu0 0.0
    %3413 = vmatprep.subr.mxu0 0.0
    %3414 = vmatpush1.msra.mxu0 0.0
    %3415 = vmatprep.subr.mxu0 0.0
    %3416 = vmatpush1.msra.mxu0 0.0
    %3417 = vmatprep.subr.mxu0 0.0
    %3418 = vmatpush1.msra.mxu0 0.0
    %3419 = vmatprep.subr.mxu0 0.0
    %3420 = vmatpush1.msra.mxu0 0.0
    %3421 = vmatprep.subr.mxu0 0.0
    %3422 = vmatpush1.msra.mxu0 0.0
    %3423 = vmatprep.subr.mxu0 0.0
    %3424 = vmatpush1.msra.mxu0 0.0
    %3425 = vmatprep.subr.mxu0 0.0
    %3426 = vmatpush1.msra.mxu0 0.0
    %3427 = vmatprep.subr.mxu0 0.0
    %3428 = vmatpush1.msra.mxu0 0.0
    %3429 = vmatprep.subr.mxu0 0.0
    %3430 = vmatpush1.msra.mxu0 0.0
    %3431 = vmatprep.subr.mxu0 0.0
    %3432 = vmatpush1.msra.mxu0 0.0
    %3433 = vmatprep.subr.mxu0 0.0
    %3434 = vmatpush1.msra.mxu0 0.0
    %3435 = vmatprep.subr.mxu0 0.0
    %3436 = vmatpush1.msra.mxu0 0.0
    %3437 = vmatprep.subr.mxu0 0.0
    %3438 = vmatpush1.msra.mxu0 0.0
    %3439 = vmatprep.mubr.f32.mxu0 0.0
    %3440 = vmatmul.mubr.f32.gmra.mrb[0].mxu0 %v3373
    %v3441 = vpop.f32.mrb[0].mxu0
    %v3442 = vadd.f32 %v2165, %v3441
    %v3443 = vpop.f32.mrb[0].mxu0
    %v3444 = vadd.f32 %v2169, %v3443
    %3445 = vdwg.mxu0
    %3446 = vrot.lane.b32.xlu0 %v2156, 120
    %v3447 = vpop.permute.xlu0 %3446
    %v3448 = vsel %vm2172, %v3447, 0
    %3450 = vmatprep.subr.mxu0 %v2159
    %3451 = vmatpush1.msra.mxu0 %v2158
    %3452 = vmatprep.subr.mxu0 0.0
    %3453 = vmatpush1.msra.mxu0 0.0
    %3454 = vmatprep.subr.mxu0 0.0
    %3455 = vmatpush1.msra.mxu0 0.0
    %3456 = vmatprep.subr.mxu0 0.0
    %3457 = vmatpush1.msra.mxu0 0.0
    %3458 = vmatprep.subr.mxu0 0.0
    %3459 = vmatpush1.msra.mxu0 0.0
    %3460 = vmatprep.subr.mxu0 0.0
    %3461 = vmatpush1.msra.mxu0 0.0
    %3462 = vmatprep.subr.mxu0 0.0
    %3463 = vmatpush1.msra.mxu0 0.0
    %3464 = vmatprep.subr.mxu0 0.0
    %3465 = vmatpush1.msra.mxu0 0.0
    %3466 = vmatprep.subr.mxu0 0.0
    %3467 = vmatpush1.msra.mxu0 0.0
    %3468 = vmatprep.subr.mxu0 0.0
    %3469 = vmatpush1.msra.mxu0 0.0
    %3470 = vmatprep.subr.mxu0 0.0
    %3471 = vmatpush1.msra.mxu0 0.0
    %3472 = vmatprep.subr.mxu0 0.0
    %3473 = vmatpush1.msra.mxu0 0.0
    %3474 = vmatprep.subr.mxu0 0.0
    %3475 = vmatpush1.msra.mxu0 0.0
    %3476 = vmatprep.subr.mxu0 0.0
    %3477 = vmatpush1.msra.mxu0 0.0
    %3478 = vmatprep.subr.mxu0 0.0
    %3479 = vmatpush1.msra.mxu0 0.0
    %3480 = vmatprep.subr.mxu0 0.0
    %3481 = vmatpush1.msra.mxu0 0.0
    %3482 = vmatprep.subr.mxu0 0.0
    %3483 = vmatpush1.msra.mxu0 0.0
    %3484 = vmatprep.subr.mxu0 0.0
    %3485 = vmatpush1.msra.mxu0 0.0
    %3486 = vmatprep.subr.mxu0 0.0
    %3487 = vmatpush1.msra.mxu0 0.0
    %3488 = vmatprep.subr.mxu0 0.0
    %3489 = vmatpush1.msra.mxu0 0.0
    %3490 = vmatprep.subr.mxu0 0.0
    %3491 = vmatpush1.msra.mxu0 0.0
    %3492 = vmatprep.subr.mxu0 0.0
    %3493 = vmatpush1.msra.mxu0 0.0
    %3494 = vmatprep.subr.mxu0 0.0
    %3495 = vmatpush1.msra.mxu0 0.0
    %3496 = vmatprep.subr.mxu0 0.0
    %3497 = vmatpush1.msra.mxu0 0.0
    %3498 = vmatprep.subr.mxu0 0.0
    %3499 = vmatpush1.msra.mxu0 0.0
    %3500 = vmatprep.subr.mxu0 0.0
    %3501 = vmatpush1.msra.mxu0 0.0
    %3502 = vmatprep.subr.mxu0 0.0
    %3503 = vmatpush1.msra.mxu0 0.0
    %3504 = vmatprep.subr.mxu0 0.0
    %3505 = vmatpush1.msra.mxu0 0.0
    %3506 = vmatprep.subr.mxu0 0.0
    %3507 = vmatpush1.msra.mxu0 0.0
    %3508 = vmatprep.subr.mxu0 0.0
    %3509 = vmatpush1.msra.mxu0 0.0
    %3510 = vmatprep.subr.mxu0 0.0
    %3511 = vmatpush1.msra.mxu0 0.0
    %3512 = vmatprep.subr.mxu0 0.0
    %3513 = vmatpush1.msra.mxu0 0.0
    %3514 = vmatprep.mubr.f32.mxu0 0.0
    %3515 = vmatmul.mubr.f32.gmra.mrb[0].mxu0 %v3448
    %v3516 = vpop.f32.mrb[0].mxu0
    %v3517 = vadd.f32 %v2165, %v3516
    %v3518 = vpop.f32.mrb[0].mxu0
    %v3519 = vadd.f32 %v2169, %v3518
    %3520 = vdwg.mxu0
    %3521 = vrot.lane.b32.xlu0 %v2156, 112
    %v3522 = vpop.permute.xlu0 %3521
    %v3523 = vsel %vm2172, %v3522, 0
    %3525 = vmatprep.subr.mxu0 %v2159
    %3526 = vmatpush1.msra.mxu0 %v2158
    %3527 = vmatprep.subr.mxu0 0.0
    %3528 = vmatpush1.msra.mxu0 0.0
    %3529 = vmatprep.subr.mxu0 0.0
    %3530 = vmatpush1.msra.mxu0 0.0
    %3531 = vmatprep.subr.mxu0 0.0
    %3532 = vmatpush1.msra.mxu0 0.0
    %3533 = vmatprep.subr.mxu0 0.0
    %3534 = vmatpush1.msra.mxu0 0.0
    %3535 = vmatprep.subr.mxu0 0.0
    %3536 = vmatpush1.msra.mxu0 0.0
    %3537 = vmatprep.subr.mxu0 0.0
    %3538 = vmatpush1.msra.mxu0 0.0
    %3539 = vmatprep.subr.mxu0 0.0
    %3540 = vmatpush1.msra.mxu0 0.0
    %3541 = vmatprep.subr.mxu0 0.0
    %3542 = vmatpush1.msra.mxu0 0.0
    %3543 = vmatprep.subr.mxu0 0.0
    %3544 = vmatpush1.msra.mxu0 0.0
    %3545 = vmatprep.subr.mxu0 0.0
    %3546 = vmatpush1.msra.mxu0 0.0
    %3547 = vmatprep.subr.mxu0 0.0
    %3548 = vmatpush1.msra.mxu0 0.0
    %3549 = vmatprep.subr.mxu0 0.0
    %3550 = vmatpush1.msra.mxu0 0.0
    %3551 = vmatprep.subr.mxu0 0.0
    %3552 = vmatpush1.msra.mxu0 0.0
    %3553 = vmatprep.subr.mxu0 0.0
    %3554 = vmatpush1.msra.mxu0 0.0
    %3555 = vmatprep.subr.mxu0 0.0
    %3556 = vmatpush1.msra.mxu0 0.0
    %3557 = vmatprep.subr.mxu0 0.0
    %3558 = vmatpush1.msra.mxu0 0.0
    %3559 = vmatprep.subr.mxu0 0.0
    %3560 = vmatpush1.msra.mxu0 0.0
    %3561 = vmatprep.subr.mxu0 0.0
    %3562 = vmatpush1.msra.mxu0 0.0
    %3563 = vmatprep.subr.mxu0 0.0
    %3564 = vmatpush1.msra.mxu0 0.0
    %3565 = vmatprep.subr.mxu0 0.0
    %3566 = vmatpush1.msra.mxu0 0.0
    %3567 = vmatprep.subr.mxu0 0.0
    %3568 = vmatpush1.msra.mxu0 0.0
    %3569 = vmatprep.subr.mxu0 0.0
    %3570 = vmatpush1.msra.mxu0 0.0
    %3571 = vmatprep.subr.mxu0 0.0
    %3572 = vmatpush1.msra.mxu0 0.0
    %3573 = vmatprep.subr.mxu0 0.0
    %3574 = vmatpush1.msra.mxu0 0.0
    %3575 = vmatprep.subr.mxu0 0.0
    %3576 = vmatpush1.msra.mxu0 0.0
    %3577 = vmatprep.subr.mxu0 0.0
    %3578 = vmatpush1.msra.mxu0 0.0
    %3579 = vmatprep.subr.mxu0 0.0
    %3580 = vmatpush1.msra.mxu0 0.0
    %3581 = vmatprep.subr.mxu0 0.0
    %3582 = vmatpush1.msra.mxu0 0.0
    %3583 = vmatprep.subr.mxu0 0.0
    %3584 = vmatpush1.msra.mxu0 0.0
    %3585 = vmatprep.subr.mxu0 0.0
    %3586 = vmatpush1.msra.mxu0 0.0
    %3587 = vmatprep.subr.mxu0 0.0
    %3588 = vmatpush1.msra.mxu0 0.0
    %3589 = vmatprep.mubr.f32.mxu0 0.0
    %3590 = vmatmul.mubr.f32.gmra.mrb[0].mxu0 %v3523
    %v3591 = vpop.f32.mrb[0].mxu0
    %v3592 = vadd.f32 %v2165, %v3591
    %v3593 = vpop.f32.mrb[0].mxu0
    %v3594 = vadd.f32 %v2169, %v3593
    %3595 = vdwg.mxu0
    %3596 = vrot.lane.b32.xlu0 %v2156, 104
    %v3597 = vpop.permute.xlu0 %3596
    %v3598 = vsel %vm2172, %v3597, 0
    %3600 = vmatprep.subr.mxu0 %v2159
    %3601 = vmatpush1.msra.mxu0 %v2158
    %3602 = vmatprep.subr.mxu0 0.0
    %3603 = vmatpush1.msra.mxu0 0.0
    %3604 = vmatprep.subr.mxu0 0.0
    %3605 = vmatpush1.msra.mxu0 0.0
    %3606 = vmatprep.subr.mxu0 0.0
    %3607 = vmatpush1.msra.mxu0 0.0
    %3608 = vmatprep.subr.mxu0 0.0
    %3609 = vmatpush1.msra.mxu0 0.0
    %3610 = vmatprep.subr.mxu0 0.0
    %3611 = vmatpush1.msra.mxu0 0.0
    %3612 = vmatprep.subr.mxu0 0.0
    %3613 = vmatpush1.msra.mxu0 0.0
    %3614 = vmatprep.subr.mxu0 0.0
    %3615 = vmatpush1.msra.mxu0 0.0
    %3616 = vmatprep.subr.mxu0 0.0
    %3617 = vmatpush1.msra.mxu0 0.0
    %3618 = vmatprep.subr.mxu0 0.0
    %3619 = vmatpush1.msra.mxu0 0.0
    %3620 = vmatprep.subr.mxu0 0.0
    %3621 = vmatpush1.msra.mxu0 0.0
    %3622 = vmatprep.subr.mxu0 0.0
    %3623 = vmatpush1.msra.mxu0 0.0
    %3624 = vmatprep.subr.mxu0 0.0
    %3625 = vmatpush1.msra.mxu0 0.0
    %3626 = vmatprep.subr.mxu0 0.0
    %3627 = vmatpush1.msra.mxu0 0.0
    %3628 = vmatprep.subr.mxu0 0.0
    %3629 = vmatpush1.msra.mxu0 0.0
    %3630 = vmatprep.subr.mxu0 0.0
    %3631 = vmatpush1.msra.mxu0 0.0
    %3632 = vmatprep.subr.mxu0 0.0
    %3633 = vmatpush1.msra.mxu0 0.0
    %3634 = vmatprep.subr.mxu0 0.0
    %3635 = vmatpush1.msra.mxu0 0.0
    %3636 = vmatprep.subr.mxu0 0.0
    %3637 = vmatpush1.msra.mxu0 0.0
    %3638 = vmatprep.subr.mxu0 0.0
    %3639 = vmatpush1.msra.mxu0 0.0
    %3640 = vmatprep.subr.mxu0 0.0
    %3641 = vmatpush1.msra.mxu0 0.0
    %3642 = vmatprep.subr.mxu0 0.0
    %3643 = vmatpush1.msra.mxu0 0.0
    %3644 = vmatprep.subr.mxu0 0.0
    %3645 = vmatpush1.msra.mxu0 0.0
    %3646 = vmatprep.subr.mxu0 0.0
    %3647 = vmatpush1.msra.mxu0 0.0
    %3648 = vmatprep.subr.mxu0 0.0
    %3649 = vmatpush1.msra.mxu0 0.0
    %3650 = vmatprep.subr.mxu0 0.0
    %3651 = vmatpush1.msra.mxu0 0.0
    %3652 = vmatprep.subr.mxu0 0.0
    %3653 = vmatpush1.msra.mxu0 0.0
    %3654 = vmatprep.subr.mxu0 0.0
    %3655 = vmatpush1.msra.mxu0 0.0
    %3656 = vmatprep.subr.mxu0 0.0
    %3657 = vmatpush1.msra.mxu0 0.0
    %3658 = vmatprep.subr.mxu0 0.0
    %3659 = vmatpush1.msra.mxu0 0.0
    %3660 = vmatprep.subr.mxu0 0.0
    %3661 = vmatpush1.msra.mxu0 0.0
    %3662 = vmatprep.subr.mxu0 0.0
    %3663 = vmatpush1.msra.mxu0 0.0
    %3664 = vmatprep.mubr.f32.mxu0 0.0
    %3665 = vmatmul.mubr.f32.gmra.mrb[0].mxu0 %v3598
    %v3666 = vpop.f32.mrb[0].mxu0
    %v3667 = vadd.f32 %v2165, %v3666
    %v3668 = vpop.f32.mrb[0].mxu0
    %v3669 = vadd.f32 %v2169, %v3668
    %3670 = vdwg.mxu0
    %3671 = vrot.lane.b32.xlu0 %v2156, 96
    %v3672 = vpop.permute.xlu0 %3671
    %v3673 = vsel %vm2172, %v3672, 0
    %3675 = vmatprep.subr.mxu0 %v2159
    %3676 = vmatpush1.msra.mxu0 %v2158
    %3677 = vmatprep.subr.mxu0 0.0
    %3678 = vmatpush1.msra.mxu0 0.0
    %3679 = vmatprep.subr.mxu0 0.0
    %3680 = vmatpush1.msra.mxu0 0.0
    %3681 = vmatprep.subr.mxu0 0.0
    %3682 = vmatpush1.msra.mxu0 0.0
    %3683 = vmatprep.subr.mxu0 0.0
    %3684 = vmatpush1.msra.mxu0 0.0
    %3685 = vmatprep.subr.mxu0 0.0
    %3686 = vmatpush1.msra.mxu0 0.0
    %3687 = vmatprep.subr.mxu0 0.0
    %3688 = vmatpush1.msra.mxu0 0.0
    %3689 = vmatprep.subr.mxu0 0.0
    %3690 = vmatpush1.msra.mxu0 0.0
    %3691 = vmatprep.subr.mxu0 0.0
    %3692 = vmatpush1.msra.mxu0 0.0
    %3693 = vmatprep.subr.mxu0 0.0
    %3694 = vmatpush1.msra.mxu0 0.0
    %3695 = vmatprep.subr.mxu0 0.0
    %3696 = vmatpush1.msra.mxu0 0.0
    %3697 = vmatprep.subr.mxu0 0.0
    %3698 = vmatpush1.msra.mxu0 0.0
    %3699 = vmatprep.subr.mxu0 0.0
    %3700 = vmatpush1.msra.mxu0 0.0
    %3701 = vmatprep.subr.mxu0 0.0
    %3702 = vmatpush1.msra.mxu0 0.0
    %3703 = vmatprep.subr.mxu0 0.0
    %3704 = vmatpush1.msra.mxu0 0.0
    %3705 = vmatprep.subr.mxu0 0.0
    %3706 = vmatpush1.msra.mxu0 0.0
    %3707 = vmatprep.subr.mxu0 0.0
    %3708 = vmatpush1.msra.mxu0 0.0
    %3709 = vmatprep.subr.mxu0 0.0
    %3710 = vmatpush1.msra.mxu0 0.0
    %3711 = vmatprep.subr.mxu0 0.0
    %3712 = vmatpush1.msra.mxu0 0.0
    %3713 = vmatprep.subr.mxu0 0.0
    %3714 = vmatpush1.msra.mxu0 0.0
    %3715 = vmatprep.subr.mxu0 0.0
    %3716 = vmatpush1.msra.mxu0 0.0
    %3717 = vmatprep.subr.mxu0 0.0
    %3718 = vmatpush1.msra.mxu0 0.0
    %3719 = vmatprep.subr.mxu0 0.0
    %3720 = vmatpush1.msra.mxu0 0.0
    %3721 = vmatprep.subr.mxu0 0.0
    %3722 = vmatpush1.msra.mxu0 0.0
    %3723 = vmatprep.subr.mxu0 0.0
    %3724 = vmatpush1.msra.mxu0 0.0
    %3725 = vmatprep.subr.mxu0 0.0
    %3726 = vmatpush1.msra.mxu0 0.0
    %3727 = vmatprep.subr.mxu0 0.0
    %3728 = vmatpush1.msra.mxu0 0.0
    %3729 = vmatprep.subr.mxu0 0.0
    %3730 = vmatpush1.msra.mxu0 0.0
    %3731 = vmatprep.subr.mxu0 0.0
    %3732 = vmatpush1.msra.mxu0 0.0
    %3733 = vmatprep.subr.mxu0 0.0
    %3734 = vmatpush1.msra.mxu0 0.0
    %3735 = vmatprep.subr.mxu0 0.0
    %3736 = vmatpush1.msra.mxu0 0.0
    %3737 = vmatprep.subr.mxu0 0.0
    %3738 = vmatpush1.msra.mxu0 0.0
    %3739 = vmatprep.mubr.f32.mxu0 0.0
    %3740 = vmatmul.mubr.f32.gmra.mrb[0].mxu0 %v3673
    %v3741 = vpop.f32.mrb[0].mxu0
    %v3742 = vadd.f32 %v2165, %v3741
    %v3743 = vpop.f32.mrb[0].mxu0
    %v3744 = vadd.f32 %v2169, %v3743
    %3745 = vdwg.mxu0
    %3746 = vrot.lane.b32.xlu0 %v2156, 88
    %v3747 = vpop.permute.xlu0 %3746
    %v3748 = vsel %vm2172, %v3747, 0
    %3750 = vmatprep.subr.mxu0 %v2159
    %3751 = vmatpush1.msra.mxu0 %v2158
    %3752 = vmatprep.subr.mxu0 0.0
    %3753 = vmatpush1.msra.mxu0 0.0
    %3754 = vmatprep.subr.mxu0 0.0
    %3755 = vmatpush1.msra.mxu0 0.0
    %3756 = vmatprep.subr.mxu0 0.0
    %3757 = vmatpush1.msra.mxu0 0.0
    %3758 = vmatprep.subr.mxu0 0.0
    %3759 = vmatpush1.msra.mxu0 0.0
    %3760 = vmatprep.subr.mxu0 0.0
    %3761 = vmatpush1.msra.mxu0 0.0
    %3762 = vmatprep.subr.mxu0 0.0
    %3763 = vmatpush1.msra.mxu0 0.0
    %3764 = vmatprep.subr.mxu0 0.0
    %3765 = vmatpush1.msra.mxu0 0.0
    %3766 = vmatprep.subr.mxu0 0.0
    %3767 = vmatpush1.msra.mxu0 0.0
    %3768 = vmatprep.subr.mxu0 0.0
    %3769 = vmatpush1.msra.mxu0 0.0
    %3770 = vmatprep.subr.mxu0 0.0
    %3771 = vmatpush1.msra.mxu0 0.0
    %3772 = vmatprep.subr.mxu0 0.0
    %3773 = vmatpush1.msra.mxu0 0.0
    %3774 = vmatprep.subr.mxu0 0.0
    %3775 = vmatpush1.msra.mxu0 0.0
    %3776 = vmatprep.subr.mxu0 0.0
    %3777 = vmatpush1.msra.mxu0 0.0
    %3778 = vmatprep.subr.mxu0 0.0
    %3779 = vmatpush1.msra.mxu0 0.0
    %3780 = vmatprep.subr.mxu0 0.0
    %3781 = vmatpush1.msra.mxu0 0.0
    %3782 = vmatprep.subr.mxu0 0.0
    %3783 = vmatpush1.msra.mxu0 0.0
    %3784 = vmatprep.subr.mxu0 0.0
    %3785 = vmatpush1.msra.mxu0 0.0
    %3786 = vmatprep.subr.mxu0 0.0
    %3787 = vmatpush1.msra.mxu0 0.0
    %3788 = vmatprep.subr.mxu0 0.0
    %3789 = vmatpush1.msra.mxu0 0.0
    %3790 = vmatprep.subr.mxu0 0.0
    %3791 = vmatpush1.msra.mxu0 0.0
    %3792 = vmatprep.subr.mxu0 0.0
    %3793 = vmatpush1.msra.mxu0 0.0
    %3794 = vmatprep.subr.mxu0 0.0
    %3795 = vmatpush1.msra.mxu0 0.0
    %3796 = vmatprep.subr.mxu0 0.0
    %3797 = vmatpush1.msra.mxu0 0.0
    %3798 = vmatprep.subr.mxu0 0.0
    %3799 = vmatpush1.msra.mxu0 0.0
    %3800 = vmatprep.subr.mxu0 0.0
    %3801 = vmatpush1.msra.mxu0 0.0
    %3802 = vmatprep.subr.mxu0 0.0
    %3803 = vmatpush1.msra.mxu0 0.0
    %3804 = vmatprep.subr.mxu0 0.0
    %3805 = vmatpush1.msra.mxu0 0.0
    %3806 = vmatprep.subr.mxu0 0.0
    %3807 = vmatpush1.msra.mxu0 0.0
    %3808 = vmatprep.subr.mxu0 0.0
    %3809 = vmatpush1.msra.mxu0 0.0
    %3810 = vmatprep.subr.mxu0 0.0
    %3811 = vmatpush1.msra.mxu0 0.0
    %3812 = vmatprep.subr.mxu0 0.0
    %3813 = vmatpush1.msra.mxu0 0.0
    %3814 = vmatprep.mubr.f32.mxu0 0.0
    %3815 = vmatmul.mubr.f32.gmra.mrb[0].mxu0 %v3748
    %v3816 = vpop.f32.mrb[0].mxu0
    %v3817 = vadd.f32 %v2165, %v3816
    %v3818 = vpop.f32.mrb[0].mxu0
    %v3819 = vadd.f32 %v2169, %v3818
    %3820 = vdwg.mxu0
    %3821 = vrot.lane.b32.xlu0 %v2156, 80
    %v3822 = vpop.permute.xlu0 %3821
    %v3823 = vsel %vm2172, %v3822, 0
    %3825 = vmatprep.subr.mxu0 %v2159
    %3826 = vmatpush1.msra.mxu0 %v2158
    %3827 = vmatprep.subr.mxu0 0.0
    %3828 = vmatpush1.msra.mxu0 0.0
    %3829 = vmatprep.subr.mxu0 0.0
    %3830 = vmatpush1.msra.mxu0 0.0
    %3831 = vmatprep.subr.mxu0 0.0
    %3832 = vmatpush1.msra.mxu0 0.0
    %3833 = vmatprep.subr.mxu0 0.0
    %3834 = vmatpush1.msra.mxu0 0.0
    %3835 = vmatprep.subr.mxu0 0.0
    %3836 = vmatpush1.msra.mxu0 0.0
    %3837 = vmatprep.subr.mxu0 0.0
    %3838 = vmatpush1.msra.mxu0 0.0
    %3839 = vmatprep.subr.mxu0 0.0
    %3840 = vmatpush1.msra.mxu0 0.0
    %3841 = vmatprep.subr.mxu0 0.0
    %3842 = vmatpush1.msra.mxu0 0.0
    %3843 = vmatprep.subr.mxu0 0.0
    %3844 = vmatpush1.msra.mxu0 0.0
    %3845 = vmatprep.subr.mxu0 0.0
    %3846 = vmatpush1.msra.mxu0 0.0
    %3847 = vmatprep.subr.mxu0 0.0
    %3848 = vmatpush1.msra.mxu0 0.0
    %3849 = vmatprep.subr.mxu0 0.0
    %3850 = vmatpush1.msra.mxu0 0.0
    %3851 = vmatprep.subr.mxu0 0.0
    %3852 = vmatpush1.msra.mxu0 0.0
    %3853 = vmatprep.subr.mxu0 0.0
    %3854 = vmatpush1.msra.mxu0 0.0
    %3855 = vmatprep.subr.mxu0 0.0
    %3856 = vmatpush1.msra.mxu0 0.0
    %3857 = vmatprep.subr.mxu0 0.0
    %3858 = vmatpush1.msra.mxu0 0.0
    %3859 = vmatprep.subr.mxu0 0.0
    %3860 = vmatpush1.msra.mxu0 0.0
    %3861 = vmatprep.subr.mxu0 0.0
    %3862 = vmatpush1.msra.mxu0 0.0
    %3863 = vmatprep.subr.mxu0 0.0
    %3864 = vmatpush1.msra.mxu0 0.0
    %3865 = vmatprep.subr.mxu0 0.0
    %3866 = vmatpush1.msra.mxu0 0.0
    %3867 = vmatprep.subr.mxu0 0.0
    %3868 = vmatpush1.msra.mxu0 0.0
    %3869 = vmatprep.subr.mxu0 0.0
    %3870 = vmatpush1.msra.mxu0 0.0
    %3871 = vmatprep.subr.mxu0 0.0
    %3872 = vmatpush1.msra.mxu0 0.0
    %3873 = vmatprep.subr.mxu0 0.0
    %3874 = vmatpush1.msra.mxu0 0.0
    %3875 = vmatprep.subr.mxu0 0.0
    %3876 = vmatpush1.msra.mxu0 0.0
    %3877 = vmatprep.subr.mxu0 0.0
    %3878 = vmatpush1.msra.mxu0 0.0
    %3879 = vmatprep.subr.mxu0 0.0
    %3880 = vmatpush1.msra.mxu0 0.0
    %3881 = vmatprep.subr.mxu0 0.0
    %3882 = vmatpush1.msra.mxu0 0.0
    %3883 = vmatprep.subr.mxu0 0.0
    %3884 = vmatpush1.msra.mxu0 0.0
    %3885 = vmatprep.subr.mxu0 0.0
    %3886 = vmatpush1.msra.mxu0 0.0
    %3887 = vmatprep.subr.mxu0 0.0
    %3888 = vmatpush1.msra.mxu0 0.0
    %3889 = vmatprep.mubr.f32.mxu0 0.0
    %3890 = vmatmul.mubr.f32.gmra.mrb[0].mxu0 %v3823
    %v3891 = vpop.f32.mrb[0].mxu0
    %v3892 = vadd.f32 %v2165, %v3891
    %v3893 = vpop.f32.mrb[0].mxu0
    %v3894 = vadd.f32 %v2169, %v3893
    %3895 = vdwg.mxu0
    %3896 = vrot.lane.b32.xlu0 %v2156, 72
    %v3897 = vpop.permute.xlu0 %3896
    %v3898 = vsel %vm2172, %v3897, 0
    %3900 = vmatprep.subr.mxu0 %v2159
    %3901 = vmatpush1.msra.mxu0 %v2158
    %3902 = vmatprep.subr.mxu0 0.0
    %3903 = vmatpush1.msra.mxu0 0.0
    %3904 = vmatprep.subr.mxu0 0.0
    %3905 = vmatpush1.msra.mxu0 0.0
    %3906 = vmatprep.subr.mxu0 0.0
    %3907 = vmatpush1.msra.mxu0 0.0
    %3908 = vmatprep.subr.mxu0 0.0
    %3909 = vmatpush1.msra.mxu0 0.0
    %3910 = vmatprep.subr.mxu0 0.0
    %3911 = vmatpush1.msra.mxu0 0.0
    %3912 = vmatprep.subr.mxu0 0.0
    %3913 = vmatpush1.msra.mxu0 0.0
    %3914 = vmatprep.subr.mxu0 0.0
    %3915 = vmatpush1.msra.mxu0 0.0
    %3916 = vmatprep.subr.mxu0 0.0
    %3917 = vmatpush1.msra.mxu0 0.0
    %3918 = vmatprep.subr.mxu0 0.0
    %3919 = vmatpush1.msra.mxu0 0.0
    %3920 = vmatprep.subr.mxu0 0.0
    %3921 = vmatpush1.msra.mxu0 0.0
    %3922 = vmatprep.subr.mxu0 0.0
    %3923 = vmatpush1.msra.mxu0 0.0
    %3924 = vmatprep.subr.mxu0 0.0
    %3925 = vmatpush1.msra.mxu0 0.0
    %3926 = vmatprep.subr.mxu0 0.0
    %3927 = vmatpush1.msra.mxu0 0.0
    %3928 = vmatprep.subr.mxu0 0.0
    %3929 = vmatpush1.msra.mxu0 0.0
    %3930 = vmatprep.subr.mxu0 0.0
    %3931 = vmatpush1.msra.mxu0 0.0
    %3932 = vmatprep.subr.mxu0 0.0
    %3933 = vmatpush1.msra.mxu0 0.0
    %3934 = vmatprep.subr.mxu0 0.0
    %3935 = vmatpush1.msra.mxu0 0.0
    %3936 = vmatprep.subr.mxu0 0.0
    %3937 = vmatpush1.msra.mxu0 0.0
    %3938 = vmatprep.subr.mxu0 0.0
    %3939 = vmatpush1.msra.mxu0 0.0
    %3940 = vmatprep.subr.mxu0 0.0
    %3941 = vmatpush1.msra.mxu0 0.0
    %3942 = vmatprep.subr.mxu0 0.0
    %3943 = vmatpush1.msra.mxu0 0.0
    %3944 = vmatprep.subr.mxu0 0.0
    %3945 = vmatpush1.msra.mxu0 0.0
    %3946 = vmatprep.subr.mxu0 0.0
    %3947 = vmatpush1.msra.mxu0 0.0
    %3948 = vmatprep.subr.mxu0 0.0
    %3949 = vmatpush1.msra.mxu0 0.0
    %3950 = vmatprep.subr.mxu0 0.0
    %3951 = vmatpush1.msra.mxu0 0.0
    %3952 = vmatprep.subr.mxu0 0.0
    %3953 = vmatpush1.msra.mxu0 0.0
    %3954 = vmatprep.subr.mxu0 0.0
    %3955 = vmatpush1.msra.mxu0 0.0
    %3956 = vmatprep.subr.mxu0 0.0
    %3957 = vmatpush1.msra.mxu0 0.0
    %3958 = vmatprep.subr.mxu0 0.0
    %3959 = vmatpush1.msra.mxu0 0.0
    %3960 = vmatprep.subr.mxu0 0.0
    %3961 = vmatpush1.msra.mxu0 0.0
    %3962 = vmatprep.subr.mxu0 0.0
    %3963 = vmatpush1.msra.mxu0 0.0
    %3964 = vmatprep.mubr.f32.mxu0 0.0
    %3965 = vmatmul.mubr.f32.gmra.mrb[0].mxu0 %v3898
    %v3966 = vpop.f32.mrb[0].mxu0
    %v3967 = vadd.f32 %v2165, %v3966
    %v3968 = vpop.f32.mrb[0].mxu0
    %v3969 = vadd.f32 %v2169, %v3968
    %3970 = vdwg.mxu0
    %3971 = vrot.lane.b32.xlu0 %v2156, 64
    %v3972 = vpop.permute.xlu0 %3971
    %v3973 = vsel %vm2172, %v3972, 0
    %3975 = vmatprep.subr.mxu0 %v2159
    %3976 = vmatpush1.msra.mxu0 %v2158
    %3977 = vmatprep.subr.mxu0 0.0
    %3978 = vmatpush1.msra.mxu0 0.0
    %3979 = vmatprep.subr.mxu0 0.0
    %3980 = vmatpush1.msra.mxu0 0.0
    %3981 = vmatprep.subr.mxu0 0.0
    %3982 = vmatpush1.msra.mxu0 0.0
    %3983 = vmatprep.subr.mxu0 0.0
    %3984 = vmatpush1.msra.mxu0 0.0
    %3985 = vmatprep.subr.mxu0 0.0
    %3986 = vmatpush1.msra.mxu0 0.0
    %3987 = vmatprep.subr.mxu0 0.0
    %3988 = vmatpush1.msra.mxu0 0.0
    %3989 = vmatprep.subr.mxu0 0.0
    %3990 = vmatpush1.msra.mxu0 0.0
    %3991 = vmatprep.subr.mxu0 0.0
    %3992 = vmatpush1.msra.mxu0 0.0
    %3993 = vmatprep.subr.mxu0 0.0
    %3994 = vmatpush1.msra.mxu0 0.0
    %3995 = vmatprep.subr.mxu0 0.0
    %3996 = vmatpush1.msra.mxu0 0.0
    %3997 = vmatprep.subr.mxu0 0.0
    %3998 = vmatpush1.msra.mxu0 0.0
    %3999 = vmatprep.subr.mxu0 0.0
    %4000 = vmatpush1.msra.mxu0 0.0
    %4001 = vmatprep.subr.mxu0 0.0
    %4002 = vmatpush1.msra.mxu0 0.0
    %4003 = vmatprep.subr.mxu0 0.0
    %4004 = vmatpush1.msra.mxu0 0.0
    %4005 = vmatprep.subr.mxu0 0.0
    %4006 = vmatpush1.msra.mxu0 0.0
    %4007 = vmatprep.subr.mxu0 0.0
    %4008 = vmatpush1.msra.mxu0 0.0
    %4009 = vmatprep.subr.mxu0 0.0
    %4010 = vmatpush1.msra.mxu0 0.0
    %4011 = vmatprep.subr.mxu0 0.0
    %4012 = vmatpush1.msra.mxu0 0.0
    %4013 = vmatprep.subr.mxu0 0.0
    %4014 = vmatpush1.msra.mxu0 0.0
    %4015 = vmatprep.subr.mxu0 0.0
    %4016 = vmatpush1.msra.mxu0 0.0
    %4017 = vmatprep.subr.mxu0 0.0
    %4018 = vmatpush1.msra.mxu0 0.0
    %4019 = vmatprep.subr.mxu0 0.0
    %4020 = vmatpush1.msra.mxu0 0.0
    %4021 = vmatprep.subr.mxu0 0.0
    %4022 = vmatpush1.msra.mxu0 0.0
    %4023 = vmatprep.subr.mxu0 0.0
    %4024 = vmatpush1.msra.mxu0 0.0
    %4025 = vmatprep.subr.mxu0 0.0
    %4026 = vmatpush1.msra.mxu0 0.0
    %4027 = vmatprep.subr.mxu0 0.0
    %4028 = vmatpush1.msra.mxu0 0.0
    %4029 = vmatprep.subr.mxu0 0.0
    %4030 = vmatpush1.msra.mxu0 0.0
    %4031 = vmatprep.subr.mxu0 0.0
    %4032 = vmatpush1.msra.mxu0 0.0
    %4033 = vmatprep.subr.mxu0 0.0
    %4034 = vmatpush1.msra.mxu0 0.0
    %4035 = vmatprep.subr.mxu0 0.0
    %4036 = vmatpush1.msra.mxu0 0.0
    %4037 = vmatprep.subr.mxu0 0.0
    %4038 = vmatpush1.msra.mxu0 0.0
    %4039 = vmatprep.mubr.f32.mxu0 0.0
    %4040 = vmatmul.mubr.f32.gmra.mrb[0].mxu0 %v3973
    %v4041 = vpop.f32.mrb[0].mxu0
    %v4042 = vadd.f32 %v2165, %v4041
    %v4043 = vpop.f32.mrb[0].mxu0
    %v4044 = vadd.f32 %v2169, %v4043
    %4045 = vdwg.mxu0
    %4046 = vrot.lane.b32.xlu0 %v2156, 56
    %v4047 = vpop.permute.xlu0 %4046
    %v4048 = vsel %vm2172, %v4047, 0
    %4050 = vmatprep.subr.mxu0 %v2159
    %4051 = vmatpush1.msra.mxu0 %v2158
    %4052 = vmatprep.subr.mxu0 0.0
    %4053 = vmatpush1.msra.mxu0 0.0
    %4054 = vmatprep.subr.mxu0 0.0
    %4055 = vmatpush1.msra.mxu0 0.0
    %4056 = vmatprep.subr.mxu0 0.0
    %4057 = vmatpush1.msra.mxu0 0.0
    %4058 = vmatprep.subr.mxu0 0.0
    %4059 = vmatpush1.msra.mxu0 0.0
    %4060 = vmatprep.subr.mxu0 0.0
    %4061 = vmatpush1.msra.mxu0 0.0
    %4062 = vmatprep.subr.mxu0 0.0
    %4063 = vmatpush1.msra.mxu0 0.0
    %4064 = vmatprep.subr.mxu0 0.0
    %4065 = vmatpush1.msra.mxu0 0.0
    %4066 = vmatprep.subr.mxu0 0.0
    %4067 = vmatpush1.msra.mxu0 0.0
    %4068 = vmatprep.subr.mxu0 0.0
    %4069 = vmatpush1.msra.mxu0 0.0
    %4070 = vmatprep.subr.mxu0 0.0
    %4071 = vmatpush1.msra.mxu0 0.0
    %4072 = vmatprep.subr.mxu0 0.0
    %4073 = vmatpush1.msra.mxu0 0.0
    %4074 = vmatprep.subr.mxu0 0.0
    %4075 = vmatpush1.msra.mxu0 0.0
    %4076 = vmatprep.subr.mxu0 0.0
    %4077 = vmatpush1.msra.mxu0 0.0
    %4078 = vmatprep.subr.mxu0 0.0
    %4079 = vmatpush1.msra.mxu0 0.0
    %4080 = vmatprep.subr.mxu0 0.0
    %4081 = vmatpush1.msra.mxu0 0.0
    %4082 = vmatprep.subr.mxu0 0.0
    %4083 = vmatpush1.msra.mxu0 0.0
    %4084 = vmatprep.subr.mxu0 0.0
    %4085 = vmatpush1.msra.mxu0 0.0
    %4086 = vmatprep.subr.mxu0 0.0
    %4087 = vmatpush1.msra.mxu0 0.0
    %4088 = vmatprep.subr.mxu0 0.0
    %4089 = vmatpush1.msra.mxu0 0.0
    %4090 = vmatprep.subr.mxu0 0.0
    %4091 = vmatpush1.msra.mxu0 0.0
    %4092 = vmatprep.subr.mxu0 0.0
    %4093 = vmatpush1.msra.mxu0 0.0
    %4094 = vmatprep.subr.mxu0 0.0
    %4095 = vmatpush1.msra.mxu0 0.0
    %4096 = vmatprep.subr.mxu0 0.0
    %4097 = vmatpush1.msra.mxu0 0.0
    %4098 = vmatprep.subr.mxu0 0.0
    %4099 = vmatpush1.msra.mxu0 0.0
    %4100 = vmatprep.subr.mxu0 0.0
    %4101 = vmatpush1.msra.mxu0 0.0
    %4102 = vmatprep.subr.mxu0 0.0
    %4103 = vmatpush1.msra.mxu0 0.0
    %4104 = vmatprep.subr.mxu0 0.0
    %4105 = vmatpush1.msra.mxu0 0.0
    %4106 = vmatprep.subr.mxu0 0.0
    %4107 = vmatpush1.msra.mxu0 0.0
    %4108 = vmatprep.subr.mxu0 0.0
    %4109 = vmatpush1.msra.mxu0 0.0
    %4110 = vmatprep.subr.mxu0 0.0
    %4111 = vmatpush1.msra.mxu0 0.0
    %4112 = vmatprep.subr.mxu0 0.0
    %4113 = vmatpush1.msra.mxu0 0.0
    %4114 = vmatprep.mubr.f32.mxu0 0.0
    %4115 = vmatmul.mubr.f32.gmra.mrb[0].mxu0 %v4048
    %v4116 = vpop.f32.mrb[0].mxu0
    %v4117 = vadd.f32 %v2165, %v4116
    %v4118 = vpop.f32.mrb[0].mxu0
    %v4119 = vadd.f32 %v2169, %v4118
    %4120 = vdwg.mxu0
    %4121 = vrot.lane.b32.xlu0 %v2156, 48
    %v4122 = vpop.permute.xlu0 %4121
    %v4123 = vsel %vm2172, %v4122, 0
    %4125 = vmatprep.subr.mxu0 %v2159
    %4126 = vmatpush1.msra.mxu0 %v2158
    %4127 = vmatprep.subr.mxu0 0.0
    %4128 = vmatpush1.msra.mxu0 0.0
    %4129 = vmatprep.subr.mxu0 0.0
    %4130 = vmatpush1.msra.mxu0 0.0
    %4131 = vmatprep.subr.mxu0 0.0
    %4132 = vmatpush1.msra.mxu0 0.0
    %4133 = vmatprep.subr.mxu0 0.0
    %4134 = vmatpush1.msra.mxu0 0.0
    %4135 = vmatprep.subr.mxu0 0.0
    %4136 = vmatpush1.msra.mxu0 0.0
    %4137 = vmatprep.subr.mxu0 0.0
    %4138 = vmatpush1.msra.mxu0 0.0
    %4139 = vmatprep.subr.mxu0 0.0
    %4140 = vmatpush1.msra.mxu0 0.0
    %4141 = vmatprep.subr.mxu0 0.0
    %4142 = vmatpush1.msra.mxu0 0.0
    %4143 = vmatprep.subr.mxu0 0.0
    %4144 = vmatpush1.msra.mxu0 0.0
    %4145 = vmatprep.subr.mxu0 0.0
    %4146 = vmatpush1.msra.mxu0 0.0
    %4147 = vmatprep.subr.mxu0 0.0
    %4148 = vmatpush1.msra.mxu0 0.0
    %4149 = vmatprep.subr.mxu0 0.0
    %4150 = vmatpush1.msra.mxu0 0.0
    %4151 = vmatprep.subr.mxu0 0.0
    %4152 = vmatpush1.msra.mxu0 0.0
    %4153 = vmatprep.subr.mxu0 0.0
    %4154 = vmatpush1.msra.mxu0 0.0
    %4155 = vmatprep.subr.mxu0 0.0
    %4156 = vmatpush1.msra.mxu0 0.0
    %4157 = vmatprep.subr.mxu0 0.0
    %4158 = vmatpush1.msra.mxu0 0.0
    %4159 = vmatprep.subr.mxu0 0.0
    %4160 = vmatpush1.msra.mxu0 0.0
    %4161 = vmatprep.subr.mxu0 0.0
    %4162 = vmatpush1.msra.mxu0 0.0
    %4163 = vmatprep.subr.mxu0 0.0
    %4164 = vmatpush1.msra.mxu0 0.0
    %4165 = vmatprep.subr.mxu0 0.0
    %4166 = vmatpush1.msra.mxu0 0.0
    %4167 = vmatprep.subr.mxu0 0.0
    %4168 = vmatpush1.msra.mxu0 0.0
    %4169 = vmatprep.subr.mxu0 0.0
    %4170 = vmatpush1.msra.mxu0 0.0
    %4171 = vmatprep.subr.mxu0 0.0
    %4172 = vmatpush1.msra.mxu0 0.0
    %4173 = vmatprep.subr.mxu0 0.0
    %4174 = vmatpush1.msra.mxu0 0.0
    %4175 = vmatprep.subr.mxu0 0.0
    %4176 = vmatpush1.msra.mxu0 0.0
    %4177 = vmatprep.subr.mxu0 0.0
    %4178 = vmatpush1.msra.mxu0 0.0
    %4179 = vmatprep.subr.mxu0 0.0
    %4180 = vmatpush1.msra.mxu0 0.0
    %4181 = vmatprep.subr.mxu0 0.0
    %4182 = vmatpush1.msra.mxu0 0.0
    %4183 = vmatprep.subr.mxu0 0.0
    %4184 = vmatpush1.msra.mxu0 0.0
    %4185 = vmatprep.subr.mxu0 0.0
    %4186 = vmatpush1.msra.mxu0 0.0
    %4187 = vmatprep.subr.mxu0 0.0
    %4188 = vmatpush1.msra.mxu0 0.0
    %4189 = vmatprep.mubr.f32.mxu0 0.0
    %4190 = vmatmul.mubr.f32.gmra.mrb[0].mxu0 %v4123
    %v4191 = vpop.f32.mrb[0].mxu0
    %v4192 = vadd.f32 %v2165, %v4191
    %v4193 = vpop.f32.mrb[0].mxu0
    %v4194 = vadd.f32 %v2169, %v4193
    %4195 = vdwg.mxu0
    %4196 = vrot.lane.b32.xlu0 %v2156, 40
    %v4197 = vpop.permute.xlu0 %4196
    %v4198 = vsel %vm2172, %v4197, 0
    %4200 = vmatprep.subr.mxu0 %v2159
    %4201 = vmatpush1.msra.mxu0 %v2158
    %4202 = vmatprep.subr.mxu0 0.0
    %4203 = vmatpush1.msra.mxu0 0.0
    %4204 = vmatprep.subr.mxu0 0.0
    %4205 = vmatpush1.msra.mxu0 0.0
    %4206 = vmatprep.subr.mxu0 0.0
    %4207 = vmatpush1.msra.mxu0 0.0
    %4208 = vmatprep.subr.mxu0 0.0
    %4209 = vmatpush1.msra.mxu0 0.0
    %4210 = vmatprep.subr.mxu0 0.0
    %4211 = vmatpush1.msra.mxu0 0.0
    %4212 = vmatprep.subr.mxu0 0.0
    %4213 = vmatpush1.msra.mxu0 0.0
    %4214 = vmatprep.subr.mxu0 0.0
    %4215 = vmatpush1.msra.mxu0 0.0
    %4216 = vmatprep.subr.mxu0 0.0
    %4217 = vmatpush1.msra.mxu0 0.0
    %4218 = vmatprep.subr.mxu0 0.0
    %4219 = vmatpush1.msra.mxu0 0.0
    %4220 = vmatprep.subr.mxu0 0.0
    %4221 = vmatpush1.msra.mxu0 0.0
    %4222 = vmatprep.subr.mxu0 0.0
    %4223 = vmatpush1.msra.mxu0 0.0
    %4224 = vmatprep.subr.mxu0 0.0
    %4225 = vmatpush1.msra.mxu0 0.0
    %4226 = vmatprep.subr.mxu0 0.0
    %4227 = vmatpush1.msra.mxu0 0.0
    %4228 = vmatprep.subr.mxu0 0.0
    %4229 = vmatpush1.msra.mxu0 0.0
    %4230 = vmatprep.subr.mxu0 0.0
    %4231 = vmatpush1.msra.mxu0 0.0
    %4232 = vmatprep.subr.mxu0 0.0
    %4233 = vmatpush1.msra.mxu0 0.0
    %4234 = vmatprep.subr.mxu0 0.0
    %4235 = vmatpush1.msra.mxu0 0.0
    %4236 = vmatprep.subr.mxu0 0.0
    %4237 = vmatpush1.msra.mxu0 0.0
    %4238 = vmatprep.subr.mxu0 0.0
    %4239 = vmatpush1.msra.mxu0 0.0
    %4240 = vmatprep.subr.mxu0 0.0
    %4241 = vmatpush1.msra.mxu0 0.0
    %4242 = vmatprep.subr.mxu0 0.0
    %4243 = vmatpush1.msra.mxu0 0.0
    %4244 = vmatprep.subr.mxu0 0.0
    %4245 = vmatpush1.msra.mxu0 0.0
    %4246 = vmatprep.subr.mxu0 0.0
    %4247 = vmatpush1.msra.mxu0 0.0
    %4248 = vmatprep.subr.mxu0 0.0
    %4249 = vmatpush1.msra.mxu0 0.0
    %4250 = vmatprep.subr.mxu0 0.0
    %4251 = vmatpush1.msra.mxu0 0.0
    %4252 = vmatprep.subr.mxu0 0.0
    %4253 = vmatpush1.msra.mxu0 0.0
    %4254 = vmatprep.subr.mxu0 0.0
    %4255 = vmatpush1.msra.mxu0 0.0
    %4256 = vmatprep.subr.mxu0 0.0
    %4257 = vmatpush1.msra.mxu0 0.0
    %4258 = vmatprep.subr.mxu0 0.0
    %4259 = vmatpush1.msra.mxu0 0.0
    %4260 = vmatprep.subr.mxu0 0.0
    %4261 = vmatpush1.msra.mxu0 0.0
    %4262 = vmatprep.subr.mxu0 0.0
    %4263 = vmatpush1.msra.mxu0 0.0
    %4264 = vmatprep.mubr.f32.mxu0 0.0
    %4265 = vmatmul.mubr.f32.gmra.mrb[0].mxu0 %v4198
    %v4266 = vpop.f32.mrb[0].mxu0
    %v4267 = vadd.f32 %v2165, %v4266
    %v4268 = vpop.f32.mrb[0].mxu0
    %v4269 = vadd.f32 %v2169, %v4268
    %4270 = vdwg.mxu0
    %4271 = vrot.lane.b32.xlu0 %v2156, 32
    %v4272 = vpop.permute.xlu0 %4271
    %v4273 = vsel %vm2172, %v4272, 0
    %4275 = vmatprep.subr.mxu0 %v2159
    %4276 = vmatpush1.msra.mxu0 %v2158
    %4277 = vmatprep.subr.mxu0 0.0
    %4278 = vmatpush1.msra.mxu0 0.0
    %4279 = vmatprep.subr.mxu0 0.0
    %4280 = vmatpush1.msra.mxu0 0.0
    %4281 = vmatprep.subr.mxu0 0.0
    %4282 = vmatpush1.msra.mxu0 0.0
    %4283 = vmatprep.subr.mxu0 0.0
    %4284 = vmatpush1.msra.mxu0 0.0
    %4285 = vmatprep.subr.mxu0 0.0
    %4286 = vmatpush1.msra.mxu0 0.0
    %4287 = vmatprep.subr.mxu0 0.0
    %4288 = vmatpush1.msra.mxu0 0.0
    %4289 = vmatprep.subr.mxu0 0.0
    %4290 = vmatpush1.msra.mxu0 0.0
    %4291 = vmatprep.subr.mxu0 0.0
    %4292 = vmatpush1.msra.mxu0 0.0
    %4293 = vmatprep.subr.mxu0 0.0
    %4294 = vmatpush1.msra.mxu0 0.0
    %4295 = vmatprep.subr.mxu0 0.0
    %4296 = vmatpush1.msra.mxu0 0.0
    %4297 = vmatprep.subr.mxu0 0.0
    %4298 = vmatpush1.msra.mxu0 0.0
    %4299 = vmatprep.subr.mxu0 0.0
    %4300 = vmatpush1.msra.mxu0 0.0
    %4301 = vmatprep.subr.mxu0 0.0
    %4302 = vmatpush1.msra.mxu0 0.0
    %4303 = vmatprep.subr.mxu0 0.0
    %4304 = vmatpush1.msra.mxu0 0.0
    %4305 = vmatprep.subr.mxu0 0.0
    %4306 = vmatpush1.msra.mxu0 0.0
    %4307 = vmatprep.subr.mxu0 0.0
    %4308 = vmatpush1.msra.mxu0 0.0
    %4309 = vmatprep.subr.mxu0 0.0
    %4310 = vmatpush1.msra.mxu0 0.0
    %4311 = vmatprep.subr.mxu0 0.0
    %4312 = vmatpush1.msra.mxu0 0.0
    %4313 = vmatprep.subr.mxu0 0.0
    %4314 = vmatpush1.msra.mxu0 0.0
    %4315 = vmatprep.subr.mxu0 0.0
    %4316 = vmatpush1.msra.mxu0 0.0
    %4317 = vmatprep.subr.mxu0 0.0
    %4318 = vmatpush1.msra.mxu0 0.0
    %4319 = vmatprep.subr.mxu0 0.0
    %4320 = vmatpush1.msra.mxu0 0.0
    %4321 = vmatprep.subr.mxu0 0.0
    %4322 = vmatpush1.msra.mxu0 0.0
    %4323 = vmatprep.subr.mxu0 0.0
    %4324 = vmatpush1.msra.mxu0 0.0
    %4325 = vmatprep.subr.mxu0 0.0
    %4326 = vmatpush1.msra.mxu0 0.0
    %4327 = vmatprep.subr.mxu0 0.0
    %4328 = vmatpush1.msra.mxu0 0.0
    %4329 = vmatprep.subr.mxu0 0.0
    %4330 = vmatpush1.msra.mxu0 0.0
    %4331 = vmatprep.subr.mxu0 0.0
    %4332 = vmatpush1.msra.mxu0 0.0
    %4333 = vmatprep.subr.mxu0 0.0
    %4334 = vmatpush1.msra.mxu0 0.0
    %4335 = vmatprep.subr.mxu0 0.0
    %4336 = vmatpush1.msra.mxu0 0.0
    %4337 = vmatprep.subr.mxu0 0.0
    %4338 = vmatpush1.msra.mxu0 0.0
    %4339 = vmatprep.mubr.f32.mxu0 0.0
    %4340 = vmatmul.mubr.f32.gmra.mrb[0].mxu0 %v4273
    %v4341 = vpop.f32.mrb[0].mxu0
    %v4342 = vadd.f32 %v2165, %v4341
    %v4343 = vpop.f32.mrb[0].mxu0
    %v4344 = vadd.f32 %v2169, %v4343
    %4345 = vdwg.mxu0
    %4346 = vrot.lane.b32.xlu0 %v2156, 24
    %v4347 = vpop.permute.xlu0 %4346
    %v4348 = vsel %vm2172, %v4347, 0
    %4350 = vmatprep.subr.mxu0 %v2159
    %4351 = vmatpush1.msra.mxu0 %v2158
    %4352 = vmatprep.subr.mxu0 0.0
    %4353 = vmatpush1.msra.mxu0 0.0
    %4354 = vmatprep.subr.mxu0 0.0
    %4355 = vmatpush1.msra.mxu0 0.0
    %4356 = vmatprep.subr.mxu0 0.0
    %4357 = vmatpush1.msra.mxu0 0.0
    %4358 = vmatprep.subr.mxu0 0.0
    %4359 = vmatpush1.msra.mxu0 0.0
    %4360 = vmatprep.subr.mxu0 0.0
    %4361 = vmatpush1.msra.mxu0 0.0
    %4362 = vmatprep.subr.mxu0 0.0
    %4363 = vmatpush1.msra.mxu0 0.0
    %4364 = vmatprep.subr.mxu0 0.0
    %4365 = vmatpush1.msra.mxu0 0.0
    %4366 = vmatprep.subr.mxu0 0.0
    %4367 = vmatpush1.msra.mxu0 0.0
    %4368 = vmatprep.subr.mxu0 0.0
    %4369 = vmatpush1.msra.mxu0 0.0
    %4370 = vmatprep.subr.mxu0 0.0
    %4371 = vmatpush1.msra.mxu0 0.0
    %4372 = vmatprep.subr.mxu0 0.0
    %4373 = vmatpush1.msra.mxu0 0.0
    %4374 = vmatprep.subr.mxu0 0.0
    %4375 = vmatpush1.msra.mxu0 0.0
    %4376 = vmatprep.subr.mxu0 0.0
    %4377 = vmatpush1.msra.mxu0 0.0
    %4378 = vmatprep.subr.mxu0 0.0
    %4379 = vmatpush1.msra.mxu0 0.0
    %4380 = vmatprep.subr.mxu0 0.0
    %4381 = vmatpush1.msra.mxu0 0.0
    %4382 = vmatprep.subr.mxu0 0.0
    %4383 = vmatpush1.msra.mxu0 0.0
    %4384 = vmatprep.subr.mxu0 0.0
    %4385 = vmatpush1.msra.mxu0 0.0
    %4386 = vmatprep.subr.mxu0 0.0
    %4387 = vmatpush1.msra.mxu0 0.0
    %4388 = vmatprep.subr.mxu0 0.0
    %4389 = vmatpush1.msra.mxu0 0.0
    %4390 = vmatprep.subr.mxu0 0.0
    %4391 = vmatpush1.msra.mxu0 0.0
    %4392 = vmatprep.subr.mxu0 0.0
    %4393 = vmatpush1.msra.mxu0 0.0
    %4394 = vmatprep.subr.mxu0 0.0
    %4395 = vmatpush1.msra.mxu0 0.0
    %4396 = vmatprep.subr.mxu0 0.0
    %4397 = vmatpush1.msra.mxu0 0.0
    %4398 = vmatprep.subr.mxu0 0.0
    %4399 = vmatpush1.msra.mxu0 0.0
    %4400 = vmatprep.subr.mxu0 0.0
    %4401 = vmatpush1.msra.mxu0 0.0
    %4402 = vmatprep.subr.mxu0 0.0
    %4403 = vmatpush1.msra.mxu0 0.0
    %4404 = vmatprep.subr.mxu0 0.0
    %4405 = vmatpush1.msra.mxu0 0.0
    %4406 = vmatprep.subr.mxu0 0.0
    %4407 = vmatpush1.msra.mxu0 0.0
    %4408 = vmatprep.subr.mxu0 0.0
    %4409 = vmatpush1.msra.mxu0 0.0
    %4410 = vmatprep.subr.mxu0 0.0
    %4411 = vmatpush1.msra.mxu0 0.0
    %4412 = vmatprep.subr.mxu0 0.0
    %4413 = vmatpush1.msra.mxu0 0.0
    %4414 = vmatprep.mubr.f32.mxu0 0.0
    %4415 = vmatmul.mubr.f32.gmra.mrb[0].mxu0 %v4348
    %v4416 = vpop.f32.mrb[0].mxu0
    %v4417 = vadd.f32 %v2165, %v4416
    %v4418 = vpop.f32.mrb[0].mxu0
    %v4419 = vadd.f32 %v2169, %v4418
    %4420 = vdwg.mxu0
    %4421 = vrot.lane.b32.xlu0 %v2156, 16
    %v4422 = vpop.permute.xlu0 %4421
    %v4423 = vsel %vm2172, %v4422, 0
    %4425 = vmatprep.subr.mxu0 %v2159
    %4426 = vmatpush1.msra.mxu0 %v2158
    %4427 = vmatprep.subr.mxu0 0.0
    %4428 = vmatpush1.msra.mxu0 0.0
    %4429 = vmatprep.subr.mxu0 0.0
    %4430 = vmatpush1.msra.mxu0 0.0
    %4431 = vmatprep.subr.mxu0 0.0
    %4432 = vmatpush1.msra.mxu0 0.0
    %4433 = vmatprep.subr.mxu0 0.0
    %4434 = vmatpush1.msra.mxu0 0.0
    %4435 = vmatprep.subr.mxu0 0.0
    %4436 = vmatpush1.msra.mxu0 0.0
    %4437 = vmatprep.subr.mxu0 0.0
    %4438 = vmatpush1.msra.mxu0 0.0
    %4439 = vmatprep.subr.mxu0 0.0
    %4440 = vmatpush1.msra.mxu0 0.0
    %4441 = vmatprep.subr.mxu0 0.0
    %4442 = vmatpush1.msra.mxu0 0.0
    %4443 = vmatprep.subr.mxu0 0.0
    %4444 = vmatpush1.msra.mxu0 0.0
    %4445 = vmatprep.subr.mxu0 0.0
    %4446 = vmatpush1.msra.mxu0 0.0
    %4447 = vmatprep.subr.mxu0 0.0
    %4448 = vmatpush1.msra.mxu0 0.0
    %4449 = vmatprep.subr.mxu0 0.0
    %4450 = vmatpush1.msra.mxu0 0.0
    %4451 = vmatprep.subr.mxu0 0.0
    %4452 = vmatpush1.msra.mxu0 0.0
    %4453 = vmatprep.subr.mxu0 0.0
    %4454 = vmatpush1.msra.mxu0 0.0
    %4455 = vmatprep.subr.mxu0 0.0
    %4456 = vmatpush1.msra.mxu0 0.0
    %4457 = vmatprep.subr.mxu0 0.0
    %4458 = vmatpush1.msra.mxu0 0.0
    %4459 = vmatprep.subr.mxu0 0.0
    %4460 = vmatpush1.msra.mxu0 0.0
    %4461 = vmatprep.subr.mxu0 0.0
    %4462 = vmatpush1.msra.mxu0 0.0
    %4463 = vmatprep.subr.mxu0 0.0
    %4464 = vmatpush1.msra.mxu0 0.0
    %4465 = vmatprep.subr.mxu0 0.0
    %4466 = vmatpush1.msra.mxu0 0.0
    %4467 = vmatprep.subr.mxu0 0.0
    %4468 = vmatpush1.msra.mxu0 0.0
    %4469 = vmatprep.subr.mxu0 0.0
    %4470 = vmatpush1.msra.mxu0 0.0
    %4471 = vmatprep.subr.mxu0 0.0
    %4472 = vmatpush1.msra.mxu0 0.0
    %4473 = vmatprep.subr.mxu0 0.0
    %4474 = vmatpush1.msra.mxu0 0.0
    %4475 = vmatprep.subr.mxu0 0.0
    %4476 = vmatpush1.msra.mxu0 0.0
    %4477 = vmatprep.subr.mxu0 0.0
    %4478 = vmatpush1.msra.mxu0 0.0
    %4479 = vmatprep.subr.mxu0 0.0
    %4480 = vmatpush1.msra.mxu0 0.0
    %4481 = vmatprep.subr.mxu0 0.0
    %4482 = vmatpush1.msra.mxu0 0.0
    %4483 = vmatprep.subr.mxu0 0.0
    %4484 = vmatpush1.msra.mxu0 0.0
    %4485 = vmatprep.subr.mxu0 0.0
    %4486 = vmatpush1.msra.mxu0 0.0
    %4487 = vmatprep.subr.mxu0 0.0
    %4488 = vmatpush1.msra.mxu0 0.0
    %4489 = vmatprep.mubr.f32.mxu0 0.0
    %4490 = vmatmul.mubr.f32.gmra.mrb[0].mxu0 %v4423
    %v4491 = vpop.f32.mrb[0].mxu0
    %v4492 = vadd.f32 %v2165, %v4491
    %v4493 = vpop.f32.mrb[0].mxu0
    %v4494 = vadd.f32 %v2169, %v4493
    %4495 = vdwg.mxu0
    %4496 = vrot.lane.b32.xlu0 %v2156, 8
    %v4497 = vpop.permute.xlu0 %4496
    %v4498 = vsel %vm2172, %v4497, 0
    %4500 = vmatprep.subr.mxu0 %v2159
    %4501 = vmatpush1.msra.mxu0 %v2158
    %4502 = vmatprep.subr.mxu0 0.0
    %4503 = vmatpush1.msra.mxu0 0.0
    %4504 = vmatprep.subr.mxu0 0.0
    %4505 = vmatpush1.msra.mxu0 0.0
    %4506 = vmatprep.subr.mxu0 0.0
    %4507 = vmatpush1.msra.mxu0 0.0
    %4508 = vmatprep.subr.mxu0 0.0
    %4509 = vmatpush1.msra.mxu0 0.0
    %4510 = vmatprep.subr.mxu0 0.0
    %4511 = vmatpush1.msra.mxu0 0.0
    %4512 = vmatprep.subr.mxu0 0.0
    %4513 = vmatpush1.msra.mxu0 0.0
    %4514 = vmatprep.subr.mxu0 0.0
    %4515 = vmatpush1.msra.mxu0 0.0
    %4516 = vmatprep.subr.mxu0 0.0
    %4517 = vmatpush1.msra.mxu0 0.0
    %4518 = vmatprep.subr.mxu0 0.0
    %4519 = vmatpush1.msra.mxu0 0.0
    %4520 = vmatprep.subr.mxu0 0.0
    %4521 = vmatpush1.msra.mxu0 0.0
    %4522 = vmatprep.subr.mxu0 0.0
    %4523 = vmatpush1.msra.mxu0 0.0
    %4524 = vmatprep.subr.mxu0 0.0
    %4525 = vmatpush1.msra.mxu0 0.0
    %4526 = vmatprep.subr.mxu0 0.0
    %4527 = vmatpush1.msra.mxu0 0.0
    %4528 = vmatprep.subr.mxu0 0.0
    %4529 = vmatpush1.msra.mxu0 0.0
    %4530 = vmatprep.subr.mxu0 0.0
    %4531 = vmatpush1.msra.mxu0 0.0
    %4532 = vmatprep.subr.mxu0 0.0
    %4533 = vmatpush1.msra.mxu0 0.0
    %4534 = vmatprep.subr.mxu0 0.0
    %4535 = vmatpush1.msra.mxu0 0.0
    %4536 = vmatprep.subr.mxu0 0.0
    %4537 = vmatpush1.msra.mxu0 0.0
    %4538 = vmatprep.subr.mxu0 0.0
    %4539 = vmatpush1.msra.mxu0 0.0
    %4540 = vmatprep.subr.mxu0 0.0
    %4541 = vmatpush1.msra.mxu0 0.0
    %4542 = vmatprep.subr.mxu0 0.0
    %4543 = vmatpush1.msra.mxu0 0.0
    %4544 = vmatprep.subr.mxu0 0.0
    %4545 = vmatpush1.msra.mxu0 0.0
    %4546 = vmatprep.subr.mxu0 0.0
    %4547 = vmatpush1.msra.mxu0 0.0
    %4548 = vmatprep.subr.mxu0 0.0
    %4549 = vmatpush1.msra.mxu0 0.0
    %4550 = vmatprep.subr.mxu0 0.0
    %4551 = vmatpush1.msra.mxu0 0.0
    %4552 = vmatprep.subr.mxu0 0.0
    %4553 = vmatpush1.msra.mxu0 0.0
    %4554 = vmatprep.subr.mxu0 0.0
    %4555 = vmatpush1.msra.mxu0 0.0
    %4556 = vmatprep.subr.mxu0 0.0
    %4557 = vmatpush1.msra.mxu0 0.0
    %4558 = vmatprep.subr.mxu0 0.0
    %4559 = vmatpush1.msra.mxu0 0.0
    %4560 = vmatprep.subr.mxu0 0.0
    %4561 = vmatpush1.msra.mxu0 0.0
    %4562 = vmatprep.subr.mxu0 0.0
    %4563 = vmatpush1.msra.mxu0 0.0
    %4564 = vmatprep.mubr.f32.mxu0 0.0
    %4565 = vmatmul.mubr.f32.gmra.mrb[0].mxu0 %v4498
    %v4566 = vpop.f32.mrb[0].mxu0
    %v4567 = vadd.f32 %v2165, %v4566
    %v4568 = vpop.f32.mrb[0].mxu0
    %v4569 = vadd.f32 %v2169, %v4568
    %4570 = vdwg.mxu0
    %v4571 = vld [vmem:[%s15] sm:$0x3]
    %v4572 = vld [vmem:[%s16] sm:$0x3]
    %v4573 = vld [vmem:[%s11] sm:$0xff]
    %v4574 = vld [vmem:[%s11 + $0x8] sm:$0xff]
    %v4575 = vld [vmem:[%s11 + $0x10] sm:$0xff]
    %v4576 = vld [vmem:[%s11 + $0x18] sm:$0xff]
    %v4577 = vld [vmem:[%s11 + $0x20] sm:$0xff]
    %v4578 = vld [vmem:[%s11 + $0x28] sm:$0xff]
    %v4579 = vld [vmem:[%s11 + $0x30] sm:$0xff]
    %v4580 = vld [vmem:[%s11 + $0x38] sm:$0xff]
    %v4581 = vld [vmem:[%s11 + $0x40] sm:$0xff]
    %v4582 = vld [vmem:[%s11 + $0x48] sm:$0xff]
    %v4583 = vld [vmem:[%s11 + $0x50] sm:$0xff]
    %v4584 = vld [vmem:[%s11 + $0x58] sm:$0xff]
    %v4585 = vld [vmem:[%s11 + $0x60] sm:$0xff]
    %v4586 = vld [vmem:[%s11 + $0x68] sm:$0xff]
    %v4587 = vld [vmem:[%s11 + $0x70] sm:$0xff]
    %v4588 = vld [vmem:[%s11 + $0x78] sm:$0xff]
    %v4589 = vsel %vm565, %v2243, %v4567
    %v4590 = vsel %vm566, %v2245, %v4569
    %v4592 = vsel %vm1206, %v4571, 0
    %4594 = vmatprep.subr.mxu0 %v4574
    %4595 = vmatpush1.msra.mxu0 %v4573
    %4596 = vmatprep.subr.mxu0 %v4576
    %4597 = vmatpush1.msra.mxu0 %v4575
    %4598 = vmatprep.subr.mxu0 %v4578
    %4599 = vmatpush1.msra.mxu0 %v4577
    %4600 = vmatprep.subr.mxu0 %v4580
    %4601 = vmatpush1.msra.mxu0 %v4579
    %4602 = vmatprep.subr.mxu0 %v4582
    %4603 = vmatpush1.msra.mxu0 %v4581
    %4604 = vmatprep.subr.mxu0 %v4584
    %4605 = vmatpush1.msra.mxu0 %v4583
    %4606 = vmatprep.subr.mxu0 %v4586
    %4607 = vmatpush1.msra.mxu0 %v4585
    %4608 = vmatprep.subr.mxu0 %v4588
    %4609 = vmatpush1.msra.mxu0 %v4587
    %4610 = vmatprep.subr.mxu0 0.0
    %4611 = vmatpush1.msra.mxu0 0.0
    %4612 = vmatprep.subr.mxu0 0.0
    %4613 = vmatpush1.msra.mxu0 0.0
    %4614 = vmatprep.subr.mxu0 0.0
    %4615 = vmatpush1.msra.mxu0 0.0
    %4616 = vmatprep.subr.mxu0 0.0
    %4617 = vmatpush1.msra.mxu0 0.0
    %4618 = vmatprep.subr.mxu0 0.0
    %4619 = vmatpush1.msra.mxu0 0.0
    %4620 = vmatprep.subr.mxu0 0.0
    %4621 = vmatpush1.msra.mxu0 0.0
    %4622 = vmatprep.subr.mxu0 0.0
    %4623 = vmatpush1.msra.mxu0 0.0
    %4624 = vmatprep.subr.mxu0 0.0
    %4625 = vmatpush1.msra.mxu0 0.0
    %4626 = vmatprep.subr.mxu0 0.0
    %4627 = vmatpush1.msra.mxu0 0.0
    %4628 = vmatprep.subr.mxu0 0.0
    %4629 = vmatpush1.msra.mxu0 0.0
    %4630 = vmatprep.subr.mxu0 0.0
    %4631 = vmatpush1.msra.mxu0 0.0
    %4632 = vmatprep.subr.mxu0 0.0
    %4633 = vmatpush1.msra.mxu0 0.0
    %4634 = vmatprep.subr.mxu0 0.0
    %4635 = vmatpush1.msra.mxu0 0.0
    %4636 = vmatprep.subr.mxu0 0.0
    %4637 = vmatpush1.msra.mxu0 0.0
    %4638 = vmatprep.subr.mxu0 0.0
    %4639 = vmatpush1.msra.mxu0 0.0
    %4640 = vmatprep.subr.mxu0 0.0
    %4641 = vmatpush1.msra.mxu0 0.0
    %4642 = vmatprep.subr.mxu0 0.0
    %4643 = vmatpush1.msra.mxu0 0.0
    %4644 = vmatprep.subr.mxu0 0.0
    %4645 = vmatpush1.msra.mxu0 0.0
    %4646 = vmatprep.subr.mxu0 0.0
    %4647 = vmatpush1.msra.mxu0 0.0
    %4648 = vmatprep.subr.mxu0 0.0
    %4649 = vmatpush1.msra.mxu0 0.0
    %4650 = vmatprep.subr.mxu0 0.0
    %4651 = vmatpush1.msra.mxu0 0.0
    %4652 = vmatprep.subr.mxu0 0.0
    %4653 = vmatpush1.msra.mxu0 0.0
    %4654 = vmatprep.subr.mxu0 0.0
    %4655 = vmatpush1.msra.mxu0 0.0
    %4656 = vmatprep.subr.mxu0 0.0
    %4657 = vmatpush1.msra.mxu0 0.0
    %4658 = vmatprep.mubr.f32.mxu0 0.0
    %4659 = vmatmul.mubr.f32.gmra.mrb[0].mxu0 %v4592
    %v4660 = vpop.f32.mrb[0].mxu0
    %v4661 = vadd.f32 0.0, %v4660
    %v4662 = vpop.f32.mrb[0].mxu0
    %v4663 = vadd.f32 0.0, %v4662
    %4664 = vdwg.mxu0
    %v4665 = vadd.f32 %v4589, %v4661
    %v4666 = vadd.f32 %v4590, %v4663
    %v4667 = vxor.u32 %v4665, 2147483648
    %v4668 = vxor.u32 %v4666, 2147483648
    %v4669 = vmul.f32 %v4667, 1.442695
    %v4670 = vpow.pop %v4669
    %v4671 = vmul.f32 %v4668, 1.442695
    %v4672 = vpow.pop %v4671
    %v4673 = vadd.f32 %v4670, 1.0
    %v4674 = vadd.f32 %v4672, 1.0
    %v4675 = vrcp.pop %v4673
    %v4676 = vmul.f32 1.0, %v4675
    %v4677 = vrcp.pop %v4674
    %v4678 = vmul.f32 1.0, %v4677
    %v4679 = vtanh.pop %v4666
    %4681 = vrot.lane.b32.xlu0 %v4572, 64
    %v4682 = vpop.permute.xlu0 %4681
    %v4684 = vmul.f32 %v4676, %v4682
    %v4685 = vmul.f32 %v4676, %v4679
    %4687 = vrot.lane.b32.xlu0 %v4685, 64
    %v4688 = vpop.permute.xlu0 %4687
    %v4690 = vadd.f32 %v4684, %v4688
    %v4691 = vtanh.pop %v4690
    %v4692 = vmul.f32 %v4678, %v4691
    %v4693 = vsel %vm565, %v2318, %v4492
    %v4694 = vsel %vm566, %v2320, %v4494
    %4696 = vrot.lane.b32.xlu0 %v4692, 64
    %v4697 = vpop.permute.xlu0 %4696
    %v4698 = vsel %vm1206, %v4697, 0
    %4700 = vmatprep.subr.mxu0 %v4574
    %4701 = vmatpush1.msra.mxu0 %v4573
    %4702 = vmatprep.subr.mxu0 %v4576
    %4703 = vmatpush1.msra.mxu0 %v4575
    %4704 = vmatprep.subr.mxu0 %v4578
    %4705 = vmatpush1.msra.mxu0 %v4577
    %4706 = vmatprep.subr.mxu0 %v4580
    %4707 = vmatpush1.msra.mxu0 %v4579
    %4708 = vmatprep.subr.mxu0 %v4582
    %4709 = vmatpush1.msra.mxu0 %v4581
    %4710 = vmatprep.subr.mxu0 %v4584
    %4711 = vmatpush1.msra.mxu0 %v4583
    %4712 = vmatprep.subr.mxu0 %v4586
    %4713 = vmatpush1.msra.mxu0 %v4585
    %4714 = vmatprep.subr.mxu0 %v4588
    %4715 = vmatpush1.msra.mxu0 %v4587
    %4716 = vmatprep.subr.mxu0 0.0
    %4717 = vmatpush1.msra.mxu0 0.0
    %4718 = vmatprep.subr.mxu0 0.0
    %4719 = vmatpush1.msra.mxu0 0.0
    %4720 = vmatprep.subr.mxu0 0.0
    %4721 = vmatpush1.msra.mxu0 0.0
    %4722 = vmatprep.subr.mxu0 0.0
    %4723 = vmatpush1.msra.mxu0 0.0
    %4724 = vmatprep.subr.mxu0 0.0
    %4725 = vmatpush1.msra.mxu0 0.0
    %4726 = vmatprep.subr.mxu0 0.0
    %4727 = vmatpush1.msra.mxu0 0.0
    %4728 = vmatprep.subr.mxu0 0.0
    %4729 = vmatpush1.msra.mxu0 0.0
    %4730 = vmatprep.subr.mxu0 0.0
    %4731 = vmatpush1.msra.mxu0 0.0
    %4732 = vmatprep.subr.mxu0 0.0
    %4733 = vmatpush1.msra.mxu0 0.0
    %4734 = vmatprep.subr.mxu0 0.0
    %4735 = vmatpush1.msra.mxu0 0.0
    %4736 = vmatprep.subr.mxu0 0.0
    %4737 = vmatpush1.msra.mxu0 0.0
    %4738 = vmatprep.subr.mxu0 0.0
    %4739 = vmatpush1.msra.mxu0 0.0
    %4740 = vmatprep.subr.mxu0 0.0
    %4741 = vmatpush1.msra.mxu0 0.0
    %4742 = vmatprep.subr.mxu0 0.0
    %4743 = vmatpush1.msra.mxu0 0.0
    %4744 = vmatprep.subr.mxu0 0.0
    %4745 = vmatpush1.msra.mxu0 0.0
    %4746 = vmatprep.subr.mxu0 0.0
    %4747 = vmatpush1.msra.mxu0 0.0
    %4748 = vmatprep.subr.mxu0 0.0
    %4749 = vmatpush1.msra.mxu0 0.0
    %4750 = vmatprep.subr.mxu0 0.0
    %4751 = vmatpush1.msra.mxu0 0.0
    %4752 = vmatprep.subr.mxu0 0.0
    %4753 = vmatpush1.msra.mxu0 0.0
    %4754 = vmatprep.subr.mxu0 0.0
    %4755 = vmatpush1.msra.mxu0 0.0
    %4756 = vmatprep.subr.mxu0 0.0
    %4757 = vmatpush1.msra.mxu0 0.0
    %4758 = vmatprep.subr.mxu0 0.0
    %4759 = vmatpush1.msra.mxu0 0.0
    %4760 = vmatprep.subr.mxu0 0.0
    %4761 = vmatpush1.msra.mxu0 0.0
    %4762 = vmatprep.subr.mxu0 0.0
    %4763 = vmatpush1.msra.mxu0 0.0
    %4764 = vmatprep.mubr.f32.mxu0 0.0
    %4765 = vmatmul.mubr.f32.gmra.mrb[0].mxu0 %v4698
    %v4766 = vpop.f32.mrb[0].mxu0
    %v4767 = vadd.f32 0.0, %v4766
    %v4768 = vpop.f32.mrb[0].mxu0
    %v4769 = vadd.f32 0.0, %v4768
    %4770 = vdwg.mxu0
    %v4771 = vadd.f32 %v4693, %v4767
    %v4772 = vadd.f32 %v4694, %v4769
    %v4773 = vxor.u32 %v4771, 2147483648
    %v4774 = vxor.u32 %v4772, 2147483648
    %v4775 = vmul.f32 %v4773, 1.442695
    %v4776 = vpow.pop %v4775
    %v4777 = vmul.f32 %v4774, 1.442695
    %v4778 = vpow.pop %v4777
    %v4779 = vadd.f32 %v4776, 1.0
    %v4780 = vadd.f32 %v4778, 1.0
    %v4781 = vrcp.pop %v4779
    %v4782 = vmul.f32 1.0, %v4781
    %v4783 = vrcp.pop %v4780
    %v4784 = vmul.f32 1.0, %v4783
    %v4785 = vtanh.pop %v4772
    %v4786 = vmul.f32 %v4782, %v4690
    %v4787 = vmul.f32 %v4782, %v4785
    %4789 = vrot.lane.b32.xlu0 %v4787, 64
    %v4790 = vpop.permute.xlu0 %4789
    %v4792 = vadd.f32 %v4786, %v4790
    %v4793 = vtanh.pop %v4792
    %v4794 = vmul.f32 %v4784, %v4793
    %v4795 = vsel %vm565, %v2393, %v4417
    %v4796 = vsel %vm566, %v2395, %v4419
    %4798 = vrot.lane.b32.xlu0 %v4794, 64
    %v4799 = vpop.permute.xlu0 %4798
    %v4800 = vsel %vm1206, %v4799, 0
    %4802 = vmatprep.subr.mxu0 %v4574
    %4803 = vmatpush1.msra.mxu0 %v4573
    %4804 = vmatprep.subr.mxu0 %v4576
    %4805 = vmatpush1.msra.mxu0 %v4575
    %4806 = vmatprep.subr.mxu0 %v4578
    %4807 = vmatpush1.msra.mxu0 %v4577
    %4808 = vmatprep.subr.mxu0 %v4580
    %4809 = vmatpush1.msra.mxu0 %v4579
    %4810 = vmatprep.subr.mxu0 %v4582
    %4811 = vmatpush1.msra.mxu0 %v4581
    %4812 = vmatprep.subr.mxu0 %v4584
    %4813 = vmatpush1.msra.mxu0 %v4583
    %4814 = vmatprep.subr.mxu0 %v4586
    %4815 = vmatpush1.msra.mxu0 %v4585
    %4816 = vmatprep.subr.mxu0 %v4588
    %4817 = vmatpush1.msra.mxu0 %v4587
    %4818 = vmatprep.subr.mxu0 0.0
    %4819 = vmatpush1.msra.mxu0 0.0
    %4820 = vmatprep.subr.mxu0 0.0
    %4821 = vmatpush1.msra.mxu0 0.0
    %4822 = vmatprep.subr.mxu0 0.0
    %4823 = vmatpush1.msra.mxu0 0.0
    %4824 = vmatprep.subr.mxu0 0.0
    %4825 = vmatpush1.msra.mxu0 0.0
    %4826 = vmatprep.subr.mxu0 0.0
    %4827 = vmatpush1.msra.mxu0 0.0
    %4828 = vmatprep.subr.mxu0 0.0
    %4829 = vmatpush1.msra.mxu0 0.0
    %4830 = vmatprep.subr.mxu0 0.0
    %4831 = vmatpush1.msra.mxu0 0.0
    %4832 = vmatprep.subr.mxu0 0.0
    %4833 = vmatpush1.msra.mxu0 0.0
    %4834 = vmatprep.subr.mxu0 0.0
    %4835 = vmatpush1.msra.mxu0 0.0
    %4836 = vmatprep.subr.mxu0 0.0
    %4837 = vmatpush1.msra.mxu0 0.0
    %4838 = vmatprep.subr.mxu0 0.0
    %4839 = vmatpush1.msra.mxu0 0.0
    %4840 = vmatprep.subr.mxu0 0.0
    %4841 = vmatpush1.msra.mxu0 0.0
    %4842 = vmatprep.subr.mxu0 0.0
    %4843 = vmatpush1.msra.mxu0 0.0
    %4844 = vmatprep.subr.mxu0 0.0
    %4845 = vmatpush1.msra.mxu0 0.0
    %4846 = vmatprep.subr.mxu0 0.0
    %4847 = vmatpush1.msra.mxu0 0.0
    %4848 = vmatprep.subr.mxu0 0.0
    %4849 = vmatpush1.msra.mxu0 0.0
    %4850 = vmatprep.subr.mxu0 0.0
    %4851 = vmatpush1.msra.mxu0 0.0
    %4852 = vmatprep.subr.mxu0 0.0
    %4853 = vmatpush1.msra.mxu0 0.0
    %4854 = vmatprep.subr.mxu0 0.0
    %4855 = vmatpush1.msra.mxu0 0.0
    %4856 = vmatprep.subr.mxu0 0.0
    %4857 = vmatpush1.msra.mxu0 0.0
    %4858 = vmatprep.subr.mxu0 0.0
    %4859 = vmatpush1.msra.mxu0 0.0
    %4860 = vmatprep.subr.mxu0 0.0
    %4861 = vmatpush1.msra.mxu0 0.0
    %4862 = vmatprep.subr.mxu0 0.0
    %4863 = vmatpush1.msra.mxu0 0.0
    %4864 = vmatprep.subr.mxu0 0.0
    %4865 = vmatpush1.msra.mxu0 0.0
    %4866 = vmatprep.mubr.f32.mxu0 0.0
    %4867 = vmatmul.mubr.f32.gmra.mrb[0].mxu0 %v4800
    %v4868 = vpop.f32.mrb[0].mxu0
    %v4869 = vadd.f32 0.0, %v4868
    %v4870 = vpop.f32.mrb[0].mxu0
    %v4871 = vadd.f32 0.0, %v4870
    %4872 = vdwg.mxu0
    %v4873 = vadd.f32 %v4795, %v4869
    %v4874 = vadd.f32 %v4796, %v4871
    %v4875 = vxor.u32 %v4873, 2147483648
    %v4876 = vxor.u32 %v4874, 2147483648
    %v4877 = vmul.f32 %v4875, 1.442695
    %v4878 = vpow.pop %v4877
    %v4879 = vmul.f32 %v4876, 1.442695
    %v4880 = vpow.pop %v4879
    %v4881 = vadd.f32 %v4878, 1.0
    %v4882 = vadd.f32 %v4880, 1.0
    %v4883 = vrcp.pop %v4881
    %v4884 = vmul.f32 1.0, %v4883
    %v4885 = vrcp.pop %v4882
    %v4886 = vmul.f32 1.0, %v4885
    %v4887 = vtanh.pop %v4874
    %v4888 = vmul.f32 %v4884, %v4792
    %v4889 = vmul.f32 %v4884, %v4887
    %4891 = vrot.lane.b32.xlu0 %v4889, 64
    %v4892 = vpop.permute.xlu0 %4891
    %v4894 = vadd.f32 %v4888, %v4892
    %v4895 = vtanh.pop %v4894
    %v4896 = vmul.f32 %v4886, %v4895
    %v4897 = vsel %vm565, %v2468, %v4342
    %v4898 = vsel %vm566, %v2470, %v4344
    %4900 = vrot.lane.b32.xlu0 %v4896, 64
    %v4901 = vpop.permute.xlu0 %4900
    %v4902 = vsel %vm1206, %v4901, 0
    %4904 = vmatprep.subr.mxu0 %v4574
    %4905 = vmatpush1.msra.mxu0 %v4573
    %4906 = vmatprep.subr.mxu0 %v4576
    %4907 = vmatpush1.msra.mxu0 %v4575
    %4908 = vmatprep.subr.mxu0 %v4578
    %4909 = vmatpush1.msra.mxu0 %v4577
    %4910 = vmatprep.subr.mxu0 %v4580
    %4911 = vmatpush1.msra.mxu0 %v4579
    %4912 = vmatprep.subr.mxu0 %v4582
    %4913 = vmatpush1.msra.mxu0 %v4581
    %4914 = vmatprep.subr.mxu0 %v4584
    %4915 = vmatpush1.msra.mxu0 %v4583
    %4916 = vmatprep.subr.mxu0 %v4586
    %4917 = vmatpush1.msra.mxu0 %v4585
    %4918 = vmatprep.subr.mxu0 %v4588
    %4919 = vmatpush1.msra.mxu0 %v4587
    %4920 = vmatprep.subr.mxu0 0.0
    %4921 = vmatpush1.msra.mxu0 0.0
    %4922 = vmatprep.subr.mxu0 0.0
    %4923 = vmatpush1.msra.mxu0 0.0
    %4924 = vmatprep.subr.mxu0 0.0
    %4925 = vmatpush1.msra.mxu0 0.0
    %4926 = vmatprep.subr.mxu0 0.0
    %4927 = vmatpush1.msra.mxu0 0.0
    %4928 = vmatprep.subr.mxu0 0.0
    %4929 = vmatpush1.msra.mxu0 0.0
    %4930 = vmatprep.subr.mxu0 0.0
    %4931 = vmatpush1.msra.mxu0 0.0
    %4932 = vmatprep.subr.mxu0 0.0
    %4933 = vmatpush1.msra.mxu0 0.0
    %4934 = vmatprep.subr.mxu0 0.0
    %4935 = vmatpush1.msra.mxu0 0.0
    %4936 = vmatprep.subr.mxu0 0.0
    %4937 = vmatpush1.msra.mxu0 0.0
    %4938 = vmatprep.subr.mxu0 0.0
    %4939 = vmatpush1.msra.mxu0 0.0
    %4940 = vmatprep.subr.mxu0 0.0
    %4941 = vmatpush1.msra.mxu0 0.0
    %4942 = vmatprep.subr.mxu0 0.0
    %4943 = vmatpush1.msra.mxu0 0.0
    %4944 = vmatprep.subr.mxu0 0.0
    %4945 = vmatpush1.msra.mxu0 0.0
    %4946 = vmatprep.subr.mxu0 0.0
    %4947 = vmatpush1.msra.mxu0 0.0
    %4948 = vmatprep.subr.mxu0 0.0
    %4949 = vmatpush1.msra.mxu0 0.0
    %4950 = vmatprep.subr.mxu0 0.0
    %4951 = vmatpush1.msra.mxu0 0.0
    %4952 = vmatprep.subr.mxu0 0.0
    %4953 = vmatpush1.msra.mxu0 0.0
    %4954 = vmatprep.subr.mxu0 0.0
    %4955 = vmatpush1.msra.mxu0 0.0
    %4956 = vmatprep.subr.mxu0 0.0
    %4957 = vmatpush1.msra.mxu0 0.0
    %4958 = vmatprep.subr.mxu0 0.0
    %4959 = vmatpush1.msra.mxu0 0.0
    %4960 = vmatprep.subr.mxu0 0.0
    %4961 = vmatpush1.msra.mxu0 0.0
    %4962 = vmatprep.subr.mxu0 0.0
    %4963 = vmatpush1.msra.mxu0 0.0
    %4964 = vmatprep.subr.mxu0 0.0
    %4965 = vmatpush1.msra.mxu0 0.0
    %4966 = vmatprep.subr.mxu0 0.0
    %4967 = vmatpush1.msra.mxu0 0.0
    %4968 = vmatprep.mubr.f32.mxu0 0.0
    %4969 = vmatmul.mubr.f32.gmra.mrb[0].mxu0 %v4902
    %v4970 = vpop.f32.mrb[0].mxu0
    %v4971 = vadd.f32 0.0, %v4970
    %v4972 = vpop.f32.mrb[0].mxu0
    %v4973 = vadd.f32 0.0, %v4972
    %4974 = vdwg.mxu0
    %v4975 = vadd.f32 %v4897, %v4971
    %v4976 = vadd.f32 %v4898, %v4973
    %v4977 = vxor.u32 %v4975, 2147483648
    %v4978 = vxor.u32 %v4976, 2147483648
    %v4979 = vmul.f32 %v4977, 1.442695
    %v4980 = vpow.pop %v4979
    %v4981 = vmul.f32 %v4978, 1.442695
    %v4982 = vpow.pop %v4981
    %v4983 = vadd.f32 %v4980, 1.0
    %v4984 = vadd.f32 %v4982, 1.0
    %v4985 = vrcp.pop %v4983
    %v4986 = vmul.f32 1.0, %v4985
    %v4987 = vrcp.pop %v4984
    %v4988 = vmul.f32 1.0, %v4987
    %v4989 = vtanh.pop %v4976
    %v4990 = vmul.f32 %v4986, %v4894
    %v4991 = vmul.f32 %v4986, %v4989
    %4993 = vrot.lane.b32.xlu0 %v4991, 64
    %v4994 = vpop.permute.xlu0 %4993
    %v4996 = vadd.f32 %v4990, %v4994
    %v4997 = vtanh.pop %v4996
    %v4998 = vmul.f32 %v4988, %v4997
    %v4999 = vsel %vm565, %v2543, %v4267
    %v5000 = vsel %vm566, %v2545, %v4269
    %5002 = vrot.lane.b32.xlu0 %v4998, 64
    %v5003 = vpop.permute.xlu0 %5002
    %v5004 = vsel %vm1206, %v5003, 0
    %5006 = vmatprep.subr.mxu0 %v4574
    %5007 = vmatpush1.msra.mxu0 %v4573
    %5008 = vmatprep.subr.mxu0 %v4576
    %5009 = vmatpush1.msra.mxu0 %v4575
    %5010 = vmatprep.subr.mxu0 %v4578
    %5011 = vmatpush1.msra.mxu0 %v4577
    %5012 = vmatprep.subr.mxu0 %v4580
    %5013 = vmatpush1.msra.mxu0 %v4579
    %5014 = vmatprep.subr.mxu0 %v4582
    %5015 = vmatpush1.msra.mxu0 %v4581
    %5016 = vmatprep.subr.mxu0 %v4584
    %5017 = vmatpush1.msra.mxu0 %v4583
    %5018 = vmatprep.subr.mxu0 %v4586
    %5019 = vmatpush1.msra.mxu0 %v4585
    %5020 = vmatprep.subr.mxu0 %v4588
    %5021 = vmatpush1.msra.mxu0 %v4587
    %5022 = vmatprep.subr.mxu0 0.0
    %5023 = vmatpush1.msra.mxu0 0.0
    %5024 = vmatprep.subr.mxu0 0.0
    %5025 = vmatpush1.msra.mxu0 0.0
    %5026 = vmatprep.subr.mxu0 0.0
    %5027 = vmatpush1.msra.mxu0 0.0
    %5028 = vmatprep.subr.mxu0 0.0
    %5029 = vmatpush1.msra.mxu0 0.0
    %5030 = vmatprep.subr.mxu0 0.0
    %5031 = vmatpush1.msra.mxu0 0.0
    %5032 = vmatprep.subr.mxu0 0.0
    %5033 = vmatpush1.msra.mxu0 0.0
    %5034 = vmatprep.subr.mxu0 0.0
    %5035 = vmatpush1.msra.mxu0 0.0
    %5036 = vmatprep.subr.mxu0 0.0
    %5037 = vmatpush1.msra.mxu0 0.0
    %5038 = vmatprep.subr.mxu0 0.0
    %5039 = vmatpush1.msra.mxu0 0.0
    %5040 = vmatprep.subr.mxu0 0.0
    %5041 = vmatpush1.msra.mxu0 0.0
    %5042 = vmatprep.subr.mxu0 0.0
    %5043 = vmatpush1.msra.mxu0 0.0
    %5044 = vmatprep.subr.mxu0 0.0
    %5045 = vmatpush1.msra.mxu0 0.0
    %5046 = vmatprep.subr.mxu0 0.0
    %5047 = vmatpush1.msra.mxu0 0.0
    %5048 = vmatprep.subr.mxu0 0.0
    %5049 = vmatpush1.msra.mxu0 0.0
    %5050 = vmatprep.subr.mxu0 0.0
    %5051 = vmatpush1.msra.mxu0 0.0
    %5052 = vmatprep.subr.mxu0 0.0
    %5053 = vmatpush1.msra.mxu0 0.0
    %5054 = vmatprep.subr.mxu0 0.0
    %5055 = vmatpush1.msra.mxu0 0.0
    %5056 = vmatprep.subr.mxu0 0.0
    %5057 = vmatpush1.msra.mxu0 0.0
    %5058 = vmatprep.subr.mxu0 0.0
    %5059 = vmatpush1.msra.mxu0 0.0
    %5060 = vmatprep.subr.mxu0 0.0
    %5061 = vmatpush1.msra.mxu0 0.0
    %5062 = vmatprep.subr.mxu0 0.0
    %5063 = vmatpush1.msra.mxu0 0.0
    %5064 = vmatprep.subr.mxu0 0.0
    %5065 = vmatpush1.msra.mxu0 0.0
    %5066 = vmatprep.subr.mxu0 0.0
    %5067 = vmatpush1.msra.mxu0 0.0
    %5068 = vmatprep.subr.mxu0 0.0
    %5069 = vmatpush1.msra.mxu0 0.0
    %5070 = vmatprep.mubr.f32.mxu0 0.0
    %5071 = vmatmul.mubr.f32.gmra.mrb[0].mxu0 %v5004
    %v5072 = vpop.f32.mrb[0].mxu0
    %v5073 = vadd.f32 0.0, %v5072
    %v5074 = vpop.f32.mrb[0].mxu0
    %v5075 = vadd.f32 0.0, %v5074
    %5076 = vdwg.mxu0
    %v5077 = vadd.f32 %v4999, %v5073
    %v5078 = vadd.f32 %v5000, %v5075
    %v5079 = vxor.u32 %v5077, 2147483648
    %v5080 = vxor.u32 %v5078, 2147483648
    %v5081 = vmul.f32 %v5079, 1.442695
    %v5082 = vpow.pop %v5081
    %v5083 = vmul.f32 %v5080, 1.442695
    %v5084 = vpow.pop %v5083
    %v5085 = vadd.f32 %v5082, 1.0
    %v5086 = vadd.f32 %v5084, 1.0
    %v5087 = vrcp.pop %v5085
    %v5088 = vmul.f32 1.0, %v5087
    %v5089 = vrcp.pop %v5086
    %v5090 = vmul.f32 1.0, %v5089
    %v5091 = vtanh.pop %v5078
    %v5092 = vmul.f32 %v5088, %v4996
    %v5093 = vmul.f32 %v5088, %v5091
    %5095 = vrot.lane.b32.xlu0 %v5093, 64
    %v5096 = vpop.permute.xlu0 %5095
    %v5098 = vadd.f32 %v5092, %v5096
    %v5099 = vtanh.pop %v5098
    %v5100 = vmul.f32 %v5090, %v5099
    %v5101 = vsel %vm565, %v2618, %v4192
    %v5102 = vsel %vm566, %v2620, %v4194
    %5104 = vrot.lane.b32.xlu0 %v5100, 64
    %v5105 = vpop.permute.xlu0 %5104
    %v5106 = vsel %vm1206, %v5105, 0
    %5108 = vmatprep.subr.mxu0 %v4574
    %5109 = vmatpush1.msra.mxu0 %v4573
    %5110 = vmatprep.subr.mxu0 %v4576
    %5111 = vmatpush1.msra.mxu0 %v4575
    %5112 = vmatprep.subr.mxu0 %v4578
    %5113 = vmatpush1.msra.mxu0 %v4577
    %5114 = vmatprep.subr.mxu0 %v4580
    %5115 = vmatpush1.msra.mxu0 %v4579
    %5116 = vmatprep.subr.mxu0 %v4582
    %5117 = vmatpush1.msra.mxu0 %v4581
    %5118 = vmatprep.subr.mxu0 %v4584
    %5119 = vmatpush1.msra.mxu0 %v4583
    %5120 = vmatprep.subr.mxu0 %v4586
    %5121 = vmatpush1.msra.mxu0 %v4585
    %5122 = vmatprep.subr.mxu0 %v4588
    %5123 = vmatpush1.msra.mxu0 %v4587
    %5124 = vmatprep.subr.mxu0 0.0
    %5125 = vmatpush1.msra.mxu0 0.0
    %5126 = vmatprep.subr.mxu0 0.0
    %5127 = vmatpush1.msra.mxu0 0.0
    %5128 = vmatprep.subr.mxu0 0.0
    %5129 = vmatpush1.msra.mxu0 0.0
    %5130 = vmatprep.subr.mxu0 0.0
    %5131 = vmatpush1.msra.mxu0 0.0
    %5132 = vmatprep.subr.mxu0 0.0
    %5133 = vmatpush1.msra.mxu0 0.0
    %5134 = vmatprep.subr.mxu0 0.0
    %5135 = vmatpush1.msra.mxu0 0.0
    %5136 = vmatprep.subr.mxu0 0.0
    %5137 = vmatpush1.msra.mxu0 0.0
    %5138 = vmatprep.subr.mxu0 0.0
    %5139 = vmatpush1.msra.mxu0 0.0
    %5140 = vmatprep.subr.mxu0 0.0
    %5141 = vmatpush1.msra.mxu0 0.0
    %5142 = vmatprep.subr.mxu0 0.0
    %5143 = vmatpush1.msra.mxu0 0.0
    %5144 = vmatprep.subr.mxu0 0.0
    %5145 = vmatpush1.msra.mxu0 0.0
    %5146 = vmatprep.subr.mxu0 0.0
    %5147 = vmatpush1.msra.mxu0 0.0
    %5148 = vmatprep.subr.mxu0 0.0
    %5149 = vmatpush1.msra.mxu0 0.0
    %5150 = vmatprep.subr.mxu0 0.0
    %5151 = vmatpush1.msra.mxu0 0.0
    %5152 = vmatprep.subr.mxu0 0.0
    %5153 = vmatpush1.msra.mxu0 0.0
    %5154 = vmatprep.subr.mxu0 0.0
    %5155 = vmatpush1.msra.mxu0 0.0
    %5156 = vmatprep.subr.mxu0 0.0
    %5157 = vmatpush1.msra.mxu0 0.0
    %5158 = vmatprep.subr.mxu0 0.0
    %5159 = vmatpush1.msra.mxu0 0.0
    %5160 = vmatprep.subr.mxu0 0.0
    %5161 = vmatpush1.msra.mxu0 0.0
    %5162 = vmatprep.subr.mxu0 0.0
    %5163 = vmatpush1.msra.mxu0 0.0
    %5164 = vmatprep.subr.mxu0 0.0
    %5165 = vmatpush1.msra.mxu0 0.0
    %5166 = vmatprep.subr.mxu0 0.0
    %5167 = vmatpush1.msra.mxu0 0.0
    %5168 = vmatprep.subr.mxu0 0.0
    %5169 = vmatpush1.msra.mxu0 0.0
    %5170 = vmatprep.subr.mxu0 0.0
    %5171 = vmatpush1.msra.mxu0 0.0
    %5172 = vmatprep.mubr.f32.mxu0 0.0
    %5173 = vmatmul.mubr.f32.gmra.mrb[0].mxu0 %v5106
    %v5174 = vpop.f32.mrb[0].mxu0
    %v5175 = vadd.f32 0.0, %v5174
    %v5176 = vpop.f32.mrb[0].mxu0
    %v5177 = vadd.f32 0.0, %v5176
    %5178 = vdwg.mxu0
    %v5179 = vadd.f32 %v5101, %v5175
    %v5180 = vadd.f32 %v5102, %v5177
    %v5181 = vxor.u32 %v5179, 2147483648
    %v5182 = vxor.u32 %v5180, 2147483648
    %v5183 = vmul.f32 %v5181, 1.442695
    %v5184 = vpow.pop %v5183
    %v5185 = vmul.f32 %v5182, 1.442695
    %v5186 = vpow.pop %v5185
    %v5187 = vadd.f32 %v5184, 1.0
    %v5188 = vadd.f32 %v5186, 1.0
    %v5189 = vrcp.pop %v5187
    %v5190 = vmul.f32 1.0, %v5189
    %v5191 = vrcp.pop %v5188
    %v5192 = vmul.f32 1.0, %v5191
    %v5193 = vtanh.pop %v5180
    %v5194 = vmul.f32 %v5190, %v5098
    %v5195 = vmul.f32 %v5190, %v5193
    %5197 = vrot.lane.b32.xlu0 %v5195, 64
    %v5198 = vpop.permute.xlu0 %5197
    %v5200 = vadd.f32 %v5194, %v5198
    %v5201 = vtanh.pop %v5200
    %v5202 = vmul.f32 %v5192, %v5201
    %v5203 = vsel %vm565, %v2693, %v4117
    %v5204 = vsel %vm566, %v2695, %v4119
    %5206 = vrot.lane.b32.xlu0 %v5202, 64
    %v5207 = vpop.permute.xlu0 %5206
    %v5208 = vsel %vm1206, %v5207, 0
    %5210 = vmatprep.subr.mxu0 %v4574
    %5211 = vmatpush1.msra.mxu0 %v4573
    %5212 = vmatprep.subr.mxu0 %v4576
    %5213 = vmatpush1.msra.mxu0 %v4575
    %5214 = vmatprep.subr.mxu0 %v4578
    %5215 = vmatpush1.msra.mxu0 %v4577
    %5216 = vmatprep.subr.mxu0 %v4580
    %5217 = vmatpush1.msra.mxu0 %v4579
    %5218 = vmatprep.subr.mxu0 %v4582
    %5219 = vmatpush1.msra.mxu0 %v4581
    %5220 = vmatprep.subr.mxu0 %v4584
    %5221 = vmatpush1.msra.mxu0 %v4583
    %5222 = vmatprep.subr.mxu0 %v4586
    %5223 = vmatpush1.msra.mxu0 %v4585
    %5224 = vmatprep.subr.mxu0 %v4588
    %5225 = vmatpush1.msra.mxu0 %v4587
    %5226 = vmatprep.subr.mxu0 0.0
    %5227 = vmatpush1.msra.mxu0 0.0
    %5228 = vmatprep.subr.mxu0 0.0
    %5229 = vmatpush1.msra.mxu0 0.0
    %5230 = vmatprep.subr.mxu0 0.0
    %5231 = vmatpush1.msra.mxu0 0.0
    %5232 = vmatprep.subr.mxu0 0.0
    %5233 = vmatpush1.msra.mxu0 0.0
    %5234 = vmatprep.subr.mxu0 0.0
    %5235 = vmatpush1.msra.mxu0 0.0
    %5236 = vmatprep.subr.mxu0 0.0
    %5237 = vmatpush1.msra.mxu0 0.0
    %5238 = vmatprep.subr.mxu0 0.0
    %5239 = vmatpush1.msra.mxu0 0.0
    %5240 = vmatprep.subr.mxu0 0.0
    %5241 = vmatpush1.msra.mxu0 0.0
    %5242 = vmatprep.subr.mxu0 0.0
    %5243 = vmatpush1.msra.mxu0 0.0
    %5244 = vmatprep.subr.mxu0 0.0
    %5245 = vmatpush1.msra.mxu0 0.0
    %5246 = vmatprep.subr.mxu0 0.0
    %5247 = vmatpush1.msra.mxu0 0.0
    %5248 = vmatprep.subr.mxu0 0.0
    %5249 = vmatpush1.msra.mxu0 0.0
    %5250 = vmatprep.subr.mxu0 0.0
    %5251 = vmatpush1.msra.mxu0 0.0
    %5252 = vmatprep.subr.mxu0 0.0
    %5253 = vmatpush1.msra.mxu0 0.0
    %5254 = vmatprep.subr.mxu0 0.0
    %5255 = vmatpush1.msra.mxu0 0.0
    %5256 = vmatprep.subr.mxu0 0.0
    %5257 = vmatpush1.msra.mxu0 0.0
    %5258 = vmatprep.subr.mxu0 0.0
    %5259 = vmatpush1.msra.mxu0 0.0
    %5260 = vmatprep.subr.mxu0 0.0
    %5261 = vmatpush1.msra.mxu0 0.0
    %5262 = vmatprep.subr.mxu0 0.0
    %5263 = vmatpush1.msra.mxu0 0.0
    %5264 = vmatprep.subr.mxu0 0.0
    %5265 = vmatpush1.msra.mxu0 0.0
    %5266 = vmatprep.subr.mxu0 0.0
    %5267 = vmatpush1.msra.mxu0 0.0
    %5268 = vmatprep.subr.mxu0 0.0
    %5269 = vmatpush1.msra.mxu0 0.0
    %5270 = vmatprep.subr.mxu0 0.0
    %5271 = vmatpush1.msra.mxu0 0.0
    %5272 = vmatprep.subr.mxu0 0.0
    %5273 = vmatpush1.msra.mxu0 0.0
    %5274 = vmatprep.mubr.f32.mxu0 0.0
    %5275 = vmatmul.mubr.f32.gmra.mrb[0].mxu0 %v5208
    %v5276 = vpop.f32.mrb[0].mxu0
    %v5277 = vadd.f32 0.0, %v5276
    %v5278 = vpop.f32.mrb[0].mxu0
    %v5279 = vadd.f32 0.0, %v5278
    %5280 = vdwg.mxu0
    %v5281 = vadd.f32 %v5203, %v5277
    %v5282 = vadd.f32 %v5204, %v5279
    %v5283 = vxor.u32 %v5281, 2147483648
    %v5284 = vxor.u32 %v5282, 2147483648
    %v5285 = vmul.f32 %v5283, 1.442695
    %v5286 = vpow.pop %v5285
    %v5287 = vmul.f32 %v5284, 1.442695
    %v5288 = vpow.pop %v5287
    %v5289 = vadd.f32 %v5286, 1.0
    %v5290 = vadd.f32 %v5288, 1.0
    %v5291 = vrcp.pop %v5289
    %v5292 = vmul.f32 1.0, %v5291
    %v5293 = vrcp.pop %v5290
    %v5294 = vmul.f32 1.0, %v5293
    %v5295 = vtanh.pop %v5282
    %v5296 = vmul.f32 %v5292, %v5200
    %v5297 = vmul.f32 %v5292, %v5295
    %5299 = vrot.lane.b32.xlu0 %v5297, 64
    %v5300 = vpop.permute.xlu0 %5299
    %v5302 = vadd.f32 %v5296, %v5300
    %v5303 = vtanh.pop %v5302
    %v5304 = vmul.f32 %v5294, %v5303
    %v5305 = vsel %vm565, %v2768, %v4042
    %v5306 = vsel %vm566, %v2770, %v4044
    %5308 = vrot.lane.b32.xlu0 %v5304, 64
    %v5309 = vpop.permute.xlu0 %5308
    %v5310 = vsel %vm1206, %v5309, 0
    %5312 = vmatprep.subr.mxu0 %v4574
    %5313 = vmatpush1.msra.mxu0 %v4573
    %5314 = vmatprep.subr.mxu0 %v4576
    %5315 = vmatpush1.msra.mxu0 %v4575
    %5316 = vmatprep.subr.mxu0 %v4578
    %5317 = vmatpush1.msra.mxu0 %v4577
    %5318 = vmatprep.subr.mxu0 %v4580
    %5319 = vmatpush1.msra.mxu0 %v4579
    %5320 = vmatprep.subr.mxu0 %v4582
    %5321 = vmatpush1.msra.mxu0 %v4581
    %5322 = vmatprep.subr.mxu0 %v4584
    %5323 = vmatpush1.msra.mxu0 %v4583
    %5324 = vmatprep.subr.mxu0 %v4586
    %5325 = vmatpush1.msra.mxu0 %v4585
    %5326 = vmatprep.subr.mxu0 %v4588
    %5327 = vmatpush1.msra.mxu0 %v4587
    %5328 = vmatprep.subr.mxu0 0.0
    %5329 = vmatpush1.msra.mxu0 0.0
    %5330 = vmatprep.subr.mxu0 0.0
    %5331 = vmatpush1.msra.mxu0 0.0
    %5332 = vmatprep.subr.mxu0 0.0
    %5333 = vmatpush1.msra.mxu0 0.0
    %5334 = vmatprep.subr.mxu0 0.0
    %5335 = vmatpush1.msra.mxu0 0.0
    %5336 = vmatprep.subr.mxu0 0.0
    %5337 = vmatpush1.msra.mxu0 0.0
    %5338 = vmatprep.subr.mxu0 0.0
    %5339 = vmatpush1.msra.mxu0 0.0
    %5340 = vmatprep.subr.mxu0 0.0
    %5341 = vmatpush1.msra.mxu0 0.0
    %5342 = vmatprep.subr.mxu0 0.0
    %5343 = vmatpush1.msra.mxu0 0.0
    %5344 = vmatprep.subr.mxu0 0.0
    %5345 = vmatpush1.msra.mxu0 0.0
    %5346 = vmatprep.subr.mxu0 0.0
    %5347 = vmatpush1.msra.mxu0 0.0
    %5348 = vmatprep.subr.mxu0 0.0
    %5349 = vmatpush1.msra.mxu0 0.0
    %5350 = vmatprep.subr.mxu0 0.0
    %5351 = vmatpush1.msra.mxu0 0.0
    %5352 = vmatprep.subr.mxu0 0.0
    %5353 = vmatpush1.msra.mxu0 0.0
    %5354 = vmatprep.subr.mxu0 0.0
    %5355 = vmatpush1.msra.mxu0 0.0
    %5356 = vmatprep.subr.mxu0 0.0
    %5357 = vmatpush1.msra.mxu0 0.0
    %5358 = vmatprep.subr.mxu0 0.0
    %5359 = vmatpush1.msra.mxu0 0.0
    %5360 = vmatprep.subr.mxu0 0.0
    %5361 = vmatpush1.msra.mxu0 0.0
    %5362 = vmatprep.subr.mxu0 0.0
    %5363 = vmatpush1.msra.mxu0 0.0
    %5364 = vmatprep.subr.mxu0 0.0
    %5365 = vmatpush1.msra.mxu0 0.0
    %5366 = vmatprep.subr.mxu0 0.0
    %5367 = vmatpush1.msra.mxu0 0.0
    %5368 = vmatprep.subr.mxu0 0.0
    %5369 = vmatpush1.msra.mxu0 0.0
    %5370 = vmatprep.subr.mxu0 0.0
    %5371 = vmatpush1.msra.mxu0 0.0
    %5372 = vmatprep.subr.mxu0 0.0
    %5373 = vmatpush1.msra.mxu0 0.0
    %5374 = vmatprep.subr.mxu0 0.0
    %5375 = vmatpush1.msra.mxu0 0.0
    %5376 = vmatprep.mubr.f32.mxu0 0.0
    %5377 = vmatmul.mubr.f32.gmra.mrb[0].mxu0 %v5310
    %v5378 = vpop.f32.mrb[0].mxu0
    %v5379 = vadd.f32 0.0, %v5378
    %v5380 = vpop.f32.mrb[0].mxu0
    %v5381 = vadd.f32 0.0, %v5380
    %5382 = vdwg.mxu0
    %v5383 = vadd.f32 %v5305, %v5379
    %v5384 = vadd.f32 %v5306, %v5381
    %v5385 = vxor.u32 %v5383, 2147483648
    %v5386 = vxor.u32 %v5384, 2147483648
    %v5387 = vmul.f32 %v5385, 1.442695
    %v5388 = vpow.pop %v5387
    %v5389 = vmul.f32 %v5386, 1.442695
    %v5390 = vpow.pop %v5389
    %v5391 = vadd.f32 %v5388, 1.0
    %v5392 = vadd.f32 %v5390, 1.0
    %v5393 = vrcp.pop %v5391
    %v5394 = vmul.f32 1.0, %v5393
    %v5395 = vrcp.pop %v5392
    %v5396 = vmul.f32 1.0, %v5395
    %v5397 = vtanh.pop %v5384
    %v5398 = vmul.f32 %v5394, %v5302
    %v5399 = vmul.f32 %v5394, %v5397
    %5401 = vrot.lane.b32.xlu0 %v5399, 64
    %v5402 = vpop.permute.xlu0 %5401
    %v5404 = vadd.f32 %v5398, %v5402
    %v5405 = vtanh.pop %v5404
    %v5406 = vmul.f32 %v5396, %v5405
    %v5407 = vsel %vm565, %v2843, %v3967
    %v5408 = vsel %vm566, %v2845, %v3969
    %5410 = vrot.lane.b32.xlu0 %v5406, 64
    %v5411 = vpop.permute.xlu0 %5410
    %v5412 = vsel %vm1206, %v5411, 0
    %5414 = vmatprep.subr.mxu0 %v4574
    %5415 = vmatpush1.msra.mxu0 %v4573
    %5416 = vmatprep.subr.mxu0 %v4576
    %5417 = vmatpush1.msra.mxu0 %v4575
    %5418 = vmatprep.subr.mxu0 %v4578
    %5419 = vmatpush1.msra.mxu0 %v4577
    %5420 = vmatprep.subr.mxu0 %v4580
    %5421 = vmatpush1.msra.mxu0 %v4579
    %5422 = vmatprep.subr.mxu0 %v4582
    %5423 = vmatpush1.msra.mxu0 %v4581
    %5424 = vmatprep.subr.mxu0 %v4584
    %5425 = vmatpush1.msra.mxu0 %v4583
    %5426 = vmatprep.subr.mxu0 %v4586
    %5427 = vmatpush1.msra.mxu0 %v4585
    %5428 = vmatprep.subr.mxu0 %v4588
    %5429 = vmatpush1.msra.mxu0 %v4587
    %5430 = vmatprep.subr.mxu0 0.0
    %5431 = vmatpush1.msra.mxu0 0.0
    %5432 = vmatprep.subr.mxu0 0.0
    %5433 = vmatpush1.msra.mxu0 0.0
    %5434 = vmatprep.subr.mxu0 0.0
    %5435 = vmatpush1.msra.mxu0 0.0
    %5436 = vmatprep.subr.mxu0 0.0
    %5437 = vmatpush1.msra.mxu0 0.0
    %5438 = vmatprep.subr.mxu0 0.0
    %5439 = vmatpush1.msra.mxu0 0.0
    %5440 = vmatprep.subr.mxu0 0.0
    %5441 = vmatpush1.msra.mxu0 0.0
    %5442 = vmatprep.subr.mxu0 0.0
    %5443 = vmatpush1.msra.mxu0 0.0
    %5444 = vmatprep.subr.mxu0 0.0
    %5445 = vmatpush1.msra.mxu0 0.0
    %5446 = vmatprep.subr.mxu0 0.0
    %5447 = vmatpush1.msra.mxu0 0.0
    %5448 = vmatprep.subr.mxu0 0.0
    %5449 = vmatpush1.msra.mxu0 0.0
    %5450 = vmatprep.subr.mxu0 0.0
    %5451 = vmatpush1.msra.mxu0 0.0
    %5452 = vmatprep.subr.mxu0 0.0
    %5453 = vmatpush1.msra.mxu0 0.0
    %5454 = vmatprep.subr.mxu0 0.0
    %5455 = vmatpush1.msra.mxu0 0.0
    %5456 = vmatprep.subr.mxu0 0.0
    %5457 = vmatpush1.msra.mxu0 0.0
    %5458 = vmatprep.subr.mxu0 0.0
    %5459 = vmatpush1.msra.mxu0 0.0
    %5460 = vmatprep.subr.mxu0 0.0
    %5461 = vmatpush1.msra.mxu0 0.0
    %5462 = vmatprep.subr.mxu0 0.0
    %5463 = vmatpush1.msra.mxu0 0.0
    %5464 = vmatprep.subr.mxu0 0.0
    %5465 = vmatpush1.msra.mxu0 0.0
    %5466 = vmatprep.subr.mxu0 0.0
    %5467 = vmatpush1.msra.mxu0 0.0
    %5468 = vmatprep.subr.mxu0 0.0
    %5469 = vmatpush1.msra.mxu0 0.0
    %5470 = vmatprep.subr.mxu0 0.0
    %5471 = vmatpush1.msra.mxu0 0.0
    %5472 = vmatprep.subr.mxu0 0.0
    %5473 = vmatpush1.msra.mxu0 0.0
    %5474 = vmatprep.subr.mxu0 0.0
    %5475 = vmatpush1.msra.mxu0 0.0
    %5476 = vmatprep.subr.mxu0 0.0
    %5477 = vmatpush1.msra.mxu0 0.0
    %5478 = vmatprep.mubr.f32.mxu0 0.0
    %5479 = vmatmul.mubr.f32.gmra.mrb[0].mxu0 %v5412
    %v5480 = vpop.f32.mrb[0].mxu0
    %v5481 = vadd.f32 0.0, %v5480
    %v5482 = vpop.f32.mrb[0].mxu0
    %v5483 = vadd.f32 0.0, %v5482
    %5484 = vdwg.mxu0
    %v5485 = vadd.f32 %v5407, %v5481
    %v5486 = vadd.f32 %v5408, %v5483
    %v5487 = vxor.u32 %v5485, 2147483648
    %v5488 = vxor.u32 %v5486, 2147483648
    %v5489 = vmul.f32 %v5487, 1.442695
    %v5490 = vpow.pop %v5489
    %v5491 = vmul.f32 %v5488, 1.442695
    %v5492 = vpow.pop %v5491
    %v5493 = vadd.f32 %v5490, 1.0
    %v5494 = vadd.f32 %v5492, 1.0
    %v5495 = vrcp.pop %v5493
    %v5496 = vmul.f32 1.0, %v5495
    %v5497 = vrcp.pop %v5494
    %v5498 = vmul.f32 1.0, %v5497
    %v5499 = vtanh.pop %v5486
    %v5500 = vmul.f32 %v5496, %v5404
    %v5501 = vmul.f32 %v5496, %v5499
    %5503 = vrot.lane.b32.xlu0 %v5501, 64
    %v5504 = vpop.permute.xlu0 %5503
    %v5506 = vadd.f32 %v5500, %v5504
    %v5507 = vtanh.pop %v5506
    %v5508 = vmul.f32 %v5498, %v5507
    %v5509 = vsel %vm565, %v2918, %v3892
    %v5510 = vsel %vm566, %v2920, %v3894
    %5512 = vrot.lane.b32.xlu0 %v5508, 64
    %v5513 = vpop.permute.xlu0 %5512
    %v5514 = vsel %vm1206, %v5513, 0
    %5516 = vmatprep.subr.mxu0 %v4574
    %5517 = vmatpush1.msra.mxu0 %v4573
    %5518 = vmatprep.subr.mxu0 %v4576
    %5519 = vmatpush1.msra.mxu0 %v4575
    %5520 = vmatprep.subr.mxu0 %v4578
    %5521 = vmatpush1.msra.mxu0 %v4577
    %5522 = vmatprep.subr.mxu0 %v4580
    %5523 = vmatpush1.msra.mxu0 %v4579
    %5524 = vmatprep.subr.mxu0 %v4582
    %5525 = vmatpush1.msra.mxu0 %v4581
    %5526 = vmatprep.subr.mxu0 %v4584
    %5527 = vmatpush1.msra.mxu0 %v4583
    %5528 = vmatprep.subr.mxu0 %v4586
    %5529 = vmatpush1.msra.mxu0 %v4585
    %5530 = vmatprep.subr.mxu0 %v4588
    %5531 = vmatpush1.msra.mxu0 %v4587
    %5532 = vmatprep.subr.mxu0 0.0
    %5533 = vmatpush1.msra.mxu0 0.0
    %5534 = vmatprep.subr.mxu0 0.0
    %5535 = vmatpush1.msra.mxu0 0.0
    %5536 = vmatprep.subr.mxu0 0.0
    %5537 = vmatpush1.msra.mxu0 0.0
    %5538 = vmatprep.subr.mxu0 0.0
    %5539 = vmatpush1.msra.mxu0 0.0
    %5540 = vmatprep.subr.mxu0 0.0
    %5541 = vmatpush1.msra.mxu0 0.0
    %5542 = vmatprep.subr.mxu0 0.0
    %5543 = vmatpush1.msra.mxu0 0.0
    %5544 = vmatprep.subr.mxu0 0.0
    %5545 = vmatpush1.msra.mxu0 0.0
    %5546 = vmatprep.subr.mxu0 0.0
    %5547 = vmatpush1.msra.mxu0 0.0
    %5548 = vmatprep.subr.mxu0 0.0
    %5549 = vmatpush1.msra.mxu0 0.0
    %5550 = vmatprep.subr.mxu0 0.0
    %5551 = vmatpush1.msra.mxu0 0.0
    %5552 = vmatprep.subr.mxu0 0.0
    %5553 = vmatpush1.msra.mxu0 0.0
    %5554 = vmatprep.subr.mxu0 0.0
    %5555 = vmatpush1.msra.mxu0 0.0
    %5556 = vmatprep.subr.mxu0 0.0
    %5557 = vmatpush1.msra.mxu0 0.0
    %5558 = vmatprep.subr.mxu0 0.0
    %5559 = vmatpush1.msra.mxu0 0.0
    %5560 = vmatprep.subr.mxu0 0.0
    %5561 = vmatpush1.msra.mxu0 0.0
    %5562 = vmatprep.subr.mxu0 0.0
    %5563 = vmatpush1.msra.mxu0 0.0
    %5564 = vmatprep.subr.mxu0 0.0
    %5565 = vmatpush1.msra.mxu0 0.0
    %5566 = vmatprep.subr.mxu0 0.0
    %5567 = vmatpush1.msra.mxu0 0.0
    %5568 = vmatprep.subr.mxu0 0.0
    %5569 = vmatpush1.msra.mxu0 0.0
    %5570 = vmatprep.subr.mxu0 0.0
    %5571 = vmatpush1.msra.mxu0 0.0
    %5572 = vmatprep.subr.mxu0 0.0
    %5573 = vmatpush1.msra.mxu0 0.0
    %5574 = vmatprep.subr.mxu0 0.0
    %5575 = vmatpush1.msra.mxu0 0.0
    %5576 = vmatprep.subr.mxu0 0.0
    %5577 = vmatpush1.msra.mxu0 0.0
    %5578 = vmatprep.subr.mxu0 0.0
    %5579 = vmatpush1.msra.mxu0 0.0
    %5580 = vmatprep.mubr.f32.mxu0 0.0
    %5581 = vmatmul.mubr.f32.gmra.mrb[0].mxu0 %v5514
    %v5582 = vpop.f32.mrb[0].mxu0
    %v5583 = vadd.f32 0.0, %v5582
    %v5584 = vpop.f32.mrb[0].mxu0
    %v5585 = vadd.f32 0.0, %v5584
    %5586 = vdwg.mxu0
    %v5587 = vadd.f32 %v5509, %v5583
    %v5588 = vadd.f32 %v5510, %v5585
    %v5589 = vxor.u32 %v5587, 2147483648
    %v5590 = vxor.u32 %v5588, 2147483648
    %v5591 = vmul.f32 %v5589, 1.442695
    %v5592 = vpow.pop %v5591
    %v5593 = vmul.f32 %v5590, 1.442695
    %v5594 = vpow.pop %v5593
    %v5595 = vadd.f32 %v5592, 1.0
    %v5596 = vadd.f32 %v5594, 1.0
    %v5597 = vrcp.pop %v5595
    %v5598 = vmul.f32 1.0, %v5597
    %v5599 = vrcp.pop %v5596
    %v5600 = vmul.f32 1.0, %v5599
    %v5601 = vtanh.pop %v5588
    %v5602 = vmul.f32 %v5598, %v5506
    %v5603 = vmul.f32 %v5598, %v5601
    %5605 = vrot.lane.b32.xlu0 %v5603, 64
    %v5606 = vpop.permute.xlu0 %5605
    %v5608 = vadd.f32 %v5602, %v5606
    %v5609 = vtanh.pop %v5608
    %v5610 = vmul.f32 %v5600, %v5609
    %v5611 = vsel %vm565, %v2993, %v3817
    %v5612 = vsel %vm566, %v2995, %v3819
    %5614 = vrot.lane.b32.xlu0 %v5610, 64
    %v5615 = vpop.permute.xlu0 %5614
    %v5616 = vsel %vm1206, %v5615, 0
    %5618 = vmatprep.subr.mxu0 %v4574
    %5619 = vmatpush1.msra.mxu0 %v4573
    %5620 = vmatprep.subr.mxu0 %v4576
    %5621 = vmatpush1.msra.mxu0 %v4575
    %5622 = vmatprep.subr.mxu0 %v4578
    %5623 = vmatpush1.msra.mxu0 %v4577
    %5624 = vmatprep.subr.mxu0 %v4580
    %5625 = vmatpush1.msra.mxu0 %v4579
    %5626 = vmatprep.subr.mxu0 %v4582
    %5627 = vmatpush1.msra.mxu0 %v4581
    %5628 = vmatprep.subr.mxu0 %v4584
    %5629 = vmatpush1.msra.mxu0 %v4583
    %5630 = vmatprep.subr.mxu0 %v4586
    %5631 = vmatpush1.msra.mxu0 %v4585
    %5632 = vmatprep.subr.mxu0 %v4588
    %5633 = vmatpush1.msra.mxu0 %v4587
    %5634 = vmatprep.subr.mxu0 0.0
    %5635 = vmatpush1.msra.mxu0 0.0
    %5636 = vmatprep.subr.mxu0 0.0
    %5637 = vmatpush1.msra.mxu0 0.0
    %5638 = vmatprep.subr.mxu0 0.0
    %5639 = vmatpush1.msra.mxu0 0.0
    %5640 = vmatprep.subr.mxu0 0.0
    %5641 = vmatpush1.msra.mxu0 0.0
    %5642 = vmatprep.subr.mxu0 0.0
    %5643 = vmatpush1.msra.mxu0 0.0
    %5644 = vmatprep.subr.mxu0 0.0
    %5645 = vmatpush1.msra.mxu0 0.0
    %5646 = vmatprep.subr.mxu0 0.0
    %5647 = vmatpush1.msra.mxu0 0.0
    %5648 = vmatprep.subr.mxu0 0.0
    %5649 = vmatpush1.msra.mxu0 0.0
    %5650 = vmatprep.subr.mxu0 0.0
    %5651 = vmatpush1.msra.mxu0 0.0
    %5652 = vmatprep.subr.mxu0 0.0
    %5653 = vmatpush1.msra.mxu0 0.0
    %5654 = vmatprep.subr.mxu0 0.0
    %5655 = vmatpush1.msra.mxu0 0.0
    %5656 = vmatprep.subr.mxu0 0.0
    %5657 = vmatpush1.msra.mxu0 0.0
    %5658 = vmatprep.subr.mxu0 0.0
    %5659 = vmatpush1.msra.mxu0 0.0
    %5660 = vmatprep.subr.mxu0 0.0
    %5661 = vmatpush1.msra.mxu0 0.0
    %5662 = vmatprep.subr.mxu0 0.0
    %5663 = vmatpush1.msra.mxu0 0.0
    %5664 = vmatprep.subr.mxu0 0.0
    %5665 = vmatpush1.msra.mxu0 0.0
    %5666 = vmatprep.subr.mxu0 0.0
    %5667 = vmatpush1.msra.mxu0 0.0
    %5668 = vmatprep.subr.mxu0 0.0
    %5669 = vmatpush1.msra.mxu0 0.0
    %5670 = vmatprep.subr.mxu0 0.0
    %5671 = vmatpush1.msra.mxu0 0.0
    %5672 = vmatprep.subr.mxu0 0.0
    %5673 = vmatpush1.msra.mxu0 0.0
    %5674 = vmatprep.subr.mxu0 0.0
    %5675 = vmatpush1.msra.mxu0 0.0
    %5676 = vmatprep.subr.mxu0 0.0
    %5677 = vmatpush1.msra.mxu0 0.0
    %5678 = vmatprep.subr.mxu0 0.0
    %5679 = vmatpush1.msra.mxu0 0.0
    %5680 = vmatprep.subr.mxu0 0.0
    %5681 = vmatpush1.msra.mxu0 0.0
    %5682 = vmatprep.mubr.f32.mxu0 0.0
    %5683 = vmatmul.mubr.f32.gmra.mrb[0].mxu0 %v5616
    %v5684 = vpop.f32.mrb[0].mxu0
    %v5685 = vadd.f32 0.0, %v5684
    %v5686 = vpop.f32.mrb[0].mxu0
    %v5687 = vadd.f32 0.0, %v5686
    %5688 = vdwg.mxu0
    %v5689 = vadd.f32 %v5611, %v5685
    %v5690 = vadd.f32 %v5612, %v5687
    %v5691 = vxor.u32 %v5689, 2147483648
    %v5692 = vxor.u32 %v5690, 2147483648
    %v5693 = vmul.f32 %v5691, 1.442695
    %v5694 = vpow.pop %v5693
    %v5695 = vmul.f32 %v5692, 1.442695
    %v5696 = vpow.pop %v5695
    %v5697 = vadd.f32 %v5694, 1.0
    %v5698 = vadd.f32 %v5696, 1.0
    %v5699 = vrcp.pop %v5697
    %v5700 = vmul.f32 1.0, %v5699
    %v5701 = vrcp.pop %v5698
    %v5702 = vmul.f32 1.0, %v5701
    %v5703 = vtanh.pop %v5690
    %v5704 = vmul.f32 %v5700, %v5608
    %v5705 = vmul.f32 %v5700, %v5703
    %5707 = vrot.lane.b32.xlu0 %v5705, 64
    %v5708 = vpop.permute.xlu0 %5707
    %v5710 = vadd.f32 %v5704, %v5708
    %v5711 = vtanh.pop %v5710
    %v5712 = vmul.f32 %v5702, %v5711
    %v5713 = vsel %vm565, %v3068, %v3742
    %v5714 = vsel %vm566, %v3070, %v3744
    %5716 = vrot.lane.b32.xlu0 %v5712, 64
    %v5717 = vpop.permute.xlu0 %5716
    %v5718 = vsel %vm1206, %v5717, 0
    %5720 = vmatprep.subr.mxu0 %v4574
    %5721 = vmatpush1.msra.mxu0 %v4573
    %5722 = vmatprep.subr.mxu0 %v4576
    %5723 = vmatpush1.msra.mxu0 %v4575
    %5724 = vmatprep.subr.mxu0 %v4578
    %5725 = vmatpush1.msra.mxu0 %v4577
    %5726 = vmatprep.subr.mxu0 %v4580
    %5727 = vmatpush1.msra.mxu0 %v4579
    %5728 = vmatprep.subr.mxu0 %v4582
    %5729 = vmatpush1.msra.mxu0 %v4581
    %5730 = vmatprep.subr.mxu0 %v4584
    %5731 = vmatpush1.msra.mxu0 %v4583
    %5732 = vmatprep.subr.mxu0 %v4586
    %5733 = vmatpush1.msra.mxu0 %v4585
    %5734 = vmatprep.subr.mxu0 %v4588
    %5735 = vmatpush1.msra.mxu0 %v4587
    %5736 = vmatprep.subr.mxu0 0.0
    %5737 = vmatpush1.msra.mxu0 0.0
    %5738 = vmatprep.subr.mxu0 0.0
    %5739 = vmatpush1.msra.mxu0 0.0
    %5740 = vmatprep.subr.mxu0 0.0
    %5741 = vmatpush1.msra.mxu0 0.0
    %5742 = vmatprep.subr.mxu0 0.0
    %5743 = vmatpush1.msra.mxu0 0.0
    %5744 = vmatprep.subr.mxu0 0.0
    %5745 = vmatpush1.msra.mxu0 0.0
    %5746 = vmatprep.subr.mxu0 0.0
    %5747 = vmatpush1.msra.mxu0 0.0
    %5748 = vmatprep.subr.mxu0 0.0
    %5749 = vmatpush1.msra.mxu0 0.0
    %5750 = vmatprep.subr.mxu0 0.0
    %5751 = vmatpush1.msra.mxu0 0.0
    %5752 = vmatprep.subr.mxu0 0.0
    %5753 = vmatpush1.msra.mxu0 0.0
    %5754 = vmatprep.subr.mxu0 0.0
    %5755 = vmatpush1.msra.mxu0 0.0
    %5756 = vmatprep.subr.mxu0 0.0
    %5757 = vmatpush1.msra.mxu0 0.0
    %5758 = vmatprep.subr.mxu0 0.0
    %5759 = vmatpush1.msra.mxu0 0.0
    %5760 = vmatprep.subr.mxu0 0.0
    %5761 = vmatpush1.msra.mxu0 0.0
    %5762 = vmatprep.subr.mxu0 0.0
    %5763 = vmatpush1.msra.mxu0 0.0
    %5764 = vmatprep.subr.mxu0 0.0
    %5765 = vmatpush1.msra.mxu0 0.0
    %5766 = vmatprep.subr.mxu0 0.0
    %5767 = vmatpush1.msra.mxu0 0.0
    %5768 = vmatprep.subr.mxu0 0.0
    %5769 = vmatpush1.msra.mxu0 0.0
    %5770 = vmatprep.subr.mxu0 0.0
    %5771 = vmatpush1.msra.mxu0 0.0
    %5772 = vmatprep.subr.mxu0 0.0
    %5773 = vmatpush1.msra.mxu0 0.0
    %5774 = vmatprep.subr.mxu0 0.0
    %5775 = vmatpush1.msra.mxu0 0.0
    %5776 = vmatprep.subr.mxu0 0.0
    %5777 = vmatpush1.msra.mxu0 0.0
    %5778 = vmatprep.subr.mxu0 0.0
    %5779 = vmatpush1.msra.mxu0 0.0
    %5780 = vmatprep.subr.mxu0 0.0
    %5781 = vmatpush1.msra.mxu0 0.0
    %5782 = vmatprep.subr.mxu0 0.0
    %5783 = vmatpush1.msra.mxu0 0.0
    %5784 = vmatprep.mubr.f32.mxu0 0.0
    %5785 = vmatmul.mubr.f32.gmra.mrb[0].mxu0 %v5718
    %v5786 = vpop.f32.mrb[0].mxu0
    %v5787 = vadd.f32 0.0, %v5786
    %v5788 = vpop.f32.mrb[0].mxu0
    %v5789 = vadd.f32 0.0, %v5788
    %5790 = vdwg.mxu0
    %v5791 = vadd.f32 %v5713, %v5787
    %v5792 = vadd.f32 %v5714, %v5789
    %v5793 = vxor.u32 %v5791, 2147483648
    %v5794 = vxor.u32 %v5792, 2147483648
    %v5795 = vmul.f32 %v5793, 1.442695
    %v5796 = vpow.pop %v5795
    %v5797 = vmul.f32 %v5794, 1.442695
    %v5798 = vpow.pop %v5797
    %v5799 = vadd.f32 %v5796, 1.0
    %v5800 = vadd.f32 %v5798, 1.0
    %v5801 = vrcp.pop %v5799
    %v5802 = vmul.f32 1.0, %v5801
    %v5803 = vrcp.pop %v5800
    %v5804 = vmul.f32 1.0, %v5803
    %v5805 = vtanh.pop %v5792
    %v5806 = vmul.f32 %v5802, %v5710
    %v5807 = vmul.f32 %v5802, %v5805
    %5809 = vrot.lane.b32.xlu0 %v5807, 64
    %v5810 = vpop.permute.xlu0 %5809
    %v5812 = vadd.f32 %v5806, %v5810
    %v5813 = vtanh.pop %v5812
    %v5814 = vmul.f32 %v5804, %v5813
    %v5815 = vsel %vm565, %v3143, %v3667
    %v5816 = vsel %vm566, %v3145, %v3669
    %5818 = vrot.lane.b32.xlu0 %v5814, 64
    %v5819 = vpop.permute.xlu0 %5818
    %v5820 = vsel %vm1206, %v5819, 0
    %5822 = vmatprep.subr.mxu0 %v4574
    %5823 = vmatpush1.msra.mxu0 %v4573
    %5824 = vmatprep.subr.mxu0 %v4576
    %5825 = vmatpush1.msra.mxu0 %v4575
    %5826 = vmatprep.subr.mxu0 %v4578
    %5827 = vmatpush1.msra.mxu0 %v4577
    %5828 = vmatprep.subr.mxu0 %v4580
    %5829 = vmatpush1.msra.mxu0 %v4579
    %5830 = vmatprep.subr.mxu0 %v4582
    %5831 = vmatpush1.msra.mxu0 %v4581
    %5832 = vmatprep.subr.mxu0 %v4584
    %5833 = vmatpush1.msra.mxu0 %v4583
    %5834 = vmatprep.subr.mxu0 %v4586
    %5835 = vmatpush1.msra.mxu0 %v4585
    %5836 = vmatprep.subr.mxu0 %v4588
    %5837 = vmatpush1.msra.mxu0 %v4587
    %5838 = vmatprep.subr.mxu0 0.0
    %5839 = vmatpush1.msra.mxu0 0.0
    %5840 = vmatprep.subr.mxu0 0.0
    %5841 = vmatpush1.msra.mxu0 0.0
    %5842 = vmatprep.subr.mxu0 0.0
    %5843 = vmatpush1.msra.mxu0 0.0
    %5844 = vmatprep.subr.mxu0 0.0
    %5845 = vmatpush1.msra.mxu0 0.0
    %5846 = vmatprep.subr.mxu0 0.0
    %5847 = vmatpush1.msra.mxu0 0.0
    %5848 = vmatprep.subr.mxu0 0.0
    %5849 = vmatpush1.msra.mxu0 0.0
    %5850 = vmatprep.subr.mxu0 0.0
    %5851 = vmatpush1.msra.mxu0 0.0
    %5852 = vmatprep.subr.mxu0 0.0
    %5853 = vmatpush1.msra.mxu0 0.0
    %5854 = vmatprep.subr.mxu0 0.0
    %5855 = vmatpush1.msra.mxu0 0.0
    %5856 = vmatprep.subr.mxu0 0.0
    %5857 = vmatpush1.msra.mxu0 0.0
    %5858 = vmatprep.subr.mxu0 0.0
    %5859 = vmatpush1.msra.mxu0 0.0
    %5860 = vmatprep.subr.mxu0 0.0
    %5861 = vmatpush1.msra.mxu0 0.0
    %5862 = vmatprep.subr.mxu0 0.0
    %5863 = vmatpush1.msra.mxu0 0.0
    %5864 = vmatprep.subr.mxu0 0.0
    %5865 = vmatpush1.msra.mxu0 0.0
    %5866 = vmatprep.subr.mxu0 0.0
    %5867 = vmatpush1.msra.mxu0 0.0
    %5868 = vmatprep.subr.mxu0 0.0
    %5869 = vmatpush1.msra.mxu0 0.0
    %5870 = vmatprep.subr.mxu0 0.0
    %5871 = vmatpush1.msra.mxu0 0.0
    %5872 = vmatprep.subr.mxu0 0.0
    %5873 = vmatpush1.msra.mxu0 0.0
    %5874 = vmatprep.subr.mxu0 0.0
    %5875 = vmatpush1.msra.mxu0 0.0
    %5876 = vmatprep.subr.mxu0 0.0
    %5877 = vmatpush1.msra.mxu0 0.0
    %5878 = vmatprep.subr.mxu0 0.0
    %5879 = vmatpush1.msra.mxu0 0.0
    %5880 = vmatprep.subr.mxu0 0.0
    %5881 = vmatpush1.msra.mxu0 0.0
    %5882 = vmatprep.subr.mxu0 0.0
    %5883 = vmatpush1.msra.mxu0 0.0
    %5884 = vmatprep.subr.mxu0 0.0
    %5885 = vmatpush1.msra.mxu0 0.0
    %5886 = vmatprep.mubr.f32.mxu0 0.0
    %5887 = vmatmul.mubr.f32.gmra.mrb[0].mxu0 %v5820
    %v5888 = vpop.f32.mrb[0].mxu0
    %v5889 = vadd.f32 0.0, %v5888
    %v5890 = vpop.f32.mrb[0].mxu0
    %v5891 = vadd.f32 0.0, %v5890
    %5892 = vdwg.mxu0
    %v5893 = vadd.f32 %v5815, %v5889
    %v5894 = vadd.f32 %v5816, %v5891
    %v5895 = vxor.u32 %v5893, 2147483648
    %v5896 = vxor.u32 %v5894, 2147483648
    %v5897 = vmul.f32 %v5895, 1.442695
    %v5898 = vpow.pop %v5897
    %v5899 = vmul.f32 %v5896, 1.442695
    %v5900 = vpow.pop %v5899
    %v5901 = vadd.f32 %v5898, 1.0
    %v5902 = vadd.f32 %v5900, 1.0
    %v5903 = vrcp.pop %v5901
    %v5904 = vmul.f32 1.0, %v5903
    %v5905 = vrcp.pop %v5902
    %v5906 = vmul.f32 1.0, %v5905
    %v5907 = vtanh.pop %v5894
    %v5908 = vmul.f32 %v5904, %v5812
    %v5909 = vmul.f32 %v5904, %v5907
    %5911 = vrot.lane.b32.xlu0 %v5909, 64
    %v5912 = vpop.permute.xlu0 %5911
    %v5914 = vadd.f32 %v5908, %v5912
    %v5915 = vtanh.pop %v5914
    %v5916 = vmul.f32 %v5906, %v5915
    %v5917 = vsel %vm565, %v3218, %v3592
    %v5918 = vsel %vm566, %v3220, %v3594
    %5920 = vrot.lane.b32.xlu0 %v5916, 64
    %v5921 = vpop.permute.xlu0 %5920
    %v5922 = vsel %vm1206, %v5921, 0
    %5924 = vmatprep.subr.mxu0 %v4574
    %5925 = vmatpush1.msra.mxu0 %v4573
    %5926 = vmatprep.subr.mxu0 %v4576
    %5927 = vmatpush1.msra.mxu0 %v4575
    %5928 = vmatprep.subr.mxu0 %v4578
    %5929 = vmatpush1.msra.mxu0 %v4577
    %5930 = vmatprep.subr.mxu0 %v4580
    %5931 = vmatpush1.msra.mxu0 %v4579
    %5932 = vmatprep.subr.mxu0 %v4582
    %5933 = vmatpush1.msra.mxu0 %v4581
    %5934 = vmatprep.subr.mxu0 %v4584
    %5935 = vmatpush1.msra.mxu0 %v4583
    %5936 = vmatprep.subr.mxu0 %v4586
    %5937 = vmatpush1.msra.mxu0 %v4585
    %5938 = vmatprep.subr.mxu0 %v4588
    %5939 = vmatpush1.msra.mxu0 %v4587
    %5940 = vmatprep.subr.mxu0 0.0
    %5941 = vmatpush1.msra.mxu0 0.0
    %5942 = vmatprep.subr.mxu0 0.0
    %5943 = vmatpush1.msra.mxu0 0.0
    %5944 = vmatprep.subr.mxu0 0.0
    %5945 = vmatpush1.msra.mxu0 0.0
    %5946 = vmatprep.subr.mxu0 0.0
    %5947 = vmatpush1.msra.mxu0 0.0
    %5948 = vmatprep.subr.mxu0 0.0
    %5949 = vmatpush1.msra.mxu0 0.0
    %5950 = vmatprep.subr.mxu0 0.0
    %5951 = vmatpush1.msra.mxu0 0.0
    %5952 = vmatprep.subr.mxu0 0.0
    %5953 = vmatpush1.msra.mxu0 0.0
    %5954 = vmatprep.subr.mxu0 0.0
    %5955 = vmatpush1.msra.mxu0 0.0
    %5956 = vmatprep.subr.mxu0 0.0
    %5957 = vmatpush1.msra.mxu0 0.0
    %5958 = vmatprep.subr.mxu0 0.0
    %5959 = vmatpush1.msra.mxu0 0.0
    %5960 = vmatprep.subr.mxu0 0.0
    %5961 = vmatpush1.msra.mxu0 0.0
    %5962 = vmatprep.subr.mxu0 0.0
    %5963 = vmatpush1.msra.mxu0 0.0
    %5964 = vmatprep.subr.mxu0 0.0
    %5965 = vmatpush1.msra.mxu0 0.0
    %5966 = vmatprep.subr.mxu0 0.0
    %5967 = vmatpush1.msra.mxu0 0.0
    %5968 = vmatprep.subr.mxu0 0.0
    %5969 = vmatpush1.msra.mxu0 0.0
    %5970 = vmatprep.subr.mxu0 0.0
    %5971 = vmatpush1.msra.mxu0 0.0
    %5972 = vmatprep.subr.mxu0 0.0
    %5973 = vmatpush1.msra.mxu0 0.0
    %5974 = vmatprep.subr.mxu0 0.0
    %5975 = vmatpush1.msra.mxu0 0.0
    %5976 = vmatprep.subr.mxu0 0.0
    %5977 = vmatpush1.msra.mxu0 0.0
    %5978 = vmatprep.subr.mxu0 0.0
    %5979 = vmatpush1.msra.mxu0 0.0
    %5980 = vmatprep.subr.mxu0 0.0
    %5981 = vmatpush1.msra.mxu0 0.0
    %5982 = vmatprep.subr.mxu0 0.0
    %5983 = vmatpush1.msra.mxu0 0.0
    %5984 = vmatprep.subr.mxu0 0.0
    %5985 = vmatpush1.msra.mxu0 0.0
    %5986 = vmatprep.subr.mxu0 0.0
    %5987 = vmatpush1.msra.mxu0 0.0
    %5988 = vmatprep.mubr.f32.mxu0 0.0
    %5989 = vmatmul.mubr.f32.gmra.mrb[0].mxu0 %v5922
    %v5990 = vpop.f32.mrb[0].mxu0
    %v5991 = vadd.f32 0.0, %v5990
    %v5992 = vpop.f32.mrb[0].mxu0
    %v5993 = vadd.f32 0.0, %v5992
    %5994 = vdwg.mxu0
    %v5995 = vadd.f32 %v5917, %v5991
    %v5996 = vadd.f32 %v5918, %v5993
    %v5997 = vxor.u32 %v5995, 2147483648
    %v5998 = vxor.u32 %v5996, 2147483648
    %v5999 = vmul.f32 %v5997, 1.442695
    %v6000 = vpow.pop %v5999
    %v6001 = vmul.f32 %v5998, 1.442695
    %v6002 = vpow.pop %v6001
    %v6003 = vadd.f32 %v6000, 1.0
    %v6004 = vadd.f32 %v6002, 1.0
    %v6005 = vrcp.pop %v6003
    %v6006 = vmul.f32 1.0, %v6005
    %v6007 = vrcp.pop %v6004
    %v6008 = vmul.f32 1.0, %v6007
    %v6009 = vtanh.pop %v5996
    %v6010 = vmul.f32 %v6006, %v5914
    %v6011 = vmul.f32 %v6006, %v6009
    %6013 = vrot.lane.b32.xlu0 %v6011, 64
    %v6014 = vpop.permute.xlu0 %6013
    %v6016 = vadd.f32 %v6010, %v6014
    %v6017 = vtanh.pop %v6016
    %v6018 = vmul.f32 %v6008, %v6017
    %v6019 = vsel %vm565, %v3293, %v3517
    %v6020 = vsel %vm566, %v3295, %v3519
    %6022 = vrot.lane.b32.xlu0 %v6018, 64
    %v6023 = vpop.permute.xlu0 %6022
    %v6024 = vsel %vm1206, %v6023, 0
    %6026 = vmatprep.subr.mxu0 %v4574
    %6027 = vmatpush1.msra.mxu0 %v4573
    %6028 = vmatprep.subr.mxu0 %v4576
    %6029 = vmatpush1.msra.mxu0 %v4575
    %6030 = vmatprep.subr.mxu0 %v4578
    %6031 = vmatpush1.msra.mxu0 %v4577
    %6032 = vmatprep.subr.mxu0 %v4580
    %6033 = vmatpush1.msra.mxu0 %v4579
    %6034 = vmatprep.subr.mxu0 %v4582
    %6035 = vmatpush1.msra.mxu0 %v4581
    %6036 = vmatprep.subr.mxu0 %v4584
    %6037 = vmatpush1.msra.mxu0 %v4583
    %6038 = vmatprep.subr.mxu0 %v4586
    %6039 = vmatpush1.msra.mxu0 %v4585
    %6040 = vmatprep.subr.mxu0 %v4588
    %6041 = vmatpush1.msra.mxu0 %v4587
    %6042 = vmatprep.subr.mxu0 0.0
    %6043 = vmatpush1.msra.mxu0 0.0
    %6044 = vmatprep.subr.mxu0 0.0
    %6045 = vmatpush1.msra.mxu0 0.0
    %6046 = vmatprep.subr.mxu0 0.0
    %6047 = vmatpush1.msra.mxu0 0.0
    %6048 = vmatprep.subr.mxu0 0.0
    %6049 = vmatpush1.msra.mxu0 0.0
    %6050 = vmatprep.subr.mxu0 0.0
    %6051 = vmatpush1.msra.mxu0 0.0
    %6052 = vmatprep.subr.mxu0 0.0
    %6053 = vmatpush1.msra.mxu0 0.0
    %6054 = vmatprep.subr.mxu0 0.0
    %6055 = vmatpush1.msra.mxu0 0.0
    %6056 = vmatprep.subr.mxu0 0.0
    %6057 = vmatpush1.msra.mxu0 0.0
    %6058 = vmatprep.subr.mxu0 0.0
    %6059 = vmatpush1.msra.mxu0 0.0
    %6060 = vmatprep.subr.mxu0 0.0
    %6061 = vmatpush1.msra.mxu0 0.0
    %6062 = vmatprep.subr.mxu0 0.0
    %6063 = vmatpush1.msra.mxu0 0.0
    %6064 = vmatprep.subr.mxu0 0.0
    %6065 = vmatpush1.msra.mxu0 0.0
    %6066 = vmatprep.subr.mxu0 0.0
    %6067 = vmatpush1.msra.mxu0 0.0
    %6068 = vmatprep.subr.mxu0 0.0
    %6069 = vmatpush1.msra.mxu0 0.0
    %6070 = vmatprep.subr.mxu0 0.0
    %6071 = vmatpush1.msra.mxu0 0.0
    %6072 = vmatprep.subr.mxu0 0.0
    %6073 = vmatpush1.msra.mxu0 0.0
    %6074 = vmatprep.subr.mxu0 0.0
    %6075 = vmatpush1.msra.mxu0 0.0
    %6076 = vmatprep.subr.mxu0 0.0
    %6077 = vmatpush1.msra.mxu0 0.0
    %6078 = vmatprep.subr.mxu0 0.0
    %6079 = vmatpush1.msra.mxu0 0.0
    %6080 = vmatprep.subr.mxu0 0.0
    %6081 = vmatpush1.msra.mxu0 0.0
    %6082 = vmatprep.subr.mxu0 0.0
    %6083 = vmatpush1.msra.mxu0 0.0
    %6084 = vmatprep.subr.mxu0 0.0
    %6085 = vmatpush1.msra.mxu0 0.0
    %6086 = vmatprep.subr.mxu0 0.0
    %6087 = vmatpush1.msra.mxu0 0.0
    %6088 = vmatprep.subr.mxu0 0.0
    %6089 = vmatpush1.msra.mxu0 0.0
    %6090 = vmatprep.mubr.f32.mxu0 0.0
    %6091 = vmatmul.mubr.f32.gmra.mrb[0].mxu0 %v6024
    %v6092 = vpop.f32.mrb[0].mxu0
    %v6093 = vadd.f32 0.0, %v6092
    %v6094 = vpop.f32.mrb[0].mxu0
    %v6095 = vadd.f32 0.0, %v6094
    %6096 = vdwg.mxu0
    %v6097 = vadd.f32 %v6019, %v6093
    %v6098 = vadd.f32 %v6020, %v6095
    %v6099 = vxor.u32 %v6097, 2147483648
    %v6100 = vxor.u32 %v6098, 2147483648
    %v6101 = vmul.f32 %v6099, 1.442695
    %v6102 = vpow.pop %v6101
    %v6103 = vmul.f32 %v6100, 1.442695
    %v6104 = vpow.pop %v6103
    %v6105 = vadd.f32 %v6102, 1.0
    %v6106 = vadd.f32 %v6104, 1.0
    %v6107 = vrcp.pop %v6105
    %v6108 = vmul.f32 1.0, %v6107
    %v6109 = vrcp.pop %v6106
    %v6110 = vmul.f32 1.0, %v6109
    %v6111 = vtanh.pop %v6098
    %v6112 = vmul.f32 %v6108, %v6016
    %v6113 = vmul.f32 %v6108, %v6111
    %6115 = vrot.lane.b32.xlu0 %v6113, 64
    %v6116 = vpop.permute.xlu0 %6115
    %v6118 = vadd.f32 %v6112, %v6116
    %v6119 = vtanh.pop %v6118
    %v6120 = vmul.f32 %v6110, %v6119
    %v6121 = vsel %vm565, %v3368, %v3442
    %v6122 = vsel %vm566, %v3370, %v3444
    %6124 = vrot.lane.b32.xlu0 %v6120, 64
    %v6125 = vpop.permute.xlu0 %6124
    %v6126 = vsel %vm1206, %v6125, 0
    %6128 = vmatprep.subr.mxu0 %v4574
    %6129 = vmatpush1.msra.mxu0 %v4573
    %6130 = vmatprep.subr.mxu0 %v4576
    %6131 = vmatpush1.msra.mxu0 %v4575
    %6132 = vmatprep.subr.mxu0 %v4578
    %6133 = vmatpush1.msra.mxu0 %v4577
    %6134 = vmatprep.subr.mxu0 %v4580
    %6135 = vmatpush1.msra.mxu0 %v4579
    %6136 = vmatprep.subr.mxu0 %v4582
    %6137 = vmatpush1.msra.mxu0 %v4581
    %6138 = vmatprep.subr.mxu0 %v4584
    %6139 = vmatpush1.msra.mxu0 %v4583
    %6140 = vmatprep.subr.mxu0 %v4586
    %6141 = vmatpush1.msra.mxu0 %v4585
    %6142 = vmatprep.subr.mxu0 %v4588
    %6143 = vmatpush1.msra.mxu0 %v4587
    %6144 = vmatprep.subr.mxu0 0.0
    %6145 = vmatpush1.msra.mxu0 0.0
    %6146 = vmatprep.subr.mxu0 0.0
    %6147 = vmatpush1.msra.mxu0 0.0
    %6148 = vmatprep.subr.mxu0 0.0
    %6149 = vmatpush1.msra.mxu0 0.0
    %6150 = vmatprep.subr.mxu0 0.0
    %6151 = vmatpush1.msra.mxu0 0.0
    %6152 = vmatprep.subr.mxu0 0.0
    %6153 = vmatpush1.msra.mxu0 0.0
    %6154 = vmatprep.subr.mxu0 0.0
    %6155 = vmatpush1.msra.mxu0 0.0
    %6156 = vmatprep.subr.mxu0 0.0
    %6157 = vmatpush1.msra.mxu0 0.0
    %6158 = vmatprep.subr.mxu0 0.0
    %6159 = vmatpush1.msra.mxu0 0.0
    %6160 = vmatprep.subr.mxu0 0.0
    %6161 = vmatpush1.msra.mxu0 0.0
    %6162 = vmatprep.subr.mxu0 0.0
    %6163 = vmatpush1.msra.mxu0 0.0
    %6164 = vmatprep.subr.mxu0 0.0
    %6165 = vmatpush1.msra.mxu0 0.0
    %6166 = vmatprep.subr.mxu0 0.0
    %6167 = vmatpush1.msra.mxu0 0.0
    %6168 = vmatprep.subr.mxu0 0.0
    %6169 = vmatpush1.msra.mxu0 0.0
    %6170 = vmatprep.subr.mxu0 0.0
    %6171 = vmatpush1.msra.mxu0 0.0
    %6172 = vmatprep.subr.mxu0 0.0
    %6173 = vmatpush1.msra.mxu0 0.0
    %6174 = vmatprep.subr.mxu0 0.0
    %6175 = vmatpush1.msra.mxu0 0.0
    %6176 = vmatprep.subr.mxu0 0.0
    %6177 = vmatpush1.msra.mxu0 0.0
    %6178 = vmatprep.subr.mxu0 0.0
    %6179 = vmatpush1.msra.mxu0 0.0
    %6180 = vmatprep.subr.mxu0 0.0
    %6181 = vmatpush1.msra.mxu0 0.0
    %6182 = vmatprep.subr.mxu0 0.0
    %6183 = vmatpush1.msra.mxu0 0.0
    %6184 = vmatprep.subr.mxu0 0.0
    %6185 = vmatpush1.msra.mxu0 0.0
    %6186 = vmatprep.subr.mxu0 0.0
    %6187 = vmatpush1.msra.mxu0 0.0
    %6188 = vmatprep.subr.mxu0 0.0
    %6189 = vmatpush1.msra.mxu0 0.0
    %6190 = vmatprep.subr.mxu0 0.0
    %6191 = vmatpush1.msra.mxu0 0.0
    %6192 = vmatprep.mubr.f32.mxu0 0.0
    %6193 = vmatmul.mubr.f32.gmra.mrb[0].mxu0 %v6126
    %v6194 = vpop.f32.mrb[0].mxu0
    %v6195 = vadd.f32 0.0, %v6194
    %v6196 = vpop.f32.mrb[0].mxu0
    %v6197 = vadd.f32 0.0, %v6196
    %6198 = vdwg.mxu0
    %v6199 = vadd.f32 %v6121, %v6195
    %v6200 = vadd.f32 %v6122, %v6197
    %v6201 = vxor.u32 %v6199, 2147483648
    %v6202 = vxor.u32 %v6200, 2147483648
    %v6203 = vmul.f32 %v6201, 1.442695
    %v6204 = vpow.pop %v6203
    %v6205 = vmul.f32 %v6202, 1.442695
    %v6206 = vpow.pop %v6205
    %v6207 = vadd.f32 %v6204, 1.0
    %v6208 = vadd.f32 %v6206, 1.0
    %v6209 = vrcp.pop %v6207
    %v6210 = vmul.f32 1.0, %v6209
    %v6211 = vrcp.pop %v6208
    %v6212 = vmul.f32 1.0, %v6211
    %v6213 = vtanh.pop %v6200
    %v6214 = vmul.f32 %v6210, %v6118
    %v6215 = vmul.f32 %v6210, %v6213
    %6217 = vrot.lane.b32.xlu0 %v6215, 64
    %v6218 = vpop.permute.xlu0 %6217
    %v6220 = vadd.f32 %v6214, %v6218
    %v6221 = vtanh.pop %v6220
    %v6222 = vmul.f32 %v6212, %v6221
    %v6223 = vsel %vm565, %v3442, %v3368
    %v6224 = vsel %vm566, %v3444, %v3370
    %6226 = vrot.lane.b32.xlu0 %v6222, 64
    %v6227 = vpop.permute.xlu0 %6226
    %v6228 = vsel %vm1206, %v6227, 0
    %6230 = vmatprep.subr.mxu0 %v4574
    %6231 = vmatpush1.msra.mxu0 %v4573
    %6232 = vmatprep.subr.mxu0 %v4576
    %6233 = vmatpush1.msra.mxu0 %v4575
    %6234 = vmatprep.subr.mxu0 %v4578
    %6235 = vmatpush1.msra.mxu0 %v4577
    %6236 = vmatprep.subr.mxu0 %v4580
    %6237 = vmatpush1.msra.mxu0 %v4579
    %6238 = vmatprep.subr.mxu0 %v4582
    %6239 = vmatpush1.msra.mxu0 %v4581
    %6240 = vmatprep.subr.mxu0 %v4584
    %6241 = vmatpush1.msra.mxu0 %v4583
    %6242 = vmatprep.subr.mxu0 %v4586
    %6243 = vmatpush1.msra.mxu0 %v4585
    %6244 = vmatprep.subr.mxu0 %v4588
    %6245 = vmatpush1.msra.mxu0 %v4587
    %6246 = vmatprep.subr.mxu0 0.0
    %6247 = vmatpush1.msra.mxu0 0.0
    %6248 = vmatprep.subr.mxu0 0.0
    %6249 = vmatpush1.msra.mxu0 0.0
    %6250 = vmatprep.subr.mxu0 0.0
    %6251 = vmatpush1.msra.mxu0 0.0
    %6252 = vmatprep.subr.mxu0 0.0
    %6253 = vmatpush1.msra.mxu0 0.0
    %6254 = vmatprep.subr.mxu0 0.0
    %6255 = vmatpush1.msra.mxu0 0.0
    %6256 = vmatprep.subr.mxu0 0.0
    %6257 = vmatpush1.msra.mxu0 0.0
    %6258 = vmatprep.subr.mxu0 0.0
    %6259 = vmatpush1.msra.mxu0 0.0
    %6260 = vmatprep.subr.mxu0 0.0
    %6261 = vmatpush1.msra.mxu0 0.0
    %6262 = vmatprep.subr.mxu0 0.0
    %6263 = vmatpush1.msra.mxu0 0.0
    %6264 = vmatprep.subr.mxu0 0.0
    %6265 = vmatpush1.msra.mxu0 0.0
    %6266 = vmatprep.subr.mxu0 0.0
    %6267 = vmatpush1.msra.mxu0 0.0
    %6268 = vmatprep.subr.mxu0 0.0
    %6269 = vmatpush1.msra.mxu0 0.0
    %6270 = vmatprep.subr.mxu0 0.0
    %6271 = vmatpush1.msra.mxu0 0.0
    %6272 = vmatprep.subr.mxu0 0.0
    %6273 = vmatpush1.msra.mxu0 0.0
    %6274 = vmatprep.subr.mxu0 0.0
    %6275 = vmatpush1.msra.mxu0 0.0
    %6276 = vmatprep.subr.mxu0 0.0
    %6277 = vmatpush1.msra.mxu0 0.0
    %6278 = vmatprep.subr.mxu0 0.0
    %6279 = vmatpush1.msra.mxu0 0.0
    %6280 = vmatprep.subr.mxu0 0.0
    %6281 = vmatpush1.msra.mxu0 0.0
    %6282 = vmatprep.subr.mxu0 0.0
    %6283 = vmatpush1.msra.mxu0 0.0
    %6284 = vmatprep.subr.mxu0 0.0
    %6285 = vmatpush1.msra.mxu0 0.0
    %6286 = vmatprep.subr.mxu0 0.0
    %6287 = vmatpush1.msra.mxu0 0.0
    %6288 = vmatprep.subr.mxu0 0.0
    %6289 = vmatpush1.msra.mxu0 0.0
    %6290 = vmatprep.subr.mxu0 0.0
    %6291 = vmatpush1.msra.mxu0 0.0
    %6292 = vmatprep.subr.mxu0 0.0
    %6293 = vmatpush1.msra.mxu0 0.0
    %6294 = vmatprep.mubr.f32.mxu0 0.0
    %6295 = vmatmul.mubr.f32.gmra.mrb[0].mxu0 %v6228
    %v6296 = vpop.f32.mrb[0].mxu0
    %v6297 = vadd.f32 0.0, %v6296
    %v6298 = vpop.f32.mrb[0].mxu0
    %v6299 = vadd.f32 0.0, %v6298
    %6300 = vdwg.mxu0
    %v6301 = vadd.f32 %v6223, %v6297
    %v6302 = vadd.f32 %v6224, %v6299
    %v6303 = vxor.u32 %v6301, 2147483648
    %v6304 = vxor.u32 %v6302, 2147483648
    %v6305 = vmul.f32 %v6303, 1.442695
    %v6306 = vpow.pop %v6305
    %v6307 = vmul.f32 %v6304, 1.442695
    %v6308 = vpow.pop %v6307
    %v6309 = vadd.f32 %v6306, 1.0
    %v6310 = vadd.f32 %v6308, 1.0
    %v6311 = vrcp.pop %v6309
    %v6312 = vmul.f32 1.0, %v6311
    %v6313 = vrcp.pop %v6310
    %v6314 = vmul.f32 1.0, %v6313
    %v6315 = vtanh.pop %v6302
    %v6316 = vmul.f32 %v6312, %v6220
    %v6317 = vmul.f32 %v6312, %v6315
    %6319 = vrot.lane.b32.xlu0 %v6317, 64
    %v6320 = vpop.permute.xlu0 %6319
    %v6322 = vadd.f32 %v6316, %v6320
    %v6323 = vtanh.pop %v6322
    %v6324 = vmul.f32 %v6314, %v6323
    %v6325 = vsel %vm565, %v3517, %v3293
    %v6326 = vsel %vm566, %v3519, %v3295
    %6328 = vrot.lane.b32.xlu0 %v6324, 64
    %v6329 = vpop.permute.xlu0 %6328
    %v6330 = vsel %vm1206, %v6329, 0
    %6332 = vmatprep.subr.mxu0 %v4574
    %6333 = vmatpush1.msra.mxu0 %v4573
    %6334 = vmatprep.subr.mxu0 %v4576
    %6335 = vmatpush1.msra.mxu0 %v4575
    %6336 = vmatprep.subr.mxu0 %v4578
    %6337 = vmatpush1.msra.mxu0 %v4577
    %6338 = vmatprep.subr.mxu0 %v4580
    %6339 = vmatpush1.msra.mxu0 %v4579
    %6340 = vmatprep.subr.mxu0 %v4582
    %6341 = vmatpush1.msra.mxu0 %v4581
    %6342 = vmatprep.subr.mxu0 %v4584
    %6343 = vmatpush1.msra.mxu0 %v4583
    %6344 = vmatprep.subr.mxu0 %v4586
    %6345 = vmatpush1.msra.mxu0 %v4585
    %6346 = vmatprep.subr.mxu0 %v4588
    %6347 = vmatpush1.msra.mxu0 %v4587
    %6348 = vmatprep.subr.mxu0 0.0
    %6349 = vmatpush1.msra.mxu0 0.0
    %6350 = vmatprep.subr.mxu0 0.0
    %6351 = vmatpush1.msra.mxu0 0.0
    %6352 = vmatprep.subr.mxu0 0.0
    %6353 = vmatpush1.msra.mxu0 0.0
    %6354 = vmatprep.subr.mxu0 0.0
    %6355 = vmatpush1.msra.mxu0 0.0
    %6356 = vmatprep.subr.mxu0 0.0
    %6357 = vmatpush1.msra.mxu0 0.0
    %6358 = vmatprep.subr.mxu0 0.0
    %6359 = vmatpush1.msra.mxu0 0.0
    %6360 = vmatprep.subr.mxu0 0.0
    %6361 = vmatpush1.msra.mxu0 0.0
    %6362 = vmatprep.subr.mxu0 0.0
    %6363 = vmatpush1.msra.mxu0 0.0
    %6364 = vmatprep.subr.mxu0 0.0
    %6365 = vmatpush1.msra.mxu0 0.0
    %6366 = vmatprep.subr.mxu0 0.0
    %6367 = vmatpush1.msra.mxu0 0.0
    %6368 = vmatprep.subr.mxu0 0.0
    %6369 = vmatpush1.msra.mxu0 0.0
    %6370 = vmatprep.subr.mxu0 0.0
    %6371 = vmatpush1.msra.mxu0 0.0
    %6372 = vmatprep.subr.mxu0 0.0
    %6373 = vmatpush1.msra.mxu0 0.0
    %6374 = vmatprep.subr.mxu0 0.0
    %6375 = vmatpush1.msra.mxu0 0.0
    %6376 = vmatprep.subr.mxu0 0.0
    %6377 = vmatpush1.msra.mxu0 0.0
    %6378 = vmatprep.subr.mxu0 0.0
    %6379 = vmatpush1.msra.mxu0 0.0
    %6380 = vmatprep.subr.mxu0 0.0
    %6381 = vmatpush1.msra.mxu0 0.0
    %6382 = vmatprep.subr.mxu0 0.0
    %6383 = vmatpush1.msra.mxu0 0.0
    %6384 = vmatprep.subr.mxu0 0.0
    %6385 = vmatpush1.msra.mxu0 0.0
    %6386 = vmatprep.subr.mxu0 0.0
    %6387 = vmatpush1.msra.mxu0 0.0
    %6388 = vmatprep.subr.mxu0 0.0
    %6389 = vmatpush1.msra.mxu0 0.0
    %6390 = vmatprep.subr.mxu0 0.0
    %6391 = vmatpush1.msra.mxu0 0.0
    %6392 = vmatprep.subr.mxu0 0.0
    %6393 = vmatpush1.msra.mxu0 0.0
    %6394 = vmatprep.subr.mxu0 0.0
    %6395 = vmatpush1.msra.mxu0 0.0
    %6396 = vmatprep.mubr.f32.mxu0 0.0
    %6397 = vmatmul.mubr.f32.gmra.mrb[0].mxu0 %v6330
    %v6398 = vpop.f32.mrb[0].mxu0
    %v6399 = vadd.f32 0.0, %v6398
    %v6400 = vpop.f32.mrb[0].mxu0
    %v6401 = vadd.f32 0.0, %v6400
    %6402 = vdwg.mxu0
    %v6403 = vadd.f32 %v6325, %v6399
    %v6404 = vadd.f32 %v6326, %v6401
    %v6405 = vxor.u32 %v6403, 2147483648
    %v6406 = vxor.u32 %v6404, 2147483648
    %v6407 = vmul.f32 %v6405, 1.442695
    %v6408 = vpow.pop %v6407
    %v6409 = vmul.f32 %v6406, 1.442695
    %v6410 = vpow.pop %v6409
    %v6411 = vadd.f32 %v6408, 1.0
    %v6412 = vadd.f32 %v6410, 1.0
    %v6413 = vrcp.pop %v6411
    %v6414 = vmul.f32 1.0, %v6413
    %v6415 = vrcp.pop %v6412
    %v6416 = vmul.f32 1.0, %v6415
    %v6417 = vtanh.pop %v6404
    %v6418 = vmul.f32 %v6414, %v6322
    %v6419 = vmul.f32 %v6414, %v6417
    %6421 = vrot.lane.b32.xlu0 %v6419, 64
    %v6422 = vpop.permute.xlu0 %6421
    %v6424 = vadd.f32 %v6418, %v6422
    %v6425 = vtanh.pop %v6424
    %v6426 = vmul.f32 %v6416, %v6425
    %v6427 = vsel %vm565, %v3592, %v3218
    %v6428 = vsel %vm566, %v3594, %v3220
    %6430 = vrot.lane.b32.xlu0 %v6426, 64
    %v6431 = vpop.permute.xlu0 %6430
    %v6432 = vsel %vm1206, %v6431, 0
    %6434 = vmatprep.subr.mxu0 %v4574
    %6435 = vmatpush1.msra.mxu0 %v4573
    %6436 = vmatprep.subr.mxu0 %v4576
    %6437 = vmatpush1.msra.mxu0 %v4575
    %6438 = vmatprep.subr.mxu0 %v4578
    %6439 = vmatpush1.msra.mxu0 %v4577
    %6440 = vmatprep.subr.mxu0 %v4580
    %6441 = vmatpush1.msra.mxu0 %v4579
    %6442 = vmatprep.subr.mxu0 %v4582
    %6443 = vmatpush1.msra.mxu0 %v4581
    %6444 = vmatprep.subr.mxu0 %v4584
    %6445 = vmatpush1.msra.mxu0 %v4583
    %6446 = vmatprep.subr.mxu0 %v4586
    %6447 = vmatpush1.msra.mxu0 %v4585
    %6448 = vmatprep.subr.mxu0 %v4588
    %6449 = vmatpush1.msra.mxu0 %v4587
    %6450 = vmatprep.subr.mxu0 0.0
    %6451 = vmatpush1.msra.mxu0 0.0
    %6452 = vmatprep.subr.mxu0 0.0
    %6453 = vmatpush1.msra.mxu0 0.0
    %6454 = vmatprep.subr.mxu0 0.0
    %6455 = vmatpush1.msra.mxu0 0.0
    %6456 = vmatprep.subr.mxu0 0.0
    %6457 = vmatpush1.msra.mxu0 0.0
    %6458 = vmatprep.subr.mxu0 0.0
    %6459 = vmatpush1.msra.mxu0 0.0
    %6460 = vmatprep.subr.mxu0 0.0
    %6461 = vmatpush1.msra.mxu0 0.0
    %6462 = vmatprep.subr.mxu0 0.0
    %6463 = vmatpush1.msra.mxu0 0.0
    %6464 = vmatprep.subr.mxu0 0.0
    %6465 = vmatpush1.msra.mxu0 0.0
    %6466 = vmatprep.subr.mxu0 0.0
    %6467 = vmatpush1.msra.mxu0 0.0
    %6468 = vmatprep.subr.mxu0 0.0
    %6469 = vmatpush1.msra.mxu0 0.0
    %6470 = vmatprep.subr.mxu0 0.0
    %6471 = vmatpush1.msra.mxu0 0.0
    %6472 = vmatprep.subr.mxu0 0.0
    %6473 = vmatpush1.msra.mxu0 0.0
    %6474 = vmatprep.subr.mxu0 0.0
    %6475 = vmatpush1.msra.mxu0 0.0
    %6476 = vmatprep.subr.mxu0 0.0
    %6477 = vmatpush1.msra.mxu0 0.0
    %6478 = vmatprep.subr.mxu0 0.0
    %6479 = vmatpush1.msra.mxu0 0.0
    %6480 = vmatprep.subr.mxu0 0.0
    %6481 = vmatpush1.msra.mxu0 0.0
    %6482 = vmatprep.subr.mxu0 0.0
    %6483 = vmatpush1.msra.mxu0 0.0
    %6484 = vmatprep.subr.mxu0 0.0
    %6485 = vmatpush1.msra.mxu0 0.0
    %6486 = vmatprep.subr.mxu0 0.0
    %6487 = vmatpush1.msra.mxu0 0.0
    %6488 = vmatprep.subr.mxu0 0.0
    %6489 = vmatpush1.msra.mxu0 0.0
    %6490 = vmatprep.subr.mxu0 0.0
    %6491 = vmatpush1.msra.mxu0 0.0
    %6492 = vmatprep.subr.mxu0 0.0
    %6493 = vmatpush1.msra.mxu0 0.0
    %6494 = vmatprep.subr.mxu0 0.0
    %6495 = vmatpush1.msra.mxu0 0.0
    %6496 = vmatprep.subr.mxu0 0.0
    %6497 = vmatpush1.msra.mxu0 0.0
    %6498 = vmatprep.mubr.f32.mxu0 0.0
    %6499 = vmatmul.mubr.f32.gmra.mrb[0].mxu0 %v6432
    %v6500 = vpop.f32.mrb[0].mxu0
    %v6501 = vadd.f32 0.0, %v6500
    %v6502 = vpop.f32.mrb[0].mxu0
    %v6503 = vadd.f32 0.0, %v6502
    %6504 = vdwg.mxu0
    %v6505 = vadd.f32 %v6427, %v6501
    %v6506 = vadd.f32 %v6428, %v6503
    %v6507 = vxor.u32 %v6505, 2147483648
    %v6508 = vxor.u32 %v6506, 2147483648
    %v6509 = vmul.f32 %v6507, 1.442695
    %v6510 = vpow.pop %v6509
    %v6511 = vmul.f32 %v6508, 1.442695
    %v6512 = vpow.pop %v6511
    %v6513 = vadd.f32 %v6510, 1.0
    %v6514 = vadd.f32 %v6512, 1.0
    %v6515 = vrcp.pop %v6513
    %v6516 = vmul.f32 1.0, %v6515
    %v6517 = vrcp.pop %v6514
    %v6518 = vmul.f32 1.0, %v6517
    %v6519 = vtanh.pop %v6506
    %v6520 = vmul.f32 %v6516, %v6424
    %v6521 = vmul.f32 %v6516, %v6519
    %6523 = vrot.lane.b32.xlu0 %v6521, 64
    %v6524 = vpop.permute.xlu0 %6523
    %v6526 = vadd.f32 %v6520, %v6524
    %v6527 = vtanh.pop %v6526
    %v6528 = vmul.f32 %v6518, %v6527
    %v6529 = vsel %vm565, %v3667, %v3143
    %v6530 = vsel %vm566, %v3669, %v3145
    %6532 = vrot.lane.b32.xlu0 %v6528, 64
    %v6533 = vpop.permute.xlu0 %6532
    %v6534 = vsel %vm1206, %v6533, 0
    %6536 = vmatprep.subr.mxu0 %v4574
    %6537 = vmatpush1.msra.mxu0 %v4573
    %6538 = vmatprep.subr.mxu0 %v4576
    %6539 = vmatpush1.msra.mxu0 %v4575
    %6540 = vmatprep.subr.mxu0 %v4578
    %6541 = vmatpush1.msra.mxu0 %v4577
    %6542 = vmatprep.subr.mxu0 %v4580
    %6543 = vmatpush1.msra.mxu0 %v4579
    %6544 = vmatprep.subr.mxu0 %v4582
    %6545 = vmatpush1.msra.mxu0 %v4581
    %6546 = vmatprep.subr.mxu0 %v4584
    %6547 = vmatpush1.msra.mxu0 %v4583
    %6548 = vmatprep.subr.mxu0 %v4586
    %6549 = vmatpush1.msra.mxu0 %v4585
    %6550 = vmatprep.subr.mxu0 %v4588
    %6551 = vmatpush1.msra.mxu0 %v4587
    %6552 = vmatprep.subr.mxu0 0.0
    %6553 = vmatpush1.msra.mxu0 0.0
    %6554 = vmatprep.subr.mxu0 0.0
    %6555 = vmatpush1.msra.mxu0 0.0
    %6556 = vmatprep.subr.mxu0 0.0
    %6557 = vmatpush1.msra.mxu0 0.0
    %6558 = vmatprep.subr.mxu0 0.0
    %6559 = vmatpush1.msra.mxu0 0.0
    %6560 = vmatprep.subr.mxu0 0.0
    %6561 = vmatpush1.msra.mxu0 0.0
    %6562 = vmatprep.subr.mxu0 0.0
    %6563 = vmatpush1.msra.mxu0 0.0
    %6564 = vmatprep.subr.mxu0 0.0
    %6565 = vmatpush1.msra.mxu0 0.0
    %6566 = vmatprep.subr.mxu0 0.0
    %6567 = vmatpush1.msra.mxu0 0.0
    %6568 = vmatprep.subr.mxu0 0.0
    %6569 = vmatpush1.msra.mxu0 0.0
    %6570 = vmatprep.subr.mxu0 0.0
    %6571 = vmatpush1.msra.mxu0 0.0
    %6572 = vmatprep.subr.mxu0 0.0
    %6573 = vmatpush1.msra.mxu0 0.0
    %6574 = vmatprep.subr.mxu0 0.0
    %6575 = vmatpush1.msra.mxu0 0.0
    %6576 = vmatprep.subr.mxu0 0.0
    %6577 = vmatpush1.msra.mxu0 0.0
    %6578 = vmatprep.subr.mxu0 0.0
    %6579 = vmatpush1.msra.mxu0 0.0
    %6580 = vmatprep.subr.mxu0 0.0
    %6581 = vmatpush1.msra.mxu0 0.0
    %6582 = vmatprep.subr.mxu0 0.0
    %6583 = vmatpush1.msra.mxu0 0.0
    %6584 = vmatprep.subr.mxu0 0.0
    %6585 = vmatpush1.msra.mxu0 0.0
    %6586 = vmatprep.subr.mxu0 0.0
    %6587 = vmatpush1.msra.mxu0 0.0
    %6588 = vmatprep.subr.mxu0 0.0
    %6589 = vmatpush1.msra.mxu0 0.0
    %6590 = vmatprep.subr.mxu0 0.0
    %6591 = vmatpush1.msra.mxu0 0.0
    %6592 = vmatprep.subr.mxu0 0.0
    %6593 = vmatpush1.msra.mxu0 0.0
    %6594 = vmatprep.subr.mxu0 0.0
    %6595 = vmatpush1.msra.mxu0 0.0
    %6596 = vmatprep.subr.mxu0 0.0
    %6597 = vmatpush1.msra.mxu0 0.0
    %6598 = vmatprep.subr.mxu0 0.0
    %6599 = vmatpush1.msra.mxu0 0.0
    %6600 = vmatprep.mubr.f32.mxu0 0.0
    %6601 = vmatmul.mubr.f32.gmra.mrb[0].mxu0 %v6534
    %v6602 = vpop.f32.mrb[0].mxu0
    %v6603 = vadd.f32 0.0, %v6602
    %v6604 = vpop.f32.mrb[0].mxu0
    %v6605 = vadd.f32 0.0, %v6604
    %6606 = vdwg.mxu0
    %v6607 = vadd.f32 %v6529, %v6603
    %v6608 = vadd.f32 %v6530, %v6605
    %v6609 = vxor.u32 %v6607, 2147483648
    %v6610 = vxor.u32 %v6608, 2147483648
    %v6611 = vmul.f32 %v6609, 1.442695
    %v6612 = vpow.pop %v6611
    %v6613 = vmul.f32 %v6610, 1.442695
    %v6614 = vpow.pop %v6613
    %v6615 = vadd.f32 %v6612, 1.0
    %v6616 = vadd.f32 %v6614, 1.0
    %v6617 = vrcp.pop %v6615
    %v6618 = vmul.f32 1.0, %v6617
    %v6619 = vrcp.pop %v6616
    %v6620 = vmul.f32 1.0, %v6619
    %v6621 = vtanh.pop %v6608
    %v6622 = vmul.f32 %v6618, %v6526
    %v6623 = vmul.f32 %v6618, %v6621
    %6625 = vrot.lane.b32.xlu0 %v6623, 64
    %v6626 = vpop.permute.xlu0 %6625
    %v6628 = vadd.f32 %v6622, %v6626
    %v6629 = vtanh.pop %v6628
    %v6630 = vmul.f32 %v6620, %v6629
    %v6631 = vsel %vm565, %v3742, %v3068
    %v6632 = vsel %vm566, %v3744, %v3070
    %6634 = vrot.lane.b32.xlu0 %v6630, 64
    %v6635 = vpop.permute.xlu0 %6634
    %v6636 = vsel %vm1206, %v6635, 0
    %6638 = vmatprep.subr.mxu0 %v4574
    %6639 = vmatpush1.msra.mxu0 %v4573
    %6640 = vmatprep.subr.mxu0 %v4576
    %6641 = vmatpush1.msra.mxu0 %v4575
    %6642 = vmatprep.subr.mxu0 %v4578
    %6643 = vmatpush1.msra.mxu0 %v4577
    %6644 = vmatprep.subr.mxu0 %v4580
    %6645 = vmatpush1.msra.mxu0 %v4579
    %6646 = vmatprep.subr.mxu0 %v4582
    %6647 = vmatpush1.msra.mxu0 %v4581
    %6648 = vmatprep.subr.mxu0 %v4584
    %6649 = vmatpush1.msra.mxu0 %v4583
    %6650 = vmatprep.subr.mxu0 %v4586
    %6651 = vmatpush1.msra.mxu0 %v4585
    %6652 = vmatprep.subr.mxu0 %v4588
    %6653 = vmatpush1.msra.mxu0 %v4587
    %6654 = vmatprep.subr.mxu0 0.0
    %6655 = vmatpush1.msra.mxu0 0.0
    %6656 = vmatprep.subr.mxu0 0.0
    %6657 = vmatpush1.msra.mxu0 0.0
    %6658 = vmatprep.subr.mxu0 0.0
    %6659 = vmatpush1.msra.mxu0 0.0
    %6660 = vmatprep.subr.mxu0 0.0
    %6661 = vmatpush1.msra.mxu0 0.0
    %6662 = vmatprep.subr.mxu0 0.0
    %6663 = vmatpush1.msra.mxu0 0.0
    %6664 = vmatprep.subr.mxu0 0.0
    %6665 = vmatpush1.msra.mxu0 0.0
    %6666 = vmatprep.subr.mxu0 0.0
    %6667 = vmatpush1.msra.mxu0 0.0
    %6668 = vmatprep.subr.mxu0 0.0
    %6669 = vmatpush1.msra.mxu0 0.0
    %6670 = vmatprep.subr.mxu0 0.0
    %6671 = vmatpush1.msra.mxu0 0.0
    %6672 = vmatprep.subr.mxu0 0.0
    %6673 = vmatpush1.msra.mxu0 0.0
    %6674 = vmatprep.subr.mxu0 0.0
    %6675 = vmatpush1.msra.mxu0 0.0
    %6676 = vmatprep.subr.mxu0 0.0
    %6677 = vmatpush1.msra.mxu0 0.0
    %6678 = vmatprep.subr.mxu0 0.0
    %6679 = vmatpush1.msra.mxu0 0.0
    %6680 = vmatprep.subr.mxu0 0.0
    %6681 = vmatpush1.msra.mxu0 0.0
    %6682 = vmatprep.subr.mxu0 0.0
    %6683 = vmatpush1.msra.mxu0 0.0
    %6684 = vmatprep.subr.mxu0 0.0
    %6685 = vmatpush1.msra.mxu0 0.0
    %6686 = vmatprep.subr.mxu0 0.0
    %6687 = vmatpush1.msra.mxu0 0.0
    %6688 = vmatprep.subr.mxu0 0.0
    %6689 = vmatpush1.msra.mxu0 0.0
    %6690 = vmatprep.subr.mxu0 0.0
    %6691 = vmatpush1.msra.mxu0 0.0
    %6692 = vmatprep.subr.mxu0 0.0
    %6693 = vmatpush1.msra.mxu0 0.0
    %6694 = vmatprep.subr.mxu0 0.0
    %6695 = vmatpush1.msra.mxu0 0.0
    %6696 = vmatprep.subr.mxu0 0.0
    %6697 = vmatpush1.msra.mxu0 0.0
    %6698 = vmatprep.subr.mxu0 0.0
    %6699 = vmatpush1.msra.mxu0 0.0
    %6700 = vmatprep.subr.mxu0 0.0
    %6701 = vmatpush1.msra.mxu0 0.0
    %6702 = vmatprep.mubr.f32.mxu0 0.0
    %6703 = vmatmul.mubr.f32.gmra.mrb[0].mxu0 %v6636
    %v6704 = vpop.f32.mrb[0].mxu0
    %v6705 = vadd.f32 0.0, %v6704
    %v6706 = vpop.f32.mrb[0].mxu0
    %v6707 = vadd.f32 0.0, %v6706
    %6708 = vdwg.mxu0
    %v6709 = vadd.f32 %v6631, %v6705
    %v6710 = vadd.f32 %v6632, %v6707
    %v6711 = vxor.u32 %v6709, 2147483648
    %v6712 = vxor.u32 %v6710, 2147483648
    %v6713 = vmul.f32 %v6711, 1.442695
    %v6714 = vpow.pop %v6713
    %v6715 = vmul.f32 %v6712, 1.442695
    %v6716 = vpow.pop %v6715
    %v6717 = vadd.f32 %v6714, 1.0
    %v6718 = vadd.f32 %v6716, 1.0
    %v6719 = vrcp.pop %v6717
    %v6720 = vmul.f32 1.0, %v6719
    %v6721 = vrcp.pop %v6718
    %v6722 = vmul.f32 1.0, %v6721
    %v6723 = vtanh.pop %v6710
    %v6724 = vmul.f32 %v6720, %v6628
    %v6725 = vmul.f32 %v6720, %v6723
    %6727 = vrot.lane.b32.xlu0 %v6725, 64
    %v6728 = vpop.permute.xlu0 %6727
    %v6730 = vadd.f32 %v6724, %v6728
    %v6731 = vtanh.pop %v6730
    %v6732 = vmul.f32 %v6722, %v6731
    %v6733 = vsel %vm565, %v3817, %v2993
    %v6734 = vsel %vm566, %v3819, %v2995
    %6736 = vrot.lane.b32.xlu0 %v6732, 64
    %v6737 = vpop.permute.xlu0 %6736
    %v6738 = vsel %vm1206, %v6737, 0
    %6740 = vmatprep.subr.mxu0 %v4574
    %6741 = vmatpush1.msra.mxu0 %v4573
    %6742 = vmatprep.subr.mxu0 %v4576
    %6743 = vmatpush1.msra.mxu0 %v4575
    %6744 = vmatprep.subr.mxu0 %v4578
    %6745 = vmatpush1.msra.mxu0 %v4577
    %6746 = vmatprep.subr.mxu0 %v4580
    %6747 = vmatpush1.msra.mxu0 %v4579
    %6748 = vmatprep.subr.mxu0 %v4582
    %6749 = vmatpush1.msra.mxu0 %v4581
    %6750 = vmatprep.subr.mxu0 %v4584
    %6751 = vmatpush1.msra.mxu0 %v4583
    %6752 = vmatprep.subr.mxu0 %v4586
    %6753 = vmatpush1.msra.mxu0 %v4585
    %6754 = vmatprep.subr.mxu0 %v4588
    %6755 = vmatpush1.msra.mxu0 %v4587
    %6756 = vmatprep.subr.mxu0 0.0
    %6757 = vmatpush1.msra.mxu0 0.0
    %6758 = vmatprep.subr.mxu0 0.0
    %6759 = vmatpush1.msra.mxu0 0.0
    %6760 = vmatprep.subr.mxu0 0.0
    %6761 = vmatpush1.msra.mxu0 0.0
    %6762 = vmatprep.subr.mxu0 0.0
    %6763 = vmatpush1.msra.mxu0 0.0
    %6764 = vmatprep.subr.mxu0 0.0
    %6765 = vmatpush1.msra.mxu0 0.0
    %6766 = vmatprep.subr.mxu0 0.0
    %6767 = vmatpush1.msra.mxu0 0.0
    %6768 = vmatprep.subr.mxu0 0.0
    %6769 = vmatpush1.msra.mxu0 0.0
    %6770 = vmatprep.subr.mxu0 0.0
    %6771 = vmatpush1.msra.mxu0 0.0
    %6772 = vmatprep.subr.mxu0 0.0
    %6773 = vmatpush1.msra.mxu0 0.0
    %6774 = vmatprep.subr.mxu0 0.0
    %6775 = vmatpush1.msra.mxu0 0.0
    %6776 = vmatprep.subr.mxu0 0.0
    %6777 = vmatpush1.msra.mxu0 0.0
    %6778 = vmatprep.subr.mxu0 0.0
    %6779 = vmatpush1.msra.mxu0 0.0
    %6780 = vmatprep.subr.mxu0 0.0
    %6781 = vmatpush1.msra.mxu0 0.0
    %6782 = vmatprep.subr.mxu0 0.0
    %6783 = vmatpush1.msra.mxu0 0.0
    %6784 = vmatprep.subr.mxu0 0.0
    %6785 = vmatpush1.msra.mxu0 0.0
    %6786 = vmatprep.subr.mxu0 0.0
    %6787 = vmatpush1.msra.mxu0 0.0
    %6788 = vmatprep.subr.mxu0 0.0
    %6789 = vmatpush1.msra.mxu0 0.0
    %6790 = vmatprep.subr.mxu0 0.0
    %6791 = vmatpush1.msra.mxu0 0.0
    %6792 = vmatprep.subr.mxu0 0.0
    %6793 = vmatpush1.msra.mxu0 0.0
    %6794 = vmatprep.subr.mxu0 0.0
    %6795 = vmatpush1.msra.mxu0 0.0
    %6796 = vmatprep.subr.mxu0 0.0
    %6797 = vmatpush1.msra.mxu0 0.0
    %6798 = vmatprep.subr.mxu0 0.0
    %6799 = vmatpush1.msra.mxu0 0.0
    %6800 = vmatprep.subr.mxu0 0.0
    %6801 = vmatpush1.msra.mxu0 0.0
    %6802 = vmatprep.subr.mxu0 0.0
    %6803 = vmatpush1.msra.mxu0 0.0
    %6804 = vmatprep.mubr.f32.mxu0 0.0
    %6805 = vmatmul.mubr.f32.gmra.mrb[0].mxu0 %v6738
    %v6806 = vpop.f32.mrb[0].mxu0
    %v6807 = vadd.f32 0.0, %v6806
    %v6808 = vpop.f32.mrb[0].mxu0
    %v6809 = vadd.f32 0.0, %v6808
    %6810 = vdwg.mxu0
    %v6811 = vadd.f32 %v6733, %v6807
    %v6812 = vadd.f32 %v6734, %v6809
    %v6813 = vxor.u32 %v6811, 2147483648
    %v6814 = vxor.u32 %v6812, 2147483648
    %v6815 = vmul.f32 %v6813, 1.442695
    %v6816 = vpow.pop %v6815
    %v6817 = vmul.f32 %v6814, 1.442695
    %v6818 = vpow.pop %v6817
    %v6819 = vadd.f32 %v6816, 1.0
    %v6820 = vadd.f32 %v6818, 1.0
    %v6821 = vrcp.pop %v6819
    %v6822 = vmul.f32 1.0, %v6821
    %v6823 = vrcp.pop %v6820
    %v6824 = vmul.f32 1.0, %v6823
    %v6825 = vtanh.pop %v6812
    %v6826 = vmul.f32 %v6822, %v6730
    %v6827 = vmul.f32 %v6822, %v6825
    %6829 = vrot.lane.b32.xlu0 %v6827, 64
    %v6830 = vpop.permute.xlu0 %6829
    %v6832 = vadd.f32 %v6826, %v6830
    %v6833 = vtanh.pop %v6832
    %v6834 = vmul.f32 %v6824, %v6833
    %v6835 = vsel %vm565, %v3892, %v2918
    %v6836 = vsel %vm566, %v3894, %v2920
    %6838 = vrot.lane.b32.xlu0 %v6834, 64
    %v6839 = vpop.permute.xlu0 %6838
    %v6840 = vsel %vm1206, %v6839, 0
    %6842 = vmatprep.subr.mxu0 %v4574
    %6843 = vmatpush1.msra.mxu0 %v4573
    %6844 = vmatprep.subr.mxu0 %v4576
    %6845 = vmatpush1.msra.mxu0 %v4575
    %6846 = vmatprep.subr.mxu0 %v4578
    %6847 = vmatpush1.msra.mxu0 %v4577
    %6848 = vmatprep.subr.mxu0 %v4580
    %6849 = vmatpush1.msra.mxu0 %v4579
    %6850 = vmatprep.subr.mxu0 %v4582
    %6851 = vmatpush1.msra.mxu0 %v4581
    %6852 = vmatprep.subr.mxu0 %v4584
    %6853 = vmatpush1.msra.mxu0 %v4583
    %6854 = vmatprep.subr.mxu0 %v4586
    %6855 = vmatpush1.msra.mxu0 %v4585
    %6856 = vmatprep.subr.mxu0 %v4588
    %6857 = vmatpush1.msra.mxu0 %v4587
    %6858 = vmatprep.subr.mxu0 0.0
    %6859 = vmatpush1.msra.mxu0 0.0
    %6860 = vmatprep.subr.mxu0 0.0
    %6861 = vmatpush1.msra.mxu0 0.0
    %6862 = vmatprep.subr.mxu0 0.0
    %6863 = vmatpush1.msra.mxu0 0.0
    %6864 = vmatprep.subr.mxu0 0.0
    %6865 = vmatpush1.msra.mxu0 0.0
    %6866 = vmatprep.subr.mxu0 0.0
    %6867 = vmatpush1.msra.mxu0 0.0
    %6868 = vmatprep.subr.mxu0 0.0
    %6869 = vmatpush1.msra.mxu0 0.0
    %6870 = vmatprep.subr.mxu0 0.0
    %6871 = vmatpush1.msra.mxu0 0.0
    %6872 = vmatprep.subr.mxu0 0.0
    %6873 = vmatpush1.msra.mxu0 0.0
    %6874 = vmatprep.subr.mxu0 0.0
    %6875 = vmatpush1.msra.mxu0 0.0
    %6876 = vmatprep.subr.mxu0 0.0
    %6877 = vmatpush1.msra.mxu0 0.0
    %6878 = vmatprep.subr.mxu0 0.0
    %6879 = vmatpush1.msra.mxu0 0.0
    %6880 = vmatprep.subr.mxu0 0.0
    %6881 = vmatpush1.msra.mxu0 0.0
    %6882 = vmatprep.subr.mxu0 0.0
    %6883 = vmatpush1.msra.mxu0 0.0
    %6884 = vmatprep.subr.mxu0 0.0
    %6885 = vmatpush1.msra.mxu0 0.0
    %6886 = vmatprep.subr.mxu0 0.0
    %6887 = vmatpush1.msra.mxu0 0.0
    %6888 = vmatprep.subr.mxu0 0.0
    %6889 = vmatpush1.msra.mxu0 0.0
    %6890 = vmatprep.subr.mxu0 0.0
    %6891 = vmatpush1.msra.mxu0 0.0
    %6892 = vmatprep.subr.mxu0 0.0
    %6893 = vmatpush1.msra.mxu0 0.0
    %6894 = vmatprep.subr.mxu0 0.0
    %6895 = vmatpush1.msra.mxu0 0.0
    %6896 = vmatprep.subr.mxu0 0.0
    %6897 = vmatpush1.msra.mxu0 0.0
    %6898 = vmatprep.subr.mxu0 0.0
    %6899 = vmatpush1.msra.mxu0 0.0
    %6900 = vmatprep.subr.mxu0 0.0
    %6901 = vmatpush1.msra.mxu0 0.0
    %6902 = vmatprep.subr.mxu0 0.0
    %6903 = vmatpush1.msra.mxu0 0.0
    %6904 = vmatprep.subr.mxu0 0.0
    %6905 = vmatpush1.msra.mxu0 0.0
    %6906 = vmatprep.mubr.f32.mxu0 0.0
    %6907 = vmatmul.mubr.f32.gmra.mrb[0].mxu0 %v6840
    %v6908 = vpop.f32.mrb[0].mxu0
    %v6909 = vadd.f32 0.0, %v6908
    %v6910 = vpop.f32.mrb[0].mxu0
    %v6911 = vadd.f32 0.0, %v6910
    %6912 = vdwg.mxu0
    %v6913 = vadd.f32 %v6835, %v6909
    %v6914 = vadd.f32 %v6836, %v6911
    %v6915 = vxor.u32 %v6913, 2147483648
    %v6916 = vxor.u32 %v6914, 2147483648
    %v6917 = vmul.f32 %v6915, 1.442695
    %v6918 = vpow.pop %v6917
    %v6919 = vmul.f32 %v6916, 1.442695
    %v6920 = vpow.pop %v6919
    %v6921 = vadd.f32 %v6918, 1.0
    %v6922 = vadd.f32 %v6920, 1.0
    %v6923 = vrcp.pop %v6921
    %v6924 = vmul.f32 1.0, %v6923
    %v6925 = vrcp.pop %v6922
    %v6926 = vmul.f32 1.0, %v6925
    %v6927 = vtanh.pop %v6914
    %v6928 = vmul.f32 %v6924, %v6832
    %v6929 = vmul.f32 %v6924, %v6927
    %6931 = vrot.lane.b32.xlu0 %v6929, 64
    %v6932 = vpop.permute.xlu0 %6931
    %v6934 = vadd.f32 %v6928, %v6932
    %v6935 = vtanh.pop %v6934
    %v6936 = vmul.f32 %v6926, %v6935
    %v6937 = vsel %vm565, %v3967, %v2843
    %v6938 = vsel %vm566, %v3969, %v2845
    %6940 = vrot.lane.b32.xlu0 %v6936, 64
    %v6941 = vpop.permute.xlu0 %6940
    %v6942 = vsel %vm1206, %v6941, 0
    %6944 = vmatprep.subr.mxu0 %v4574
    %6945 = vmatpush1.msra.mxu0 %v4573
    %6946 = vmatprep.subr.mxu0 %v4576
    %6947 = vmatpush1.msra.mxu0 %v4575
    %6948 = vmatprep.subr.mxu0 %v4578
    %6949 = vmatpush1.msra.mxu0 %v4577
    %6950 = vmatprep.subr.mxu0 %v4580
    %6951 = vmatpush1.msra.mxu0 %v4579
    %6952 = vmatprep.subr.mxu0 %v4582
    %6953 = vmatpush1.msra.mxu0 %v4581
    %6954 = vmatprep.subr.mxu0 %v4584
    %6955 = vmatpush1.msra.mxu0 %v4583
    %6956 = vmatprep.subr.mxu0 %v4586
    %6957 = vmatpush1.msra.mxu0 %v4585
    %6958 = vmatprep.subr.mxu0 %v4588
    %6959 = vmatpush1.msra.mxu0 %v4587
    %6960 = vmatprep.subr.mxu0 0.0
    %6961 = vmatpush1.msra.mxu0 0.0
    %6962 = vmatprep.subr.mxu0 0.0
    %6963 = vmatpush1.msra.mxu0 0.0
    %6964 = vmatprep.subr.mxu0 0.0
    %6965 = vmatpush1.msra.mxu0 0.0
    %6966 = vmatprep.subr.mxu0 0.0
    %6967 = vmatpush1.msra.mxu0 0.0
    %6968 = vmatprep.subr.mxu0 0.0
    %6969 = vmatpush1.msra.mxu0 0.0
    %6970 = vmatprep.subr.mxu0 0.0
    %6971 = vmatpush1.msra.mxu0 0.0
    %6972 = vmatprep.subr.mxu0 0.0
    %6973 = vmatpush1.msra.mxu0 0.0
    %6974 = vmatprep.subr.mxu0 0.0
    %6975 = vmatpush1.msra.mxu0 0.0
    %6976 = vmatprep.subr.mxu0 0.0
    %6977 = vmatpush1.msra.mxu0 0.0
    %6978 = vmatprep.subr.mxu0 0.0
    %6979 = vmatpush1.msra.mxu0 0.0
    %6980 = vmatprep.subr.mxu0 0.0
    %6981 = vmatpush1.msra.mxu0 0.0
    %6982 = vmatprep.subr.mxu0 0.0
    %6983 = vmatpush1.msra.mxu0 0.0
    %6984 = vmatprep.subr.mxu0 0.0
    %6985 = vmatpush1.msra.mxu0 0.0
    %6986 = vmatprep.subr.mxu0 0.0
    %6987 = vmatpush1.msra.mxu0 0.0
    %6988 = vmatprep.subr.mxu0 0.0
    %6989 = vmatpush1.msra.mxu0 0.0
    %6990 = vmatprep.subr.mxu0 0.0
    %6991 = vmatpush1.msra.mxu0 0.0
    %6992 = vmatprep.subr.mxu0 0.0
    %6993 = vmatpush1.msra.mxu0 0.0
    %6994 = vmatprep.subr.mxu0 0.0
    %6995 = vmatpush1.msra.mxu0 0.0
    %6996 = vmatprep.subr.mxu0 0.0
    %6997 = vmatpush1.msra.mxu0 0.0
    %6998 = vmatprep.subr.mxu0 0.0
    %6999 = vmatpush1.msra.mxu0 0.0
    %7000 = vmatprep.subr.mxu0 0.0
    %7001 = vmatpush1.msra.mxu0 0.0
    %7002 = vmatprep.subr.mxu0 0.0
    %7003 = vmatpush1.msra.mxu0 0.0
    %7004 = vmatprep.subr.mxu0 0.0
    %7005 = vmatpush1.msra.mxu0 0.0
    %7006 = vmatprep.subr.mxu0 0.0
    %7007 = vmatpush1.msra.mxu0 0.0
    %7008 = vmatprep.mubr.f32.mxu0 0.0
    %7009 = vmatmul.mubr.f32.gmra.mrb[0].mxu0 %v6942
    %v7010 = vpop.f32.mrb[0].mxu0
    %v7011 = vadd.f32 0.0, %v7010
    %v7012 = vpop.f32.mrb[0].mxu0
    %v7013 = vadd.f32 0.0, %v7012
    %7014 = vdwg.mxu0
    %v7015 = vadd.f32 %v6937, %v7011
    %v7016 = vadd.f32 %v6938, %v7013
    %v7017 = vxor.u32 %v7015, 2147483648
    %v7018 = vxor.u32 %v7016, 2147483648
    %v7019 = vmul.f32 %v7017, 1.442695
    %v7020 = vpow.pop %v7019
    %v7021 = vmul.f32 %v7018, 1.442695
    %v7022 = vpow.pop %v7021
    %v7023 = vadd.f32 %v7020, 1.0
    %v7024 = vadd.f32 %v7022, 1.0
    %v7025 = vrcp.pop %v7023
    %v7026 = vmul.f32 1.0, %v7025
    %v7027 = vrcp.pop %v7024
    %v7028 = vmul.f32 1.0, %v7027
    %v7029 = vtanh.pop %v7016
    %v7030 = vmul.f32 %v7026, %v6934
    %v7031 = vmul.f32 %v7026, %v7029
    %7033 = vrot.lane.b32.xlu0 %v7031, 64
    %v7034 = vpop.permute.xlu0 %7033
    %v7036 = vadd.f32 %v7030, %v7034
    %v7037 = vtanh.pop %v7036
    %v7038 = vmul.f32 %v7028, %v7037
    %v7039 = vsel %vm565, %v4042, %v2768
    %v7040 = vsel %vm566, %v4044, %v2770
    %7042 = vrot.lane.b32.xlu0 %v7038, 64
    %v7043 = vpop.permute.xlu0 %7042
    %v7044 = vsel %vm1206, %v7043, 0
    %7046 = vmatprep.subr.mxu0 %v4574
    %7047 = vmatpush1.msra.mxu0 %v4573
    %7048 = vmatprep.subr.mxu0 %v4576
    %7049 = vmatpush1.msra.mxu0 %v4575
    %7050 = vmatprep.subr.mxu0 %v4578
    %7051 = vmatpush1.msra.mxu0 %v4577
    %7052 = vmatprep.subr.mxu0 %v4580
    %7053 = vmatpush1.msra.mxu0 %v4579
    %7054 = vmatprep.subr.mxu0 %v4582
    %7055 = vmatpush1.msra.mxu0 %v4581
    %7056 = vmatprep.subr.mxu0 %v4584
    %7057 = vmatpush1.msra.mxu0 %v4583
    %7058 = vmatprep.subr.mxu0 %v4586
    %7059 = vmatpush1.msra.mxu0 %v4585
    %7060 = vmatprep.subr.mxu0 %v4588
    %7061 = vmatpush1.msra.mxu0 %v4587
    %7062 = vmatprep.subr.mxu0 0.0
    %7063 = vmatpush1.msra.mxu0 0.0
    %7064 = vmatprep.subr.mxu0 0.0
    %7065 = vmatpush1.msra.mxu0 0.0
    %7066 = vmatprep.subr.mxu0 0.0
    %7067 = vmatpush1.msra.mxu0 0.0
    %7068 = vmatprep.subr.mxu0 0.0
    %7069 = vmatpush1.msra.mxu0 0.0
    %7070 = vmatprep.subr.mxu0 0.0
    %7071 = vmatpush1.msra.mxu0 0.0
    %7072 = vmatprep.subr.mxu0 0.0
    %7073 = vmatpush1.msra.mxu0 0.0
    %7074 = vmatprep.subr.mxu0 0.0
    %7075 = vmatpush1.msra.mxu0 0.0
    %7076 = vmatprep.subr.mxu0 0.0
    %7077 = vmatpush1.msra.mxu0 0.0
    %7078 = vmatprep.subr.mxu0 0.0
    %7079 = vmatpush1.msra.mxu0 0.0
    %7080 = vmatprep.subr.mxu0 0.0
    %7081 = vmatpush1.msra.mxu0 0.0
    %7082 = vmatprep.subr.mxu0 0.0
    %7083 = vmatpush1.msra.mxu0 0.0
    %7084 = vmatprep.subr.mxu0 0.0
    %7085 = vmatpush1.msra.mxu0 0.0
    %7086 = vmatprep.subr.mxu0 0.0
    %7087 = vmatpush1.msra.mxu0 0.0
    %7088 = vmatprep.subr.mxu0 0.0
    %7089 = vmatpush1.msra.mxu0 0.0
    %7090 = vmatprep.subr.mxu0 0.0
    %7091 = vmatpush1.msra.mxu0 0.0
    %7092 = vmatprep.subr.mxu0 0.0
    %7093 = vmatpush1.msra.mxu0 0.0
    %7094 = vmatprep.subr.mxu0 0.0
    %7095 = vmatpush1.msra.mxu0 0.0
    %7096 = vmatprep.subr.mxu0 0.0
    %7097 = vmatpush1.msra.mxu0 0.0
    %7098 = vmatprep.subr.mxu0 0.0
    %7099 = vmatpush1.msra.mxu0 0.0
    %7100 = vmatprep.subr.mxu0 0.0
    %7101 = vmatpush1.msra.mxu0 0.0
    %7102 = vmatprep.subr.mxu0 0.0
    %7103 = vmatpush1.msra.mxu0 0.0
    %7104 = vmatprep.subr.mxu0 0.0
    %7105 = vmatpush1.msra.mxu0 0.0
    %7106 = vmatprep.subr.mxu0 0.0
    %7107 = vmatpush1.msra.mxu0 0.0
    %7108 = vmatprep.subr.mxu0 0.0
    %7109 = vmatpush1.msra.mxu0 0.0
    %7110 = vmatprep.mubr.f32.mxu0 0.0
    %7111 = vmatmul.mubr.f32.gmra.mrb[0].mxu0 %v7044
    %v7112 = vpop.f32.mrb[0].mxu0
    %v7113 = vadd.f32 0.0, %v7112
    %v7114 = vpop.f32.mrb[0].mxu0
    %v7115 = vadd.f32 0.0, %v7114
    %7116 = vdwg.mxu0
    %v7117 = vadd.f32 %v7039, %v7113
    %v7118 = vadd.f32 %v7040, %v7115
    %v7119 = vxor.u32 %v7117, 2147483648
    %v7120 = vxor.u32 %v7118, 2147483648
    %v7121 = vmul.f32 %v7119, 1.442695
    %v7122 = vpow.pop %v7121
    %v7123 = vmul.f32 %v7120, 1.442695
    %v7124 = vpow.pop %v7123
    %v7125 = vadd.f32 %v7122, 1.0
    %v7126 = vadd.f32 %v7124, 1.0
    %v7127 = vrcp.pop %v7125
    %v7128 = vmul.f32 1.0, %v7127
    %v7129 = vrcp.pop %v7126
    %v7130 = vmul.f32 1.0, %v7129
    %v7131 = vtanh.pop %v7118
    %v7132 = vmul.f32 %v7128, %v7036
    %v7133 = vmul.f32 %v7128, %v7131
    %7135 = vrot.lane.b32.xlu0 %v7133, 64
    %v7136 = vpop.permute.xlu0 %7135
    %v7138 = vadd.f32 %v7132, %v7136
    %v7139 = vtanh.pop %v7138
    %v7140 = vmul.f32 %v7130, %v7139
    %v7141 = vsel %vm565, %v4117, %v2693
    %v7142 = vsel %vm566, %v4119, %v2695
    %7144 = vrot.lane.b32.xlu0 %v7140, 64
    %v7145 = vpop.permute.xlu0 %7144
    %v7146 = vsel %vm1206, %v7145, 0
    %7148 = vmatprep.subr.mxu0 %v4574
    %7149 = vmatpush1.msra.mxu0 %v4573
    %7150 = vmatprep.subr.mxu0 %v4576
    %7151 = vmatpush1.msra.mxu0 %v4575
    %7152 = vmatprep.subr.mxu0 %v4578
    %7153 = vmatpush1.msra.mxu0 %v4577
    %7154 = vmatprep.subr.mxu0 %v4580
    %7155 = vmatpush1.msra.mxu0 %v4579
    %7156 = vmatprep.subr.mxu0 %v4582
    %7157 = vmatpush1.msra.mxu0 %v4581
    %7158 = vmatprep.subr.mxu0 %v4584
    %7159 = vmatpush1.msra.mxu0 %v4583
    %7160 = vmatprep.subr.mxu0 %v4586
    %7161 = vmatpush1.msra.mxu0 %v4585
    %7162 = vmatprep.subr.mxu0 %v4588
    %7163 = vmatpush1.msra.mxu0 %v4587
    %7164 = vmatprep.subr.mxu0 0.0
    %7165 = vmatpush1.msra.mxu0 0.0
    %7166 = vmatprep.subr.mxu0 0.0
    %7167 = vmatpush1.msra.mxu0 0.0
    %7168 = vmatprep.subr.mxu0 0.0
    %7169 = vmatpush1.msra.mxu0 0.0
    %7170 = vmatprep.subr.mxu0 0.0
    %7171 = vmatpush1.msra.mxu0 0.0
    %7172 = vmatprep.subr.mxu0 0.0
    %7173 = vmatpush1.msra.mxu0 0.0
    %7174 = vmatprep.subr.mxu0 0.0
    %7175 = vmatpush1.msra.mxu0 0.0
    %7176 = vmatprep.subr.mxu0 0.0
    %7177 = vmatpush1.msra.mxu0 0.0
    %7178 = vmatprep.subr.mxu0 0.0
    %7179 = vmatpush1.msra.mxu0 0.0
    %7180 = vmatprep.subr.mxu0 0.0
    %7181 = vmatpush1.msra.mxu0 0.0
    %7182 = vmatprep.subr.mxu0 0.0
    %7183 = vmatpush1.msra.mxu0 0.0
    %7184 = vmatprep.subr.mxu0 0.0
    %7185 = vmatpush1.msra.mxu0 0.0
    %7186 = vmatprep.subr.mxu0 0.0
    %7187 = vmatpush1.msra.mxu0 0.0
    %7188 = vmatprep.subr.mxu0 0.0
    %7189 = vmatpush1.msra.mxu0 0.0
    %7190 = vmatprep.subr.mxu0 0.0
    %7191 = vmatpush1.msra.mxu0 0.0
    %7192 = vmatprep.subr.mxu0 0.0
    %7193 = vmatpush1.msra.mxu0 0.0
    %7194 = vmatprep.subr.mxu0 0.0
    %7195 = vmatpush1.msra.mxu0 0.0
    %7196 = vmatprep.subr.mxu0 0.0
    %7197 = vmatpush1.msra.mxu0 0.0
    %7198 = vmatprep.subr.mxu0 0.0
    %7199 = vmatpush1.msra.mxu0 0.0
    %7200 = vmatprep.subr.mxu0 0.0
    %7201 = vmatpush1.msra.mxu0 0.0
    %7202 = vmatprep.subr.mxu0 0.0
    %7203 = vmatpush1.msra.mxu0 0.0
    %7204 = vmatprep.subr.mxu0 0.0
    %7205 = vmatpush1.msra.mxu0 0.0
    %7206 = vmatprep.subr.mxu0 0.0
    %7207 = vmatpush1.msra.mxu0 0.0
    %7208 = vmatprep.subr.mxu0 0.0
    %7209 = vmatpush1.msra.mxu0 0.0
    %7210 = vmatprep.subr.mxu0 0.0
    %7211 = vmatpush1.msra.mxu0 0.0
    %7212 = vmatprep.mubr.f32.mxu0 0.0
    %7213 = vmatmul.mubr.f32.gmra.mrb[0].mxu0 %v7146
    %v7214 = vpop.f32.mrb[0].mxu0
    %v7215 = vadd.f32 0.0, %v7214
    %v7216 = vpop.f32.mrb[0].mxu0
    %v7217 = vadd.f32 0.0, %v7216
    %7218 = vdwg.mxu0
    %v7219 = vadd.f32 %v7141, %v7215
    %v7220 = vadd.f32 %v7142, %v7217
    %v7221 = vxor.u32 %v7219, 2147483648
    %v7222 = vxor.u32 %v7220, 2147483648
    %v7223 = vmul.f32 %v7221, 1.442695
    %v7224 = vpow.pop %v7223
    %v7225 = vmul.f32 %v7222, 1.442695
    %v7226 = vpow.pop %v7225
    %v7227 = vadd.f32 %v7224, 1.0
    %v7228 = vadd.f32 %v7226, 1.0
    %v7229 = vrcp.pop %v7227
    %v7230 = vmul.f32 1.0, %v7229
    %v7231 = vrcp.pop %v7228
    %v7232 = vmul.f32 1.0, %v7231
    %v7233 = vtanh.pop %v7220
    %v7234 = vmul.f32 %v7230, %v7138
    %v7235 = vmul.f32 %v7230, %v7233
    %7237 = vrot.lane.b32.xlu0 %v7235, 64
    %v7238 = vpop.permute.xlu0 %7237
    %v7240 = vadd.f32 %v7234, %v7238
    %v7241 = vtanh.pop %v7240
    %v7242 = vmul.f32 %v7232, %v7241
    %v7243 = vsel %vm565, %v4192, %v2618
    %v7244 = vsel %vm566, %v4194, %v2620
    %7246 = vrot.lane.b32.xlu0 %v7242, 64
    %v7247 = vpop.permute.xlu0 %7246
    %v7248 = vsel %vm1206, %v7247, 0
    %7250 = vmatprep.subr.mxu0 %v4574
    %7251 = vmatpush1.msra.mxu0 %v4573
    %7252 = vmatprep.subr.mxu0 %v4576
    %7253 = vmatpush1.msra.mxu0 %v4575
    %7254 = vmatprep.subr.mxu0 %v4578
    %7255 = vmatpush1.msra.mxu0 %v4577
    %7256 = vmatprep.subr.mxu0 %v4580
    %7257 = vmatpush1.msra.mxu0 %v4579
    %7258 = vmatprep.subr.mxu0 %v4582
    %7259 = vmatpush1.msra.mxu0 %v4581
    %7260 = vmatprep.subr.mxu0 %v4584
    %7261 = vmatpush1.msra.mxu0 %v4583
    %7262 = vmatprep.subr.mxu0 %v4586
    %7263 = vmatpush1.msra.mxu0 %v4585
    %7264 = vmatprep.subr.mxu0 %v4588
    %7265 = vmatpush1.msra.mxu0 %v4587
    %7266 = vmatprep.subr.mxu0 0.0
    %7267 = vmatpush1.msra.mxu0 0.0
    %7268 = vmatprep.subr.mxu0 0.0
    %7269 = vmatpush1.msra.mxu0 0.0
    %7270 = vmatprep.subr.mxu0 0.0
    %7271 = vmatpush1.msra.mxu0 0.0
    %7272 = vmatprep.subr.mxu0 0.0
    %7273 = vmatpush1.msra.mxu0 0.0
    %7274 = vmatprep.subr.mxu0 0.0
    %7275 = vmatpush1.msra.mxu0 0.0
    %7276 = vmatprep.subr.mxu0 0.0
    %7277 = vmatpush1.msra.mxu0 0.0
    %7278 = vmatprep.subr.mxu0 0.0
    %7279 = vmatpush1.msra.mxu0 0.0
    %7280 = vmatprep.subr.mxu0 0.0
    %7281 = vmatpush1.msra.mxu0 0.0
    %7282 = vmatprep.subr.mxu0 0.0
    %7283 = vmatpush1.msra.mxu0 0.0
    %7284 = vmatprep.subr.mxu0 0.0
    %7285 = vmatpush1.msra.mxu0 0.0
    %7286 = vmatprep.subr.mxu0 0.0
    %7287 = vmatpush1.msra.mxu0 0.0
    %7288 = vmatprep.subr.mxu0 0.0
    %7289 = vmatpush1.msra.mxu0 0.0
    %7290 = vmatprep.subr.mxu0 0.0
    %7291 = vmatpush1.msra.mxu0 0.0
    %7292 = vmatprep.subr.mxu0 0.0
    %7293 = vmatpush1.msra.mxu0 0.0
    %7294 = vmatprep.subr.mxu0 0.0
    %7295 = vmatpush1.msra.mxu0 0.0
    %7296 = vmatprep.subr.mxu0 0.0
    %7297 = vmatpush1.msra.mxu0 0.0
    %7298 = vmatprep.subr.mxu0 0.0
    %7299 = vmatpush1.msra.mxu0 0.0
    %7300 = vmatprep.subr.mxu0 0.0
    %7301 = vmatpush1.msra.mxu0 0.0
    %7302 = vmatprep.subr.mxu0 0.0
    %7303 = vmatpush1.msra.mxu0 0.0
    %7304 = vmatprep.subr.mxu0 0.0
    %7305 = vmatpush1.msra.mxu0 0.0
    %7306 = vmatprep.subr.mxu0 0.0
    %7307 = vmatpush1.msra.mxu0 0.0
    %7308 = vmatprep.subr.mxu0 0.0
    %7309 = vmatpush1.msra.mxu0 0.0
    %7310 = vmatprep.subr.mxu0 0.0
    %7311 = vmatpush1.msra.mxu0 0.0
    %7312 = vmatprep.subr.mxu0 0.0
    %7313 = vmatpush1.msra.mxu0 0.0
    %7314 = vmatprep.mubr.f32.mxu0 0.0
    %7315 = vmatmul.mubr.f32.gmra.mrb[0].mxu0 %v7248
    %v7316 = vpop.f32.mrb[0].mxu0
    %v7317 = vadd.f32 0.0, %v7316
    %v7318 = vpop.f32.mrb[0].mxu0
    %v7319 = vadd.f32 0.0, %v7318
    %7320 = vdwg.mxu0
    %v7321 = vadd.f32 %v7243, %v7317
    %v7322 = vadd.f32 %v7244, %v7319
    %v7323 = vxor.u32 %v7321, 2147483648
    %v7324 = vxor.u32 %v7322, 2147483648
    %v7325 = vmul.f32 %v7323, 1.442695
    %v7326 = vpow.pop %v7325
    %v7327 = vmul.f32 %v7324, 1.442695
    %v7328 = vpow.pop %v7327
    %v7329 = vadd.f32 %v7326, 1.0
    %v7330 = vadd.f32 %v7328, 1.0
    %v7331 = vrcp.pop %v7329
    %v7332 = vmul.f32 1.0, %v7331
    %v7333 = vrcp.pop %v7330
    %v7334 = vmul.f32 1.0, %v7333
    %v7335 = vtanh.pop %v7322
    %v7336 = vmul.f32 %v7332, %v7240
    %v7337 = vmul.f32 %v7332, %v7335
    %7339 = vrot.lane.b32.xlu0 %v7337, 64
    %v7340 = vpop.permute.xlu0 %7339
    %v7342 = vadd.f32 %v7336, %v7340
    %v7343 = vtanh.pop %v7342
    %v7344 = vmul.f32 %v7334, %v7343
    %v7345 = vsel %vm565, %v4267, %v2543
    %v7346 = vsel %vm566, %v4269, %v2545
    %7348 = vrot.lane.b32.xlu0 %v7344, 64
    %v7349 = vpop.permute.xlu0 %7348
    %v7350 = vsel %vm1206, %v7349, 0
    %7352 = vmatprep.subr.mxu0 %v4574
    %7353 = vmatpush1.msra.mxu0 %v4573
    %7354 = vmatprep.subr.mxu0 %v4576
    %7355 = vmatpush1.msra.mxu0 %v4575
    %7356 = vmatprep.subr.mxu0 %v4578
    %7357 = vmatpush1.msra.mxu0 %v4577
    %7358 = vmatprep.subr.mxu0 %v4580
    %7359 = vmatpush1.msra.mxu0 %v4579
    %7360 = vmatprep.subr.mxu0 %v4582
    %7361 = vmatpush1.msra.mxu0 %v4581
    %7362 = vmatprep.subr.mxu0 %v4584
    %7363 = vmatpush1.msra.mxu0 %v4583
    %7364 = vmatprep.subr.mxu0 %v4586
    %7365 = vmatpush1.msra.mxu0 %v4585
    %7366 = vmatprep.subr.mxu0 %v4588
    %7367 = vmatpush1.msra.mxu0 %v4587
    %7368 = vmatprep.subr.mxu0 0.0
    %7369 = vmatpush1.msra.mxu0 0.0
    %7370 = vmatprep.subr.mxu0 0.0
    %7371 = vmatpush1.msra.mxu0 0.0
    %7372 = vmatprep.subr.mxu0 0.0
    %7373 = vmatpush1.msra.mxu0 0.0
    %7374 = vmatprep.subr.mxu0 0.0
    %7375 = vmatpush1.msra.mxu0 0.0
    %7376 = vmatprep.subr.mxu0 0.0
    %7377 = vmatpush1.msra.mxu0 0.0
    %7378 = vmatprep.subr.mxu0 0.0
    %7379 = vmatpush1.msra.mxu0 0.0
    %7380 = vmatprep.subr.mxu0 0.0
    %7381 = vmatpush1.msra.mxu0 0.0
    %7382 = vmatprep.subr.mxu0 0.0
    %7383 = vmatpush1.msra.mxu0 0.0
    %7384 = vmatprep.subr.mxu0 0.0
    %7385 = vmatpush1.msra.mxu0 0.0
    %7386 = vmatprep.subr.mxu0 0.0
    %7387 = vmatpush1.msra.mxu0 0.0
    %7388 = vmatprep.subr.mxu0 0.0
    %7389 = vmatpush1.msra.mxu0 0.0
    %7390 = vmatprep.subr.mxu0 0.0
    %7391 = vmatpush1.msra.mxu0 0.0
    %7392 = vmatprep.subr.mxu0 0.0
    %7393 = vmatpush1.msra.mxu0 0.0
    %7394 = vmatprep.subr.mxu0 0.0
    %7395 = vmatpush1.msra.mxu0 0.0
    %7396 = vmatprep.subr.mxu0 0.0
    %7397 = vmatpush1.msra.mxu0 0.0
    %7398 = vmatprep.subr.mxu0 0.0
    %7399 = vmatpush1.msra.mxu0 0.0
    %7400 = vmatprep.subr.mxu0 0.0
    %7401 = vmatpush1.msra.mxu0 0.0
    %7402 = vmatprep.subr.mxu0 0.0
    %7403 = vmatpush1.msra.mxu0 0.0
    %7404 = vmatprep.subr.mxu0 0.0
    %7405 = vmatpush1.msra.mxu0 0.0
    %7406 = vmatprep.subr.mxu0 0.0
    %7407 = vmatpush1.msra.mxu0 0.0
    %7408 = vmatprep.subr.mxu0 0.0
    %7409 = vmatpush1.msra.mxu0 0.0
    %7410 = vmatprep.subr.mxu0 0.0
    %7411 = vmatpush1.msra.mxu0 0.0
    %7412 = vmatprep.subr.mxu0 0.0
    %7413 = vmatpush1.msra.mxu0 0.0
    %7414 = vmatprep.subr.mxu0 0.0
    %7415 = vmatpush1.msra.mxu0 0.0
    %7416 = vmatprep.mubr.f32.mxu0 0.0
    %7417 = vmatmul.mubr.f32.gmra.mrb[0].mxu0 %v7350
    %v7418 = vpop.f32.mrb[0].mxu0
    %v7419 = vadd.f32 0.0, %v7418
    %v7420 = vpop.f32.mrb[0].mxu0
    %v7421 = vadd.f32 0.0, %v7420
    %7422 = vdwg.mxu0
    %v7423 = vadd.f32 %v7345, %v7419
    %v7424 = vadd.f32 %v7346, %v7421
    %v7425 = vxor.u32 %v7423, 2147483648
    %v7426 = vxor.u32 %v7424, 2147483648
    %v7427 = vmul.f32 %v7425, 1.442695
    %v7428 = vpow.pop %v7427
    %v7429 = vmul.f32 %v7426, 1.442695
    %v7430 = vpow.pop %v7429
    %v7431 = vadd.f32 %v7428, 1.0
    %v7432 = vadd.f32 %v7430, 1.0
    %v7433 = vrcp.pop %v7431
    %v7434 = vmul.f32 1.0, %v7433
    %v7435 = vrcp.pop %v7432
    %v7436 = vmul.f32 1.0, %v7435
    %v7437 = vtanh.pop %v7424
    %v7438 = vmul.f32 %v7434, %v7342
    %v7439 = vmul.f32 %v7434, %v7437
    %7441 = vrot.lane.b32.xlu0 %v7439, 64
    %v7442 = vpop.permute.xlu0 %7441
    %v7444 = vadd.f32 %v7438, %v7442
    %v7445 = vtanh.pop %v7444
    %v7446 = vmul.f32 %v7436, %v7445
    %v7447 = vsel %vm565, %v4342, %v2468
    %v7448 = vsel %vm566, %v4344, %v2470
    %7450 = vrot.lane.b32.xlu0 %v7446, 64
    %v7451 = vpop.permute.xlu0 %7450
    %v7452 = vsel %vm1206, %v7451, 0
    %7454 = vmatprep.subr.mxu0 %v4574
    %7455 = vmatpush1.msra.mxu0 %v4573
    %7456 = vmatprep.subr.mxu0 %v4576
    %7457 = vmatpush1.msra.mxu0 %v4575
    %7458 = vmatprep.subr.mxu0 %v4578
    %7459 = vmatpush1.msra.mxu0 %v4577
    %7460 = vmatprep.subr.mxu0 %v4580
    %7461 = vmatpush1.msra.mxu0 %v4579
    %7462 = vmatprep.subr.mxu0 %v4582
    %7463 = vmatpush1.msra.mxu0 %v4581
    %7464 = vmatprep.subr.mxu0 %v4584
    %7465 = vmatpush1.msra.mxu0 %v4583
    %7466 = vmatprep.subr.mxu0 %v4586
    %7467 = vmatpush1.msra.mxu0 %v4585
    %7468 = vmatprep.subr.mxu0 %v4588
    %7469 = vmatpush1.msra.mxu0 %v4587
    %7470 = vmatprep.subr.mxu0 0.0
    %7471 = vmatpush1.msra.mxu0 0.0
    %7472 = vmatprep.subr.mxu0 0.0
    %7473 = vmatpush1.msra.mxu0 0.0
    %7474 = vmatprep.subr.mxu0 0.0
    %7475 = vmatpush1.msra.mxu0 0.0
    %7476 = vmatprep.subr.mxu0 0.0
    %7477 = vmatpush1.msra.mxu0 0.0
    %7478 = vmatprep.subr.mxu0 0.0
    %7479 = vmatpush1.msra.mxu0 0.0
    %7480 = vmatprep.subr.mxu0 0.0
    %7481 = vmatpush1.msra.mxu0 0.0
    %7482 = vmatprep.subr.mxu0 0.0
    %7483 = vmatpush1.msra.mxu0 0.0
    %7484 = vmatprep.subr.mxu0 0.0
    %7485 = vmatpush1.msra.mxu0 0.0
    %7486 = vmatprep.subr.mxu0 0.0
    %7487 = vmatpush1.msra.mxu0 0.0
    %7488 = vmatprep.subr.mxu0 0.0
    %7489 = vmatpush1.msra.mxu0 0.0
    %7490 = vmatprep.subr.mxu0 0.0
    %7491 = vmatpush1.msra.mxu0 0.0
    %7492 = vmatprep.subr.mxu0 0.0
    %7493 = vmatpush1.msra.mxu0 0.0
    %7494 = vmatprep.subr.mxu0 0.0
    %7495 = vmatpush1.msra.mxu0 0.0
    %7496 = vmatprep.subr.mxu0 0.0
    %7497 = vmatpush1.msra.mxu0 0.0
    %7498 = vmatprep.subr.mxu0 0.0
    %7499 = vmatpush1.msra.mxu0 0.0
    %7500 = vmatprep.subr.mxu0 0.0
    %7501 = vmatpush1.msra.mxu0 0.0
    %7502 = vmatprep.subr.mxu0 0.0
    %7503 = vmatpush1.msra.mxu0 0.0
    %7504 = vmatprep.subr.mxu0 0.0
    %7505 = vmatpush1.msra.mxu0 0.0
    %7506 = vmatprep.subr.mxu0 0.0
    %7507 = vmatpush1.msra.mxu0 0.0
    %7508 = vmatprep.subr.mxu0 0.0
    %7509 = vmatpush1.msra.mxu0 0.0
    %7510 = vmatprep.subr.mxu0 0.0
    %7511 = vmatpush1.msra.mxu0 0.0
    %7512 = vmatprep.subr.mxu0 0.0
    %7513 = vmatpush1.msra.mxu0 0.0
    %7514 = vmatprep.subr.mxu0 0.0
    %7515 = vmatpush1.msra.mxu0 0.0
    %7516 = vmatprep.subr.mxu0 0.0
    %7517 = vmatpush1.msra.mxu0 0.0
    %7518 = vmatprep.mubr.f32.mxu0 0.0
    %7519 = vmatmul.mubr.f32.gmra.mrb[0].mxu0 %v7452
    %v7520 = vpop.f32.mrb[0].mxu0
    %v7521 = vadd.f32 0.0, %v7520
    %v7522 = vpop.f32.mrb[0].mxu0
    %v7523 = vadd.f32 0.0, %v7522
    %7524 = vdwg.mxu0
    %v7525 = vadd.f32 %v7447, %v7521
    %v7526 = vadd.f32 %v7448, %v7523
    %v7527 = vxor.u32 %v7525, 2147483648
    %v7528 = vxor.u32 %v7526, 2147483648
    %v7529 = vmul.f32 %v7527, 1.442695
    %v7530 = vpow.pop %v7529
    %v7531 = vmul.f32 %v7528, 1.442695
    %v7532 = vpow.pop %v7531
    %v7533 = vadd.f32 %v7530, 1.0
    %v7534 = vadd.f32 %v7532, 1.0
    %v7535 = vrcp.pop %v7533
    %v7536 = vmul.f32 1.0, %v7535
    %v7537 = vrcp.pop %v7534
    %v7538 = vmul.f32 1.0, %v7537
    %v7539 = vtanh.pop %v7526
    %v7540 = vmul.f32 %v7536, %v7444
    %v7541 = vmul.f32 %v7536, %v7539
    %7543 = vrot.lane.b32.xlu0 %v7541, 64
    %v7544 = vpop.permute.xlu0 %7543
    %v7546 = vadd.f32 %v7540, %v7544
    %v7547 = vtanh.pop %v7546
    %v7548 = vmul.f32 %v7538, %v7547
    %v7549 = vsel %vm565, %v4417, %v2393
    %v7550 = vsel %vm566, %v4419, %v2395
    %7552 = vrot.lane.b32.xlu0 %v7548, 64
    %v7553 = vpop.permute.xlu0 %7552
    %v7554 = vsel %vm1206, %v7553, 0
    %7556 = vmatprep.subr.mxu0 %v4574
    %7557 = vmatpush1.msra.mxu0 %v4573
    %7558 = vmatprep.subr.mxu0 %v4576
    %7559 = vmatpush1.msra.mxu0 %v4575
    %7560 = vmatprep.subr.mxu0 %v4578
    %7561 = vmatpush1.msra.mxu0 %v4577
    %7562 = vmatprep.subr.mxu0 %v4580
    %7563 = vmatpush1.msra.mxu0 %v4579
    %7564 = vmatprep.subr.mxu0 %v4582
    %7565 = vmatpush1.msra.mxu0 %v4581
    %7566 = vmatprep.subr.mxu0 %v4584
    %7567 = vmatpush1.msra.mxu0 %v4583
    %7568 = vmatprep.subr.mxu0 %v4586
    %7569 = vmatpush1.msra.mxu0 %v4585
    %7570 = vmatprep.subr.mxu0 %v4588
    %7571 = vmatpush1.msra.mxu0 %v4587
    %7572 = vmatprep.subr.mxu0 0.0
    %7573 = vmatpush1.msra.mxu0 0.0
    %7574 = vmatprep.subr.mxu0 0.0
    %7575 = vmatpush1.msra.mxu0 0.0
    %7576 = vmatprep.subr.mxu0 0.0
    %7577 = vmatpush1.msra.mxu0 0.0
    %7578 = vmatprep.subr.mxu0 0.0
    %7579 = vmatpush1.msra.mxu0 0.0
    %7580 = vmatprep.subr.mxu0 0.0
    %7581 = vmatpush1.msra.mxu0 0.0
    %7582 = vmatprep.subr.mxu0 0.0
    %7583 = vmatpush1.msra.mxu0 0.0
    %7584 = vmatprep.subr.mxu0 0.0
    %7585 = vmatpush1.msra.mxu0 0.0
    %7586 = vmatprep.subr.mxu0 0.0
    %7587 = vmatpush1.msra.mxu0 0.0
    %7588 = vmatprep.subr.mxu0 0.0
    %7589 = vmatpush1.msra.mxu0 0.0
    %7590 = vmatprep.subr.mxu0 0.0
    %7591 = vmatpush1.msra.mxu0 0.0
    %7592 = vmatprep.subr.mxu0 0.0
    %7593 = vmatpush1.msra.mxu0 0.0
    %7594 = vmatprep.subr.mxu0 0.0
    %7595 = vmatpush1.msra.mxu0 0.0
    %7596 = vmatprep.subr.mxu0 0.0
    %7597 = vmatpush1.msra.mxu0 0.0
    %7598 = vmatprep.subr.mxu0 0.0
    %7599 = vmatpush1.msra.mxu0 0.0
    %7600 = vmatprep.subr.mxu0 0.0
    %7601 = vmatpush1.msra.mxu0 0.0
    %7602 = vmatprep.subr.mxu0 0.0
    %7603 = vmatpush1.msra.mxu0 0.0
    %7604 = vmatprep.subr.mxu0 0.0
    %7605 = vmatpush1.msra.mxu0 0.0
    %7606 = vmatprep.subr.mxu0 0.0
    %7607 = vmatpush1.msra.mxu0 0.0
    %7608 = vmatprep.subr.mxu0 0.0
    %7609 = vmatpush1.msra.mxu0 0.0
    %7610 = vmatprep.subr.mxu0 0.0
    %7611 = vmatpush1.msra.mxu0 0.0
    %7612 = vmatprep.subr.mxu0 0.0
    %7613 = vmatpush1.msra.mxu0 0.0
    %7614 = vmatprep.subr.mxu0 0.0
    %7615 = vmatpush1.msra.mxu0 0.0
    %7616 = vmatprep.subr.mxu0 0.0
    %7617 = vmatpush1.msra.mxu0 0.0
    %7618 = vmatprep.subr.mxu0 0.0
    %7619 = vmatpush1.msra.mxu0 0.0
    %7620 = vmatprep.mubr.f32.mxu0 0.0
    %7621 = vmatmul.mubr.f32.gmra.mrb[0].mxu0 %v7554
    %v7622 = vpop.f32.mrb[0].mxu0
    %v7623 = vadd.f32 0.0, %v7622
    %v7624 = vpop.f32.mrb[0].mxu0
    %v7625 = vadd.f32 0.0, %v7624
    %7626 = vdwg.mxu0
    %v7627 = vadd.f32 %v7549, %v7623
    %v7628 = vadd.f32 %v7550, %v7625
    %v7629 = vxor.u32 %v7627, 2147483648
    %v7630 = vxor.u32 %v7628, 2147483648
    %v7631 = vmul.f32 %v7629, 1.442695
    %v7632 = vpow.pop %v7631
    %v7633 = vmul.f32 %v7630, 1.442695
    %v7634 = vpow.pop %v7633
    %v7635 = vadd.f32 %v7632, 1.0
    %v7636 = vadd.f32 %v7634, 1.0
    %v7637 = vrcp.pop %v7635
    %v7638 = vmul.f32 1.0, %v7637
    %v7639 = vrcp.pop %v7636
    %v7640 = vmul.f32 1.0, %v7639
    %v7641 = vtanh.pop %v7628
    %v7642 = vmul.f32 %v7638, %v7546
    %v7643 = vmul.f32 %v7638, %v7641
    %7645 = vrot.lane.b32.xlu0 %v7643, 64
    %v7646 = vpop.permute.xlu0 %7645
    %v7648 = vadd.f32 %v7642, %v7646
    %v7649 = vtanh.pop %v7648
    %v7650 = vmul.f32 %v7640, %v7649
    %v7651 = vsel %vm565, %v4492, %v2318
    %v7652 = vsel %vm566, %v4494, %v2320
    %7654 = vrot.lane.b32.xlu0 %v7650, 64
    %v7655 = vpop.permute.xlu0 %7654
    %v7656 = vsel %vm1206, %v7655, 0
    %7658 = vmatprep.subr.mxu0 %v4574
    %7659 = vmatpush1.msra.mxu0 %v4573
    %7660 = vmatprep.subr.mxu0 %v4576
    %7661 = vmatpush1.msra.mxu0 %v4575
    %7662 = vmatprep.subr.mxu0 %v4578
    %7663 = vmatpush1.msra.mxu0 %v4577
    %7664 = vmatprep.subr.mxu0 %v4580
    %7665 = vmatpush1.msra.mxu0 %v4579
    %7666 = vmatprep.subr.mxu0 %v4582
    %7667 = vmatpush1.msra.mxu0 %v4581
    %7668 = vmatprep.subr.mxu0 %v4584
    %7669 = vmatpush1.msra.mxu0 %v4583
    %7670 = vmatprep.subr.mxu0 %v4586
    %7671 = vmatpush1.msra.mxu0 %v4585
    %7672 = vmatprep.subr.mxu0 %v4588
    %7673 = vmatpush1.msra.mxu0 %v4587
    %7674 = vmatprep.subr.mxu0 0.0
    %7675 = vmatpush1.msra.mxu0 0.0
    %7676 = vmatprep.subr.mxu0 0.0
    %7677 = vmatpush1.msra.mxu0 0.0
    %7678 = vmatprep.subr.mxu0 0.0
    %7679 = vmatpush1.msra.mxu0 0.0
    %7680 = vmatprep.subr.mxu0 0.0
    %7681 = vmatpush1.msra.mxu0 0.0
    %7682 = vmatprep.subr.mxu0 0.0
    %7683 = vmatpush1.msra.mxu0 0.0
    %7684 = vmatprep.subr.mxu0 0.0
    %7685 = vmatpush1.msra.mxu0 0.0
    %7686 = vmatprep.subr.mxu0 0.0
    %7687 = vmatpush1.msra.mxu0 0.0
    %7688 = vmatprep.subr.mxu0 0.0
    %7689 = vmatpush1.msra.mxu0 0.0
    %7690 = vmatprep.subr.mxu0 0.0
    %7691 = vmatpush1.msra.mxu0 0.0
    %7692 = vmatprep.subr.mxu0 0.0
    %7693 = vmatpush1.msra.mxu0 0.0
    %7694 = vmatprep.subr.mxu0 0.0
    %7695 = vmatpush1.msra.mxu0 0.0
    %7696 = vmatprep.subr.mxu0 0.0
    %7697 = vmatpush1.msra.mxu0 0.0
    %7698 = vmatprep.subr.mxu0 0.0
    %7699 = vmatpush1.msra.mxu0 0.0
    %7700 = vmatprep.subr.mxu0 0.0
    %7701 = vmatpush1.msra.mxu0 0.0
    %7702 = vmatprep.subr.mxu0 0.0
    %7703 = vmatpush1.msra.mxu0 0.0
    %7704 = vmatprep.subr.mxu0 0.0
    %7705 = vmatpush1.msra.mxu0 0.0
    %7706 = vmatprep.subr.mxu0 0.0
    %7707 = vmatpush1.msra.mxu0 0.0
    %7708 = vmatprep.subr.mxu0 0.0
    %7709 = vmatpush1.msra.mxu0 0.0
    %7710 = vmatprep.subr.mxu0 0.0
    %7711 = vmatpush1.msra.mxu0 0.0
    %7712 = vmatprep.subr.mxu0 0.0
    %7713 = vmatpush1.msra.mxu0 0.0
    %7714 = vmatprep.subr.mxu0 0.0
    %7715 = vmatpush1.msra.mxu0 0.0
    %7716 = vmatprep.subr.mxu0 0.0
    %7717 = vmatpush1.msra.mxu0 0.0
    %7718 = vmatprep.subr.mxu0 0.0
    %7719 = vmatpush1.msra.mxu0 0.0
    %7720 = vmatprep.subr.mxu0 0.0
    %7721 = vmatpush1.msra.mxu0 0.0
    %7722 = vmatprep.mubr.f32.mxu0 0.0
    %7723 = vmatmul.mubr.f32.gmra.mrb[0].mxu0 %v7656
    %v7724 = vpop.f32.mrb[0].mxu0
    %v7725 = vadd.f32 0.0, %v7724
    %v7726 = vpop.f32.mrb[0].mxu0
    %v7727 = vadd.f32 0.0, %v7726
    %7728 = vdwg.mxu0
    %v7729 = vadd.f32 %v7651, %v7725
    %v7730 = vadd.f32 %v7652, %v7727
    %v7731 = vxor.u32 %v7729, 2147483648
    %v7732 = vxor.u32 %v7730, 2147483648
    %v7733 = vmul.f32 %v7731, 1.442695
    %v7734 = vpow.pop %v7733
    %v7735 = vmul.f32 %v7732, 1.442695
    %v7736 = vpow.pop %v7735
    %v7737 = vadd.f32 %v7734, 1.0
    %v7738 = vadd.f32 %v7736, 1.0
    %v7739 = vrcp.pop %v7737
    %v7740 = vmul.f32 1.0, %v7739
    %v7741 = vrcp.pop %v7738
    %v7742 = vmul.f32 1.0, %v7741
    %v7743 = vtanh.pop %v7730
    %v7744 = vmul.f32 %v7740, %v7648
    %v7745 = vmul.f32 %v7740, %v7743
    %7747 = vrot.lane.b32.xlu0 %v7745, 64
    %v7748 = vpop.permute.xlu0 %7747
    %v7750 = vadd.f32 %v7744, %v7748
    %v7751 = vtanh.pop %v7750
    %v7752 = vmul.f32 %v7742, %v7751
    %v7753 = vsel %vm565, %v4567, %v2243
    %v7754 = vsel %vm566, %v4569, %v2245
    %7756 = vrot.lane.b32.xlu0 %v7752, 64
    %v7757 = vpop.permute.xlu0 %7756
    %v7758 = vsel %vm1206, %v7757, 0
    %7760 = vmatprep.subr.mxu0 %v4574
    %7761 = vmatpush1.msra.mxu0 %v4573
    %7762 = vmatprep.subr.mxu0 %v4576
    %7763 = vmatpush1.msra.mxu0 %v4575
    %7764 = vmatprep.subr.mxu0 %v4578
    %7765 = vmatpush1.msra.mxu0 %v4577
    %7766 = vmatprep.subr.mxu0 %v4580
    %7767 = vmatpush1.msra.mxu0 %v4579
    %7768 = vmatprep.subr.mxu0 %v4582
    %7769 = vmatpush1.msra.mxu0 %v4581
    %7770 = vmatprep.subr.mxu0 %v4584
    %7771 = vmatpush1.msra.mxu0 %v4583
    %7772 = vmatprep.subr.mxu0 %v4586
    %7773 = vmatpush1.msra.mxu0 %v4585
    %7774 = vmatprep.subr.mxu0 %v4588
    %7775 = vmatpush1.msra.mxu0 %v4587
    %7776 = vmatprep.subr.mxu0 0.0
    %7777 = vmatpush1.msra.mxu0 0.0
    %7778 = vmatprep.subr.mxu0 0.0
    %7779 = vmatpush1.msra.mxu0 0.0
    %7780 = vmatprep.subr.mxu0 0.0
    %7781 = vmatpush1.msra.mxu0 0.0
    %7782 = vmatprep.subr.mxu0 0.0
    %7783 = vmatpush1.msra.mxu0 0.0
    %7784 = vmatprep.subr.mxu0 0.0
    %7785 = vmatpush1.msra.mxu0 0.0
    %7786 = vmatprep.subr.mxu0 0.0
    %7787 = vmatpush1.msra.mxu0 0.0
    %7788 = vmatprep.subr.mxu0 0.0
    %7789 = vmatpush1.msra.mxu0 0.0
    %7790 = vmatprep.subr.mxu0 0.0
    %7791 = vmatpush1.msra.mxu0 0.0
    %7792 = vmatprep.subr.mxu0 0.0
    %7793 = vmatpush1.msra.mxu0 0.0
    %7794 = vmatprep.subr.mxu0 0.0
    %7795 = vmatpush1.msra.mxu0 0.0
    %7796 = vmatprep.subr.mxu0 0.0
    %7797 = vmatpush1.msra.mxu0 0.0
    %7798 = vmatprep.subr.mxu0 0.0
    %7799 = vmatpush1.msra.mxu0 0.0
    %7800 = vmatprep.subr.mxu0 0.0
    %7801 = vmatpush1.msra.mxu0 0.0
    %7802 = vmatprep.subr.mxu0 0.0
    %7803 = vmatpush1.msra.mxu0 0.0
    %7804 = vmatprep.subr.mxu0 0.0
    %7805 = vmatpush1.msra.mxu0 0.0
    %7806 = vmatprep.subr.mxu0 0.0
    %7807 = vmatpush1.msra.mxu0 0.0
    %7808 = vmatprep.subr.mxu0 0.0
    %7809 = vmatpush1.msra.mxu0 0.0
    %7810 = vmatprep.subr.mxu0 0.0
    %7811 = vmatpush1.msra.mxu0 0.0
    %7812 = vmatprep.subr.mxu0 0.0
    %7813 = vmatpush1.msra.mxu0 0.0
    %7814 = vmatprep.subr.mxu0 0.0
    %7815 = vmatpush1.msra.mxu0 0.0
    %7816 = vmatprep.subr.mxu0 0.0
    %7817 = vmatpush1.msra.mxu0 0.0
    %7818 = vmatprep.subr.mxu0 0.0
    %7819 = vmatpush1.msra.mxu0 0.0
    %7820 = vmatprep.subr.mxu0 0.0
    %7821 = vmatpush1.msra.mxu0 0.0
    %7822 = vmatprep.subr.mxu0 0.0
    %7823 = vmatpush1.msra.mxu0 0.0
    %7824 = vmatprep.mubr.f32.mxu0 0.0
    %7825 = vmatmul.mubr.f32.gmra.mrb[0].mxu0 %v7758
    %v7826 = vpop.f32.mrb[0].mxu0
    %v7827 = vadd.f32 0.0, %v7826
    %v7828 = vpop.f32.mrb[0].mxu0
    %v7829 = vadd.f32 0.0, %v7828
    %7830 = vdwg.mxu0
    %v7831 = vadd.f32 %v7753, %v7827
    %v7832 = vadd.f32 %v7754, %v7829
    %v7833 = vxor.u32 %v7831, 2147483648
    %v7834 = vxor.u32 %v7832, 2147483648
    %v7835 = vmul.f32 %v7833, 1.442695
    %v7836 = vpow.pop %v7835
    %v7837 = vmul.f32 %v7834, 1.442695
    %v7838 = vpow.pop %v7837
    %v7839 = vadd.f32 %v7836, 1.0
    %v7840 = vadd.f32 %v7838, 1.0
    %v7841 = vrcp.pop %v7839
    %v7842 = vmul.f32 1.0, %v7841
    %v7843 = vrcp.pop %v7840
    %v7844 = vmul.f32 1.0, %v7843
    %v7845 = vtanh.pop %v7832
    %v7846 = vmul.f32 %v7842, %v7750
    %v7847 = vmul.f32 %v7842, %v7845
    %7849 = vrot.lane.b32.xlu0 %v7847, 64
    %v7850 = vpop.permute.xlu0 %7849
    %v7852 = vadd.f32 %v7846, %v7850
    %v7853 = vtanh.pop %v7852
    %v7854 = vmul.f32 %v7844, %v7853
    %7856 = vrot.lane.b32.xlu0 %v2022, 64
    %v7857 = vpop.permute.xlu0 %7856
    %v7859 = vsel %vm1206, %v7857, %v7854
    %v7860 = vld [vmem:[%s17] sm:$0x3]
    %vm7861 = vcmp.ge.f32.partialorder %v7860, 0.5
    %v7862 = vsel %vm7861, 1, 0
    %v7863 = vcvt.s32.f32 %v7862
    %v7864 = vmul.f32 %v7859, %v7863
    %v7865 = vmul.f32 %v7864, 2.0
    %v7866 = vld [vmem:[%s18] sm:$0xff]
    %v7867 = vld [vmem:[%s18 + $0x8] sm:$0xff]
    %v7868 = vld [vmem:[%s18 + $0x10] sm:$0xff]
    %v7869 = vld [vmem:[%s18 + $0x18] sm:$0xff]
    %v7870 = vld [vmem:[%s18 + $0x20] sm:$0xff]
    %v7871 = vld [vmem:[%s18 + $0x28] sm:$0xff]
    %v7872 = vld [vmem:[%s18 + $0x30] sm:$0xff]
    %v7873 = vld [vmem:[%s18 + $0x38] sm:$0xff]
    %v7874 = vld [vmem:[%s18 + $0x40] sm:$0xff]
    %v7875 = vld [vmem:[%s18 + $0x48] sm:$0xff]
    %v7876 = vld [vmem:[%s18 + $0x50] sm:$0xff]
    %v7877 = vld [vmem:[%s18 + $0x58] sm:$0xff]
    %v7878 = vld [vmem:[%s18 + $0x60] sm:$0xff]
    %v7879 = vld [vmem:[%s18 + $0x68] sm:$0xff]
    %v7880 = vld [vmem:[%s18 + $0x70] sm:$0xff]
    %v7881 = vld [vmem:[%s18 + $0x78] sm:$0xff]
    %v7882 = vld [vmem:[%s19] sm:$0x1]
    %v7884 = vlaneseq
    %v7885 = vshrl.u32 %v7884, 7
    %v7886 = vsub.s32 0, %v7885
    %v7887 = vrot.slane %v7882, %v7886
    %7889 = vmatprep.subr.mxu0 0.0
    %7890 = vmatpush1.msra.mxu0 %v7866
    %7891 = vmatprep.subr.mxu0 0.0
    %7892 = vmatpush1.msra.mxu0 %v7867
    %7893 = vmatprep.subr.mxu0 0.0
    %7894 = vmatpush1.msra.mxu0 %v7868
    %7895 = vmatprep.subr.mxu0 0.0
    %7896 = vmatpush1.msra.mxu0 %v7869
    %7897 = vmatprep.subr.mxu0 0.0
    %7898 = vmatpush1.msra.mxu0 %v7870
    %7899 = vmatprep.subr.mxu0 0.0
    %7900 = vmatpush1.msra.mxu0 %v7871
    %7901 = vmatprep.subr.mxu0 0.0
    %7902 = vmatpush1.msra.mxu0 %v7872
    %7903 = vmatprep.subr.mxu0 0.0
    %7904 = vmatpush1.msra.mxu0 %v7873
    %7905 = vmatprep.subr.mxu0 0.0
    %7906 = vmatpush1.msra.mxu0 %v7874
    %7907 = vmatprep.subr.mxu0 0.0
    %7908 = vmatpush1.msra.mxu0 %v7875
    %7909 = vmatprep.subr.mxu0 0.0
    %7910 = vmatpush1.msra.mxu0 %v7876
    %7911 = vmatprep.subr.mxu0 0.0
    %7912 = vmatpush1.msra.mxu0 %v7877
    %7913 = vmatprep.subr.mxu0 0.0
    %7914 = vmatpush1.msra.mxu0 %v7878
    %7915 = vmatprep.subr.mxu0 0.0
    %7916 = vmatpush1.msra.mxu0 %v7879
    %7917 = vmatprep.subr.mxu0 0.0
    %7918 = vmatpush1.msra.mxu0 %v7880
    %7919 = vmatprep.subr.mxu0 0.0
    %7920 = vmatpush1.msra.mxu0 %v7881
    %7921 = vmatprep.subr.mxu0 0.0
    %7922 = vmatpush1.msra.mxu0 0.0
    %7923 = vmatprep.subr.mxu0 0.0
    %7924 = vmatpush1.msra.mxu0 0.0
    %7925 = vmatprep.subr.mxu0 0.0
    %7926 = vmatpush1.msra.mxu0 0.0
    %7927 = vmatprep.subr.mxu0 0.0
    %7928 = vmatpush1.msra.mxu0 0.0
    %7929 = vmatprep.subr.mxu0 0.0
    %7930 = vmatpush1.msra.mxu0 0.0
    %7931 = vmatprep.subr.mxu0 0.0
    %7932 = vmatpush1.msra.mxu0 0.0
    %7933 = vmatprep.subr.mxu0 0.0
    %7934 = vmatpush1.msra.mxu0 0.0
    %7935 = vmatprep.subr.mxu0 0.0
    %7936 = vmatpush1.msra.mxu0 0.0
    %7937 = vmatprep.subr.mxu0 0.0
    %7938 = vmatpush1.msra.mxu0 0.0
    %7939 = vmatprep.subr.mxu0 0.0
    %7940 = vmatpush1.msra.mxu0 0.0
    %7941 = vmatprep.subr.mxu0 0.0
    %7942 = vmatpush1.msra.mxu0 0.0
    %7943 = vmatprep.subr.mxu0 0.0
    %7944 = vmatpush1.msra.mxu0 0.0
    %7945 = vmatprep.subr.mxu0 0.0
    %7946 = vmatpush1.msra.mxu0 0.0
    %7947 = vmatprep.subr.mxu0 0.0
    %7948 = vmatpush1.msra.mxu0 0.0
    %7949 = vmatprep.subr.mxu0 0.0
    %7950 = vmatpush1.msra.mxu0 0.0
    %7951 = vmatprep.subr.mxu0 0.0
    %7952 = vmatpush1.msra.mxu0 0.0
    %7953 = vmatprep.mubr.f32.mxu0 0.0
    %7954 = vmatmul.mubr.f32.gmra.mrb[0].mxu0 %v7865
    %v7955 = vpop.f32.mrb[0].mxu0
    %v7956 = vadd.f32 %v7887, %v7955
    %v7957 = vpop.f32.mrb[0].mxu0
    %7958 = vdwg.mxu0
    %7959 = vst [vmem:[#allocation2] sm:$0x3] %v7956
    // Predicated region
    $region82: #{a_call__.1} parent=1 // pred_check
      _
    $region83: #{a_call__.1} parent=1 // pred_check_branch
      %7961 = sbr.rel (0) target = $region85
    $region84: #{a_call__.1} parent=1 // pred_region
      %s7963 = ssub.s32 32, 32
      %7964 = vsyncadd [#allocation3], %s7963
      %s7966 = sshll.u32 [#allocation2], 4
      %s7967 = int_to_ptr.vmem [resolvable:$true] %s7966
      %7969 = dma.vmem_to_hbm [thread:$0]  %s7967, 32, %s20, [#allocation3]
    $region85: #{a_call__.1} parent=1 // pred_fallthru
      _
    // Predicated region
    $region86: #{a_call__.1} parent=1 // pred_check
      _
    $region87: #{a_call__.1} parent=1 // pred_check_branch
      %7971 = sbr.rel (0) target = $region89
    $region88: #{a_call__.1} parent=1 // pred_region
      %7972 = dma.done [#allocation3], 32
    $region89: #{a_call__.1} parent=1 // pred_fallthru
      _
    %7973 = vsyncpa [#allocation3], 1

</llo_original>
